<compile_context>
chip_gen: v7x
topology: tpu7x:2x2x1
jax: 0.10.0
libtpu: 0.0.40
codegen_flags: <defaults>
</compile_context>

<pallas_src>
import functools

import jax
import jax.numpy as jnp
import numpy as np
from jax.experimental import pallas as pl
from jax.experimental.pallas import tpu as pltpu


# --------------------------------------------------------------------------
# Fused forward kernel (one grid step == one image)
# --------------------------------------------------------------------------
def qnet_kernel(p1_ref, w1_ref, b1_ref, w2_ref, b2_ref, w3_ref, b3_ref,
                fw1_ref, fb1_ref, fw2_ref, fb2_ref, out_ref,
                h1_s, p2_s, h2_s, p3_s, h3_s, flat_s):
    # ---- conv1 as GEMM: patch rows precomputed in wrapper, /255 folded in w1
    h1_s[...] = jnp.maximum(
        jnp.dot(p1_ref[0], w1_ref[...], preferred_element_type=jnp.float32)
        + b1_ref[...], 0.0)                                     # (400, 32)
    # h1_s row layout: ((y%2)*2 + (x%2))*100 + (y//2)*10 + (x//2), y,x in [0,20)

    # ---- conv2 (4x4, stride 2): one contiguous 89-row slice per kernel tap
    for i in range(4):
        for j in range(4):
            src = (i % 2) * 200 + (j % 2) * 100 + (i // 2) * 10 + (j // 2)
            p2_s[:, pl.ds((i * 4 + j) * 32, 32)] = h1_s[pl.ds(src, 89), :]
    h2_s[...] = jnp.maximum(
        jnp.dot(p2_s[...], w2_ref[...], preferred_element_type=jnp.float32)
        + b2_ref[...], 0.0)                                     # (89, 64) row = y*10+x

    # ---- conv3 (3x3, stride 1): one contiguous 67-row slice per kernel tap
    for i in range(3):
        for j in range(3):
            p3_s[:, pl.ds((i * 3 + j) * 64, 64)] = h2_s[pl.ds(i * 10 + j, 67), :]
    h3_s[...] = jnp.maximum(
        jnp.dot(p3_s[...], w3_ref[...], preferred_element_type=jnp.float32)
        + b3_ref[...], 0.0)                                     # (67, 64) row = y*10+x

    # ---- flatten (channels-last order; NCHW permutation folded into fw1)
    for y in range(7):
        for x in range(7):
            flat_s[:, pl.ds((y * 7 + x) * 64, 64)] = h3_s[pl.ds(y * 10 + x, 1), :]

    # ---- FC1 (bf16 weights, f32 accum) + ReLU, FC2 epilogue (N padded to 128)
    h4 = jnp.maximum(
        jnp.dot(flat_s[...].astype(jnp.bfloat16), fw1_ref[...],
                preferred_element_type=jnp.float32)
        + fb1_ref[...], 0.0)                                    # (1, 512)
    out_ref[0] = (jnp.dot(h4, fw2_ref[...], preferred_element_type=jnp.float32)
                  + fb2_ref[...])                               # (1, 128)


def qnet_pallas(p1, prep):
    """p1: (B, 400, 256) conv1 patch matrix; prep: kernel-layout params."""
    B = p1.shape[0]
    (w1m, b1m, w2m, b2m, w3m, b3m, fw1m, fb1m, fw2m, fb2m) = prep
    zero2 = lambda b: (0, 0)
    out = pl.pallas_call(
        qnet_kernel,
        out_shape=jax.ShapeDtypeStruct((B, 1, 128), jnp.float32),
        grid_spec=pltpu.PrefetchScalarGridSpec(
            num_scalar_prefetch=0,
            grid=(B,),
            in_specs=[
                pl.BlockSpec((1, 400, 256), lambda b: (b, 0, 0)),  # conv1 patches
                pl.BlockSpec((256, 32), zero2),    # w1 (with /255 folded in)
                pl.BlockSpec((1, 32), zero2),      # b1
                pl.BlockSpec((512, 64), zero2),    # w2
                pl.BlockSpec((1, 64), zero2),      # b2
                pl.BlockSpec((576, 64), zero2),    # w3
                pl.BlockSpec((1, 64), zero2),      # b3
                pl.BlockSpec((3136, 512), zero2),  # fw1 (bf16, flatten-permuted)
                pl.BlockSpec((1, 512), zero2),     # fb1
                pl.BlockSpec((512, 128), zero2),   # fw2 (N padded to 128)
                pl.BlockSpec((1, 128), zero2),     # fb2 (padded)
            ],
            out_specs=pl.BlockSpec((1, 1, 128), lambda b: (b, 0, 0)),
            scratch_shapes=[
                pltpu.VMEM((400, 32), jnp.float32),    # h1
                pltpu.VMEM((89, 512), jnp.float32),    # conv2 patches
                pltpu.VMEM((89, 64), jnp.float32),     # h2
                pltpu.VMEM((67, 576), jnp.float32),    # conv3 patches
                pltpu.VMEM((67, 64), jnp.float32),     # h3
                pltpu.VMEM((1, 3136), jnp.float32),    # FC1 input row
            ],
        ),
        compiler_params=pltpu.CompilerParams(
            dimension_semantics=("parallel",),
            vmem_limit_bytes=32 * 1024 * 1024,
        ),
    )(p1, w1m, b1m, w2m, b2m, w3m, b3m, fw1m, fb1m, fw2m, fb2m)
    return out.reshape(B, 128)


# --------------------------------------------------------------------------
# Wrapper glue (plain JAX): conv1 im2col + one-time weight re-layout
# --------------------------------------------------------------------------
def conv1_patches(x):
    """x: (B, 4, 84, 84) NCHW -> (B, 400, 256) patch matrix.

    Feature order  : (kh*8 + kw)*4 + cin   (matches w1.transpose(2,3,1,0))
    Row order      : ((y%2)*2 + (x%2))*100 + (y//2)*10 + (x//2)
                     (parity-blocked, so conv2's stride-2 im2col is contiguous
                      inside the kernel)
    """
    B = x.shape[0]
    cols = [x[:, :, i:i + 80:4, j:j + 80:4] for i in range(8) for j in range(8)]
    p = jnp.stack(cols, axis=1)                       # (B, 64, 4, 20, 20)
    p = p.transpose(0, 3, 4, 1, 2).reshape(B, 20, 20, 256)
    p = p.reshape(B, 10, 2, 10, 2, 256).transpose(0, 2, 4, 1, 3, 5)
    return p.reshape(B, 400, 256)


def prepare_params(params):
    """One-time re-layout of the PyTorch-style parameters into kernel layout."""
    (w1, b1, w2, b2, w3, b3, fw1, fb1, fw2, fb2) = params
    n_actions = fw2.shape[0]
    # Conv weights -> (KH*KW*Cin, Cout); /255 input scaling folded into w1.
    w1m = (w1.transpose(2, 3, 1, 0).reshape(8 * 8 * 4, 32) / 255.0).astype(jnp.float32)
    w2m = w2.transpose(2, 3, 1, 0).reshape(4 * 4 * 32, 64).astype(jnp.float32)
    w3m = w3.transpose(2, 3, 1, 0).reshape(3 * 3 * 64, 64).astype(jnp.float32)
    # FC1: fold the NCHW->(spatial, channel) flatten permutation into columns,
    # store transposed (3136, 512) and in bf16 (halves the dominant HBM stream).
    fw1m = fw1.reshape(512, 64, 49).transpose(2, 1, 0).reshape(3136, 512)
    fw1m = fw1m.astype(jnp.bfloat16)
    # FC2: transpose and pad N to 128 for a lane-dense output store.
    fw2m = jnp.zeros((512, 128), jnp.float32).at[:, :n_actions].set(fw2.T)
    fb2m = jnp.zeros((1, 128), jnp.float32).at[0, :n_actions].set(fb2)
    return (w1m, b1.reshape(1, 32).astype(jnp.float32),
            w2m, b2.reshape(1, 64).astype(jnp.float32),
            w3m, b3.reshape(1, 64).astype(jnp.float32),
            fw1m, fb1.reshape(1, 512).astype(jnp.float32),
            fw2m, fb2m)


@functools.partial(jax.jit, static_argnames=("n_actions",))
def qnetwork_forward(x, prep, n_actions):
    p1 = conv1_patches(x)
    out = qnet_pallas(p1, prep)
    return out[:, :n_actions]


# --------------------------------------------------------------------------
# Pure-JAX reference (ground truth for the check)
# --------------------------------------------------------------------------
def qnetwork_reference(x, params):
    (w1, b1, w2, b2, w3, b3, fw1, fb1, fw2, fb2) = params

    def conv(h, w, b, s):
        y = jax.lax.conv_general_dilated(
            h, w, (s, s), "VALID", dimension_numbers=("NCHW", "OIHW", "NCHW"))
        return y + b[None, :, None, None]

    h = x / 255.0
    h = jax.nn.relu(conv(h, w1, b1, 4))
    h = jax.nn.relu(conv(h, w2, b2, 2))
    h = jax.nn.relu(conv(h, w3, b3, 1))
    h = h.reshape(h.shape[0], -1)
    h = jax.nn.relu(h @ fw1.T + fb1)
    return h @ fw2.T + fb2


# --------------------------------------------------------------------------
# Deterministic parameter init (PyTorch-default-style uniform bounds)
# --------------------------------------------------------------------------
def init_params(key, n_actions):
    def uinit(k, shape, fan_in):
        bound = 1.0 / np.sqrt(fan_in)
        return jax.random.uniform(k, shape, jnp.float32, -bound, bound)

    ks = jax.random.split(key, 10)
    w1 = uinit(ks[0], (32, 4, 8, 8), 4 * 8 * 8)
    b1 = uinit(ks[1], (32,), 4 * 8 * 8)
    w2 = uinit(ks[2], (64, 32, 4, 4), 32 * 4 * 4)
    b2 = uinit(ks[3], (64,), 32 * 4 * 4)
    w3 = uinit(ks[4], (64, 64, 3, 3), 64 * 3 * 3)
    b3 = uinit(ks[5], (64,), 64 * 3 * 3)
    fw1 = uinit(ks[6], (512, 3136), 3136)
    fb1 = uinit(ks[7], (512,), 3136)
    fw2 = uinit(ks[8], (n_actions, 512), 512)
    fb2 = uinit(ks[9], (n_actions,), 512)
    return (w1, b1, w2, b2, w3, b3, fw1, fb1, fw2, fb2)


if __name__ == "__main__":
    # Linear(3136, 512) pins the spatial size: 3136 = 64*7*7 -> 84x84 input.
    B, n_actions = 2, 6
    key = jax.random.PRNGKey(0)
    k_x, k_p = jax.random.split(key)
    x = jax.random.uniform(k_x, (B, 4, 84, 84), jnp.float32, 0.0, 255.0)
    params = init_params(k_p, n_actions)

    prep = prepare_params(params)   # one-time weight re-layout (outside forward)

    q = jax.block_until_ready(qnetwork_forward(x, prep, n_actions))
    q_ref = jax.block_until_ready(qnetwork_reference(x, params))

    assert q.shape == (B, n_actions), q.shape
    np.testing.assert_allclose(np.asarray(q), np.asarray(q_ref), rtol=1e-2, atol=1e-2)
    print("KERNEL_OK")
</pallas_src>

<mosaic_0001>
module attributes {stable_mosaic.version = 11 : i64} {
  func.func @qnet_kernel(%arg0: i32, %arg1: memref<1x400x256xf32, #tpu.memory_space<vmem>>, %arg2: memref<256x32xf32, #tpu.memory_space<vmem>>, %arg3: memref<1x32xf32, #tpu.memory_space<vmem>>, %arg4: memref<512x64xf32, #tpu.memory_space<vmem>>, %arg5: memref<1x64xf32, #tpu.memory_space<vmem>>, %arg6: memref<576x64xf32, #tpu.memory_space<vmem>>, %arg7: memref<1x64xf32, #tpu.memory_space<vmem>>, %arg8: memref<3136x512xbf16, #tpu.memory_space<vmem>>, %arg9: memref<1x512xf32, #tpu.memory_space<vmem>>, %arg10: memref<512x128xf32, #tpu.memory_space<vmem>>, %arg11: memref<1x128xf32, #tpu.memory_space<vmem>>, %arg12: memref<1x1x128xf32, #tpu.memory_space<vmem>>, %arg13: memref<400x32xf32, #tpu.memory_space<vmem>>, %arg14: memref<89x512xf32, #tpu.memory_space<vmem>>, %arg15: memref<89x64xf32, #tpu.memory_space<vmem>>, %arg16: memref<67x576xf32, #tpu.memory_space<vmem>>, %arg17: memref<67x64xf32, #tpu.memory_space<vmem>>, %arg18: memref<1x3136xf32, #tpu.memory_space<vmem>>) attributes {dimension_semantics = [#tpu.dimension_semantics<parallel>], iteration_bounds = array<i64: 2>, scalar_prefetch = 0 : i64, scratch_operands = 6 : i64, tpu.core_type = #tpu.core_type<tc>, window_params = [{transform_indices = @transform_0, window_bounds = array<i64: 1, 400, 256>}, {pipeline_mode = #tpu.pipeline_mode<synchronous>, transform_indices = @transform_1, window_bounds = array<i64: 256, 32>}, {pipeline_mode = #tpu.pipeline_mode<synchronous>, transform_indices = @transform_2, window_bounds = array<i64: 1, 32>}, {pipeline_mode = #tpu.pipeline_mode<synchronous>, transform_indices = @transform_3, window_bounds = array<i64: 512, 64>}, {pipeline_mode = #tpu.pipeline_mode<synchronous>, transform_indices = @transform_4, window_bounds = array<i64: 1, 64>}, {pipeline_mode = #tpu.pipeline_mode<synchronous>, transform_indices = @transform_5, window_bounds = array<i64: 576, 64>}, {pipeline_mode = #tpu.pipeline_mode<synchronous>, transform_indices = @transform_6, window_bounds = array<i64: 1, 64>}, {pipeline_mode = #tpu.pipeline_mode<synchronous>, transform_indices = @transform_7, window_bounds = array<i64: 3136, 512>}, {pipeline_mode = #tpu.pipeline_mode<synchronous>, transform_indices = @transform_8, window_bounds = array<i64: 1, 512>}, {pipeline_mode = #tpu.pipeline_mode<synchronous>, transform_indices = @transform_9, window_bounds = array<i64: 512, 128>}, {pipeline_mode = #tpu.pipeline_mode<synchronous>, transform_indices = @transform_10, window_bounds = array<i64: 1, 128>}, {transform_indices = @transform_11, window_bounds = array<i64: 1, 1, 128>}]} {
    %c0 = arith.constant 0 : index
    %c0_0 = arith.constant 0 : index
    %c0_1 = arith.constant 0 : index
    %0 = vector.load %arg1[%c0, %c0_0, %c0_1] : memref<1x400x256xf32, #tpu.memory_space<vmem>>, vector<1x400x256xf32>
    %1 = vector.shape_cast %0 : vector<1x400x256xf32> to vector<400x256xf32>
    %c0_2 = arith.constant 0 : index
    %c0_3 = arith.constant 0 : index
    %2 = vector.load %arg2[%c0_2, %c0_3] : memref<256x32xf32, #tpu.memory_space<vmem>>, vector<256x32xf32>
    %cst = arith.constant dense<0.000000e+00> : vector<400x32xf32>
    %3 = tpu.matmul %1, %2, %cst {dimension_numbers = #tpu.dot_dimension_numbers<[1], [0], [0], [1], [0, 0, 1, 1], [], []>} : vector<400x256xf32>, vector<256x32xf32>, vector<400x32xf32> -> vector<400x32xf32>
    %c0_4 = arith.constant 0 : index
    %c0_5 = arith.constant 0 : index
    %4 = vector.load %arg3[%c0_4, %c0_5] : memref<1x32xf32, #tpu.memory_space<vmem>>, vector<1x32xf32>
    %5 = vector.broadcast %4 : vector<1x32xf32> to vector<400x32xf32>
    %6 = arith.addf %3, %5 : vector<400x32xf32>
    %cst_6 = arith.constant 0.000000e+00 : f32
    %7 = vector.broadcast %cst_6 : f32 to vector<400x32xf32>
    %8 = arith.maximumf %6, %7 : vector<400x32xf32>
    %c0_7 = arith.constant 0 : index
    %c0_8 = arith.constant 0 : index
    %9 = vector.load %arg13[%c0_7, %c0_8] : memref<400x32xf32, #tpu.memory_space<vmem>>, vector<400x32xf32>
    tpu.vector_store %arg13[%c0_7, %c0_8], %8 {strides = array<i32>} : memref<400x32xf32, #tpu.memory_space<vmem>>, vector<400x32xf32>,
    %c0_9 = arith.constant 0 : index
    %c0_10 = arith.constant 0 : index
    %10 = vector.load %arg13[%c0_9, %c0_10] : memref<400x32xf32, #tpu.memory_space<vmem>>, vector<89x32xf32>
    %c0_11 = arith.constant 0 : index
    %c0_12 = arith.constant 0 : index
    %11 = vector.load %arg14[%c0_11, %c0_12] : memref<89x512xf32, #tpu.memory_space<vmem>>, vector<89x32xf32>
    tpu.vector_store %arg14[%c0_11, %c0_12], %10 {strides = array<i32>} : memref<89x512xf32, #tpu.memory_space<vmem>>, vector<89x32xf32>,
    %c100 = arith.constant 100 : index
    %c0_13 = arith.constant 0 : index
    %12 = vector.load %arg13[%c100, %c0_13] : memref<400x32xf32, #tpu.memory_space<vmem>>, vector<89x32xf32>
    %c0_14 = arith.constant 0 : index
    %c32 = arith.constant 32 : index
    %13 = vector.load %arg14[%c0_14, %c32] : memref<89x512xf32, #tpu.memory_space<vmem>>, vector<89x32xf32>
    tpu.vector_store %arg14[%c0_14, %c32], %12 {strides = array<i32>} : memref<89x512xf32, #tpu.memory_space<vmem>>, vector<89x32xf32>,
    %c1 = arith.constant 1 : index
    %c0_15 = arith.constant 0 : index
    %14 = vector.load %arg13[%c1, %c0_15] : memref<400x32xf32, #tpu.memory_space<vmem>>, vector<89x32xf32>
    %c0_16 = arith.constant 0 : index
    %c64 = arith.constant 64 : index
    %15 = vector.load %arg14[%c0_16, %c64] : memref<89x512xf32, #tpu.memory_space<vmem>>, vector<89x32xf32>
    tpu.vector_store %arg14[%c0_16, %c64], %14 {strides = array<i32>} : memref<89x512xf32, #tpu.memory_space<vmem>>, vector<89x32xf32>,
    %c101 = arith.constant 101 : index
    %c0_17 = arith.constant 0 : index
    %16 = vector.load %arg13[%c101, %c0_17] : memref<400x32xf32, #tpu.memory_space<vmem>>, vector<89x32xf32>
    %c0_18 = arith.constant 0 : index
    %c96 = arith.constant 96 : index
    %17 = vector.load %arg14[%c0_18, %c96] : memref<89x512xf32, #tpu.memory_space<vmem>>, vector<89x32xf32>
    tpu.vector_store %arg14[%c0_18, %c96], %16 {strides = array<i32>} : memref<89x512xf32, #tpu.memory_space<vmem>>, vector<89x32xf32>,
    %c200 = arith.constant 200 : index
    %c0_19 = arith.constant 0 : index
    %18 = vector.load %arg13[%c200, %c0_19] : memref<400x32xf32, #tpu.memory_space<vmem>>, vector<89x32xf32>
    %c0_20 = arith.constant 0 : index
    %c128 = arith.constant 128 : index
    %19 = vector.load %arg14[%c0_20, %c128] : memref<89x512xf32, #tpu.memory_space<vmem>>, vector<89x32xf32>
    tpu.vector_store %arg14[%c0_20, %c128], %18 {strides = array<i32>} : memref<89x512xf32, #tpu.memory_space<vmem>>, vector<89x32xf32>,
    %c300 = arith.constant 300 : index
    %c0_21 = arith.constant 0 : index
    %20 = vector.load %arg13[%c300, %c0_21] : memref<400x32xf32, #tpu.memory_space<vmem>>, vector<89x32xf32>
    %c0_22 = arith.constant 0 : index
    %c160 = arith.constant 160 : index
    %21 = vector.load %arg14[%c0_22, %c160] : memref<89x512xf32, #tpu.memory_space<vmem>>, vector<89x32xf32>
    tpu.vector_store %arg14[%c0_22, %c160], %20 {strides = array<i32>} : memref<89x512xf32, #tpu.memory_space<vmem>>, vector<89x32xf32>,
    %c201 = arith.constant 201 : index
    %c0_23 = arith.constant 0 : index
    %22 = vector.load %arg13[%c201, %c0_23] : memref<400x32xf32, #tpu.memory_space<vmem>>, vector<89x32xf32>
    %c0_24 = arith.constant 0 : index
    %c192 = arith.constant 192 : index
    %23 = vector.load %arg14[%c0_24, %c192] : memref<89x512xf32, #tpu.memory_space<vmem>>, vector<89x32xf32>
    tpu.vector_store %arg14[%c0_24, %c192], %22 {strides = array<i32>} : memref<89x512xf32, #tpu.memory_space<vmem>>, vector<89x32xf32>,
    %c301 = arith.constant 301 : index
    %c0_25 = arith.constant 0 : index
    %24 = vector.load %arg13[%c301, %c0_25] : memref<400x32xf32, #tpu.memory_space<vmem>>, vector<89x32xf32>
    %c0_26 = arith.constant 0 : index
    %c224 = arith.constant 224 : index
    %25 = vector.load %arg14[%c0_26, %c224] : memref<89x512xf32, #tpu.memory_space<vmem>>, vector<89x32xf32>
    tpu.vector_store %arg14[%c0_26, %c224], %24 {strides = array<i32>} : memref<89x512xf32, #tpu.memory_space<vmem>>, vector<89x32xf32>,
    %c10 = arith.constant 10 : index
    %c0_27 = arith.constant 0 : index
    %26 = vector.load %arg13[%c10, %c0_27] : memref<400x32xf32, #tpu.memory_space<vmem>>, vector<89x32xf32>
    %c0_28 = arith.constant 0 : index
    %c256 = arith.constant 256 : index
    %27 = vector.load %arg14[%c0_28, %c256] : memref<89x512xf32, #tpu.memory_space<vmem>>, vector<89x32xf32>
    tpu.vector_store %arg14[%c0_28, %c256], %26 {strides = array<i32>} : memref<89x512xf32, #tpu.memory_space<vmem>>, vector<89x32xf32>,
    %c110 = arith.constant 110 : index
    %c0_29 = arith.constant 0 : index
    %28 = vector.load %arg13[%c110, %c0_29] : memref<400x32xf32, #tpu.memory_space<vmem>>, vector<89x32xf32>
    %c0_30 = arith.constant 0 : index
    %c288 = arith.constant 288 : index
    %29 = vector.load %arg14[%c0_30, %c288] : memref<89x512xf32, #tpu.memory_space<vmem>>, vector<89x32xf32>
    tpu.vector_store %arg14[%c0_30, %c288], %28 {strides = array<i32>} : memref<89x512xf32, #tpu.memory_space<vmem>>, vector<89x32xf32>,
    %c11 = arith.constant 11 : index
    %c0_31 = arith.constant 0 : index
    %30 = vector.load %arg13[%c11, %c0_31] : memref<400x32xf32, #tpu.memory_space<vmem>>, vector<89x32xf32>
    %c0_32 = arith.constant 0 : index
    %c320 = arith.constant 320 : index
    %31 = vector.load %arg14[%c0_32, %c320] : memref<89x512xf32, #tpu.memory_space<vmem>>, vector<89x32xf32>
    tpu.vector_store %arg14[%c0_32, %c320], %30 {strides = array<i32>} : memref<89x512xf32, #tpu.memory_space<vmem>>, vector<89x32xf32>,
    %c111 = arith.constant 111 : index
    %c0_33 = arith.constant 0 : index
    %32 = vector.load %arg13[%c111, %c0_33] : memref<400x32xf32, #tpu.memory_space<vmem>>, vector<89x32xf32>
    %c0_34 = arith.constant 0 : index
    %c352 = arith.constant 352 : index
    %33 = vector.load %arg14[%c0_34, %c352] : memref<89x512xf32, #tpu.memory_space<vmem>>, vector<89x32xf32>
    tpu.vector_store %arg14[%c0_34, %c352], %32 {strides = array<i32>} : memref<89x512xf32, #tpu.memory_space<vmem>>, vector<89x32xf32>,
    %c210 = arith.constant 210 : index
    %c0_35 = arith.constant 0 : index
    %34 = vector.load %arg13[%c210, %c0_35] : memref<400x32xf32, #tpu.memory_space<vmem>>, vector<89x32xf32>
    %c0_36 = arith.constant 0 : index
    %c384 = arith.constant 384 : index
    %35 = vector.load %arg14[%c0_36, %c384] : memref<89x512xf32, #tpu.memory_space<vmem>>, vector<89x32xf32>
    tpu.vector_store %arg14[%c0_36, %c384], %34 {strides = array<i32>} : memref<89x512xf32, #tpu.memory_space<vmem>>, vector<89x32xf32>,
    %c310 = arith.constant 310 : index
    %c0_37 = arith.constant 0 : index
    %36 = vector.load %arg13[%c310, %c0_37] : memref<400x32xf32, #tpu.memory_space<vmem>>, vector<89x32xf32>
    %c0_38 = arith.constant 0 : index
    %c416 = arith.constant 416 : index
    %37 = vector.load %arg14[%c0_38, %c416] : memref<89x512xf32, #tpu.memory_space<vmem>>, vector<89x32xf32>
    tpu.vector_store %arg14[%c0_38, %c416], %36 {strides = array<i32>} : memref<89x512xf32, #tpu.memory_space<vmem>>, vector<89x32xf32>,
    %c211 = arith.constant 211 : index
    %c0_39 = arith.constant 0 : index
    %38 = vector.load %arg13[%c211, %c0_39] : memref<400x32xf32, #tpu.memory_space<vmem>>, vector<89x32xf32>
    %c0_40 = arith.constant 0 : index
    %c448 = arith.constant 448 : index
    %39 = vector.load %arg14[%c0_40, %c448] : memref<89x512xf32, #tpu.memory_space<vmem>>, vector<89x32xf32>
    tpu.vector_store %arg14[%c0_40, %c448], %38 {strides = array<i32>} : memref<89x512xf32, #tpu.memory_space<vmem>>, vector<89x32xf32>,
    %c311 = arith.constant 311 : index
    %c0_41 = arith.constant 0 : index
    %40 = vector.load %arg13[%c311, %c0_41] : memref<400x32xf32, #tpu.memory_space<vmem>>, vector<89x32xf32>
    %c0_42 = arith.constant 0 : index
    %c480 = arith.constant 480 : index
    %41 = vector.load %arg14[%c0_42, %c480] : memref<89x512xf32, #tpu.memory_space<vmem>>, vector<89x32xf32>
    tpu.vector_store %arg14[%c0_42, %c480], %40 {strides = array<i32>} : memref<89x512xf32, #tpu.memory_space<vmem>>, vector<89x32xf32>,
    %c0_43 = arith.constant 0 : index
    %c0_44 = arith.constant 0 : index
    %42 = vector.load %arg14[%c0_43, %c0_44] : memref<89x512xf32, #tpu.memory_space<vmem>>, vector<89x512xf32>
    %c0_45 = arith.constant 0 : index
    %c0_46 = arith.constant 0 : index
    %43 = vector.load %arg4[%c0_45, %c0_46] : memref<512x64xf32, #tpu.memory_space<vmem>>, vector<512x64xf32>
    %cst_47 = arith.constant dense<0.000000e+00> : vector<89x64xf32>
    %44 = tpu.matmul %42, %43, %cst_47 {dimension_numbers = #tpu.dot_dimension_numbers<[1], [0], [0], [1], [0, 0, 1, 1], [], []>} : vector<89x512xf32>, vector<512x64xf32>, vector<89x64xf32> -> vector<89x64xf32>
    %c0_48 = arith.constant 0 : index
    %c0_49 = arith.constant 0 : index
    %45 = vector.load %arg5[%c0_48, %c0_49] : memref<1x64xf32, #tpu.memory_space<vmem>>, vector<1x64xf32>
    %46 = vector.broadcast %45 : vector<1x64xf32> to vector<89x64xf32>
    %47 = arith.addf %44, %46 : vector<89x64xf32>
    %cst_50 = arith.constant 0.000000e+00 : f32
    %48 = vector.broadcast %cst_50 : f32 to vector<89x64xf32>
    %49 = arith.maximumf %47, %48 : vector<89x64xf32>
    %c0_51 = arith.constant 0 : index
    %c0_52 = arith.constant 0 : index
    %50 = vector.load %arg15[%c0_51, %c0_52] : memref<89x64xf32, #tpu.memory_space<vmem>>, vector<89x64xf32>
    tpu.vector_store %arg15[%c0_51, %c0_52], %49 {strides = array<i32>} : memref<89x64xf32, #tpu.memory_space<vmem>>, vector<89x64xf32>,
    %c0_53 = arith.constant 0 : index
    %c0_54 = arith.constant 0 : index
    %51 = vector.load %arg15[%c0_53, %c0_54] : memref<89x64xf32, #tpu.memory_space<vmem>>, vector<67x64xf32>
    %c0_55 = arith.constant 0 : index
    %c0_56 = arith.constant 0 : index
    %52 = vector.load %arg16[%c0_55, %c0_56] : memref<67x576xf32, #tpu.memory_space<vmem>>, vector<67x64xf32>
    tpu.vector_store %arg16[%c0_55, %c0_56], %51 {strides = array<i32>} : memref<67x576xf32, #tpu.memory_space<vmem>>, vector<67x64xf32>,
    %c1_57 = arith.constant 1 : index
    %c0_58 = arith.constant 0 : index
    %53 = vector.load %arg15[%c1_57, %c0_58] : memref<89x64xf32, #tpu.memory_space<vmem>>, vector<67x64xf32>
    %c0_59 = arith.constant 0 : index
    %c64_60 = arith.constant 64 : index
    %54 = vector.load %arg16[%c0_59, %c64_60] : memref<67x576xf32, #tpu.memory_space<vmem>>, vector<67x64xf32>
    tpu.vector_store %arg16[%c0_59, %c64_60], %53 {strides = array<i32>} : memref<67x576xf32, #tpu.memory_space<vmem>>, vector<67x64xf32>,
    %c2 = arith.constant 2 : index
    %c0_61 = arith.constant 0 : index
    %55 = vector.load %arg15[%c2, %c0_61] : memref<89x64xf32, #tpu.memory_space<vmem>>, vector<67x64xf32>
    %c0_62 = arith.constant 0 : index
    %c128_63 = arith.constant 128 : index
    %56 = vector.load %arg16[%c0_62, %c128_63] : memref<67x576xf32, #tpu.memory_space<vmem>>, vector<67x64xf32>
    tpu.vector_store %arg16[%c0_62, %c128_63], %55 {strides = array<i32>} : memref<67x576xf32, #tpu.memory_space<vmem>>, vector<67x64xf32>,
    %c10_64 = arith.constant 10 : index
    %c0_65 = arith.constant 0 : index
    %57 = vector.load %arg15[%c10_64, %c0_65] : memref<89x64xf32, #tpu.memory_space<vmem>>, vector<67x64xf32>
    %c0_66 = arith.constant 0 : index
    %c192_67 = arith.constant 192 : index
    %58 = vector.load %arg16[%c0_66, %c192_67] : memref<67x576xf32, #tpu.memory_space<vmem>>, vector<67x64xf32>
    tpu.vector_store %arg16[%c0_66, %c192_67], %57 {strides = array<i32>} : memref<67x576xf32, #tpu.memory_space<vmem>>, vector<67x64xf32>,
    %c11_68 = arith.constant 11 : index
    %c0_69 = arith.constant 0 : index
    %59 = vector.load %arg15[%c11_68, %c0_69] : memref<89x64xf32, #tpu.memory_space<vmem>>, vector<67x64xf32>
    %c0_70 = arith.constant 0 : index
    %c256_71 = arith.constant 256 : index
    %60 = vector.load %arg16[%c0_70, %c256_71] : memref<67x576xf32, #tpu.memory_space<vmem>>, vector<67x64xf32>
    tpu.vector_store %arg16[%c0_70, %c256_71], %59 {strides = array<i32>} : memref<67x576xf32, #tpu.memory_space<vmem>>, vector<67x64xf32>,
    %c12 = arith.constant 12 : index
    %c0_72 = arith.constant 0 : index
    %61 = vector.load %arg15[%c12, %c0_72] : memref<89x64xf32, #tpu.memory_space<vmem>>, vector<67x64xf32>
    %c0_73 = arith.constant 0 : index
    %c320_74 = arith.constant 320 : index
    %62 = vector.load %arg16[%c0_73, %c320_74] : memref<67x576xf32, #tpu.memory_space<vmem>>, vector<67x64xf32>
    tpu.vector_store %arg16[%c0_73, %c320_74], %61 {strides = array<i32>} : memref<67x576xf32, #tpu.memory_space<vmem>>, vector<67x64xf32>,
    %c20 = arith.constant 20 : index
    %c0_75 = arith.constant 0 : index
    %63 = vector.load %arg15[%c20, %c0_75] : memref<89x64xf32, #tpu.memory_space<vmem>>, vector<67x64xf32>
    %c0_76 = arith.constant 0 : index
    %c384_77 = arith.constant 384 : index
    %64 = vector.load %arg16[%c0_76, %c384_77] : memref<67x576xf32, #tpu.memory_space<vmem>>, vector<67x64xf32>
    tpu.vector_store %arg16[%c0_76, %c384_77], %63 {strides = array<i32>} : memref<67x576xf32, #tpu.memory_space<vmem>>, vector<67x64xf32>,
    %c21 = arith.constant 21 : index
    %c0_78 = arith.constant 0 : index
    %65 = vector.load %arg15[%c21, %c0_78] : memref<89x64xf32, #tpu.memory_space<vmem>>, vector<67x64xf32>
    %c0_79 = arith.constant 0 : index
    %c448_80 = arith.constant 448 : index
    %66 = vector.load %arg16[%c0_79, %c448_80] : memref<67x576xf32, #tpu.memory_space<vmem>>, vector<67x64xf32>
    tpu.vector_store %arg16[%c0_79, %c448_80], %65 {strides = array<i32>} : memref<67x576xf32, #tpu.memory_space<vmem>>, vector<67x64xf32>,
    %c22 = arith.constant 22 : index
    %c0_81 = arith.constant 0 : index
    %67 = vector.load %arg15[%c22, %c0_81] : memref<89x64xf32, #tpu.memory_space<vmem>>, vector<67x64xf32>
    %c0_82 = arith.constant 0 : index
    %c512 = arith.constant 512 : index
    %68 = vector.load %arg16[%c0_82, %c512] : memref<67x576xf32, #tpu.memory_space<vmem>>, vector<67x64xf32>
    tpu.vector_store %arg16[%c0_82, %c512], %67 {strides = array<i32>} : memref<67x576xf32, #tpu.memory_space<vmem>>, vector<67x64xf32>,
    %c0_83 = arith.constant 0 : index
    %c0_84 = arith.constant 0 : index
    %69 = vector.load %arg16[%c0_83, %c0_84] : memref<67x576xf32, #tpu.memory_space<vmem>>, vector<67x576xf32>
    %c0_85 = arith.constant 0 : index
    %c0_86 = arith.constant 0 : index
    %70 = vector.load %arg6[%c0_85, %c0_86] : memref<576x64xf32, #tpu.memory_space<vmem>>, vector<576x64xf32>
    %cst_87 = arith.constant dense<0.000000e+00> : vector<67x64xf32>
    %71 = tpu.matmul %69, %70, %cst_87 {dimension_numbers = #tpu.dot_dimension_numbers<[1], [0], [0], [1], [0, 0, 1, 1], [], []>} : vector<67x576xf32>, vector<576x64xf32>, vector<67x64xf32> -> vector<67x64xf32>
    %c0_88 = arith.constant 0 : index
    %c0_89 = arith.constant 0 : index
    %72 = vector.load %arg7[%c0_88, %c0_89] : memref<1x64xf32, #tpu.memory_space<vmem>>, vector<1x64xf32>
    %73 = vector.broadcast %72 : vector<1x64xf32> to vector<67x64xf32>
    %74 = arith.addf %71, %73 : vector<67x64xf32>
    %cst_90 = arith.constant 0.000000e+00 : f32
    %75 = vector.broadcast %cst_90 : f32 to vector<67x64xf32>
    %76 = arith.maximumf %74, %75 : vector<67x64xf32>
    %c0_91 = arith.constant 0 : index
    %c0_92 = arith.constant 0 : index
    %77 = vector.load %arg17[%c0_91, %c0_92] : memref<67x64xf32, #tpu.memory_space<vmem>>, vector<67x64xf32>
    tpu.vector_store %arg17[%c0_91, %c0_92], %76 {strides = array<i32>} : memref<67x64xf32, #tpu.memory_space<vmem>>, vector<67x64xf32>,
    %c0_93 = arith.constant 0 : index
    %c0_94 = arith.constant 0 : index
    %78 = vector.load %arg17[%c0_93, %c0_94] : memref<67x64xf32, #tpu.memory_space<vmem>>, vector<1x64xf32>
    %c0_95 = arith.constant 0 : index
    %c0_96 = arith.constant 0 : index
    %79 = vector.load %arg18[%c0_95, %c0_96] : memref<1x3136xf32, #tpu.memory_space<vmem>>, vector<1x64xf32>
    tpu.vector_store %arg18[%c0_95, %c0_96], %78 {strides = array<i32>} : memref<1x3136xf32, #tpu.memory_space<vmem>>, vector<1x64xf32>,
    %c1_97 = arith.constant 1 : index
    %c0_98 = arith.constant 0 : index
    %80 = vector.load %arg17[%c1_97, %c0_98] : memref<67x64xf32, #tpu.memory_space<vmem>>, vector<1x64xf32>
    %c0_99 = arith.constant 0 : index
    %c64_100 = arith.constant 64 : index
    %81 = vector.load %arg18[%c0_99, %c64_100] : memref<1x3136xf32, #tpu.memory_space<vmem>>, vector<1x64xf32>
    tpu.vector_store %arg18[%c0_99, %c64_100], %80 {strides = array<i32>} : memref<1x3136xf32, #tpu.memory_space<vmem>>, vector<1x64xf32>,
    %c2_101 = arith.constant 2 : index
    %c0_102 = arith.constant 0 : index
    %82 = vector.load %arg17[%c2_101, %c0_102] : memref<67x64xf32, #tpu.memory_space<vmem>>, vector<1x64xf32>
    %c0_103 = arith.constant 0 : index
    %c128_104 = arith.constant 128 : index
    %83 = vector.load %arg18[%c0_103, %c128_104] : memref<1x3136xf32, #tpu.memory_space<vmem>>, vector<1x64xf32>
    tpu.vector_store %arg18[%c0_103, %c128_104], %82 {strides = array<i32>} : memref<1x3136xf32, #tpu.memory_space<vmem>>, vector<1x64xf32>,
    %c3 = arith.constant 3 : index
    %c0_105 = arith.constant 0 : index
    %84 = vector.load %arg17[%c3, %c0_105] : memref<67x64xf32, #tpu.memory_space<vmem>>, vector<1x64xf32>
    %c0_106 = arith.constant 0 : index
    %c192_107 = arith.constant 192 : index
    %85 = vector.load %arg18[%c0_106, %c192_107] : memref<1x3136xf32, #tpu.memory_space<vmem>>, vector<1x64xf32>
    tpu.vector_store %arg18[%c0_106, %c192_107], %84 {strides = array<i32>} : memref<1x3136xf32, #tpu.memory_space<vmem>>, vector<1x64xf32>,
    %c4 = arith.constant 4 : index
    %c0_108 = arith.constant 0 : index
    %86 = vector.load %arg17[%c4, %c0_108] : memref<67x64xf32, #tpu.memory_space<vmem>>, vector<1x64xf32>
    %c0_109 = arith.constant 0 : index
    %c256_110 = arith.constant 256 : index
    %87 = vector.load %arg18[%c0_109, %c256_110] : memref<1x3136xf32, #tpu.memory_space<vmem>>, vector<1x64xf32>
    tpu.vector_store %arg18[%c0_109, %c256_110], %86 {strides = array<i32>} : memref<1x3136xf32, #tpu.memory_space<vmem>>, vector<1x64xf32>,
    %c5 = arith.constant 5 : index
    %c0_111 = arith.constant 0 : index
    %88 = vector.load %arg17[%c5, %c0_111] : memref<67x64xf32, #tpu.memory_space<vmem>>, vector<1x64xf32>
    %c0_112 = arith.constant 0 : index
    %c320_113 = arith.constant 320 : index
    %89 = vector.load %arg18[%c0_112, %c320_113] : memref<1x3136xf32, #tpu.memory_space<vmem>>, vector<1x64xf32>
    tpu.vector_store %arg18[%c0_112, %c320_113], %88 {strides = array<i32>} : memref<1x3136xf32, #tpu.memory_space<vmem>>, vector<1x64xf32>,
    %c6 = arith.constant 6 : index
    %c0_114 = arith.constant 0 : index
    %90 = vector.load %arg17[%c6, %c0_114] : memref<67x64xf32, #tpu.memory_space<vmem>>, vector<1x64xf32>
    %c0_115 = arith.constant 0 : index
    %c384_116 = arith.constant 384 : index
    %91 = vector.load %arg18[%c0_115, %c384_116] : memref<1x3136xf32, #tpu.memory_space<vmem>>, vector<1x64xf32>
    tpu.vector_store %arg18[%c0_115, %c384_116], %90 {strides = array<i32>} : memref<1x3136xf32, #tpu.memory_space<vmem>>, vector<1x64xf32>,
    %c10_117 = arith.constant 10 : index
    %c0_118 = arith.constant 0 : index
    %92 = vector.load %arg17[%c10_117, %c0_118] : memref<67x64xf32, #tpu.memory_space<vmem>>, vector<1x64xf32>
    %c0_119 = arith.constant 0 : index
    %c448_120 = arith.constant 448 : index
    %93 = vector.load %arg18[%c0_119, %c448_120] : memref<1x3136xf32, #tpu.memory_space<vmem>>, vector<1x64xf32>
    tpu.vector_store %arg18[%c0_119, %c448_120], %92 {strides = array<i32>} : memref<1x3136xf32, #tpu.memory_space<vmem>>, vector<1x64xf32>,
    %c11_121 = arith.constant 11 : index
    %c0_122 = arith.constant 0 : index
    %94 = vector.load %arg17[%c11_121, %c0_122] : memref<67x64xf32, #tpu.memory_space<vmem>>, vector<1x64xf32>
    %c0_123 = arith.constant 0 : index
    %c512_124 = arith.constant 512 : index
    %95 = vector.load %arg18[%c0_123, %c512_124] : memref<1x3136xf32, #tpu.memory_space<vmem>>, vector<1x64xf32>
    tpu.vector_store %arg18[%c0_123, %c512_124], %94 {strides = array<i32>} : memref<1x3136xf32, #tpu.memory_space<vmem>>, vector<1x64xf32>,
    %c12_125 = arith.constant 12 : index
    %c0_126 = arith.constant 0 : index
    %96 = vector.load %arg17[%c12_125, %c0_126] : memref<67x64xf32, #tpu.memory_space<vmem>>, vector<1x64xf32>
    %c0_127 = arith.constant 0 : index
    %c576 = arith.constant 576 : index
    %97 = vector.load %arg18[%c0_127, %c576] : memref<1x3136xf32, #tpu.memory_space<vmem>>, vector<1x64xf32>
    tpu.vector_store %arg18[%c0_127, %c576], %96 {strides = array<i32>} : memref<1x3136xf32, #tpu.memory_space<vmem>>, vector<1x64xf32>,
    %c13 = arith.constant 13 : index
    %c0_128 = arith.constant 0 : index
    %98 = vector.load %arg17[%c13, %c0_128] : memref<67x64xf32, #tpu.memory_space<vmem>>, vector<1x64xf32>
    %c0_129 = arith.constant 0 : index
    %c640 = arith.constant 640 : index
    %99 = vector.load %arg18[%c0_129, %c640] : memref<1x3136xf32, #tpu.memory_space<vmem>>, vector<1x64xf32>
    tpu.vector_store %arg18[%c0_129, %c640], %98 {strides = array<i32>} : memref<1x3136xf32, #tpu.memory_space<vmem>>, vector<1x64xf32>,
    %c14 = arith.constant 14 : index
    %c0_130 = arith.constant 0 : index
    %100 = vector.load %arg17[%c14, %c0_130] : memref<67x64xf32, #tpu.memory_space<vmem>>, vector<1x64xf32>
    %c0_131 = arith.constant 0 : index
    %c704 = arith.constant 704 : index
    %101 = vector.load %arg18[%c0_131, %c704] : memref<1x3136xf32, #tpu.memory_space<vmem>>, vector<1x64xf32>
    tpu.vector_store %arg18[%c0_131, %c704], %100 {strides = array<i32>} : memref<1x3136xf32, #tpu.memory_space<vmem>>, vector<1x64xf32>,
    %c15 = arith.constant 15 : index
    %c0_132 = arith.constant 0 : index
    %102 = vector.load %arg17[%c15, %c0_132] : memref<67x64xf32, #tpu.memory_space<vmem>>, vector<1x64xf32>
    %c0_133 = arith.constant 0 : index
    %c768 = arith.constant 768 : index
    %103 = vector.load %arg18[%c0_133, %c768] : memref<1x3136xf32, #tpu.memory_space<vmem>>, vector<1x64xf32>
    tpu.vector_store %arg18[%c0_133, %c768], %102 {strides = array<i32>} : memref<1x3136xf32, #tpu.memory_space<vmem>>, vector<1x64xf32>,
    %c16 = arith.constant 16 : index
    %c0_134 = arith.constant 0 : index
    %104 = vector.load %arg17[%c16, %c0_134] : memref<67x64xf32, #tpu.memory_space<vmem>>, vector<1x64xf32>
    %c0_135 = arith.constant 0 : index
    %c832 = arith.constant 832 : index
    %105 = vector.load %arg18[%c0_135, %c832] : memref<1x3136xf32, #tpu.memory_space<vmem>>, vector<1x64xf32>
    tpu.vector_store %arg18[%c0_135, %c832], %104 {strides = array<i32>} : memref<1x3136xf32, #tpu.memory_space<vmem>>, vector<1x64xf32>,
    %c20_136 = arith.constant 20 : index
    %c0_137 = arith.constant 0 : index
    %106 = vector.load %arg17[%c20_136, %c0_137] : memref<67x64xf32, #tpu.memory_space<vmem>>, vector<1x64xf32>
    %c0_138 = arith.constant 0 : index
    %c896 = arith.constant 896 : index
    %107 = vector.load %arg18[%c0_138, %c896] : memref<1x3136xf32, #tpu.memory_space<vmem>>, vector<1x64xf32>
    tpu.vector_store %arg18[%c0_138, %c896], %106 {strides = array<i32>} : memref<1x3136xf32, #tpu.memory_space<vmem>>, vector<1x64xf32>,
    %c21_139 = arith.constant 21 : index
    %c0_140 = arith.constant 0 : index
    %108 = vector.load %arg17[%c21_139, %c0_140] : memref<67x64xf32, #tpu.memory_space<vmem>>, vector<1x64xf32>
    %c0_141 = arith.constant 0 : index
    %c960 = arith.constant 960 : index
    %109 = vector.load %arg18[%c0_141, %c960] : memref<1x3136xf32, #tpu.memory_space<vmem>>, vector<1x64xf32>
    tpu.vector_store %arg18[%c0_141, %c960], %108 {strides = array<i32>} : memref<1x3136xf32, #tpu.memory_space<vmem>>, vector<1x64xf32>,
    %c22_142 = arith.constant 22 : index
    %c0_143 = arith.constant 0 : index
    %110 = vector.load %arg17[%c22_142, %c0_143] : memref<67x64xf32, #tpu.memory_space<vmem>>, vector<1x64xf32>
    %c0_144 = arith.constant 0 : index
    %c1024 = arith.constant 1024 : index
    %111 = vector.load %arg18[%c0_144, %c1024] : memref<1x3136xf32, #tpu.memory_space<vmem>>, vector<1x64xf32>
    tpu.vector_store %arg18[%c0_144, %c1024], %110 {strides = array<i32>} : memref<1x3136xf32, #tpu.memory_space<vmem>>, vector<1x64xf32>,
    %c23 = arith.constant 23 : index
    %c0_145 = arith.constant 0 : index
    %112 = vector.load %arg17[%c23, %c0_145] : memref<67x64xf32, #tpu.memory_space<vmem>>, vector<1x64xf32>
    %c0_146 = arith.constant 0 : index
    %c1088 = arith.constant 1088 : index
    %113 = vector.load %arg18[%c0_146, %c1088] : memref<1x3136xf32, #tpu.memory_space<vmem>>, vector<1x64xf32>
    tpu.vector_store %arg18[%c0_146, %c1088], %112 {strides = array<i32>} : memref<1x3136xf32, #tpu.memory_space<vmem>>, vector<1x64xf32>,
    %c24 = arith.constant 24 : index
    %c0_147 = arith.constant 0 : index
    %114 = vector.load %arg17[%c24, %c0_147] : memref<67x64xf32, #tpu.memory_space<vmem>>, vector<1x64xf32>
    %c0_148 = arith.constant 0 : index
    %c1152 = arith.constant 1152 : index
    %115 = vector.load %arg18[%c0_148, %c1152] : memref<1x3136xf32, #tpu.memory_space<vmem>>, vector<1x64xf32>
    tpu.vector_store %arg18[%c0_148, %c1152], %114 {strides = array<i32>} : memref<1x3136xf32, #tpu.memory_space<vmem>>, vector<1x64xf32>,
    %c25 = arith.constant 25 : index
    %c0_149 = arith.constant 0 : index
    %116 = vector.load %arg17[%c25, %c0_149] : memref<67x64xf32, #tpu.memory_space<vmem>>, vector<1x64xf32>
    %c0_150 = arith.constant 0 : index
    %c1216 = arith.constant 1216 : index
    %117 = vector.load %arg18[%c0_150, %c1216] : memref<1x3136xf32, #tpu.memory_space<vmem>>, vector<1x64xf32>
    tpu.vector_store %arg18[%c0_150, %c1216], %116 {strides = array<i32>} : memref<1x3136xf32, #tpu.memory_space<vmem>>, vector<1x64xf32>,
    %c26 = arith.constant 26 : index
    %c0_151 = arith.constant 0 : index
    %118 = vector.load %arg17[%c26, %c0_151] : memref<67x64xf32, #tpu.memory_space<vmem>>, vector<1x64xf32>
    %c0_152 = arith.constant 0 : index
    %c1280 = arith.constant 1280 : index
    %119 = vector.load %arg18[%c0_152, %c1280] : memref<1x3136xf32, #tpu.memory_space<vmem>>, vector<1x64xf32>
    tpu.vector_store %arg18[%c0_152, %c1280], %118 {strides = array<i32>} : memref<1x3136xf32, #tpu.memory_space<vmem>>, vector<1x64xf32>,
    %c30 = arith.constant 30 : index
    %c0_153 = arith.constant 0 : index
    %120 = vector.load %arg17[%c30, %c0_153] : memref<67x64xf32, #tpu.memory_space<vmem>>, vector<1x64xf32>
    %c0_154 = arith.constant 0 : index
    %c1344 = arith.constant 1344 : index
    %121 = vector.load %arg18[%c0_154, %c1344] : memref<1x3136xf32, #tpu.memory_space<vmem>>, vector<1x64xf32>
    tpu.vector_store %arg18[%c0_154, %c1344], %120 {strides = array<i32>} : memref<1x3136xf32, #tpu.memory_space<vmem>>, vector<1x64xf32>,
    %c31 = arith.constant 31 : index
    %c0_155 = arith.constant 0 : index
    %122 = vector.load %arg17[%c31, %c0_155] : memref<67x64xf32, #tpu.memory_space<vmem>>, vector<1x64xf32>
    %c0_156 = arith.constant 0 : index
    %c1408 = arith.constant 1408 : index
    %123 = vector.load %arg18[%c0_156, %c1408] : memref<1x3136xf32, #tpu.memory_space<vmem>>, vector<1x64xf32>
    tpu.vector_store %arg18[%c0_156, %c1408], %122 {strides = array<i32>} : memref<1x3136xf32, #tpu.memory_space<vmem>>, vector<1x64xf32>,
    %c32_157 = arith.constant 32 : index
    %c0_158 = arith.constant 0 : index
    %124 = vector.load %arg17[%c32_157, %c0_158] : memref<67x64xf32, #tpu.memory_space<vmem>>, vector<1x64xf32>
    %c0_159 = arith.constant 0 : index
    %c1472 = arith.constant 1472 : index
    %125 = vector.load %arg18[%c0_159, %c1472] : memref<1x3136xf32, #tpu.memory_space<vmem>>, vector<1x64xf32>
    tpu.vector_store %arg18[%c0_159, %c1472], %124 {strides = array<i32>} : memref<1x3136xf32, #tpu.memory_space<vmem>>, vector<1x64xf32>,
    %c33 = arith.constant 33 : index
    %c0_160 = arith.constant 0 : index
    %126 = vector.load %arg17[%c33, %c0_160] : memref<67x64xf32, #tpu.memory_space<vmem>>, vector<1x64xf32>
    %c0_161 = arith.constant 0 : index
    %c1536 = arith.constant 1536 : index
    %127 = vector.load %arg18[%c0_161, %c1536] : memref<1x3136xf32, #tpu.memory_space<vmem>>, vector<1x64xf32>
    tpu.vector_store %arg18[%c0_161, %c1536], %126 {strides = array<i32>} : memref<1x3136xf32, #tpu.memory_space<vmem>>, vector<1x64xf32>,
    %c34 = arith.constant 34 : index
    %c0_162 = arith.constant 0 : index
    %128 = vector.load %arg17[%c34, %c0_162] : memref<67x64xf32, #tpu.memory_space<vmem>>, vector<1x64xf32>
    %c0_163 = arith.constant 0 : index
    %c1600 = arith.constant 1600 : index
    %129 = vector.load %arg18[%c0_163, %c1600] : memref<1x3136xf32, #tpu.memory_space<vmem>>, vector<1x64xf32>
    tpu.vector_store %arg18[%c0_163, %c1600], %128 {strides = array<i32>} : memref<1x3136xf32, #tpu.memory_space<vmem>>, vector<1x64xf32>,
    %c35 = arith.constant 35 : index
    %c0_164 = arith.constant 0 : index
    %130 = vector.load %arg17[%c35, %c0_164] : memref<67x64xf32, #tpu.memory_space<vmem>>, vector<1x64xf32>
    %c0_165 = arith.constant 0 : index
    %c1664 = arith.constant 1664 : index
    %131 = vector.load %arg18[%c0_165, %c1664] : memref<1x3136xf32, #tpu.memory_space<vmem>>, vector<1x64xf32>
    tpu.vector_store %arg18[%c0_165, %c1664], %130 {strides = array<i32>} : memref<1x3136xf32, #tpu.memory_space<vmem>>, vector<1x64xf32>,
    %c36 = arith.constant 36 : index
    %c0_166 = arith.constant 0 : index
    %132 = vector.load %arg17[%c36, %c0_166] : memref<67x64xf32, #tpu.memory_space<vmem>>, vector<1x64xf32>
    %c0_167 = arith.constant 0 : index
    %c1728 = arith.constant 1728 : index
    %133 = vector.load %arg18[%c0_167, %c1728] : memref<1x3136xf32, #tpu.memory_space<vmem>>, vector<1x64xf32>
    tpu.vector_store %arg18[%c0_167, %c1728], %132 {strides = array<i32>} : memref<1x3136xf32, #tpu.memory_space<vmem>>, vector<1x64xf32>,
    %c40 = arith.constant 40 : index
    %c0_168 = arith.constant 0 : index
    %134 = vector.load %arg17[%c40, %c0_168] : memref<67x64xf32, #tpu.memory_space<vmem>>, vector<1x64xf32>
    %c0_169 = arith.constant 0 : index
    %c1792 = arith.constant 1792 : index
    %135 = vector.load %arg18[%c0_169, %c1792] : memref<1x3136xf32, #tpu.memory_space<vmem>>, vector<1x64xf32>
    tpu.vector_store %arg18[%c0_169, %c1792], %134 {strides = array<i32>} : memref<1x3136xf32, #tpu.memory_space<vmem>>, vector<1x64xf32>,
    %c41 = arith.constant 41 : index
    %c0_170 = arith.constant 0 : index
    %136 = vector.load %arg17[%c41, %c0_170] : memref<67x64xf32, #tpu.memory_space<vmem>>, vector<1x64xf32>
    %c0_171 = arith.constant 0 : index
    %c1856 = arith.constant 1856 : index
    %137 = vector.load %arg18[%c0_171, %c1856] : memref<1x3136xf32, #tpu.memory_space<vmem>>, vector<1x64xf32>
    tpu.vector_store %arg18[%c0_171, %c1856], %136 {strides = array<i32>} : memref<1x3136xf32, #tpu.memory_space<vmem>>, vector<1x64xf32>,
    %c42 = arith.constant 42 : index
    %c0_172 = arith.constant 0 : index
    %138 = vector.load %arg17[%c42, %c0_172] : memref<67x64xf32, #tpu.memory_space<vmem>>, vector<1x64xf32>
    %c0_173 = arith.constant 0 : index
    %c1920 = arith.constant 1920 : index
    %139 = vector.load %arg18[%c0_173, %c1920] : memref<1x3136xf32, #tpu.memory_space<vmem>>, vector<1x64xf32>
    tpu.vector_store %arg18[%c0_173, %c1920], %138 {strides = array<i32>} : memref<1x3136xf32, #tpu.memory_space<vmem>>, vector<1x64xf32>,
    %c43 = arith.constant 43 : index
    %c0_174 = arith.constant 0 : index
    %140 = vector.load %arg17[%c43, %c0_174] : memref<67x64xf32, #tpu.memory_space<vmem>>, vector<1x64xf32>
    %c0_175 = arith.constant 0 : index
    %c1984 = arith.constant 1984 : index
    %141 = vector.load %arg18[%c0_175, %c1984] : memref<1x3136xf32, #tpu.memory_space<vmem>>, vector<1x64xf32>
    tpu.vector_store %arg18[%c0_175, %c1984], %140 {strides = array<i32>} : memref<1x3136xf32, #tpu.memory_space<vmem>>, vector<1x64xf32>,
    %c44 = arith.constant 44 : index
    %c0_176 = arith.constant 0 : index
    %142 = vector.load %arg17[%c44, %c0_176] : memref<67x64xf32, #tpu.memory_space<vmem>>, vector<1x64xf32>
    %c0_177 = arith.constant 0 : index
    %c2048 = arith.constant 2048 : index
    %143 = vector.load %arg18[%c0_177, %c2048] : memref<1x3136xf32, #tpu.memory_space<vmem>>, vector<1x64xf32>
    tpu.vector_store %arg18[%c0_177, %c2048], %142 {strides = array<i32>} : memref<1x3136xf32, #tpu.memory_space<vmem>>, vector<1x64xf32>,
    %c45 = arith.constant 45 : index
    %c0_178 = arith.constant 0 : index
    %144 = vector.load %arg17[%c45, %c0_178] : memref<67x64xf32, #tpu.memory_space<vmem>>, vector<1x64xf32>
    %c0_179 = arith.constant 0 : index
    %c2112 = arith.constant 2112 : index
    %145 = vector.load %arg18[%c0_179, %c2112] : memref<1x3136xf32, #tpu.memory_space<vmem>>, vector<1x64xf32>
    tpu.vector_store %arg18[%c0_179, %c2112], %144 {strides = array<i32>} : memref<1x3136xf32, #tpu.memory_space<vmem>>, vector<1x64xf32>,
    %c46 = arith.constant 46 : index
    %c0_180 = arith.constant 0 : index
    %146 = vector.load %arg17[%c46, %c0_180] : memref<67x64xf32, #tpu.memory_space<vmem>>, vector<1x64xf32>
    %c0_181 = arith.constant 0 : index
    %c2176 = arith.constant 2176 : index
    %147 = vector.load %arg18[%c0_181, %c2176] : memref<1x3136xf32, #tpu.memory_space<vmem>>, vector<1x64xf32>
    tpu.vector_store %arg18[%c0_181, %c2176], %146 {strides = array<i32>} : memref<1x3136xf32, #tpu.memory_space<vmem>>, vector<1x64xf32>,
    %c50 = arith.constant 50 : index
    %c0_182 = arith.constant 0 : index
    %148 = vector.load %arg17[%c50, %c0_182] : memref<67x64xf32, #tpu.memory_space<vmem>>, vector<1x64xf32>
    %c0_183 = arith.constant 0 : index
    %c2240 = arith.constant 2240 : index
    %149 = vector.load %arg18[%c0_183, %c2240] : memref<1x3136xf32, #tpu.memory_space<vmem>>, vector<1x64xf32>
    tpu.vector_store %arg18[%c0_183, %c2240], %148 {strides = array<i32>} : memref<1x3136xf32, #tpu.memory_space<vmem>>, vector<1x64xf32>,
    %c51 = arith.constant 51 : index
    %c0_184 = arith.constant 0 : index
    %150 = vector.load %arg17[%c51, %c0_184] : memref<67x64xf32, #tpu.memory_space<vmem>>, vector<1x64xf32>
    %c0_185 = arith.constant 0 : index
    %c2304 = arith.constant 2304 : index
    %151 = vector.load %arg18[%c0_185, %c2304] : memref<1x3136xf32, #tpu.memory_space<vmem>>, vector<1x64xf32>
    tpu.vector_store %arg18[%c0_185, %c2304], %150 {strides = array<i32>} : memref<1x3136xf32, #tpu.memory_space<vmem>>, vector<1x64xf32>,
    %c52 = arith.constant 52 : index
    %c0_186 = arith.constant 0 : index
    %152 = vector.load %arg17[%c52, %c0_186] : memref<67x64xf32, #tpu.memory_space<vmem>>, vector<1x64xf32>
    %c0_187 = arith.constant 0 : index
    %c2368 = arith.constant 2368 : index
    %153 = vector.load %arg18[%c0_187, %c2368] : memref<1x3136xf32, #tpu.memory_space<vmem>>, vector<1x64xf32>
    tpu.vector_store %arg18[%c0_187, %c2368], %152 {strides = array<i32>} : memref<1x3136xf32, #tpu.memory_space<vmem>>, vector<1x64xf32>,
    %c53 = arith.constant 53 : index
    %c0_188 = arith.constant 0 : index
    %154 = vector.load %arg17[%c53, %c0_188] : memref<67x64xf32, #tpu.memory_space<vmem>>, vector<1x64xf32>
    %c0_189 = arith.constant 0 : index
    %c2432 = arith.constant 2432 : index
    %155 = vector.load %arg18[%c0_189, %c2432] : memref<1x3136xf32, #tpu.memory_space<vmem>>, vector<1x64xf32>
    tpu.vector_store %arg18[%c0_189, %c2432], %154 {strides = array<i32>} : memref<1x3136xf32, #tpu.memory_space<vmem>>, vector<1x64xf32>,
    %c54 = arith.constant 54 : index
    %c0_190 = arith.constant 0 : index
    %156 = vector.load %arg17[%c54, %c0_190] : memref<67x64xf32, #tpu.memory_space<vmem>>, vector<1x64xf32>
    %c0_191 = arith.constant 0 : index
    %c2496 = arith.constant 2496 : index
    %157 = vector.load %arg18[%c0_191, %c2496] : memref<1x3136xf32, #tpu.memory_space<vmem>>, vector<1x64xf32>
    tpu.vector_store %arg18[%c0_191, %c2496], %156 {strides = array<i32>} : memref<1x3136xf32, #tpu.memory_space<vmem>>, vector<1x64xf32>,
    %c55 = arith.constant 55 : index
    %c0_192 = arith.constant 0 : index
    %158 = vector.load %arg17[%c55, %c0_192] : memref<67x64xf32, #tpu.memory_space<vmem>>, vector<1x64xf32>
    %c0_193 = arith.constant 0 : index
    %c2560 = arith.constant 2560 : index
    %159 = vector.load %arg18[%c0_193, %c2560] : memref<1x3136xf32, #tpu.memory_space<vmem>>, vector<1x64xf32>
    tpu.vector_store %arg18[%c0_193, %c2560], %158 {strides = array<i32>} : memref<1x3136xf32, #tpu.memory_space<vmem>>, vector<1x64xf32>,
    %c56 = arith.constant 56 : index
    %c0_194 = arith.constant 0 : index
    %160 = vector.load %arg17[%c56, %c0_194] : memref<67x64xf32, #tpu.memory_space<vmem>>, vector<1x64xf32>
    %c0_195 = arith.constant 0 : index
    %c2624 = arith.constant 2624 : index
    %161 = vector.load %arg18[%c0_195, %c2624] : memref<1x3136xf32, #tpu.memory_space<vmem>>, vector<1x64xf32>
    tpu.vector_store %arg18[%c0_195, %c2624], %160 {strides = array<i32>} : memref<1x3136xf32, #tpu.memory_space<vmem>>, vector<1x64xf32>,
    %c60 = arith.constant 60 : index
    %c0_196 = arith.constant 0 : index
    %162 = vector.load %arg17[%c60, %c0_196] : memref<67x64xf32, #tpu.memory_space<vmem>>, vector<1x64xf32>
    %c0_197 = arith.constant 0 : index
    %c2688 = arith.constant 2688 : index
    %163 = vector.load %arg18[%c0_197, %c2688] : memref<1x3136xf32, #tpu.memory_space<vmem>>, vector<1x64xf32>
    tpu.vector_store %arg18[%c0_197, %c2688], %162 {strides = array<i32>} : memref<1x3136xf32, #tpu.memory_space<vmem>>, vector<1x64xf32>,
    %c61 = arith.constant 61 : index
    %c0_198 = arith.constant 0 : index
    %164 = vector.load %arg17[%c61, %c0_198] : memref<67x64xf32, #tpu.memory_space<vmem>>, vector<1x64xf32>
    %c0_199 = arith.constant 0 : index
    %c2752 = arith.constant 2752 : index
    %165 = vector.load %arg18[%c0_199, %c2752] : memref<1x3136xf32, #tpu.memory_space<vmem>>, vector<1x64xf32>
    tpu.vector_store %arg18[%c0_199, %c2752], %164 {strides = array<i32>} : memref<1x3136xf32, #tpu.memory_space<vmem>>, vector<1x64xf32>,
    %c62 = arith.constant 62 : index
    %c0_200 = arith.constant 0 : index
    %166 = vector.load %arg17[%c62, %c0_200] : memref<67x64xf32, #tpu.memory_space<vmem>>, vector<1x64xf32>
    %c0_201 = arith.constant 0 : index
    %c2816 = arith.constant 2816 : index
    %167 = vector.load %arg18[%c0_201, %c2816] : memref<1x3136xf32, #tpu.memory_space<vmem>>, vector<1x64xf32>
    tpu.vector_store %arg18[%c0_201, %c2816], %166 {strides = array<i32>} : memref<1x3136xf32, #tpu.memory_space<vmem>>, vector<1x64xf32>,
    %c63 = arith.constant 63 : index
    %c0_202 = arith.constant 0 : index
    %168 = vector.load %arg17[%c63, %c0_202] : memref<67x64xf32, #tpu.memory_space<vmem>>, vector<1x64xf32>
    %c0_203 = arith.constant 0 : index
    %c2880 = arith.constant 2880 : index
    %169 = vector.load %arg18[%c0_203, %c2880] : memref<1x3136xf32, #tpu.memory_space<vmem>>, vector<1x64xf32>
    tpu.vector_store %arg18[%c0_203, %c2880], %168 {strides = array<i32>} : memref<1x3136xf32, #tpu.memory_space<vmem>>, vector<1x64xf32>,
    %c64_204 = arith.constant 64 : index
    %c0_205 = arith.constant 0 : index
    %170 = vector.load %arg17[%c64_204, %c0_205] : memref<67x64xf32, #tpu.memory_space<vmem>>, vector<1x64xf32>
    %c0_206 = arith.constant 0 : index
    %c2944 = arith.constant 2944 : index
    %171 = vector.load %arg18[%c0_206, %c2944] : memref<1x3136xf32, #tpu.memory_space<vmem>>, vector<1x64xf32>
    tpu.vector_store %arg18[%c0_206, %c2944], %170 {strides = array<i32>} : memref<1x3136xf32, #tpu.memory_space<vmem>>, vector<1x64xf32>,
    %c65 = arith.constant 65 : index
    %c0_207 = arith.constant 0 : index
    %172 = vector.load %arg17[%c65, %c0_207] : memref<67x64xf32, #tpu.memory_space<vmem>>, vector<1x64xf32>
    %c0_208 = arith.constant 0 : index
    %c3008 = arith.constant 3008 : index
    %173 = vector.load %arg18[%c0_208, %c3008] : memref<1x3136xf32, #tpu.memory_space<vmem>>, vector<1x64xf32>
    tpu.vector_store %arg18[%c0_208, %c3008], %172 {strides = array<i32>} : memref<1x3136xf32, #tpu.memory_space<vmem>>, vector<1x64xf32>,
    %c66 = arith.constant 66 : index
    %c0_209 = arith.constant 0 : index
    %174 = vector.load %arg17[%c66, %c0_209] : memref<67x64xf32, #tpu.memory_space<vmem>>, vector<1x64xf32>
    %c0_210 = arith.constant 0 : index
    %c3072 = arith.constant 3072 : index
    %175 = vector.load %arg18[%c0_210, %c3072] : memref<1x3136xf32, #tpu.memory_space<vmem>>, vector<1x64xf32>
    tpu.vector_store %arg18[%c0_210, %c3072], %174 {strides = array<i32>} : memref<1x3136xf32, #tpu.memory_space<vmem>>, vector<1x64xf32>,
    %c0_211 = arith.constant 0 : index
    %c0_212 = arith.constant 0 : index
    %176 = vector.load %arg18[%c0_211, %c0_212] : memref<1x3136xf32, #tpu.memory_space<vmem>>, vector<1x3136xf32>
    %177 = arith.truncf %176 : vector<1x3136xf32> to vector<1x3136xbf16>
    %c0_213 = arith.constant 0 : index
    %c0_214 = arith.constant 0 : index
    %178 = vector.load %arg8[%c0_213, %c0_214] : memref<3136x512xbf16, #tpu.memory_space<vmem>>, vector<3136x512xbf16>
    %cst_215 = arith.constant dense<0.000000e+00> : vector<1x512xf32>
    %179 = tpu.matmul %177, %178, %cst_215 {dimension_numbers = #tpu.dot_dimension_numbers<[1], [0], [0], [1], [0, 0, 1, 1], [], []>} : vector<1x3136xbf16>, vector<3136x512xbf16>, vector<1x512xf32> -> vector<1x512xf32>
    %c0_216 = arith.constant 0 : index
    %c0_217 = arith.constant 0 : index
    %180 = vector.load %arg9[%c0_216, %c0_217] : memref<1x512xf32, #tpu.memory_space<vmem>>, vector<1x512xf32>
    %181 = arith.addf %179, %180 : vector<1x512xf32>
    %cst_218 = arith.constant 0.000000e+00 : f32
    %182 = vector.broadcast %cst_218 : f32 to vector<1x512xf32>
    %183 = arith.maximumf %181, %182 : vector<1x512xf32>
    %c0_219 = arith.constant 0 : index
    %c0_220 = arith.constant 0 : index
    %184 = vector.load %arg10[%c0_219, %c0_220] : memref<512x128xf32, #tpu.memory_space<vmem>>, vector<512x128xf32>
    %cst_221 = arith.constant dense<0.000000e+00> : vector<1x128xf32>
    %185 = tpu.matmul %183, %184, %cst_221 {dimension_numbers = #tpu.dot_dimension_numbers<[1], [0], [0], [1], [0, 0, 1, 1], [], []>} : vector<1x512xf32>, vector<512x128xf32>, vector<1x128xf32> -> vector<1x128xf32>
    %c0_222 = arith.constant 0 : index
    %c0_223 = arith.constant 0 : index
    %186 = vector.load %arg11[%c0_222, %c0_223] : memref<1x128xf32, #tpu.memory_space<vmem>>, vector<1x128xf32>
    %187 = arith.addf %185, %186 : vector<1x128xf32>
    %c0_224 = arith.constant 0 : index
    %c0_225 = arith.constant 0 : index
    %c0_226 = arith.constant 0 : index
    %188 = vector.load %arg12[%c0_224, %c0_225, %c0_226] : memref<1x1x128xf32, #tpu.memory_space<vmem>>, vector<1x1x128xf32>
    %189 = vector.shape_cast %188 : vector<1x1x128xf32> to vector<1x128xf32>
    %190 = vector.shape_cast %187 : vector<1x128xf32> to vector<1x1x128xf32>
    tpu.vector_store %arg12[%c0_224, %c0_225, %c0_226], %190 {strides = array<i32>} : memref<1x1x128xf32, #tpu.memory_space<vmem>>, vector<1x1x128xf32>,
    return
  }
  func.func @transform_0(%arg0: i32) -> (i32, i32, i32) {
    %c0_i32 = arith.constant 0 : i32
    %c0_i32_0 = arith.constant 0 : i32
    %c0_i32_1 = arith.constant 0 : i32
    return %arg0, %c0_i32, %c0_i32_0 : i32, i32, i32
  }
  func.func @transform_1(%arg0: i32) -> (i32, i32) {
    %c0_i32 = arith.constant 0 : i32
    %c0_i32_0 = arith.constant 0 : i32
    %c0_i32_1 = arith.constant 0 : i32
    return %c0_i32, %c0_i32_0 : i32, i32
  }
  func.func @transform_2(%arg0: i32) -> (i32, i32) {
    %c0_i32 = arith.constant 0 : i32
    %c0_i32_0 = arith.constant 0 : i32
    %c0_i32_1 = arith.constant 0 : i32
    return %c0_i32, %c0_i32_0 : i32, i32
  }
  func.func @transform_3(%arg0: i32) -> (i32, i32) {
    %c0_i32 = arith.constant 0 : i32
    %c0_i32_0 = arith.constant 0 : i32
    %c0_i32_1 = arith.constant 0 : i32
    return %c0_i32, %c0_i32_0 : i32, i32
  }
  func.func @transform_4(%arg0: i32) -> (i32, i32) {
    %c0_i32 = arith.constant 0 : i32
    %c0_i32_0 = arith.constant 0 : i32
    %c0_i32_1 = arith.constant 0 : i32
    return %c0_i32, %c0_i32_0 : i32, i32
  }
  func.func @transform_5(%arg0: i32) -> (i32, i32) {
    %c0_i32 = arith.constant 0 : i32
    %c0_i32_0 = arith.constant 0 : i32
    %c0_i32_1 = arith.constant 0 : i32
    return %c0_i32, %c0_i32_0 : i32, i32
  }
  func.func @transform_6(%arg0: i32) -> (i32, i32) {
    %c0_i32 = arith.constant 0 : i32
    %c0_i32_0 = arith.constant 0 : i32
    %c0_i32_1 = arith.constant 0 : i32
    return %c0_i32, %c0_i32_0 : i32, i32
  }
  func.func @transform_7(%arg0: i32) -> (i32, i32) {
    %c0_i32 = arith.constant 0 : i32
    %c0_i32_0 = arith.constant 0 : i32
    %c0_i32_1 = arith.constant 0 : i32
    return %c0_i32, %c0_i32_0 : i32, i32
  }
  func.func @transform_8(%arg0: i32) -> (i32, i32) {
    %c0_i32 = arith.constant 0 : i32
    %c0_i32_0 = arith.constant 0 : i32
    %c0_i32_1 = arith.constant 0 : i32
    return %c0_i32, %c0_i32_0 : i32, i32
  }
  func.func @transform_9(%arg0: i32) -> (i32, i32) {
    %c0_i32 = arith.constant 0 : i32
    %c0_i32_0 = arith.constant 0 : i32
    %c0_i32_1 = arith.constant 0 : i32
    return %c0_i32, %c0_i32_0 : i32, i32
  }
  func.func @transform_10(%arg0: i32) -> (i32, i32) {
    %c0_i32 = arith.constant 0 : i32
    %c0_i32_0 = arith.constant 0 : i32
    %c0_i32_1 = arith.constant 0 : i32
    return %c0_i32, %c0_i32_0 : i32, i32
  }
  func.func @transform_11(%arg0: i32) -> (i32, i32, i32) {
    %c0_i32 = arith.constant 0 : i32
    %c0_i32_0 = arith.constant 0 : i32
    %c0_i32_1 = arith.constant 0 : i32
    return %arg0, %c0_i32, %c0_i32_0 : i32, i32, i32
  }
}

</mosaic_0001>

<llo_original>
// kernel: qnetwork_forward.1
$region0: #{qnetwork_forward.1}
  #allocation0 [shape = 'u32[]', space=smem, size = 0x4, offset = 0x4, fixed_abs, tag = 'smem constant byte address 0x4 - core index']
  #allocation1 [shape = 'u32[144,128]{1,0:T(1,128)}', space=vmem, size = 0x12000, scoped, tag = 'internal scratch']
  #allocation2 [shape = 'f32[400,32]{1,0:T(8,128)}', space=vmem, size = 0x32000, scoped, tag = 'scratch operand']
  #allocation3 [shape = 'f32[89,512]{1,0:T(8,128)}', space=vmem, size = 0x30000, scoped, tag = 'scratch operand']
  #allocation4 [shape = 'f32[89,64]{1,0:T(8,128)}', space=vmem, size = 0xc000, scoped, tag = 'scratch operand']
  #allocation5 [shape = 'f32[67,576]{1,0:T(8,128)}', space=vmem, size = 0x2d000, scoped, tag = 'scratch operand']
  #allocation6 [shape = 'f32[67,64]{1,0:T(8,128)}', space=vmem, size = 0x9000, scoped, tag = 'scratch operand']
  #allocation7 [shape = 'f32[1,3136]{1,0:T(1,128)}', space=vmem, size = 0x3200, scoped, tag = 'scratch operand']
  %s0 = inlined_call_operand.vmem [shape: f32[2,400,256], index: 0, kind: input, shape index: {}]
  %s1 = inlined_call_operand.vmem [shape: f32[256,32], index: 1, kind: input, shape index: {}]
  %s2 = inlined_call_operand.vmem [shape: f32[1,32], index: 2, kind: input, shape index: {}]
  %s3 = inlined_call_operand.vmem [shape: f32[512,64], index: 3, kind: input, shape index: {}]
  %s4 = inlined_call_operand.vmem [shape: f32[1,64], index: 4, kind: input, shape index: {}]
  %s5 = inlined_call_operand.vmem [shape: f32[576,64], index: 5, kind: input, shape index: {}]
  %s6 = inlined_call_operand.vmem [shape: f32[1,64], index: 6, kind: input, shape index: {}]
  %s7 = inlined_call_operand.vmem [shape: bf16[3136,512], index: 7, kind: input, shape index: {}]
  %s8 = inlined_call_operand.vmem [shape: f32[1,512], index: 8, kind: input, shape index: {}]
  %s9 = inlined_call_operand.vmem [shape: f32[512,128], index: 9, kind: input, shape index: {}]
  %s10 = inlined_call_operand.vmem [shape: f32[1,128], index: 10, kind: input, shape index: {}]
  %s11 = inlined_call_operand.hbm [shape: f32[2,1,128], index: 11, kind: output, shape index: {}]
  %s12 = sld [smem:[#allocation0]]
  $region77: #{qnetwork_forward.1} parent=0
    _
  %s14 = ssub.s32 1, %s12
  %s15 = scalar_select 0, %s14, %s12
  $region1: #{qnetwork_forward.1} parent=0
    #allocation8 [shape = 'u8[1024]{0}', space=vmem, size = 0x400, scoped, tag = 'output window, operand 0']
    #allocation9 [shape = 's32[2]{0}', space=sflag, size = 0x8, scoped, tag = 'scoped memory for qnetwork_forward.1']
    %16 = vsyncpa [#allocation9], 0
    %s17 = scalar_lea.sflag [#allocation9], 1
    %18 = vsyncpa %s17, 0
    loop: start=0, step=1, limit=4
    $region2: #{qnetwork_forward.1} parent=1 // loop_pre_header
      _
    $region3: #{qnetwork_forward.1} parent=1 // loop_header
      %s20 = sphi 0, %s24
      %p21 = scmp.ge.s32.totalorder %s20, 4
      %s30 = sphi 0, %s32
      %s33 = sphi 0, %s30
      %s34 = sphi 0, %s33
      %s50 = sphi 0, %s34
      %s54 = sphi 0, %s54
      %s56 = sphi 0, %s54
      %s57 = sphi 0, %s56
      %s71 = sphi 0, %s57
      %s75 = sphi 0, %s75
      %s77 = sphi 0, %s75
      %s78 = sphi 0, %s77
      %s92 = sphi 0, %s78
      %s96 = sphi 0, %s96
      %s98 = sphi 0, %s96
      %s99 = sphi 0, %s98
      %s113 = sphi 0, %s99
      %s117 = sphi 0, %s117
      %s119 = sphi 0, %s117
      %s120 = sphi 0, %s119
      %s134 = sphi 0, %s120
      %s138 = sphi 0, %s138
      %s140 = sphi 0, %s138
      %s141 = sphi 0, %s140
      %s155 = sphi 0, %s141
      %s159 = sphi 0, %s159
      %s161 = sphi 0, %s159
      %s162 = sphi 0, %s161
      %s176 = sphi 0, %s162
      %s180 = sphi 0, %s180
      %s182 = sphi 0, %s180
      %s183 = sphi 0, %s182
      %s197 = sphi 0, %s183
      %s201 = sphi 0, %s201
      %s203 = sphi 0, %s201
      %s204 = sphi 0, %s203
      %s218 = sphi 0, %s204
      %s222 = sphi 0, %s222
      %s224 = sphi 0, %s222
      %s225 = sphi 0, %s224
      %s239 = sphi 0, %s225
      %s243 = sphi 0, %s243
      %s245 = sphi 0, %s243
      %s246 = sphi 0, %s245
      %s260 = sphi 0, %s246
      %s266 = sphi 0, %s268
      %s269 = sphi 0, %s266
      %s270 = sphi 0, %s269
      %s286 = sphi 0, %s270
    $region4: #{qnetwork_forward.1} parent=1 // loop_header_branch
      %23 = sbr.rel (%p21) target = $region8
    $region5: #{qnetwork_forward.1} parent=1 // loop_body
      %s25 = ssub.s32 %s20, 1
      %s26 = ssub.s32 %s20, 2
      %s27 = sadd.s32 %s20, 1
      %s28 = ssub.s32 %s20, %s27
      %p29 = scmp.eq.s32.totalorder %s28, 0
      %s31 = sadd.s32 %s30, 1
      %s32 = scalar_select %p29, %s30, %s31
      %p35 = pneg %p29
      %p36 = scmp.eq.s32.totalorder %s20, 1
      %p37 = por %p35, %p36
      %p38 = scmp.ne.s32.totalorder %s30, %s33
      %p39 = scmp.eq.s32.totalorder %s20, 0
      %p40 = por %p38, %p39
      %p41 = scmp.ne.s32.totalorder %s30, %s33
      %p42 = scmp.eq.s32.totalorder %s25, 1
      %p43 = por %p41, %p42
      %p44 = scmp.ne.s32.totalorder %s33, %s34
      %p45 = scmp.eq.s32.totalorder %s25, 0
      %p46 = por %p44, %p45
      %p47 = scmp.ne.s32.totalorder %s33, %s34
      %p48 = scmp.eq.s32.totalorder %s26, 1
      %p49 = por %p47, %p48
      %p51 = scmp.ne.s32.totalorder %s34, %s50
      %p52 = scmp.eq.s32.totalorder %s26, 0
      %p53 = por %p51, %p52
      %s55 = sadd.s32 %s54, 1
      %p58 = scmp.eq.s32.totalorder %s20, 1
      %p59 = scmp.ne.s32.totalorder %s54, %s56
      %p60 = scmp.eq.s32.totalorder %s20, 0
      %p61 = por %p59, %p60
      %p62 = scmp.ne.s32.totalorder %s54, %s56
      %p63 = scmp.eq.s32.totalorder %s25, 1
      %p64 = por %p62, %p63
      %p65 = scmp.ne.s32.totalorder %s56, %s57
      %p66 = scmp.eq.s32.totalorder %s25, 0
      %p67 = por %p65, %p66
      %p68 = scmp.ne.s32.totalorder %s56, %s57
      %p69 = scmp.eq.s32.totalorder %s26, 1
      %p70 = por %p68, %p69
      %p72 = scmp.ne.s32.totalorder %s57, %s71
      %p73 = scmp.eq.s32.totalorder %s26, 0
      %p74 = por %p72, %p73
      %s76 = sadd.s32 %s75, 1
      %p79 = scmp.eq.s32.totalorder %s20, 1
      %p80 = scmp.ne.s32.totalorder %s75, %s77
      %p81 = scmp.eq.s32.totalorder %s20, 0
      %p82 = por %p80, %p81
      %p83 = scmp.ne.s32.totalorder %s75, %s77
      %p84 = scmp.eq.s32.totalorder %s25, 1
      %p85 = por %p83, %p84
      %p86 = scmp.ne.s32.totalorder %s77, %s78
      %p87 = scmp.eq.s32.totalorder %s25, 0
      %p88 = por %p86, %p87
      %p89 = scmp.ne.s32.totalorder %s77, %s78
      %p90 = scmp.eq.s32.totalorder %s26, 1
      %p91 = por %p89, %p90
      %p93 = scmp.ne.s32.totalorder %s78, %s92
      %p94 = scmp.eq.s32.totalorder %s26, 0
      %p95 = por %p93, %p94
      %s97 = sadd.s32 %s96, 1
      %p100 = scmp.eq.s32.totalorder %s20, 1
      %p101 = scmp.ne.s32.totalorder %s96, %s98
      %p102 = scmp.eq.s32.totalorder %s20, 0
      %p103 = por %p101, %p102
      %p104 = scmp.ne.s32.totalorder %s96, %s98
      %p105 = scmp.eq.s32.totalorder %s25, 1
      %p106 = por %p104, %p105
      %p107 = scmp.ne.s32.totalorder %s98, %s99
      %p108 = scmp.eq.s32.totalorder %s25, 0
      %p109 = por %p107, %p108
      %p110 = scmp.ne.s32.totalorder %s98, %s99
      %p111 = scmp.eq.s32.totalorder %s26, 1
      %p112 = por %p110, %p111
      %p114 = scmp.ne.s32.totalorder %s99, %s113
      %p115 = scmp.eq.s32.totalorder %s26, 0
      %p116 = por %p114, %p115
      %s118 = sadd.s32 %s117, 1
      %p121 = scmp.eq.s32.totalorder %s20, 1
      %p122 = scmp.ne.s32.totalorder %s117, %s119
      %p123 = scmp.eq.s32.totalorder %s20, 0
      %p124 = por %p122, %p123
      %p125 = scmp.ne.s32.totalorder %s117, %s119
      %p126 = scmp.eq.s32.totalorder %s25, 1
      %p127 = por %p125, %p126
      %p128 = scmp.ne.s32.totalorder %s119, %s120
      %p129 = scmp.eq.s32.totalorder %s25, 0
      %p130 = por %p128, %p129
      %p131 = scmp.ne.s32.totalorder %s119, %s120
      %p132 = scmp.eq.s32.totalorder %s26, 1
      %p133 = por %p131, %p132
      %p135 = scmp.ne.s32.totalorder %s120, %s134
      %p136 = scmp.eq.s32.totalorder %s26, 0
      %p137 = por %p135, %p136
      %s139 = sadd.s32 %s138, 1
      %p142 = scmp.eq.s32.totalorder %s20, 1
      %p143 = scmp.ne.s32.totalorder %s138, %s140
      %p144 = scmp.eq.s32.totalorder %s20, 0
      %p145 = por %p143, %p144
      %p146 = scmp.ne.s32.totalorder %s138, %s140
      %p147 = scmp.eq.s32.totalorder %s25, 1
      %p148 = por %p146, %p147
      %p149 = scmp.ne.s32.totalorder %s140, %s141
      %p150 = scmp.eq.s32.totalorder %s25, 0
      %p151 = por %p149, %p150
      %p152 = scmp.ne.s32.totalorder %s140, %s141
      %p153 = scmp.eq.s32.totalorder %s26, 1
      %p154 = por %p152, %p153
      %p156 = scmp.ne.s32.totalorder %s141, %s155
      %p157 = scmp.eq.s32.totalorder %s26, 0
      %p158 = por %p156, %p157
      %s160 = sadd.s32 %s159, 1
      %p163 = scmp.eq.s32.totalorder %s20, 1
      %p164 = scmp.ne.s32.totalorder %s159, %s161
      %p165 = scmp.eq.s32.totalorder %s20, 0
      %p166 = por %p164, %p165
      %p167 = scmp.ne.s32.totalorder %s159, %s161
      %p168 = scmp.eq.s32.totalorder %s25, 1
      %p169 = por %p167, %p168
      %p170 = scmp.ne.s32.totalorder %s161, %s162
      %p171 = scmp.eq.s32.totalorder %s25, 0
      %p172 = por %p170, %p171
      %p173 = scmp.ne.s32.totalorder %s161, %s162
      %p174 = scmp.eq.s32.totalorder %s26, 1
      %p175 = por %p173, %p174
      %p177 = scmp.ne.s32.totalorder %s162, %s176
      %p178 = scmp.eq.s32.totalorder %s26, 0
      %p179 = por %p177, %p178
      %s181 = sadd.s32 %s180, 1
      %p184 = scmp.eq.s32.totalorder %s20, 1
      %p185 = scmp.ne.s32.totalorder %s180, %s182
      %p186 = scmp.eq.s32.totalorder %s20, 0
      %p187 = por %p185, %p186
      %p188 = scmp.ne.s32.totalorder %s180, %s182
      %p189 = scmp.eq.s32.totalorder %s25, 1
      %p190 = por %p188, %p189
      %p191 = scmp.ne.s32.totalorder %s182, %s183
      %p192 = scmp.eq.s32.totalorder %s25, 0
      %p193 = por %p191, %p192
      %p194 = scmp.ne.s32.totalorder %s182, %s183
      %p195 = scmp.eq.s32.totalorder %s26, 1
      %p196 = por %p194, %p195
      %p198 = scmp.ne.s32.totalorder %s183, %s197
      %p199 = scmp.eq.s32.totalorder %s26, 0
      %p200 = por %p198, %p199
      %s202 = sadd.s32 %s201, 1
      %p205 = scmp.eq.s32.totalorder %s20, 1
      %p206 = scmp.ne.s32.totalorder %s201, %s203
      %p207 = scmp.eq.s32.totalorder %s20, 0
      %p208 = por %p206, %p207
      %p209 = scmp.ne.s32.totalorder %s201, %s203
      %p210 = scmp.eq.s32.totalorder %s25, 1
      %p211 = por %p209, %p210
      %p212 = scmp.ne.s32.totalorder %s203, %s204
      %p213 = scmp.eq.s32.totalorder %s25, 0
      %p214 = por %p212, %p213
      %p215 = scmp.ne.s32.totalorder %s203, %s204
      %p216 = scmp.eq.s32.totalorder %s26, 1
      %p217 = por %p215, %p216
      %p219 = scmp.ne.s32.totalorder %s204, %s218
      %p220 = scmp.eq.s32.totalorder %s26, 0
      %p221 = por %p219, %p220
      %s223 = sadd.s32 %s222, 1
      %p226 = scmp.eq.s32.totalorder %s20, 1
      %p227 = scmp.ne.s32.totalorder %s222, %s224
      %p228 = scmp.eq.s32.totalorder %s20, 0
      %p229 = por %p227, %p228
      %p230 = scmp.ne.s32.totalorder %s222, %s224
      %p231 = scmp.eq.s32.totalorder %s25, 1
      %p232 = por %p230, %p231
      %p233 = scmp.ne.s32.totalorder %s224, %s225
      %p234 = scmp.eq.s32.totalorder %s25, 0
      %p235 = por %p233, %p234
      %p236 = scmp.ne.s32.totalorder %s224, %s225
      %p237 = scmp.eq.s32.totalorder %s26, 1
      %p238 = por %p236, %p237
      %p240 = scmp.ne.s32.totalorder %s225, %s239
      %p241 = scmp.eq.s32.totalorder %s26, 0
      %p242 = por %p240, %p241
      %s244 = sadd.s32 %s243, 1
      %p247 = scmp.eq.s32.totalorder %s20, 1
      %p248 = scmp.ne.s32.totalorder %s243, %s245
      %p249 = scmp.eq.s32.totalorder %s20, 0
      %p250 = por %p248, %p249
      %p251 = scmp.ne.s32.totalorder %s243, %s245
      %p252 = scmp.eq.s32.totalorder %s25, 1
      %p253 = por %p251, %p252
      %p254 = scmp.ne.s32.totalorder %s245, %s246
      %p255 = scmp.eq.s32.totalorder %s25, 0
      %p256 = por %p254, %p255
      %p257 = scmp.ne.s32.totalorder %s245, %s246
      %p258 = scmp.eq.s32.totalorder %s26, 1
      %p259 = por %p257, %p258
      %p261 = scmp.ne.s32.totalorder %s246, %s260
      %p262 = scmp.eq.s32.totalorder %s26, 0
      %p263 = por %p261, %p262
      %s264 = ssub.s32 %s20, %s27
      %p265 = scmp.eq.s32.totalorder %s264, 0
      %s267 = sadd.s32 %s266, 1
      %s268 = scalar_select %p265, %s266, %s267
      %p271 = pneg %p265
      %p272 = scmp.eq.s32.totalorder %s20, 1
      %p273 = por %p271, %p272
      %p274 = scmp.ne.s32.totalorder %s266, %s269
      %p275 = scmp.eq.s32.totalorder %s20, 0
      %p276 = por %p274, %p275
      %p277 = scmp.ne.s32.totalorder %s266, %s269
      %p278 = scmp.eq.s32.totalorder %s25, 1
      %p279 = por %p277, %p278
      %p280 = scmp.ne.s32.totalorder %s269, %s270
      %p281 = scmp.eq.s32.totalorder %s25, 0
      %p282 = por %p280, %p281
      %p283 = scmp.ne.s32.totalorder %s269, %s270
      %p284 = scmp.eq.s32.totalorder %s26, 1
      %p285 = por %p283, %p284
      %p287 = scmp.ne.s32.totalorder %s270, %s286
      %p288 = scmp.eq.s32.totalorder %s26, 0
      %p289 = por %p287, %p288
      %p290 = scmp.le.s32.totalorder 1, %s20
      %p291 = scmp.lt.s32.totalorder %s20, 3
      %p292 = pnand %p290, %p291
      %p293 = pneg %p292
      // Predicated region
      $region9: #{qnetwork_forward.1} parent=5 // pred_check
        _
      $region10: #{qnetwork_forward.1} parent=5 // pred_check_branch
        %295 = sbr.rel (%p292) target = $region12
      $region11: #{qnetwork_forward.1} parent=5 // pred_region
        %s296 = ssub.s32 %s20, 1
        // Predicated region
        $region13: #{qnetwork_forward.1} parent=11 // pred_check
          %p297 = pneg %p67
        $region14: #{qnetwork_forward.1} parent=11 // pred_check_branch
          %299 = sbr.rel (%p297) target = $region16
        $region15: #{qnetwork_forward.1} parent=11 // pred_region
          _
        $region16: #{qnetwork_forward.1} parent=11 // pred_fallthru
          _
        // Predicated region
        $region17: #{qnetwork_forward.1} parent=11 // pred_check
          %p300 = pneg %p88
        $region18: #{qnetwork_forward.1} parent=11 // pred_check_branch
          %302 = sbr.rel (%p300) target = $region20
        $region19: #{qnetwork_forward.1} parent=11 // pred_region
          _
        $region20: #{qnetwork_forward.1} parent=11 // pred_fallthru
          _
        // Predicated region
        $region21: #{qnetwork_forward.1} parent=11 // pred_check
          %p303 = pneg %p109
        $region22: #{qnetwork_forward.1} parent=11 // pred_check_branch
          %305 = sbr.rel (%p303) target = $region24
        $region23: #{qnetwork_forward.1} parent=11 // pred_region
          _
        $region24: #{qnetwork_forward.1} parent=11 // pred_fallthru
          _
        // Predicated region
        $region25: #{qnetwork_forward.1} parent=11 // pred_check
          %p306 = pneg %p130
        $region26: #{qnetwork_forward.1} parent=11 // pred_check_branch
          %308 = sbr.rel (%p306) target = $region28
        $region27: #{qnetwork_forward.1} parent=11 // pred_region
          _
        $region28: #{qnetwork_forward.1} parent=11 // pred_fallthru
          _
        // Predicated region
        $region29: #{qnetwork_forward.1} parent=11 // pred_check
          %p309 = pneg %p151
        $region30: #{qnetwork_forward.1} parent=11 // pred_check_branch
          %311 = sbr.rel (%p309) target = $region32
        $region31: #{qnetwork_forward.1} parent=11 // pred_region
          _
        $region32: #{qnetwork_forward.1} parent=11 // pred_fallthru
          _
        // Predicated region
        $region33: #{qnetwork_forward.1} parent=11 // pred_check
          %p312 = pneg %p172
        $region34: #{qnetwork_forward.1} parent=11 // pred_check_branch
          %314 = sbr.rel (%p312) target = $region36
        $region35: #{qnetwork_forward.1} parent=11 // pred_region
          _
        $region36: #{qnetwork_forward.1} parent=11 // pred_fallthru
          _
        // Predicated region
        $region37: #{qnetwork_forward.1} parent=11 // pred_check
          %p315 = pneg %p193
        $region38: #{qnetwork_forward.1} parent=11 // pred_check_branch
          %317 = sbr.rel (%p315) target = $region40
        $region39: #{qnetwork_forward.1} parent=11 // pred_region
          _
        $region40: #{qnetwork_forward.1} parent=11 // pred_fallthru
          _
        // Predicated region
        $region41: #{qnetwork_forward.1} parent=11 // pred_check
          %p318 = pneg %p214
        $region42: #{qnetwork_forward.1} parent=11 // pred_check_branch
          %320 = sbr.rel (%p318) target = $region44
        $region43: #{qnetwork_forward.1} parent=11 // pred_region
          _
        $region44: #{qnetwork_forward.1} parent=11 // pred_fallthru
          _
        // Predicated region
        $region45: #{qnetwork_forward.1} parent=11 // pred_check
          %p321 = pneg %p235
        $region46: #{qnetwork_forward.1} parent=11 // pred_check_branch
          %323 = sbr.rel (%p321) target = $region48
        $region47: #{qnetwork_forward.1} parent=11 // pred_region
          _
        $region48: #{qnetwork_forward.1} parent=11 // pred_fallthru
          _
        // Predicated region
        $region49: #{qnetwork_forward.1} parent=11 // pred_check
          %p324 = pneg %p256
        $region50: #{qnetwork_forward.1} parent=11 // pred_check_branch
          %326 = sbr.rel (%p324) target = $region52
        $region51: #{qnetwork_forward.1} parent=11 // pred_region
          _
        $region52: #{qnetwork_forward.1} parent=11 // pred_fallthru
          _
      $region12: #{qnetwork_forward.1} parent=5 // pred_fallthru
        _
      %p327 = scmp.lt.s32.totalorder %s20, 2
      // Predicated region
      $region53: #{qnetwork_forward.1} parent=5 // pred_check
        %p328 = pneg %p327
      $region54: #{qnetwork_forward.1} parent=5 // pred_check_branch
        %330 = sbr.rel (%p328) target = $region56
      $region55: #{qnetwork_forward.1} parent=5 // pred_region
        // Predicated region
        $region57: #{qnetwork_forward.1} parent=55 // pred_check
          %p331 = pneg %p40
        $region58: #{qnetwork_forward.1} parent=55 // pred_check_branch
          %333 = sbr.rel (%p331) target = $region60
        $region59: #{qnetwork_forward.1} parent=55 // pred_region
          %p334 = scmp.lt.s32.totalorder %s20, 1
          %s335 = scalar_select %p334, %s20, 1
          %s336 = smul.addr %s335, 100
          %s337 = smul.addr %s336, 8
          %s338 = scalar_lea.vmem %s0, %s337
        $region60: #{qnetwork_forward.1} parent=55 // pred_fallthru
          _
      $region56: #{qnetwork_forward.1} parent=5 // pred_fallthru
        _
      %p339 = scmp.le.s32.totalorder 1, %s20
      %p340 = scmp.lt.s32.totalorder %s20, 3
      %p341 = pnand %p339, %p340
      %p342 = pneg %p341
      // Predicated region
      $region61: #{qnetwork_forward.1} parent=5 // pred_check
        _
      $region62: #{qnetwork_forward.1} parent=5 // pred_check_branch
        %344 = sbr.rel (%p341) target = $region64
      $region63: #{qnetwork_forward.1} parent=5 // pred_region
        %s345 = ssub.s32 %s20, 1
        %p346 = scmp.lt.s32.totalorder %s25, 1
        %s347 = scalar_select %p346, %s25, 1
        %s348 = smul.addr %s347, 100
        %s349 = smul.addr %s348, 8
        %s350 = scalar_lea.vmem %s0, %s349
        %p351 = pneg %p46
        %p352 = pneg %p43
        %p353 = pneg %p67
        %p354 = pneg %p64
        %p355 = pneg %p88
        %p356 = pneg %p85
        %p357 = pneg %p109
        %p358 = pneg %p106
        %p359 = pneg %p130
        %p360 = pneg %p127
        %p361 = pneg %p151
        %p362 = pneg %p148
        %p363 = pneg %p172
        %p364 = pneg %p169
        %p365 = pneg %p193
        %p366 = pneg %p190
        %p367 = pneg %p214
        %p368 = pneg %p211
        %p369 = pneg %p235
        %p370 = pneg %p232
        %p371 = pneg %p256
        %p372 = pneg %p253
        %p373 = pneg %p282
        %p374 = pneg %p279
        %s375 = sand.u32 %s269, 1
        %s376 = scalar_lea.sflag [#allocation9], %s375
        %s377 = sand.u32 %s269, 1
        %s378 = scalar_lea.vmem [#allocation8], %s377
        %p379 = scmp.lt.s32.totalorder %s25, 1
        %s380 = scalar_select %p379, %s25, 1
        %s381 = smul.addr %s380, 100
        %s382 = smul.addr %s381, 8
        %s383 = scalar_lea.vmem %s0, %s382
        %v385 = vld [vmem:[%s383] sm:$0xff]
        %v386 = vld [vmem:[%s383 + $0x8] sm:$0xff]
        %v387 = vld [vmem:[%s383 + $0x10] sm:$0xff]
        %v388 = vld [vmem:[%s383 + $0x18] sm:$0xff]
        %v389 = vld [vmem:[%s383 + $0x20] sm:$0xff]
        %v390 = vld [vmem:[%s383 + $0x28] sm:$0xff]
        %v391 = vld [vmem:[%s383 + $0x30] sm:$0xff]
        %v392 = vld [vmem:[%s383 + $0x38] sm:$0xff]
        %v393 = vld [vmem:[%s383 + $0x40] sm:$0xff]
        %v394 = vld [vmem:[%s383 + $0x48] sm:$0xff]
        %v395 = vld [vmem:[%s383 + $0x50] sm:$0xff]
        %v396 = vld [vmem:[%s383 + $0x58] sm:$0xff]
        %v397 = vld [vmem:[%s383 + $0x60] sm:$0xff]
        %v398 = vld [vmem:[%s383 + $0x68] sm:$0xff]
        %v399 = vld [vmem:[%s383 + $0x70] sm:$0xff]
        %v400 = vld [vmem:[%s383 + $0x78] sm:$0xff]
        %v401 = vld [vmem:[%s383 + $0x80] sm:$0xff]
        %v402 = vld [vmem:[%s383 + $0x88] sm:$0xff]
        %v403 = vld [vmem:[%s383 + $0x90] sm:$0xff]
        %v404 = vld [vmem:[%s383 + $0x98] sm:$0xff]
        %v405 = vld [vmem:[%s383 + $0xa0] sm:$0xff]
        %v406 = vld [vmem:[%s383 + $0xa8] sm:$0xff]
        %v407 = vld [vmem:[%s383 + $0xb0] sm:$0xff]
        %v408 = vld [vmem:[%s383 + $0xb8] sm:$0xff]
        %v409 = vld [vmem:[%s383 + $0xc0] sm:$0xff]
        %v410 = vld [vmem:[%s383 + $0xc8] sm:$0xff]
        %v411 = vld [vmem:[%s383 + $0xd0] sm:$0xff]
        %v412 = vld [vmem:[%s383 + $0xd8] sm:$0xff]
        %v413 = vld [vmem:[%s383 + $0xe0] sm:$0xff]
        %v414 = vld [vmem:[%s383 + $0xe8] sm:$0xff]
        %v415 = vld [vmem:[%s383 + $0xf0] sm:$0xff]
        %v416 = vld [vmem:[%s383 + $0xf8] sm:$0xff]
        %v417 = vld [vmem:[%s383 + $0x100] sm:$0xff]
        %v418 = vld [vmem:[%s383 + $0x108] sm:$0xff]
        %v419 = vld [vmem:[%s383 + $0x110] sm:$0xff]
        %v420 = vld [vmem:[%s383 + $0x118] sm:$0xff]
        %v421 = vld [vmem:[%s383 + $0x120] sm:$0xff]
        %v422 = vld [vmem:[%s383 + $0x128] sm:$0xff]
        %v423 = vld [vmem:[%s383 + $0x130] sm:$0xff]
        %v424 = vld [vmem:[%s383 + $0x138] sm:$0xff]
        %v425 = vld [vmem:[%s383 + $0x140] sm:$0xff]
        %v426 = vld [vmem:[%s383 + $0x148] sm:$0xff]
        %v427 = vld [vmem:[%s383 + $0x150] sm:$0xff]
        %v428 = vld [vmem:[%s383 + $0x158] sm:$0xff]
        %v429 = vld [vmem:[%s383 + $0x160] sm:$0xff]
        %v430 = vld [vmem:[%s383 + $0x168] sm:$0xff]
        %v431 = vld [vmem:[%s383 + $0x170] sm:$0xff]
        %v432 = vld [vmem:[%s383 + $0x178] sm:$0xff]
        %v433 = vld [vmem:[%s383 + $0x180] sm:$0xff]
        %v434 = vld [vmem:[%s383 + $0x188] sm:$0xff]
        %v435 = vld [vmem:[%s383 + $0x190] sm:$0xff]
        %v436 = vld [vmem:[%s383 + $0x198] sm:$0xff]
        %v437 = vld [vmem:[%s383 + $0x1a0] sm:$0xff]
        %v438 = vld [vmem:[%s383 + $0x1a8] sm:$0xff]
        %v439 = vld [vmem:[%s383 + $0x1b0] sm:$0xff]
        %v440 = vld [vmem:[%s383 + $0x1b8] sm:$0xff]
        %v441 = vld [vmem:[%s383 + $0x1c0] sm:$0xff]
        %v442 = vld [vmem:[%s383 + $0x1c8] sm:$0xff]
        %v443 = vld [vmem:[%s383 + $0x1d0] sm:$0xff]
        %v444 = vld [vmem:[%s383 + $0x1d8] sm:$0xff]
        %v445 = vld [vmem:[%s383 + $0x1e0] sm:$0xff]
        %v446 = vld [vmem:[%s383 + $0x1e8] sm:$0xff]
        %v447 = vld [vmem:[%s383 + $0x1f0] sm:$0xff]
        %v448 = vld [vmem:[%s383 + $0x1f8] sm:$0xff]
        %v449 = vld [vmem:[%s383 + $0x200] sm:$0xff]
        %v450 = vld [vmem:[%s383 + $0x208] sm:$0xff]
        %v451 = vld [vmem:[%s383 + $0x210] sm:$0xff]
        %v452 = vld [vmem:[%s383 + $0x218] sm:$0xff]
        %v453 = vld [vmem:[%s383 + $0x220] sm:$0xff]
        %v454 = vld [vmem:[%s383 + $0x228] sm:$0xff]
        %v455 = vld [vmem:[%s383 + $0x230] sm:$0xff]
        %v456 = vld [vmem:[%s383 + $0x238] sm:$0xff]
        %v457 = vld [vmem:[%s383 + $0x240] sm:$0xff]
        %v458 = vld [vmem:[%s383 + $0x248] sm:$0xff]
        %v459 = vld [vmem:[%s383 + $0x250] sm:$0xff]
        %v460 = vld [vmem:[%s383 + $0x258] sm:$0xff]
        %v461 = vld [vmem:[%s383 + $0x260] sm:$0xff]
        %v462 = vld [vmem:[%s383 + $0x268] sm:$0xff]
        %v463 = vld [vmem:[%s383 + $0x270] sm:$0xff]
        %v464 = vld [vmem:[%s383 + $0x278] sm:$0xff]
        %v465 = vld [vmem:[%s383 + $0x280] sm:$0xff]
        %v466 = vld [vmem:[%s383 + $0x288] sm:$0xff]
        %v467 = vld [vmem:[%s383 + $0x290] sm:$0xff]
        %v468 = vld [vmem:[%s383 + $0x298] sm:$0xff]
        %v469 = vld [vmem:[%s383 + $0x2a0] sm:$0xff]
        %v470 = vld [vmem:[%s383 + $0x2a8] sm:$0xff]
        %v471 = vld [vmem:[%s383 + $0x2b0] sm:$0xff]
        %v472 = vld [vmem:[%s383 + $0x2b8] sm:$0xff]
        %v473 = vld [vmem:[%s383 + $0x2c0] sm:$0xff]
        %v474 = vld [vmem:[%s383 + $0x2c8] sm:$0xff]
        %v475 = vld [vmem:[%s383 + $0x2d0] sm:$0xff]
        %v476 = vld [vmem:[%s383 + $0x2d8] sm:$0xff]
        %v477 = vld [vmem:[%s383 + $0x2e0] sm:$0xff]
        %v478 = vld [vmem:[%s383 + $0x2e8] sm:$0xff]
        %v479 = vld [vmem:[%s383 + $0x2f0] sm:$0xff]
        %v480 = vld [vmem:[%s383 + $0x2f8] sm:$0xff]
        %v481 = vld [vmem:[%s383 + $0x300] sm:$0xff]
        %v482 = vld [vmem:[%s383 + $0x308] sm:$0xff]
        %v483 = vld [vmem:[%s383 + $0x310] sm:$0xff]
        %v484 = vld [vmem:[%s383 + $0x318] sm:$0xff]
        %v485 = vld [vmem:[%s1] sm:$0xff]
        %v486 = vld [vmem:[%s1 + $0x8] sm:$0xff]
        %v487 = vld [vmem:[%s1 + $0x10] sm:$0xff]
        %v488 = vld [vmem:[%s1 + $0x18] sm:$0xff]
        %v489 = vld [vmem:[%s1 + $0x20] sm:$0xff]
        %v490 = vld [vmem:[%s1 + $0x28] sm:$0xff]
        %v491 = vld [vmem:[%s1 + $0x30] sm:$0xff]
        %v492 = vld [vmem:[%s1 + $0x38] sm:$0xff]
        %v493 = vld [vmem:[%s1 + $0x40] sm:$0xff]
        %v494 = vld [vmem:[%s1 + $0x48] sm:$0xff]
        %v495 = vld [vmem:[%s1 + $0x50] sm:$0xff]
        %v496 = vld [vmem:[%s1 + $0x58] sm:$0xff]
        %v497 = vld [vmem:[%s1 + $0x60] sm:$0xff]
        %v498 = vld [vmem:[%s1 + $0x68] sm:$0xff]
        %v499 = vld [vmem:[%s1 + $0x70] sm:$0xff]
        %v500 = vld [vmem:[%s1 + $0x78] sm:$0xff]
        %v501 = vld [vmem:[%s1 + $0x80] sm:$0xff]
        %v502 = vld [vmem:[%s1 + $0x88] sm:$0xff]
        %v503 = vld [vmem:[%s1 + $0x90] sm:$0xff]
        %v504 = vld [vmem:[%s1 + $0x98] sm:$0xff]
        %v505 = vld [vmem:[%s1 + $0xa0] sm:$0xff]
        %v506 = vld [vmem:[%s1 + $0xa8] sm:$0xff]
        %v507 = vld [vmem:[%s1 + $0xb0] sm:$0xff]
        %v508 = vld [vmem:[%s1 + $0xb8] sm:$0xff]
        %v509 = vld [vmem:[%s1 + $0xc0] sm:$0xff]
        %v510 = vld [vmem:[%s1 + $0xc8] sm:$0xff]
        %v511 = vld [vmem:[%s1 + $0xd0] sm:$0xff]
        %v512 = vld [vmem:[%s1 + $0xd8] sm:$0xff]
        %v513 = vld [vmem:[%s1 + $0xe0] sm:$0xff]
        %v514 = vld [vmem:[%s1 + $0xe8] sm:$0xff]
        %v515 = vld [vmem:[%s1 + $0xf0] sm:$0xff]
        %v516 = vld [vmem:[%s1 + $0xf8] sm:$0xff]
        %v517 = vld [vmem:[%s2] sm:$0x1]
        %v519 = vlaneseq
        %v520 = vshrl.u32 %v519, 7
        %v521 = vsub.s32 0, %v520
        %v522 = vrot.slane %v517, %v521
        %524 = vmatprep.subr.mxu0 0.0
        %525 = vmatpush1.msra.mxu0 %v485
        %526 = vmatprep.subr.mxu0 0.0
        %527 = vmatpush1.msra.mxu0 %v486
        %528 = vmatprep.subr.mxu0 0.0
        %529 = vmatpush1.msra.mxu0 %v487
        %530 = vmatprep.subr.mxu0 0.0
        %531 = vmatpush1.msra.mxu0 %v488
        %532 = vmatprep.subr.mxu0 0.0
        %533 = vmatpush1.msra.mxu0 %v489
        %534 = vmatprep.subr.mxu0 0.0
        %535 = vmatpush1.msra.mxu0 %v490
        %536 = vmatprep.subr.mxu0 0.0
        %537 = vmatpush1.msra.mxu0 %v491
        %538 = vmatprep.subr.mxu0 0.0
        %539 = vmatpush1.msra.mxu0 %v492
        %540 = vmatprep.subr.mxu0 0.0
        %541 = vmatpush1.msra.mxu0 %v493
        %542 = vmatprep.subr.mxu0 0.0
        %543 = vmatpush1.msra.mxu0 %v494
        %544 = vmatprep.subr.mxu0 0.0
        %545 = vmatpush1.msra.mxu0 %v495
        %546 = vmatprep.subr.mxu0 0.0
        %547 = vmatpush1.msra.mxu0 %v496
        %548 = vmatprep.subr.mxu0 0.0
        %549 = vmatpush1.msra.mxu0 %v497
        %550 = vmatprep.subr.mxu0 0.0
        %551 = vmatpush1.msra.mxu0 %v498
        %552 = vmatprep.subr.mxu0 0.0
        %553 = vmatpush1.msra.mxu0 %v499
        %554 = vmatprep.subr.mxu0 0.0
        %555 = vmatpush1.msra.mxu0 %v500
        %556 = vmatprep.subr.mxu0 0.0
        %557 = vmatpush1.msra.mxu0 %v501
        %558 = vmatprep.subr.mxu0 0.0
        %559 = vmatpush1.msra.mxu0 %v502
        %560 = vmatprep.subr.mxu0 0.0
        %561 = vmatpush1.msra.mxu0 %v503
        %562 = vmatprep.subr.mxu0 0.0
        %563 = vmatpush1.msra.mxu0 %v504
        %564 = vmatprep.subr.mxu0 0.0
        %565 = vmatpush1.msra.mxu0 %v505
        %566 = vmatprep.subr.mxu0 0.0
        %567 = vmatpush1.msra.mxu0 %v506
        %568 = vmatprep.subr.mxu0 0.0
        %569 = vmatpush1.msra.mxu0 %v507
        %570 = vmatprep.subr.mxu0 0.0
        %571 = vmatpush1.msra.mxu0 %v508
        %572 = vmatprep.subr.mxu0 0.0
        %573 = vmatpush1.msra.mxu0 %v509
        %574 = vmatprep.subr.mxu0 0.0
        %575 = vmatpush1.msra.mxu0 %v510
        %576 = vmatprep.subr.mxu0 0.0
        %577 = vmatpush1.msra.mxu0 %v511
        %578 = vmatprep.subr.mxu0 0.0
        %579 = vmatpush1.msra.mxu0 %v512
        %580 = vmatprep.subr.mxu0 0.0
        %581 = vmatpush1.msra.mxu0 %v513
        %582 = vmatprep.subr.mxu0 0.0
        %583 = vmatpush1.msra.mxu0 %v514
        %584 = vmatprep.subr.mxu0 0.0
        %585 = vmatpush1.msra.mxu0 %v515
        %586 = vmatprep.subr.mxu0 0.0
        %587 = vmatpush1.msra.mxu0 %v516
        %588 = vmatprep.mubr.f32.mxu0 %v386
        %589 = vmatmul.mubr.f32.gmra.mrb[0].mxu0 %v385
        %v590 = vpop.f32.mrb[0].mxu0
        %v591 = vadd.f32 %v522, %v590
        %v592 = vpop.f32.mrb[0].mxu0
        %593 = vmatprep.mubr.f32.mxu0 %v388
        %594 = vmatmul.mubr.f32.gmra.mrb[0].mxu0 %v387
        %v595 = vpop.f32.mrb[0].mxu0
        %v596 = vadd.f32 %v522, %v595
        %v597 = vpop.f32.mrb[0].mxu0
        %598 = vmatprep.mubr.f32.mxu0 %v390
        %599 = vmatmul.mubr.f32.gmra.mrb[0].mxu0 %v389
        %v600 = vpop.f32.mrb[0].mxu0
        %v601 = vadd.f32 %v522, %v600
        %v602 = vpop.f32.mrb[0].mxu0
        %603 = vmatprep.mubr.f32.mxu0 %v392
        %604 = vmatmul.mubr.f32.gmra.mrb[0].mxu0 %v391
        %v605 = vpop.f32.mrb[0].mxu0
        %v606 = vadd.f32 %v522, %v605
        %v607 = vpop.f32.mrb[0].mxu0
        %608 = vmatprep.mubr.f32.mxu0 %v394
        %609 = vmatmul.mubr.f32.gmra.mrb[0].mxu0 %v393
        %v610 = vpop.f32.mrb[0].mxu0
        %v611 = vadd.f32 %v522, %v610
        %v612 = vpop.f32.mrb[0].mxu0
        %613 = vmatprep.mubr.f32.mxu0 %v396
        %614 = vmatmul.mubr.f32.gmra.mrb[0].mxu0 %v395
        %v615 = vpop.f32.mrb[0].mxu0
        %v616 = vadd.f32 %v522, %v615
        %v617 = vpop.f32.mrb[0].mxu0
        %618 = vmatprep.mubr.f32.mxu0 %v398
        %619 = vmatmul.mubr.f32.gmra.mrb[0].mxu0 %v397
        %v620 = vpop.f32.mrb[0].mxu0
        %v621 = vadd.f32 %v522, %v620
        %v622 = vpop.f32.mrb[0].mxu0
        %623 = vmatprep.mubr.f32.mxu0 %v400
        %624 = vmatmul.mubr.f32.gmra.mrb[0].mxu0 %v399
        %v625 = vpop.f32.mrb[0].mxu0
        %v626 = vadd.f32 %v522, %v625
        %v627 = vpop.f32.mrb[0].mxu0
        %628 = vmatprep.mubr.f32.mxu0 %v402
        %629 = vmatmul.mubr.f32.gmra.mrb[0].mxu0 %v401
        %v630 = vpop.f32.mrb[0].mxu0
        %v631 = vadd.f32 %v522, %v630
        %v632 = vpop.f32.mrb[0].mxu0
        %633 = vmatprep.mubr.f32.mxu0 %v404
        %634 = vmatmul.mubr.f32.gmra.mrb[0].mxu0 %v403
        %v635 = vpop.f32.mrb[0].mxu0
        %v636 = vadd.f32 %v522, %v635
        %v637 = vpop.f32.mrb[0].mxu0
        %638 = vmatprep.mubr.f32.mxu0 %v406
        %639 = vmatmul.mubr.f32.gmra.mrb[0].mxu0 %v405
        %v640 = vpop.f32.mrb[0].mxu0
        %v641 = vadd.f32 %v522, %v640
        %v642 = vpop.f32.mrb[0].mxu0
        %643 = vmatprep.mubr.f32.mxu0 %v408
        %644 = vmatmul.mubr.f32.gmra.mrb[0].mxu0 %v407
        %v645 = vpop.f32.mrb[0].mxu0
        %v646 = vadd.f32 %v522, %v645
        %v647 = vpop.f32.mrb[0].mxu0
        %648 = vmatprep.mubr.f32.mxu0 %v410
        %649 = vmatmul.mubr.f32.gmra.mrb[0].mxu0 %v409
        %v650 = vpop.f32.mrb[0].mxu0
        %v651 = vadd.f32 %v522, %v650
        %v652 = vpop.f32.mrb[0].mxu0
        %653 = vmatprep.mubr.f32.mxu0 %v412
        %654 = vmatmul.mubr.f32.gmra.mrb[0].mxu0 %v411
        %v655 = vpop.f32.mrb[0].mxu0
        %v656 = vadd.f32 %v522, %v655
        %v657 = vpop.f32.mrb[0].mxu0
        %658 = vmatprep.mubr.f32.mxu0 %v414
        %659 = vmatmul.mubr.f32.gmra.mrb[0].mxu0 %v413
        %v660 = vpop.f32.mrb[0].mxu0
        %v661 = vadd.f32 %v522, %v660
        %v662 = vpop.f32.mrb[0].mxu0
        %663 = vmatprep.mubr.f32.mxu0 %v416
        %664 = vmatmul.mubr.f32.gmra.mrb[0].mxu0 %v415
        %v665 = vpop.f32.mrb[0].mxu0
        %v666 = vadd.f32 %v522, %v665
        %v667 = vpop.f32.mrb[0].mxu0
        %668 = vmatprep.mubr.f32.mxu0 %v418
        %669 = vmatmul.mubr.f32.gmra.mrb[0].mxu0 %v417
        %v670 = vpop.f32.mrb[0].mxu0
        %v671 = vadd.f32 %v522, %v670
        %v672 = vpop.f32.mrb[0].mxu0
        %673 = vmatprep.mubr.f32.mxu0 %v420
        %674 = vmatmul.mubr.f32.gmra.mrb[0].mxu0 %v419
        %v675 = vpop.f32.mrb[0].mxu0
        %v676 = vadd.f32 %v522, %v675
        %v677 = vpop.f32.mrb[0].mxu0
        %678 = vmatprep.mubr.f32.mxu0 %v422
        %679 = vmatmul.mubr.f32.gmra.mrb[0].mxu0 %v421
        %v680 = vpop.f32.mrb[0].mxu0
        %v681 = vadd.f32 %v522, %v680
        %v682 = vpop.f32.mrb[0].mxu0
        %683 = vmatprep.mubr.f32.mxu0 %v424
        %684 = vmatmul.mubr.f32.gmra.mrb[0].mxu0 %v423
        %v685 = vpop.f32.mrb[0].mxu0
        %v686 = vadd.f32 %v522, %v685
        %v687 = vpop.f32.mrb[0].mxu0
        %688 = vmatprep.mubr.f32.mxu0 %v426
        %689 = vmatmul.mubr.f32.gmra.mrb[0].mxu0 %v425
        %v690 = vpop.f32.mrb[0].mxu0
        %v691 = vadd.f32 %v522, %v690
        %v692 = vpop.f32.mrb[0].mxu0
        %693 = vmatprep.mubr.f32.mxu0 %v428
        %694 = vmatmul.mubr.f32.gmra.mrb[0].mxu0 %v427
        %v695 = vpop.f32.mrb[0].mxu0
        %v696 = vadd.f32 %v522, %v695
        %v697 = vpop.f32.mrb[0].mxu0
        %698 = vmatprep.mubr.f32.mxu0 %v430
        %699 = vmatmul.mubr.f32.gmra.mrb[0].mxu0 %v429
        %v700 = vpop.f32.mrb[0].mxu0
        %v701 = vadd.f32 %v522, %v700
        %v702 = vpop.f32.mrb[0].mxu0
        %703 = vmatprep.mubr.f32.mxu0 %v432
        %704 = vmatmul.mubr.f32.gmra.mrb[0].mxu0 %v431
        %v705 = vpop.f32.mrb[0].mxu0
        %v706 = vadd.f32 %v522, %v705
        %v707 = vpop.f32.mrb[0].mxu0
        %708 = vmatprep.mubr.f32.mxu0 %v434
        %709 = vmatmul.mubr.f32.gmra.mrb[0].mxu0 %v433
        %v710 = vpop.f32.mrb[0].mxu0
        %v711 = vadd.f32 %v522, %v710
        %v712 = vpop.f32.mrb[0].mxu0
        %713 = vmatprep.mubr.f32.mxu0 %v436
        %714 = vmatmul.mubr.f32.gmra.mrb[0].mxu0 %v435
        %v715 = vpop.f32.mrb[0].mxu0
        %v716 = vadd.f32 %v522, %v715
        %v717 = vpop.f32.mrb[0].mxu0
        %718 = vmatprep.mubr.f32.mxu0 %v438
        %719 = vmatmul.mubr.f32.gmra.mrb[0].mxu0 %v437
        %v720 = vpop.f32.mrb[0].mxu0
        %v721 = vadd.f32 %v522, %v720
        %v722 = vpop.f32.mrb[0].mxu0
        %723 = vmatprep.mubr.f32.mxu0 %v440
        %724 = vmatmul.mubr.f32.gmra.mrb[0].mxu0 %v439
        %v725 = vpop.f32.mrb[0].mxu0
        %v726 = vadd.f32 %v522, %v725
        %v727 = vpop.f32.mrb[0].mxu0
        %728 = vmatprep.mubr.f32.mxu0 %v442
        %729 = vmatmul.mubr.f32.gmra.mrb[0].mxu0 %v441
        %v730 = vpop.f32.mrb[0].mxu0
        %v731 = vadd.f32 %v522, %v730
        %v732 = vpop.f32.mrb[0].mxu0
        %733 = vmatprep.mubr.f32.mxu0 %v444
        %734 = vmatmul.mubr.f32.gmra.mrb[0].mxu0 %v443
        %v735 = vpop.f32.mrb[0].mxu0
        %v736 = vadd.f32 %v522, %v735
        %v737 = vpop.f32.mrb[0].mxu0
        %738 = vmatprep.mubr.f32.mxu0 %v446
        %739 = vmatmul.mubr.f32.gmra.mrb[0].mxu0 %v445
        %v740 = vpop.f32.mrb[0].mxu0
        %v741 = vadd.f32 %v522, %v740
        %v742 = vpop.f32.mrb[0].mxu0
        %743 = vmatprep.mubr.f32.mxu0 %v448
        %744 = vmatmul.mubr.f32.gmra.mrb[0].mxu0 %v447
        %v745 = vpop.f32.mrb[0].mxu0
        %v746 = vadd.f32 %v522, %v745
        %v747 = vpop.f32.mrb[0].mxu0
        %748 = vmatprep.mubr.f32.mxu0 %v450
        %749 = vmatmul.mubr.f32.gmra.mrb[0].mxu0 %v449
        %v750 = vpop.f32.mrb[0].mxu0
        %v751 = vadd.f32 %v522, %v750
        %v752 = vpop.f32.mrb[0].mxu0
        %753 = vmatprep.mubr.f32.mxu0 %v452
        %754 = vmatmul.mubr.f32.gmra.mrb[0].mxu0 %v451
        %v755 = vpop.f32.mrb[0].mxu0
        %v756 = vadd.f32 %v522, %v755
        %v757 = vpop.f32.mrb[0].mxu0
        %758 = vmatprep.mubr.f32.mxu0 %v454
        %759 = vmatmul.mubr.f32.gmra.mrb[0].mxu0 %v453
        %v760 = vpop.f32.mrb[0].mxu0
        %v761 = vadd.f32 %v522, %v760
        %v762 = vpop.f32.mrb[0].mxu0
        %763 = vmatprep.mubr.f32.mxu0 %v456
        %764 = vmatmul.mubr.f32.gmra.mrb[0].mxu0 %v455
        %v765 = vpop.f32.mrb[0].mxu0
        %v766 = vadd.f32 %v522, %v765
        %v767 = vpop.f32.mrb[0].mxu0
        %768 = vmatprep.mubr.f32.mxu0 %v458
        %769 = vmatmul.mubr.f32.gmra.mrb[0].mxu0 %v457
        %v770 = vpop.f32.mrb[0].mxu0
        %v771 = vadd.f32 %v522, %v770
        %v772 = vpop.f32.mrb[0].mxu0
        %773 = vmatprep.mubr.f32.mxu0 %v460
        %774 = vmatmul.mubr.f32.gmra.mrb[0].mxu0 %v459
        %v775 = vpop.f32.mrb[0].mxu0
        %v776 = vadd.f32 %v522, %v775
        %v777 = vpop.f32.mrb[0].mxu0
        %778 = vmatprep.mubr.f32.mxu0 %v462
        %779 = vmatmul.mubr.f32.gmra.mrb[0].mxu0 %v461
        %v780 = vpop.f32.mrb[0].mxu0
        %v781 = vadd.f32 %v522, %v780
        %v782 = vpop.f32.mrb[0].mxu0
        %783 = vmatprep.mubr.f32.mxu0 %v464
        %784 = vmatmul.mubr.f32.gmra.mrb[0].mxu0 %v463
        %v785 = vpop.f32.mrb[0].mxu0
        %v786 = vadd.f32 %v522, %v785
        %v787 = vpop.f32.mrb[0].mxu0
        %788 = vmatprep.mubr.f32.mxu0 %v466
        %789 = vmatmul.mubr.f32.gmra.mrb[0].mxu0 %v465
        %v790 = vpop.f32.mrb[0].mxu0
        %v791 = vadd.f32 %v522, %v790
        %v792 = vpop.f32.mrb[0].mxu0
        %793 = vmatprep.mubr.f32.mxu0 %v468
        %794 = vmatmul.mubr.f32.gmra.mrb[0].mxu0 %v467
        %v795 = vpop.f32.mrb[0].mxu0
        %v796 = vadd.f32 %v522, %v795
        %v797 = vpop.f32.mrb[0].mxu0
        %798 = vmatprep.mubr.f32.mxu0 %v470
        %799 = vmatmul.mubr.f32.gmra.mrb[0].mxu0 %v469
        %v800 = vpop.f32.mrb[0].mxu0
        %v801 = vadd.f32 %v522, %v800
        %v802 = vpop.f32.mrb[0].mxu0
        %803 = vmatprep.mubr.f32.mxu0 %v472
        %804 = vmatmul.mubr.f32.gmra.mrb[0].mxu0 %v471
        %v805 = vpop.f32.mrb[0].mxu0
        %v806 = vadd.f32 %v522, %v805
        %v807 = vpop.f32.mrb[0].mxu0
        %808 = vmatprep.mubr.f32.mxu0 %v474
        %809 = vmatmul.mubr.f32.gmra.mrb[0].mxu0 %v473
        %v810 = vpop.f32.mrb[0].mxu0
        %v811 = vadd.f32 %v522, %v810
        %v812 = vpop.f32.mrb[0].mxu0
        %813 = vmatprep.mubr.f32.mxu0 %v476
        %814 = vmatmul.mubr.f32.gmra.mrb[0].mxu0 %v475
        %v815 = vpop.f32.mrb[0].mxu0
        %v816 = vadd.f32 %v522, %v815
        %v817 = vpop.f32.mrb[0].mxu0
        %818 = vmatprep.mubr.f32.mxu0 %v478
        %819 = vmatmul.mubr.f32.gmra.mrb[0].mxu0 %v477
        %v820 = vpop.f32.mrb[0].mxu0
        %v821 = vadd.f32 %v522, %v820
        %v822 = vpop.f32.mrb[0].mxu0
        %823 = vmatprep.mubr.f32.mxu0 %v480
        %824 = vmatmul.mubr.f32.gmra.mrb[0].mxu0 %v479
        %v825 = vpop.f32.mrb[0].mxu0
        %v826 = vadd.f32 %v522, %v825
        %v827 = vpop.f32.mrb[0].mxu0
        %828 = vmatprep.mubr.f32.mxu0 %v482
        %829 = vmatmul.mubr.f32.gmra.mrb[0].mxu0 %v481
        %v830 = vpop.f32.mrb[0].mxu0
        %v831 = vadd.f32 %v522, %v830
        %v832 = vpop.f32.mrb[0].mxu0
        %833 = vmatprep.mubr.f32.mxu0 %v484
        %834 = vmatmul.mubr.f32.gmra.mrb[0].mxu0 %v483
        %v835 = vpop.f32.mrb[0].mxu0
        %v836 = vadd.f32 %v522, %v835
        %v837 = vpop.f32.mrb[0].mxu0
        %838 = vdwg.mxu0
        %v839 = vmax.f32 %v591, 0.0
        %v840 = vmax.f32 %v596, 0.0
        %v841 = vmax.f32 %v601, 0.0
        %v842 = vmax.f32 %v606, 0.0
        %v843 = vmax.f32 %v611, 0.0
        %v844 = vmax.f32 %v616, 0.0
        %v845 = vmax.f32 %v621, 0.0
        %v846 = vmax.f32 %v626, 0.0
        %v847 = vmax.f32 %v631, 0.0
        %v848 = vmax.f32 %v636, 0.0
        %v849 = vmax.f32 %v641, 0.0
        %v850 = vmax.f32 %v646, 0.0
        %v851 = vmax.f32 %v651, 0.0
        %v852 = vmax.f32 %v656, 0.0
        %v853 = vmax.f32 %v661, 0.0
        %v854 = vmax.f32 %v666, 0.0
        %v855 = vmax.f32 %v671, 0.0
        %v856 = vmax.f32 %v676, 0.0
        %v857 = vmax.f32 %v681, 0.0
        %v858 = vmax.f32 %v686, 0.0
        %v859 = vmax.f32 %v691, 0.0
        %v860 = vmax.f32 %v696, 0.0
        %v861 = vmax.f32 %v701, 0.0
        %v862 = vmax.f32 %v706, 0.0
        %v863 = vmax.f32 %v711, 0.0
        %v864 = vmax.f32 %v716, 0.0
        %v865 = vmax.f32 %v721, 0.0
        %v866 = vmax.f32 %v726, 0.0
        %v867 = vmax.f32 %v731, 0.0
        %v868 = vmax.f32 %v736, 0.0
        %v869 = vmax.f32 %v741, 0.0
        %v870 = vmax.f32 %v746, 0.0
        %v871 = vmax.f32 %v751, 0.0
        %v872 = vmax.f32 %v756, 0.0
        %v873 = vmax.f32 %v761, 0.0
        %v874 = vmax.f32 %v766, 0.0
        %v875 = vmax.f32 %v771, 0.0
        %v876 = vmax.f32 %v776, 0.0
        %v877 = vmax.f32 %v781, 0.0
        %v878 = vmax.f32 %v786, 0.0
        %v879 = vmax.f32 %v791, 0.0
        %v880 = vmax.f32 %v796, 0.0
        %v881 = vmax.f32 %v801, 0.0
        %v882 = vmax.f32 %v806, 0.0
        %v883 = vmax.f32 %v811, 0.0
        %v884 = vmax.f32 %v816, 0.0
        %v885 = vmax.f32 %v821, 0.0
        %v886 = vmax.f32 %v826, 0.0
        %v887 = vmax.f32 %v831, 0.0
        %v888 = vmax.f32 %v836, 0.0
        %vm889 = vcmask 261120
        %890 = vst.msk [vmem:[#allocation2] sm:$0xff] %vm889, %v839
        %891 = vst.msk [vmem:[#allocation2 + $0x8] sm:$0xff] %vm889, %v840
        %892 = vst.msk [vmem:[#allocation2 + $0x10] sm:$0xff] %vm889, %v841
        %893 = vst.msk [vmem:[#allocation2 + $0x18] sm:$0xff] %vm889, %v842
        %894 = vst.msk [vmem:[#allocation2 + $0x20] sm:$0xff] %vm889, %v843
        %895 = vst.msk [vmem:[#allocation2 + $0x28] sm:$0xff] %vm889, %v844
        %896 = vst.msk [vmem:[#allocation2 + $0x30] sm:$0xff] %vm889, %v845
        %897 = vst.msk [vmem:[#allocation2 + $0x38] sm:$0xff] %vm889, %v846
        %898 = vst.msk [vmem:[#allocation2 + $0x40] sm:$0xff] %vm889, %v847
        %899 = vst.msk [vmem:[#allocation2 + $0x48] sm:$0xff] %vm889, %v848
        %900 = vst.msk [vmem:[#allocation2 + $0x50] sm:$0xff] %vm889, %v849
        %901 = vst.msk [vmem:[#allocation2 + $0x58] sm:$0xff] %vm889, %v850
        %902 = vst.msk [vmem:[#allocation2 + $0x60] sm:$0xff] %vm889, %v851
        %903 = vst.msk [vmem:[#allocation2 + $0x68] sm:$0xff] %vm889, %v852
        %904 = vst.msk [vmem:[#allocation2 + $0x70] sm:$0xff] %vm889, %v853
        %905 = vst.msk [vmem:[#allocation2 + $0x78] sm:$0xff] %vm889, %v854
        %906 = vst.msk [vmem:[#allocation2 + $0x80] sm:$0xff] %vm889, %v855
        %907 = vst.msk [vmem:[#allocation2 + $0x88] sm:$0xff] %vm889, %v856
        %908 = vst.msk [vmem:[#allocation2 + $0x90] sm:$0xff] %vm889, %v857
        %909 = vst.msk [vmem:[#allocation2 + $0x98] sm:$0xff] %vm889, %v858
        %910 = vst.msk [vmem:[#allocation2 + $0xa0] sm:$0xff] %vm889, %v859
        %911 = vst.msk [vmem:[#allocation2 + $0xa8] sm:$0xff] %vm889, %v860
        %912 = vst.msk [vmem:[#allocation2 + $0xb0] sm:$0xff] %vm889, %v861
        %913 = vst.msk [vmem:[#allocation2 + $0xb8] sm:$0xff] %vm889, %v862
        %914 = vst.msk [vmem:[#allocation2 + $0xc0] sm:$0xff] %vm889, %v863
        %915 = vst.msk [vmem:[#allocation2 + $0xc8] sm:$0xff] %vm889, %v864
        %916 = vst.msk [vmem:[#allocation2 + $0xd0] sm:$0xff] %vm889, %v865
        %917 = vst.msk [vmem:[#allocation2 + $0xd8] sm:$0xff] %vm889, %v866
        %918 = vst.msk [vmem:[#allocation2 + $0xe0] sm:$0xff] %vm889, %v867
        %919 = vst.msk [vmem:[#allocation2 + $0xe8] sm:$0xff] %vm889, %v868
        %920 = vst.msk [vmem:[#allocation2 + $0xf0] sm:$0xff] %vm889, %v869
        %921 = vst.msk [vmem:[#allocation2 + $0xf8] sm:$0xff] %vm889, %v870
        %922 = vst.msk [vmem:[#allocation2 + $0x100] sm:$0xff] %vm889, %v871
        %923 = vst.msk [vmem:[#allocation2 + $0x108] sm:$0xff] %vm889, %v872
        %924 = vst.msk [vmem:[#allocation2 + $0x110] sm:$0xff] %vm889, %v873
        %925 = vst.msk [vmem:[#allocation2 + $0x118] sm:$0xff] %vm889, %v874
        %926 = vst.msk [vmem:[#allocation2 + $0x120] sm:$0xff] %vm889, %v875
        %927 = vst.msk [vmem:[#allocation2 + $0x128] sm:$0xff] %vm889, %v876
        %928 = vst.msk [vmem:[#allocation2 + $0x130] sm:$0xff] %vm889, %v877
        %929 = vst.msk [vmem:[#allocation2 + $0x138] sm:$0xff] %vm889, %v878
        %930 = vst.msk [vmem:[#allocation2 + $0x140] sm:$0xff] %vm889, %v879
        %931 = vst.msk [vmem:[#allocation2 + $0x148] sm:$0xff] %vm889, %v880
        %932 = vst.msk [vmem:[#allocation2 + $0x150] sm:$0xff] %vm889, %v881
        %933 = vst.msk [vmem:[#allocation2 + $0x158] sm:$0xff] %vm889, %v882
        %934 = vst.msk [vmem:[#allocation2 + $0x160] sm:$0xff] %vm889, %v883
        %935 = vst.msk [vmem:[#allocation2 + $0x168] sm:$0xff] %vm889, %v884
        %936 = vst.msk [vmem:[#allocation2 + $0x170] sm:$0xff] %vm889, %v885
        %937 = vst.msk [vmem:[#allocation2 + $0x178] sm:$0xff] %vm889, %v886
        %938 = vst.msk [vmem:[#allocation2 + $0x180] sm:$0xff] %vm889, %v887
        %939 = vst.msk [vmem:[#allocation2 + $0x188] sm:$0xff] %vm889, %v888
        %v940 = vld [vmem:[#allocation2] sm:$0xff]
        %v941 = vld [vmem:[#allocation2 + $0x8] sm:$0xff]
        %v942 = vld [vmem:[#allocation2 + $0x10] sm:$0xff]
        %v943 = vld [vmem:[#allocation2 + $0x18] sm:$0xff]
        %v944 = vld [vmem:[#allocation2 + $0x20] sm:$0xff]
        %v945 = vld [vmem:[#allocation2 + $0x28] sm:$0xff]
        %v946 = vld [vmem:[#allocation2 + $0x30] sm:$0xff]
        %v947 = vld [vmem:[#allocation2 + $0x38] sm:$0xff]
        %v948 = vld [vmem:[#allocation2 + $0x40] sm:$0xff]
        %v949 = vld [vmem:[#allocation2 + $0x48] sm:$0xff]
        %v950 = vld [vmem:[#allocation2 + $0x50] sm:$0xff]
        %v951 = vld [vmem:[#allocation2 + $0x58] sm:$0x1]
        %952 = vst.msk [vmem:[#allocation3] sm:$0xff] %vm889, %v940
        %953 = vst.msk [vmem:[#allocation3 + $0x20] sm:$0xff] %vm889, %v941
        %954 = vst.msk [vmem:[#allocation3 + $0x40] sm:$0xff] %vm889, %v942
        %955 = vst.msk [vmem:[#allocation3 + $0x60] sm:$0xff] %vm889, %v943
        %956 = vst.msk [vmem:[#allocation3 + $0x80] sm:$0xff] %vm889, %v944
        %957 = vst.msk [vmem:[#allocation3 + $0xa0] sm:$0xff] %vm889, %v945
        %958 = vst.msk [vmem:[#allocation3 + $0xc0] sm:$0xff] %vm889, %v946
        %959 = vst.msk [vmem:[#allocation3 + $0xe0] sm:$0xff] %vm889, %v947
        %960 = vst.msk [vmem:[#allocation3 + $0x100] sm:$0xff] %vm889, %v948
        %961 = vst.msk [vmem:[#allocation3 + $0x120] sm:$0xff] %vm889, %v949
        %962 = vst.msk [vmem:[#allocation3 + $0x140] sm:$0xff] %vm889, %v950
        %vm963 = vcmask 253952
        %964 = vst.msk [vmem:[#allocation3 + $0x160] sm:$0x1] %vm963, %v951
        %v965 = vld [vmem:[#allocation2 + $0x64] sm:$0xff]
        %v966 = vld [vmem:[#allocation2 + $0x6c] sm:$0xff]
        %v967 = vld [vmem:[#allocation2 + $0x74] sm:$0xff]
        %v968 = vld [vmem:[#allocation2 + $0x7c] sm:$0xff]
        %v969 = vld [vmem:[#allocation2 + $0x84] sm:$0xff]
        %v970 = vld [vmem:[#allocation2 + $0x8c] sm:$0xff]
        %v971 = vld [vmem:[#allocation2 + $0x94] sm:$0xff]
        %v972 = vld [vmem:[#allocation2 + $0x9c] sm:$0xff]
        %v973 = vld [vmem:[#allocation2 + $0xa4] sm:$0xff]
        %v974 = vld [vmem:[#allocation2 + $0xac] sm:$0xff]
        %v975 = vld [vmem:[#allocation2 + $0xb4] sm:$0xff]
        %v976 = vld [vmem:[#allocation2 + $0xbc] sm:$0x1]
        %989 = vrot.lane.b32.xlu0 %v965, 32
        %v990 = vpop.permute.xlu0 %989
        %991 = vrot.lane.b32.xlu0 %v966, 32
        %v992 = vpop.permute.xlu0 %991
        %993 = vrot.lane.b32.xlu0 %v967, 32
        %v994 = vpop.permute.xlu0 %993
        %995 = vrot.lane.b32.xlu0 %v968, 32
        %v996 = vpop.permute.xlu0 %995
        %997 = vrot.lane.b32.xlu0 %v969, 32
        %v998 = vpop.permute.xlu0 %997
        %999 = vrot.lane.b32.xlu0 %v970, 32
        %v1000 = vpop.permute.xlu0 %999
        %1001 = vrot.lane.b32.xlu0 %v971, 32
        %v1002 = vpop.permute.xlu0 %1001
        %1003 = vrot.lane.b32.xlu0 %v972, 32
        %v1004 = vpop.permute.xlu0 %1003
        %1005 = vrot.lane.b32.xlu0 %v973, 32
        %v1006 = vpop.permute.xlu0 %1005
        %1007 = vrot.lane.b32.xlu0 %v974, 32
        %v1008 = vpop.permute.xlu0 %1007
        %1009 = vrot.lane.b32.xlu0 %v975, 32
        %v1010 = vpop.permute.xlu0 %1009
        %1011 = vrot.lane.b32.xlu0 %v976, 32
        %v1012 = vpop.permute.xlu0 %1011
        %vm1025 = vcmask 523520
        %1026 = vst.msk [vmem:[#allocation3] sm:$0xff] %vm1025, %v990
        %1027 = vst.msk [vmem:[#allocation3 + $0x20] sm:$0xff] %vm1025, %v992
        %1028 = vst.msk [vmem:[#allocation3 + $0x40] sm:$0xff] %vm1025, %v994
        %1029 = vst.msk [vmem:[#allocation3 + $0x60] sm:$0xff] %vm1025, %v996
        %1030 = vst.msk [vmem:[#allocation3 + $0x80] sm:$0xff] %vm1025, %v998
        %1031 = vst.msk [vmem:[#allocation3 + $0xa0] sm:$0xff] %vm1025, %v1000
        %1032 = vst.msk [vmem:[#allocation3 + $0xc0] sm:$0xff] %vm1025, %v1002
        %1033 = vst.msk [vmem:[#allocation3 + $0xe0] sm:$0xff] %vm1025, %v1004
        %1034 = vst.msk [vmem:[#allocation3 + $0x100] sm:$0xff] %vm1025, %v1006
        %1035 = vst.msk [vmem:[#allocation3 + $0x120] sm:$0xff] %vm1025, %v1008
        %1036 = vst.msk [vmem:[#allocation3 + $0x140] sm:$0xff] %vm1025, %v1010
        %vm1037 = vcmask 516352
        %1038 = vst.msk [vmem:[#allocation3 + $0x160] sm:$0x1] %vm1037, %v1012
        %v1039 = vld [vmem:[#allocation2 + $0x1] sm:$0xff]
        %v1040 = vld [vmem:[#allocation2 + $0x9] sm:$0xff]
        %v1041 = vld [vmem:[#allocation2 + $0x11] sm:$0xff]
        %v1042 = vld [vmem:[#allocation2 + $0x19] sm:$0xff]
        %v1043 = vld [vmem:[#allocation2 + $0x21] sm:$0xff]
        %v1044 = vld [vmem:[#allocation2 + $0x29] sm:$0xff]
        %v1045 = vld [vmem:[#allocation2 + $0x31] sm:$0xff]
        %v1046 = vld [vmem:[#allocation2 + $0x39] sm:$0xff]
        %v1047 = vld [vmem:[#allocation2 + $0x41] sm:$0xff]
        %v1048 = vld [vmem:[#allocation2 + $0x49] sm:$0xff]
        %v1049 = vld [vmem:[#allocation2 + $0x51] sm:$0xff]
        %v1050 = vld [vmem:[#allocation2 + $0x59] sm:$0x1]
        %1063 = vrot.lane.b32.xlu0 %v1039, 64
        %v1064 = vpop.permute.xlu0 %1063
        %1065 = vrot.lane.b32.xlu0 %v1040, 64
        %v1066 = vpop.permute.xlu0 %1065
        %1067 = vrot.lane.b32.xlu0 %v1041, 64
        %v1068 = vpop.permute.xlu0 %1067
        %1069 = vrot.lane.b32.xlu0 %v1042, 64
        %v1070 = vpop.permute.xlu0 %1069
        %1071 = vrot.lane.b32.xlu0 %v1043, 64
        %v1072 = vpop.permute.xlu0 %1071
        %1073 = vrot.lane.b32.xlu0 %v1044, 64
        %v1074 = vpop.permute.xlu0 %1073
        %1075 = vrot.lane.b32.xlu0 %v1045, 64
        %v1076 = vpop.permute.xlu0 %1075
        %1077 = vrot.lane.b32.xlu0 %v1046, 64
        %v1078 = vpop.permute.xlu0 %1077
        %1079 = vrot.lane.b32.xlu0 %v1047, 64
        %v1080 = vpop.permute.xlu0 %1079
        %1081 = vrot.lane.b32.xlu0 %v1048, 64
        %v1082 = vpop.permute.xlu0 %1081
        %1083 = vrot.lane.b32.xlu0 %v1049, 64
        %v1084 = vpop.permute.xlu0 %1083
        %1085 = vrot.lane.b32.xlu0 %v1050, 64
        %v1086 = vpop.permute.xlu0 %1085
        %vm1099 = vcmask 785920
        %1100 = vst.msk [vmem:[#allocation3] sm:$0xff] %vm1099, %v1064
        %1101 = vst.msk [vmem:[#allocation3 + $0x20] sm:$0xff] %vm1099, %v1066
        %1102 = vst.msk [vmem:[#allocation3 + $0x40] sm:$0xff] %vm1099, %v1068
        %1103 = vst.msk [vmem:[#allocation3 + $0x60] sm:$0xff] %vm1099, %v1070
        %1104 = vst.msk [vmem:[#allocation3 + $0x80] sm:$0xff] %vm1099, %v1072
        %1105 = vst.msk [vmem:[#allocation3 + $0xa0] sm:$0xff] %vm1099, %v1074
        %1106 = vst.msk [vmem:[#allocation3 + $0xc0] sm:$0xff] %vm1099, %v1076
        %1107 = vst.msk [vmem:[#allocation3 + $0xe0] sm:$0xff] %vm1099, %v1078
        %1108 = vst.msk [vmem:[#allocation3 + $0x100] sm:$0xff] %vm1099, %v1080
        %1109 = vst.msk [vmem:[#allocation3 + $0x120] sm:$0xff] %vm1099, %v1082
        %1110 = vst.msk [vmem:[#allocation3 + $0x140] sm:$0xff] %vm1099, %v1084
        %vm1111 = vcmask 778752
        %1112 = vst.msk [vmem:[#allocation3 + $0x160] sm:$0x1] %vm1111, %v1086
        %v1113 = vld [vmem:[#allocation2 + $0x65] sm:$0xff]
        %v1114 = vld [vmem:[#allocation2 + $0x6d] sm:$0xff]
        %v1115 = vld [vmem:[#allocation2 + $0x75] sm:$0xff]
        %v1116 = vld [vmem:[#allocation2 + $0x7d] sm:$0xff]
        %v1117 = vld [vmem:[#allocation2 + $0x85] sm:$0xff]
        %v1118 = vld [vmem:[#allocation2 + $0x8d] sm:$0xff]
        %v1119 = vld [vmem:[#allocation2 + $0x95] sm:$0xff]
        %v1120 = vld [vmem:[#allocation2 + $0x9d] sm:$0xff]
        %v1121 = vld [vmem:[#allocation2 + $0xa5] sm:$0xff]
        %v1122 = vld [vmem:[#allocation2 + $0xad] sm:$0xff]
        %v1123 = vld [vmem:[#allocation2 + $0xb5] sm:$0xff]
        %v1124 = vld [vmem:[#allocation2 + $0xbd] sm:$0x1]
        %1137 = vrot.lane.b32.xlu0 %v1113, 96
        %v1138 = vpop.permute.xlu0 %1137
        %1139 = vrot.lane.b32.xlu0 %v1114, 96
        %v1140 = vpop.permute.xlu0 %1139
        %1141 = vrot.lane.b32.xlu0 %v1115, 96
        %v1142 = vpop.permute.xlu0 %1141
        %1143 = vrot.lane.b32.xlu0 %v1116, 96
        %v1144 = vpop.permute.xlu0 %1143
        %1145 = vrot.lane.b32.xlu0 %v1117, 96
        %v1146 = vpop.permute.xlu0 %1145
        %1147 = vrot.lane.b32.xlu0 %v1118, 96
        %v1148 = vpop.permute.xlu0 %1147
        %1149 = vrot.lane.b32.xlu0 %v1119, 96
        %v1150 = vpop.permute.xlu0 %1149
        %1151 = vrot.lane.b32.xlu0 %v1120, 96
        %v1152 = vpop.permute.xlu0 %1151
        %1153 = vrot.lane.b32.xlu0 %v1121, 96
        %v1154 = vpop.permute.xlu0 %1153
        %1155 = vrot.lane.b32.xlu0 %v1122, 96
        %v1156 = vpop.permute.xlu0 %1155
        %1157 = vrot.lane.b32.xlu0 %v1123, 96
        %v1158 = vpop.permute.xlu0 %1157
        %1159 = vrot.lane.b32.xlu0 %v1124, 96
        %v1160 = vpop.permute.xlu0 %1159
        %vm1173 = vcmask 1048320
        %1174 = vst.msk [vmem:[#allocation3] sm:$0xff] %vm1173, %v1138
        %1175 = vst.msk [vmem:[#allocation3 + $0x20] sm:$0xff] %vm1173, %v1140
        %1176 = vst.msk [vmem:[#allocation3 + $0x40] sm:$0xff] %vm1173, %v1142
        %1177 = vst.msk [vmem:[#allocation3 + $0x60] sm:$0xff] %vm1173, %v1144
        %1178 = vst.msk [vmem:[#allocation3 + $0x80] sm:$0xff] %vm1173, %v1146
        %1179 = vst.msk [vmem:[#allocation3 + $0xa0] sm:$0xff] %vm1173, %v1148
        %1180 = vst.msk [vmem:[#allocation3 + $0xc0] sm:$0xff] %vm1173, %v1150
        %1181 = vst.msk [vmem:[#allocation3 + $0xe0] sm:$0xff] %vm1173, %v1152
        %1182 = vst.msk [vmem:[#allocation3 + $0x100] sm:$0xff] %vm1173, %v1154
        %1183 = vst.msk [vmem:[#allocation3 + $0x120] sm:$0xff] %vm1173, %v1156
        %1184 = vst.msk [vmem:[#allocation3 + $0x140] sm:$0xff] %vm1173, %v1158
        %vm1185 = vcmask 1041152
        %1186 = vst.msk [vmem:[#allocation3 + $0x160] sm:$0x1] %vm1185, %v1160
        %v1187 = vld [vmem:[#allocation2 + $0xc8] sm:$0xff]
        %v1188 = vld [vmem:[#allocation2 + $0xd0] sm:$0xff]
        %v1189 = vld [vmem:[#allocation2 + $0xd8] sm:$0xff]
        %v1190 = vld [vmem:[#allocation2 + $0xe0] sm:$0xff]
        %v1191 = vld [vmem:[#allocation2 + $0xe8] sm:$0xff]
        %v1192 = vld [vmem:[#allocation2 + $0xf0] sm:$0xff]
        %v1193 = vld [vmem:[#allocation2 + $0xf8] sm:$0xff]
        %v1194 = vld [vmem:[#allocation2 + $0x100] sm:$0xff]
        %v1195 = vld [vmem:[#allocation2 + $0x108] sm:$0xff]
        %v1196 = vld [vmem:[#allocation2 + $0x110] sm:$0xff]
        %v1197 = vld [vmem:[#allocation2 + $0x118] sm:$0xff]
        %v1198 = vld [vmem:[#allocation2 + $0x120] sm:$0x1]
        %1199 = vst.msk [vmem:[#allocation3 + $0x8] sm:$0xff] %vm889, %v1187
        %1200 = vst.msk [vmem:[#allocation3 + $0x28] sm:$0xff] %vm889, %v1188
        %1201 = vst.msk [vmem:[#allocation3 + $0x48] sm:$0xff] %vm889, %v1189
        %1202 = vst.msk [vmem:[#allocation3 + $0x68] sm:$0xff] %vm889, %v1190
        %1203 = vst.msk [vmem:[#allocation3 + $0x88] sm:$0xff] %vm889, %v1191
        %1204 = vst.msk [vmem:[#allocation3 + $0xa8] sm:$0xff] %vm889, %v1192
        %1205 = vst.msk [vmem:[#allocation3 + $0xc8] sm:$0xff] %vm889, %v1193
        %1206 = vst.msk [vmem:[#allocation3 + $0xe8] sm:$0xff] %vm889, %v1194
        %1207 = vst.msk [vmem:[#allocation3 + $0x108] sm:$0xff] %vm889, %v1195
        %1208 = vst.msk [vmem:[#allocation3 + $0x128] sm:$0xff] %vm889, %v1196
        %1209 = vst.msk [vmem:[#allocation3 + $0x148] sm:$0xff] %vm889, %v1197
        %1210 = vst.msk [vmem:[#allocation3 + $0x168] sm:$0x1] %vm963, %v1198
        %v1211 = vld [vmem:[#allocation2 + $0x12c] sm:$0xff]
        %v1212 = vld [vmem:[#allocation2 + $0x134] sm:$0xff]
        %v1213 = vld [vmem:[#allocation2 + $0x13c] sm:$0xff]
        %v1214 = vld [vmem:[#allocation2 + $0x144] sm:$0xff]
        %v1215 = vld [vmem:[#allocation2 + $0x14c] sm:$0xff]
        %v1216 = vld [vmem:[#allocation2 + $0x154] sm:$0xff]
        %v1217 = vld [vmem:[#allocation2 + $0x15c] sm:$0xff]
        %v1218 = vld [vmem:[#allocation2 + $0x164] sm:$0xff]
        %v1219 = vld [vmem:[#allocation2 + $0x16c] sm:$0xff]
        %v1220 = vld [vmem:[#allocation2 + $0x174] sm:$0xff]
        %v1221 = vld [vmem:[#allocation2 + $0x17c] sm:$0xff]
        %v1222 = vld [vmem:[#allocation2 + $0x184] sm:$0x1]
        %1235 = vrot.lane.b32.xlu0 %v1211, 32
        %v1236 = vpop.permute.xlu0 %1235
        %1237 = vrot.lane.b32.xlu0 %v1212, 32
        %v1238 = vpop.permute.xlu0 %1237
        %1239 = vrot.lane.b32.xlu0 %v1213, 32
        %v1240 = vpop.permute.xlu0 %1239
        %1241 = vrot.lane.b32.xlu0 %v1214, 32
        %v1242 = vpop.permute.xlu0 %1241
        %1243 = vrot.lane.b32.xlu0 %v1215, 32
        %v1244 = vpop.permute.xlu0 %1243
        %1245 = vrot.lane.b32.xlu0 %v1216, 32
        %v1246 = vpop.permute.xlu0 %1245
        %1247 = vrot.lane.b32.xlu0 %v1217, 32
        %v1248 = vpop.permute.xlu0 %1247
        %1249 = vrot.lane.b32.xlu0 %v1218, 32
        %v1250 = vpop.permute.xlu0 %1249
        %1251 = vrot.lane.b32.xlu0 %v1219, 32
        %v1252 = vpop.permute.xlu0 %1251
        %1253 = vrot.lane.b32.xlu0 %v1220, 32
        %v1254 = vpop.permute.xlu0 %1253
        %1255 = vrot.lane.b32.xlu0 %v1221, 32
        %v1256 = vpop.permute.xlu0 %1255
        %1257 = vrot.lane.b32.xlu0 %v1222, 32
        %v1258 = vpop.permute.xlu0 %1257
        %1271 = vst.msk [vmem:[#allocation3 + $0x8] sm:$0xff] %vm1025, %v1236
        %1272 = vst.msk [vmem:[#allocation3 + $0x28] sm:$0xff] %vm1025, %v1238
        %1273 = vst.msk [vmem:[#allocation3 + $0x48] sm:$0xff] %vm1025, %v1240
        %1274 = vst.msk [vmem:[#allocation3 + $0x68] sm:$0xff] %vm1025, %v1242
        %1275 = vst.msk [vmem:[#allocation3 + $0x88] sm:$0xff] %vm1025, %v1244
        %1276 = vst.msk [vmem:[#allocation3 + $0xa8] sm:$0xff] %vm1025, %v1246
        %1277 = vst.msk [vmem:[#allocation3 + $0xc8] sm:$0xff] %vm1025, %v1248
        %1278 = vst.msk [vmem:[#allocation3 + $0xe8] sm:$0xff] %vm1025, %v1250
        %1279 = vst.msk [vmem:[#allocation3 + $0x108] sm:$0xff] %vm1025, %v1252
        %1280 = vst.msk [vmem:[#allocation3 + $0x128] sm:$0xff] %vm1025, %v1254
        %1281 = vst.msk [vmem:[#allocation3 + $0x148] sm:$0xff] %vm1025, %v1256
        %1282 = vst.msk [vmem:[#allocation3 + $0x168] sm:$0x1] %vm1037, %v1258
        %v1283 = vld [vmem:[#allocation2 + $0xc9] sm:$0xff]
        %v1284 = vld [vmem:[#allocation2 + $0xd1] sm:$0xff]
        %v1285 = vld [vmem:[#allocation2 + $0xd9] sm:$0xff]
        %v1286 = vld [vmem:[#allocation2 + $0xe1] sm:$0xff]
        %v1287 = vld [vmem:[#allocation2 + $0xe9] sm:$0xff]
        %v1288 = vld [vmem:[#allocation2 + $0xf1] sm:$0xff]
        %v1289 = vld [vmem:[#allocation2 + $0xf9] sm:$0xff]
        %v1290 = vld [vmem:[#allocation2 + $0x101] sm:$0xff]
        %v1291 = vld [vmem:[#allocation2 + $0x109] sm:$0xff]
        %v1292 = vld [vmem:[#allocation2 + $0x111] sm:$0xff]
        %v1293 = vld [vmem:[#allocation2 + $0x119] sm:$0xff]
        %v1294 = vld [vmem:[#allocation2 + $0x121] sm:$0x1]
        %1307 = vrot.lane.b32.xlu0 %v1283, 64
        %v1308 = vpop.permute.xlu0 %1307
        %1309 = vrot.lane.b32.xlu0 %v1284, 64
        %v1310 = vpop.permute.xlu0 %1309
        %1311 = vrot.lane.b32.xlu0 %v1285, 64
        %v1312 = vpop.permute.xlu0 %1311
        %1313 = vrot.lane.b32.xlu0 %v1286, 64
        %v1314 = vpop.permute.xlu0 %1313
        %1315 = vrot.lane.b32.xlu0 %v1287, 64
        %v1316 = vpop.permute.xlu0 %1315
        %1317 = vrot.lane.b32.xlu0 %v1288, 64
        %v1318 = vpop.permute.xlu0 %1317
        %1319 = vrot.lane.b32.xlu0 %v1289, 64
        %v1320 = vpop.permute.xlu0 %1319
        %1321 = vrot.lane.b32.xlu0 %v1290, 64
        %v1322 = vpop.permute.xlu0 %1321
        %1323 = vrot.lane.b32.xlu0 %v1291, 64
        %v1324 = vpop.permute.xlu0 %1323
        %1325 = vrot.lane.b32.xlu0 %v1292, 64
        %v1326 = vpop.permute.xlu0 %1325
        %1327 = vrot.lane.b32.xlu0 %v1293, 64
        %v1328 = vpop.permute.xlu0 %1327
        %1329 = vrot.lane.b32.xlu0 %v1294, 64
        %v1330 = vpop.permute.xlu0 %1329
        %1343 = vst.msk [vmem:[#allocation3 + $0x8] sm:$0xff] %vm1099, %v1308
        %1344 = vst.msk [vmem:[#allocation3 + $0x28] sm:$0xff] %vm1099, %v1310
        %1345 = vst.msk [vmem:[#allocation3 + $0x48] sm:$0xff] %vm1099, %v1312
        %1346 = vst.msk [vmem:[#allocation3 + $0x68] sm:$0xff] %vm1099, %v1314
        %1347 = vst.msk [vmem:[#allocation3 + $0x88] sm:$0xff] %vm1099, %v1316
        %1348 = vst.msk [vmem:[#allocation3 + $0xa8] sm:$0xff] %vm1099, %v1318
        %1349 = vst.msk [vmem:[#allocation3 + $0xc8] sm:$0xff] %vm1099, %v1320
        %1350 = vst.msk [vmem:[#allocation3 + $0xe8] sm:$0xff] %vm1099, %v1322
        %1351 = vst.msk [vmem:[#allocation3 + $0x108] sm:$0xff] %vm1099, %v1324
        %1352 = vst.msk [vmem:[#allocation3 + $0x128] sm:$0xff] %vm1099, %v1326
        %1353 = vst.msk [vmem:[#allocation3 + $0x148] sm:$0xff] %vm1099, %v1328
        %1354 = vst.msk [vmem:[#allocation3 + $0x168] sm:$0x1] %vm1111, %v1330
        %v1355 = vld [vmem:[#allocation2 + $0x12d] sm:$0xff]
        %v1356 = vld [vmem:[#allocation2 + $0x135] sm:$0xff]
        %v1357 = vld [vmem:[#allocation2 + $0x13d] sm:$0xff]
        %v1358 = vld [vmem:[#allocation2 + $0x145] sm:$0xff]
        %v1359 = vld [vmem:[#allocation2 + $0x14d] sm:$0xff]
        %v1360 = vld [vmem:[#allocation2 + $0x155] sm:$0xff]
        %v1361 = vld [vmem:[#allocation2 + $0x15d] sm:$0xff]
        %v1362 = vld [vmem:[#allocation2 + $0x165] sm:$0xff]
        %v1363 = vld [vmem:[#allocation2 + $0x16d] sm:$0xff]
        %v1364 = vld [vmem:[#allocation2 + $0x175] sm:$0xff]
        %v1365 = vld [vmem:[#allocation2 + $0x17d] sm:$0xff]
        %v1366 = vld [vmem:[#allocation2 + $0x185] sm:$0x1]
        %1379 = vrot.lane.b32.xlu0 %v1355, 96
        %v1380 = vpop.permute.xlu0 %1379
        %1381 = vrot.lane.b32.xlu0 %v1356, 96
        %v1382 = vpop.permute.xlu0 %1381
        %1383 = vrot.lane.b32.xlu0 %v1357, 96
        %v1384 = vpop.permute.xlu0 %1383
        %1385 = vrot.lane.b32.xlu0 %v1358, 96
        %v1386 = vpop.permute.xlu0 %1385
        %1387 = vrot.lane.b32.xlu0 %v1359, 96
        %v1388 = vpop.permute.xlu0 %1387
        %1389 = vrot.lane.b32.xlu0 %v1360, 96
        %v1390 = vpop.permute.xlu0 %1389
        %1391 = vrot.lane.b32.xlu0 %v1361, 96
        %v1392 = vpop.permute.xlu0 %1391
        %1393 = vrot.lane.b32.xlu0 %v1362, 96
        %v1394 = vpop.permute.xlu0 %1393
        %1395 = vrot.lane.b32.xlu0 %v1363, 96
        %v1396 = vpop.permute.xlu0 %1395
        %1397 = vrot.lane.b32.xlu0 %v1364, 96
        %v1398 = vpop.permute.xlu0 %1397
        %1399 = vrot.lane.b32.xlu0 %v1365, 96
        %v1400 = vpop.permute.xlu0 %1399
        %1401 = vrot.lane.b32.xlu0 %v1366, 96
        %v1402 = vpop.permute.xlu0 %1401
        %1415 = vst.msk [vmem:[#allocation3 + $0x8] sm:$0xff] %vm1173, %v1380
        %1416 = vst.msk [vmem:[#allocation3 + $0x28] sm:$0xff] %vm1173, %v1382
        %1417 = vst.msk [vmem:[#allocation3 + $0x48] sm:$0xff] %vm1173, %v1384
        %1418 = vst.msk [vmem:[#allocation3 + $0x68] sm:$0xff] %vm1173, %v1386
        %1419 = vst.msk [vmem:[#allocation3 + $0x88] sm:$0xff] %vm1173, %v1388
        %1420 = vst.msk [vmem:[#allocation3 + $0xa8] sm:$0xff] %vm1173, %v1390
        %1421 = vst.msk [vmem:[#allocation3 + $0xc8] sm:$0xff] %vm1173, %v1392
        %1422 = vst.msk [vmem:[#allocation3 + $0xe8] sm:$0xff] %vm1173, %v1394
        %1423 = vst.msk [vmem:[#allocation3 + $0x108] sm:$0xff] %vm1173, %v1396
        %1424 = vst.msk [vmem:[#allocation3 + $0x128] sm:$0xff] %vm1173, %v1398
        %1425 = vst.msk [vmem:[#allocation3 + $0x148] sm:$0xff] %vm1173, %v1400
        %1426 = vst.msk [vmem:[#allocation3 + $0x168] sm:$0x1] %vm1185, %v1402
        %v1427 = vld [vmem:[#allocation2 + $0xa] sm:$0xff]
        %v1428 = vld [vmem:[#allocation2 + $0x12] sm:$0xff]
        %v1429 = vld [vmem:[#allocation2 + $0x1a] sm:$0xff]
        %v1430 = vld [vmem:[#allocation2 + $0x22] sm:$0xff]
        %v1431 = vld [vmem:[#allocation2 + $0x2a] sm:$0xff]
        %v1432 = vld [vmem:[#allocation2 + $0x32] sm:$0xff]
        %v1433 = vld [vmem:[#allocation2 + $0x3a] sm:$0xff]
        %v1434 = vld [vmem:[#allocation2 + $0x42] sm:$0xff]
        %v1435 = vld [vmem:[#allocation2 + $0x4a] sm:$0xff]
        %v1436 = vld [vmem:[#allocation2 + $0x52] sm:$0xff]
        %v1437 = vld [vmem:[#allocation2 + $0x5a] sm:$0xff]
        %v1438 = vld [vmem:[#allocation2 + $0x62] sm:$0x1]
        %1439 = vst.msk [vmem:[#allocation3 + $0x10] sm:$0xff] %vm889, %v1427
        %1440 = vst.msk [vmem:[#allocation3 + $0x30] sm:$0xff] %vm889, %v1428
        %1441 = vst.msk [vmem:[#allocation3 + $0x50] sm:$0xff] %vm889, %v1429
        %1442 = vst.msk [vmem:[#allocation3 + $0x70] sm:$0xff] %vm889, %v1430
        %1443 = vst.msk [vmem:[#allocation3 + $0x90] sm:$0xff] %vm889, %v1431
        %1444 = vst.msk [vmem:[#allocation3 + $0xb0] sm:$0xff] %vm889, %v1432
        %1445 = vst.msk [vmem:[#allocation3 + $0xd0] sm:$0xff] %vm889, %v1433
        %1446 = vst.msk [vmem:[#allocation3 + $0xf0] sm:$0xff] %vm889, %v1434
        %1447 = vst.msk [vmem:[#allocation3 + $0x110] sm:$0xff] %vm889, %v1435
        %1448 = vst.msk [vmem:[#allocation3 + $0x130] sm:$0xff] %vm889, %v1436
        %1449 = vst.msk [vmem:[#allocation3 + $0x150] sm:$0xff] %vm889, %v1437
        %1450 = vst.msk [vmem:[#allocation3 + $0x170] sm:$0x1] %vm963, %v1438
        %v1451 = vld [vmem:[#allocation2 + $0x6e] sm:$0xff]
        %v1452 = vld [vmem:[#allocation2 + $0x76] sm:$0xff]
        %v1453 = vld [vmem:[#allocation2 + $0x7e] sm:$0xff]
        %v1454 = vld [vmem:[#allocation2 + $0x86] sm:$0xff]
        %v1455 = vld [vmem:[#allocation2 + $0x8e] sm:$0xff]
        %v1456 = vld [vmem:[#allocation2 + $0x96] sm:$0xff]
        %v1457 = vld [vmem:[#allocation2 + $0x9e] sm:$0xff]
        %v1458 = vld [vmem:[#allocation2 + $0xa6] sm:$0xff]
        %v1459 = vld [vmem:[#allocation2 + $0xae] sm:$0xff]
        %v1460 = vld [vmem:[#allocation2 + $0xb6] sm:$0xff]
        %v1461 = vld [vmem:[#allocation2 + $0xbe] sm:$0xff]
        %v1462 = vld [vmem:[#allocation2 + $0xc6] sm:$0x1]
        %1475 = vrot.lane.b32.xlu0 %v1451, 32
        %v1476 = vpop.permute.xlu0 %1475
        %1477 = vrot.lane.b32.xlu0 %v1452, 32
        %v1478 = vpop.permute.xlu0 %1477
        %1479 = vrot.lane.b32.xlu0 %v1453, 32
        %v1480 = vpop.permute.xlu0 %1479
        %1481 = vrot.lane.b32.xlu0 %v1454, 32
        %v1482 = vpop.permute.xlu0 %1481
        %1483 = vrot.lane.b32.xlu0 %v1455, 32
        %v1484 = vpop.permute.xlu0 %1483
        %1485 = vrot.lane.b32.xlu0 %v1456, 32
        %v1486 = vpop.permute.xlu0 %1485
        %1487 = vrot.lane.b32.xlu0 %v1457, 32
        %v1488 = vpop.permute.xlu0 %1487
        %1489 = vrot.lane.b32.xlu0 %v1458, 32
        %v1490 = vpop.permute.xlu0 %1489
        %1491 = vrot.lane.b32.xlu0 %v1459, 32
        %v1492 = vpop.permute.xlu0 %1491
        %1493 = vrot.lane.b32.xlu0 %v1460, 32
        %v1494 = vpop.permute.xlu0 %1493
        %1495 = vrot.lane.b32.xlu0 %v1461, 32
        %v1496 = vpop.permute.xlu0 %1495
        %1497 = vrot.lane.b32.xlu0 %v1462, 32
        %v1498 = vpop.permute.xlu0 %1497
        %1511 = vst.msk [vmem:[#allocation3 + $0x10] sm:$0xff] %vm1025, %v1476
        %1512 = vst.msk [vmem:[#allocation3 + $0x30] sm:$0xff] %vm1025, %v1478
        %1513 = vst.msk [vmem:[#allocation3 + $0x50] sm:$0xff] %vm1025, %v1480
        %1514 = vst.msk [vmem:[#allocation3 + $0x70] sm:$0xff] %vm1025, %v1482
        %1515 = vst.msk [vmem:[#allocation3 + $0x90] sm:$0xff] %vm1025, %v1484
        %1516 = vst.msk [vmem:[#allocation3 + $0xb0] sm:$0xff] %vm1025, %v1486
        %1517 = vst.msk [vmem:[#allocation3 + $0xd0] sm:$0xff] %vm1025, %v1488
        %1518 = vst.msk [vmem:[#allocation3 + $0xf0] sm:$0xff] %vm1025, %v1490
        %1519 = vst.msk [vmem:[#allocation3 + $0x110] sm:$0xff] %vm1025, %v1492
        %1520 = vst.msk [vmem:[#allocation3 + $0x130] sm:$0xff] %vm1025, %v1494
        %1521 = vst.msk [vmem:[#allocation3 + $0x150] sm:$0xff] %vm1025, %v1496
        %1522 = vst.msk [vmem:[#allocation3 + $0x170] sm:$0x1] %vm1037, %v1498
        %v1523 = vld [vmem:[#allocation2 + $0xb] sm:$0xff]
        %v1524 = vld [vmem:[#allocation2 + $0x13] sm:$0xff]
        %v1525 = vld [vmem:[#allocation2 + $0x1b] sm:$0xff]
        %v1526 = vld [vmem:[#allocation2 + $0x23] sm:$0xff]
        %v1527 = vld [vmem:[#allocation2 + $0x2b] sm:$0xff]
        %v1528 = vld [vmem:[#allocation2 + $0x33] sm:$0xff]
        %v1529 = vld [vmem:[#allocation2 + $0x3b] sm:$0xff]
        %v1530 = vld [vmem:[#allocation2 + $0x43] sm:$0xff]
        %v1531 = vld [vmem:[#allocation2 + $0x4b] sm:$0xff]
        %v1532 = vld [vmem:[#allocation2 + $0x53] sm:$0xff]
        %v1533 = vld [vmem:[#allocation2 + $0x5b] sm:$0xff]
        %v1534 = vld [vmem:[#allocation2 + $0x63] sm:$0x1]
        %1547 = vrot.lane.b32.xlu0 %v1523, 64
        %v1548 = vpop.permute.xlu0 %1547
        %1549 = vrot.lane.b32.xlu0 %v1524, 64
        %v1550 = vpop.permute.xlu0 %1549
        %1551 = vrot.lane.b32.xlu0 %v1525, 64
        %v1552 = vpop.permute.xlu0 %1551
        %1553 = vrot.lane.b32.xlu0 %v1526, 64
        %v1554 = vpop.permute.xlu0 %1553
        %1555 = vrot.lane.b32.xlu0 %v1527, 64
        %v1556 = vpop.permute.xlu0 %1555
        %1557 = vrot.lane.b32.xlu0 %v1528, 64
        %v1558 = vpop.permute.xlu0 %1557
        %1559 = vrot.lane.b32.xlu0 %v1529, 64
        %v1560 = vpop.permute.xlu0 %1559
        %1561 = vrot.lane.b32.xlu0 %v1530, 64
        %v1562 = vpop.permute.xlu0 %1561
        %1563 = vrot.lane.b32.xlu0 %v1531, 64
        %v1564 = vpop.permute.xlu0 %1563
        %1565 = vrot.lane.b32.xlu0 %v1532, 64
        %v1566 = vpop.permute.xlu0 %1565
        %1567 = vrot.lane.b32.xlu0 %v1533, 64
        %v1568 = vpop.permute.xlu0 %1567
        %1569 = vrot.lane.b32.xlu0 %v1534, 64
        %v1570 = vpop.permute.xlu0 %1569
        %1583 = vst.msk [vmem:[#allocation3 + $0x10] sm:$0xff] %vm1099, %v1548
        %1584 = vst.msk [vmem:[#allocation3 + $0x30] sm:$0xff] %vm1099, %v1550
        %1585 = vst.msk [vmem:[#allocation3 + $0x50] sm:$0xff] %vm1099, %v1552
        %1586 = vst.msk [vmem:[#allocation3 + $0x70] sm:$0xff] %vm1099, %v1554
        %1587 = vst.msk [vmem:[#allocation3 + $0x90] sm:$0xff] %vm1099, %v1556
        %1588 = vst.msk [vmem:[#allocation3 + $0xb0] sm:$0xff] %vm1099, %v1558
        %1589 = vst.msk [vmem:[#allocation3 + $0xd0] sm:$0xff] %vm1099, %v1560
        %1590 = vst.msk [vmem:[#allocation3 + $0xf0] sm:$0xff] %vm1099, %v1562
        %1591 = vst.msk [vmem:[#allocation3 + $0x110] sm:$0xff] %vm1099, %v1564
        %1592 = vst.msk [vmem:[#allocation3 + $0x130] sm:$0xff] %vm1099, %v1566
        %1593 = vst.msk [vmem:[#allocation3 + $0x150] sm:$0xff] %vm1099, %v1568
        %1594 = vst.msk [vmem:[#allocation3 + $0x170] sm:$0x1] %vm1111, %v1570
        %v1595 = vld [vmem:[#allocation2 + $0x6f] sm:$0xff]
        %v1596 = vld [vmem:[#allocation2 + $0x77] sm:$0xff]
        %v1597 = vld [vmem:[#allocation2 + $0x7f] sm:$0xff]
        %v1598 = vld [vmem:[#allocation2 + $0x87] sm:$0xff]
        %v1599 = vld [vmem:[#allocation2 + $0x8f] sm:$0xff]
        %v1600 = vld [vmem:[#allocation2 + $0x97] sm:$0xff]
        %v1601 = vld [vmem:[#allocation2 + $0x9f] sm:$0xff]
        %v1602 = vld [vmem:[#allocation2 + $0xa7] sm:$0xff]
        %v1603 = vld [vmem:[#allocation2 + $0xaf] sm:$0xff]
        %v1604 = vld [vmem:[#allocation2 + $0xb7] sm:$0xff]
        %v1605 = vld [vmem:[#allocation2 + $0xbf] sm:$0xff]
        %v1606 = vld [vmem:[#allocation2 + $0xc7] sm:$0x1]
        %1619 = vrot.lane.b32.xlu0 %v1595, 96
        %v1620 = vpop.permute.xlu0 %1619
        %1621 = vrot.lane.b32.xlu0 %v1596, 96
        %v1622 = vpop.permute.xlu0 %1621
        %1623 = vrot.lane.b32.xlu0 %v1597, 96
        %v1624 = vpop.permute.xlu0 %1623
        %1625 = vrot.lane.b32.xlu0 %v1598, 96
        %v1626 = vpop.permute.xlu0 %1625
        %1627 = vrot.lane.b32.xlu0 %v1599, 96
        %v1628 = vpop.permute.xlu0 %1627
        %1629 = vrot.lane.b32.xlu0 %v1600, 96
        %v1630 = vpop.permute.xlu0 %1629
        %1631 = vrot.lane.b32.xlu0 %v1601, 96
        %v1632 = vpop.permute.xlu0 %1631
        %1633 = vrot.lane.b32.xlu0 %v1602, 96
        %v1634 = vpop.permute.xlu0 %1633
        %1635 = vrot.lane.b32.xlu0 %v1603, 96
        %v1636 = vpop.permute.xlu0 %1635
        %1637 = vrot.lane.b32.xlu0 %v1604, 96
        %v1638 = vpop.permute.xlu0 %1637
        %1639 = vrot.lane.b32.xlu0 %v1605, 96
        %v1640 = vpop.permute.xlu0 %1639
        %1641 = vrot.lane.b32.xlu0 %v1606, 96
        %v1642 = vpop.permute.xlu0 %1641
        %1655 = vst.msk [vmem:[#allocation3 + $0x10] sm:$0xff] %vm1173, %v1620
        %1656 = vst.msk [vmem:[#allocation3 + $0x30] sm:$0xff] %vm1173, %v1622
        %1657 = vst.msk [vmem:[#allocation3 + $0x50] sm:$0xff] %vm1173, %v1624
        %1658 = vst.msk [vmem:[#allocation3 + $0x70] sm:$0xff] %vm1173, %v1626
        %1659 = vst.msk [vmem:[#allocation3 + $0x90] sm:$0xff] %vm1173, %v1628
        %1660 = vst.msk [vmem:[#allocation3 + $0xb0] sm:$0xff] %vm1173, %v1630
        %1661 = vst.msk [vmem:[#allocation3 + $0xd0] sm:$0xff] %vm1173, %v1632
        %1662 = vst.msk [vmem:[#allocation3 + $0xf0] sm:$0xff] %vm1173, %v1634
        %1663 = vst.msk [vmem:[#allocation3 + $0x110] sm:$0xff] %vm1173, %v1636
        %1664 = vst.msk [vmem:[#allocation3 + $0x130] sm:$0xff] %vm1173, %v1638
        %1665 = vst.msk [vmem:[#allocation3 + $0x150] sm:$0xff] %vm1173, %v1640
        %1666 = vst.msk [vmem:[#allocation3 + $0x170] sm:$0x1] %vm1185, %v1642
        %v1667 = vld [vmem:[#allocation2 + $0xd2] sm:$0xff]
        %v1668 = vld [vmem:[#allocation2 + $0xda] sm:$0xff]
        %v1669 = vld [vmem:[#allocation2 + $0xe2] sm:$0xff]
        %v1670 = vld [vmem:[#allocation2 + $0xea] sm:$0xff]
        %v1671 = vld [vmem:[#allocation2 + $0xf2] sm:$0xff]
        %v1672 = vld [vmem:[#allocation2 + $0xfa] sm:$0xff]
        %v1673 = vld [vmem:[#allocation2 + $0x102] sm:$0xff]
        %v1674 = vld [vmem:[#allocation2 + $0x10a] sm:$0xff]
        %v1675 = vld [vmem:[#allocation2 + $0x112] sm:$0xff]
        %v1676 = vld [vmem:[#allocation2 + $0x11a] sm:$0xff]
        %v1677 = vld [vmem:[#allocation2 + $0x122] sm:$0xff]
        %v1678 = vld [vmem:[#allocation2 + $0x12a] sm:$0x1]
        %1679 = vst.msk [vmem:[#allocation3 + $0x18] sm:$0xff] %vm889, %v1667
        %1680 = vst.msk [vmem:[#allocation3 + $0x38] sm:$0xff] %vm889, %v1668
        %1681 = vst.msk [vmem:[#allocation3 + $0x58] sm:$0xff] %vm889, %v1669
        %1682 = vst.msk [vmem:[#allocation3 + $0x78] sm:$0xff] %vm889, %v1670
        %1683 = vst.msk [vmem:[#allocation3 + $0x98] sm:$0xff] %vm889, %v1671
        %1684 = vst.msk [vmem:[#allocation3 + $0xb8] sm:$0xff] %vm889, %v1672
        %1685 = vst.msk [vmem:[#allocation3 + $0xd8] sm:$0xff] %vm889, %v1673
        %1686 = vst.msk [vmem:[#allocation3 + $0xf8] sm:$0xff] %vm889, %v1674
        %1687 = vst.msk [vmem:[#allocation3 + $0x118] sm:$0xff] %vm889, %v1675
        %1688 = vst.msk [vmem:[#allocation3 + $0x138] sm:$0xff] %vm889, %v1676
        %1689 = vst.msk [vmem:[#allocation3 + $0x158] sm:$0xff] %vm889, %v1677
        %1690 = vst.msk [vmem:[#allocation3 + $0x178] sm:$0x1] %vm963, %v1678
        %v1691 = vld [vmem:[#allocation2 + $0x136] sm:$0xff]
        %v1692 = vld [vmem:[#allocation2 + $0x13e] sm:$0xff]
        %v1693 = vld [vmem:[#allocation2 + $0x146] sm:$0xff]
        %v1694 = vld [vmem:[#allocation2 + $0x14e] sm:$0xff]
        %v1695 = vld [vmem:[#allocation2 + $0x156] sm:$0xff]
        %v1696 = vld [vmem:[#allocation2 + $0x15e] sm:$0xff]
        %v1697 = vld [vmem:[#allocation2 + $0x166] sm:$0xff]
        %v1698 = vld [vmem:[#allocation2 + $0x16e] sm:$0xff]
        %v1699 = vld [vmem:[#allocation2 + $0x176] sm:$0xff]
        %v1700 = vld [vmem:[#allocation2 + $0x17e] sm:$0xff]
        %v1701 = vld [vmem:[#allocation2 + $0x186] sm:$0xff]
        %v1702 = vld [vmem:[#allocation2 + $0x18e] sm:$0x1]
        %1715 = vrot.lane.b32.xlu0 %v1691, 32
        %v1716 = vpop.permute.xlu0 %1715
        %1717 = vrot.lane.b32.xlu0 %v1692, 32
        %v1718 = vpop.permute.xlu0 %1717
        %1719 = vrot.lane.b32.xlu0 %v1693, 32
        %v1720 = vpop.permute.xlu0 %1719
        %1721 = vrot.lane.b32.xlu0 %v1694, 32
        %v1722 = vpop.permute.xlu0 %1721
        %1723 = vrot.lane.b32.xlu0 %v1695, 32
        %v1724 = vpop.permute.xlu0 %1723
        %1725 = vrot.lane.b32.xlu0 %v1696, 32
        %v1726 = vpop.permute.xlu0 %1725
        %1727 = vrot.lane.b32.xlu0 %v1697, 32
        %v1728 = vpop.permute.xlu0 %1727
        %1729 = vrot.lane.b32.xlu0 %v1698, 32
        %v1730 = vpop.permute.xlu0 %1729
        %1731 = vrot.lane.b32.xlu0 %v1699, 32
        %v1732 = vpop.permute.xlu0 %1731
        %1733 = vrot.lane.b32.xlu0 %v1700, 32
        %v1734 = vpop.permute.xlu0 %1733
        %1735 = vrot.lane.b32.xlu0 %v1701, 32
        %v1736 = vpop.permute.xlu0 %1735
        %1737 = vrot.lane.b32.xlu0 %v1702, 32
        %v1738 = vpop.permute.xlu0 %1737
        %1751 = vst.msk [vmem:[#allocation3 + $0x18] sm:$0xff] %vm1025, %v1716
        %1752 = vst.msk [vmem:[#allocation3 + $0x38] sm:$0xff] %vm1025, %v1718
        %1753 = vst.msk [vmem:[#allocation3 + $0x58] sm:$0xff] %vm1025, %v1720
        %1754 = vst.msk [vmem:[#allocation3 + $0x78] sm:$0xff] %vm1025, %v1722
        %1755 = vst.msk [vmem:[#allocation3 + $0x98] sm:$0xff] %vm1025, %v1724
        %1756 = vst.msk [vmem:[#allocation3 + $0xb8] sm:$0xff] %vm1025, %v1726
        %1757 = vst.msk [vmem:[#allocation3 + $0xd8] sm:$0xff] %vm1025, %v1728
        %1758 = vst.msk [vmem:[#allocation3 + $0xf8] sm:$0xff] %vm1025, %v1730
        %1759 = vst.msk [vmem:[#allocation3 + $0x118] sm:$0xff] %vm1025, %v1732
        %1760 = vst.msk [vmem:[#allocation3 + $0x138] sm:$0xff] %vm1025, %v1734
        %1761 = vst.msk [vmem:[#allocation3 + $0x158] sm:$0xff] %vm1025, %v1736
        %1762 = vst.msk [vmem:[#allocation3 + $0x178] sm:$0x1] %vm1037, %v1738
        %v1763 = vld [vmem:[#allocation2 + $0xd3] sm:$0xff]
        %v1764 = vld [vmem:[#allocation2 + $0xdb] sm:$0xff]
        %v1765 = vld [vmem:[#allocation2 + $0xe3] sm:$0xff]
        %v1766 = vld [vmem:[#allocation2 + $0xeb] sm:$0xff]
        %v1767 = vld [vmem:[#allocation2 + $0xf3] sm:$0xff]
        %v1768 = vld [vmem:[#allocation2 + $0xfb] sm:$0xff]
        %v1769 = vld [vmem:[#allocation2 + $0x103] sm:$0xff]
        %v1770 = vld [vmem:[#allocation2 + $0x10b] sm:$0xff]
        %v1771 = vld [vmem:[#allocation2 + $0x113] sm:$0xff]
        %v1772 = vld [vmem:[#allocation2 + $0x11b] sm:$0xff]
        %v1773 = vld [vmem:[#allocation2 + $0x123] sm:$0xff]
        %v1774 = vld [vmem:[#allocation2 + $0x12b] sm:$0x1]
        %1787 = vrot.lane.b32.xlu0 %v1763, 64
        %v1788 = vpop.permute.xlu0 %1787
        %1789 = vrot.lane.b32.xlu0 %v1764, 64
        %v1790 = vpop.permute.xlu0 %1789
        %1791 = vrot.lane.b32.xlu0 %v1765, 64
        %v1792 = vpop.permute.xlu0 %1791
        %1793 = vrot.lane.b32.xlu0 %v1766, 64
        %v1794 = vpop.permute.xlu0 %1793
        %1795 = vrot.lane.b32.xlu0 %v1767, 64
        %v1796 = vpop.permute.xlu0 %1795
        %1797 = vrot.lane.b32.xlu0 %v1768, 64
        %v1798 = vpop.permute.xlu0 %1797
        %1799 = vrot.lane.b32.xlu0 %v1769, 64
        %v1800 = vpop.permute.xlu0 %1799
        %1801 = vrot.lane.b32.xlu0 %v1770, 64
        %v1802 = vpop.permute.xlu0 %1801
        %1803 = vrot.lane.b32.xlu0 %v1771, 64
        %v1804 = vpop.permute.xlu0 %1803
        %1805 = vrot.lane.b32.xlu0 %v1772, 64
        %v1806 = vpop.permute.xlu0 %1805
        %1807 = vrot.lane.b32.xlu0 %v1773, 64
        %v1808 = vpop.permute.xlu0 %1807
        %1809 = vrot.lane.b32.xlu0 %v1774, 64
        %v1810 = vpop.permute.xlu0 %1809
        %1823 = vst.msk [vmem:[#allocation3 + $0x18] sm:$0xff] %vm1099, %v1788
        %1824 = vst.msk [vmem:[#allocation3 + $0x38] sm:$0xff] %vm1099, %v1790
        %1825 = vst.msk [vmem:[#allocation3 + $0x58] sm:$0xff] %vm1099, %v1792
        %1826 = vst.msk [vmem:[#allocation3 + $0x78] sm:$0xff] %vm1099, %v1794
        %1827 = vst.msk [vmem:[#allocation3 + $0x98] sm:$0xff] %vm1099, %v1796
        %1828 = vst.msk [vmem:[#allocation3 + $0xb8] sm:$0xff] %vm1099, %v1798
        %1829 = vst.msk [vmem:[#allocation3 + $0xd8] sm:$0xff] %vm1099, %v1800
        %1830 = vst.msk [vmem:[#allocation3 + $0xf8] sm:$0xff] %vm1099, %v1802
        %1831 = vst.msk [vmem:[#allocation3 + $0x118] sm:$0xff] %vm1099, %v1804
        %1832 = vst.msk [vmem:[#allocation3 + $0x138] sm:$0xff] %vm1099, %v1806
        %1833 = vst.msk [vmem:[#allocation3 + $0x158] sm:$0xff] %vm1099, %v1808
        %1834 = vst.msk [vmem:[#allocation3 + $0x178] sm:$0x1] %vm1111, %v1810
        %v1835 = vld [vmem:[#allocation2 + $0x137] sm:$0xff]
        %v1836 = vld [vmem:[#allocation2 + $0x13f] sm:$0xff]
        %v1837 = vld [vmem:[#allocation2 + $0x147] sm:$0xff]
        %v1838 = vld [vmem:[#allocation2 + $0x14f] sm:$0xff]
        %v1839 = vld [vmem:[#allocation2 + $0x157] sm:$0xff]
        %v1840 = vld [vmem:[#allocation2 + $0x15f] sm:$0xff]
        %v1841 = vld [vmem:[#allocation2 + $0x167] sm:$0xff]
        %v1842 = vld [vmem:[#allocation2 + $0x16f] sm:$0xff]
        %v1843 = vld [vmem:[#allocation2 + $0x177] sm:$0xff]
        %v1844 = vld [vmem:[#allocation2 + $0x17f] sm:$0xff]
        %v1845 = vld [vmem:[#allocation2 + $0x187] sm:$0xff]
        %v1846 = vld [vmem:[#allocation2 + $0x18f] sm:$0x1]
        %1859 = vrot.lane.b32.xlu0 %v1835, 96
        %v1860 = vpop.permute.xlu0 %1859
        %1861 = vrot.lane.b32.xlu0 %v1836, 96
        %v1862 = vpop.permute.xlu0 %1861
        %1863 = vrot.lane.b32.xlu0 %v1837, 96
        %v1864 = vpop.permute.xlu0 %1863
        %1865 = vrot.lane.b32.xlu0 %v1838, 96
        %v1866 = vpop.permute.xlu0 %1865
        %1867 = vrot.lane.b32.xlu0 %v1839, 96
        %v1868 = vpop.permute.xlu0 %1867
        %1869 = vrot.lane.b32.xlu0 %v1840, 96
        %v1870 = vpop.permute.xlu0 %1869
        %1871 = vrot.lane.b32.xlu0 %v1841, 96
        %v1872 = vpop.permute.xlu0 %1871
        %1873 = vrot.lane.b32.xlu0 %v1842, 96
        %v1874 = vpop.permute.xlu0 %1873
        %1875 = vrot.lane.b32.xlu0 %v1843, 96
        %v1876 = vpop.permute.xlu0 %1875
        %1877 = vrot.lane.b32.xlu0 %v1844, 96
        %v1878 = vpop.permute.xlu0 %1877
        %1879 = vrot.lane.b32.xlu0 %v1845, 96
        %v1880 = vpop.permute.xlu0 %1879
        %1881 = vrot.lane.b32.xlu0 %v1846, 96
        %v1882 = vpop.permute.xlu0 %1881
        %1895 = vst.msk [vmem:[#allocation3 + $0x18] sm:$0xff] %vm1173, %v1860
        %1896 = vst.msk [vmem:[#allocation3 + $0x38] sm:$0xff] %vm1173, %v1862
        %1897 = vst.msk [vmem:[#allocation3 + $0x58] sm:$0xff] %vm1173, %v1864
        %1898 = vst.msk [vmem:[#allocation3 + $0x78] sm:$0xff] %vm1173, %v1866
        %1899 = vst.msk [vmem:[#allocation3 + $0x98] sm:$0xff] %vm1173, %v1868
        %1900 = vst.msk [vmem:[#allocation3 + $0xb8] sm:$0xff] %vm1173, %v1870
        %1901 = vst.msk [vmem:[#allocation3 + $0xd8] sm:$0xff] %vm1173, %v1872
        %1902 = vst.msk [vmem:[#allocation3 + $0xf8] sm:$0xff] %vm1173, %v1874
        %1903 = vst.msk [vmem:[#allocation3 + $0x118] sm:$0xff] %vm1173, %v1876
        %1904 = vst.msk [vmem:[#allocation3 + $0x138] sm:$0xff] %vm1173, %v1878
        %1905 = vst.msk [vmem:[#allocation3 + $0x158] sm:$0xff] %vm1173, %v1880
        %1906 = vst.msk [vmem:[#allocation3 + $0x178] sm:$0x1] %vm1185, %v1882
        %v1907 = vld [vmem:[#allocation3] sm:$0xff]
        %v1908 = vld [vmem:[#allocation3 + $0x8] sm:$0xff]
        %v1909 = vld [vmem:[#allocation3 + $0x10] sm:$0xff]
        %v1910 = vld [vmem:[#allocation3 + $0x18] sm:$0xff]
        %v1911 = vld [vmem:[#allocation3 + $0x20] sm:$0xff]
        %v1912 = vld [vmem:[#allocation3 + $0x28] sm:$0xff]
        %v1913 = vld [vmem:[#allocation3 + $0x30] sm:$0xff]
        %v1914 = vld [vmem:[#allocation3 + $0x38] sm:$0xff]
        %v1915 = vld [vmem:[#allocation3 + $0x40] sm:$0xff]
        %v1916 = vld [vmem:[#allocation3 + $0x48] sm:$0xff]
        %v1917 = vld [vmem:[#allocation3 + $0x50] sm:$0xff]
        %v1918 = vld [vmem:[#allocation3 + $0x58] sm:$0xff]
        %v1919 = vld [vmem:[#allocation3 + $0x60] sm:$0xff]
        %v1920 = vld [vmem:[#allocation3 + $0x68] sm:$0xff]
        %v1921 = vld [vmem:[#allocation3 + $0x70] sm:$0xff]
        %v1922 = vld [vmem:[#allocation3 + $0x78] sm:$0xff]
        %v1923 = vld [vmem:[#allocation3 + $0x80] sm:$0xff]
        %v1924 = vld [vmem:[#allocation3 + $0x88] sm:$0xff]
        %v1925 = vld [vmem:[#allocation3 + $0x90] sm:$0xff]
        %v1926 = vld [vmem:[#allocation3 + $0x98] sm:$0xff]
        %v1927 = vld [vmem:[#allocation3 + $0xa0] sm:$0xff]
        %v1928 = vld [vmem:[#allocation3 + $0xa8] sm:$0xff]
        %v1929 = vld [vmem:[#allocation3 + $0xb0] sm:$0xff]
        %v1930 = vld [vmem:[#allocation3 + $0xb8] sm:$0xff]
        %v1931 = vld [vmem:[#allocation3 + $0xc0] sm:$0xff]
        %v1932 = vld [vmem:[#allocation3 + $0xc8] sm:$0xff]
        %v1933 = vld [vmem:[#allocation3 + $0xd0] sm:$0xff]
        %v1934 = vld [vmem:[#allocation3 + $0xd8] sm:$0xff]
        %v1935 = vld [vmem:[#allocation3 + $0xe0] sm:$0xff]
        %v1936 = vld [vmem:[#allocation3 + $0xe8] sm:$0xff]
        %v1937 = vld [vmem:[#allocation3 + $0xf0] sm:$0xff]
        %v1938 = vld [vmem:[#allocation3 + $0xf8] sm:$0xff]
        %v1939 = vld [vmem:[#allocation3 + $0x100] sm:$0xff]
        %v1940 = vld [vmem:[#allocation3 + $0x108] sm:$0xff]
        %v1941 = vld [vmem:[#allocation3 + $0x110] sm:$0xff]
        %v1942 = vld [vmem:[#allocation3 + $0x118] sm:$0xff]
        %v1943 = vld [vmem:[#allocation3 + $0x120] sm:$0xff]
        %v1944 = vld [vmem:[#allocation3 + $0x128] sm:$0xff]
        %v1945 = vld [vmem:[#allocation3 + $0x130] sm:$0xff]
        %v1946 = vld [vmem:[#allocation3 + $0x138] sm:$0xff]
        %v1947 = vld [vmem:[#allocation3 + $0x140] sm:$0xff]
        %v1948 = vld [vmem:[#allocation3 + $0x148] sm:$0xff]
        %v1949 = vld [vmem:[#allocation3 + $0x150] sm:$0xff]
        %v1950 = vld [vmem:[#allocation3 + $0x158] sm:$0xff]
        %v1951 = vld [vmem:[#allocation3 + $0x160] sm:$0x1]
        %v1952 = vld [vmem:[#allocation3 + $0x168] sm:$0x1]
        %v1953 = vld [vmem:[#allocation3 + $0x170] sm:$0x1]
        %v1954 = vld [vmem:[#allocation3 + $0x178] sm:$0x1]
        %v1955 = vld [vmem:[%s3] sm:$0xff]
        %v1956 = vld [vmem:[%s3 + $0x8] sm:$0xff]
        %v1957 = vld [vmem:[%s3 + $0x10] sm:$0xff]
        %v1958 = vld [vmem:[%s3 + $0x18] sm:$0xff]
        %v1959 = vld [vmem:[%s3 + $0x20] sm:$0xff]
        %v1960 = vld [vmem:[%s3 + $0x28] sm:$0xff]
        %v1961 = vld [vmem:[%s3 + $0x30] sm:$0xff]
        %v1962 = vld [vmem:[%s3 + $0x38] sm:$0xff]
        %v1963 = vld [vmem:[%s3 + $0x40] sm:$0xff]
        %v1964 = vld [vmem:[%s3 + $0x48] sm:$0xff]
        %v1965 = vld [vmem:[%s3 + $0x50] sm:$0xff]
        %v1966 = vld [vmem:[%s3 + $0x58] sm:$0xff]
        %v1967 = vld [vmem:[%s3 + $0x60] sm:$0xff]
        %v1968 = vld [vmem:[%s3 + $0x68] sm:$0xff]
        %v1969 = vld [vmem:[%s3 + $0x70] sm:$0xff]
        %v1970 = vld [vmem:[%s3 + $0x78] sm:$0xff]
        %v1971 = vld [vmem:[%s3 + $0x80] sm:$0xff]
        %v1972 = vld [vmem:[%s3 + $0x88] sm:$0xff]
        %v1973 = vld [vmem:[%s3 + $0x90] sm:$0xff]
        %v1974 = vld [vmem:[%s3 + $0x98] sm:$0xff]
        %v1975 = vld [vmem:[%s3 + $0xa0] sm:$0xff]
        %v1976 = vld [vmem:[%s3 + $0xa8] sm:$0xff]
        %v1977 = vld [vmem:[%s3 + $0xb0] sm:$0xff]
        %v1978 = vld [vmem:[%s3 + $0xb8] sm:$0xff]
        %v1979 = vld [vmem:[%s3 + $0xc0] sm:$0xff]
        %v1980 = vld [vmem:[%s3 + $0xc8] sm:$0xff]
        %v1981 = vld [vmem:[%s3 + $0xd0] sm:$0xff]
        %v1982 = vld [vmem:[%s3 + $0xd8] sm:$0xff]
        %v1983 = vld [vmem:[%s3 + $0xe0] sm:$0xff]
        %v1984 = vld [vmem:[%s3 + $0xe8] sm:$0xff]
        %v1985 = vld [vmem:[%s3 + $0xf0] sm:$0xff]
        %v1986 = vld [vmem:[%s3 + $0xf8] sm:$0xff]
        %v1987 = vld [vmem:[%s3 + $0x100] sm:$0xff]
        %v1988 = vld [vmem:[%s3 + $0x108] sm:$0xff]
        %v1989 = vld [vmem:[%s3 + $0x110] sm:$0xff]
        %v1990 = vld [vmem:[%s3 + $0x118] sm:$0xff]
        %v1991 = vld [vmem:[%s3 + $0x120] sm:$0xff]
        %v1992 = vld [vmem:[%s3 + $0x128] sm:$0xff]
        %v1993 = vld [vmem:[%s3 + $0x130] sm:$0xff]
        %v1994 = vld [vmem:[%s3 + $0x138] sm:$0xff]
        %v1995 = vld [vmem:[%s3 + $0x140] sm:$0xff]
        %v1996 = vld [vmem:[%s3 + $0x148] sm:$0xff]
        %v1997 = vld [vmem:[%s3 + $0x150] sm:$0xff]
        %v1998 = vld [vmem:[%s3 + $0x158] sm:$0xff]
        %v1999 = vld [vmem:[%s3 + $0x160] sm:$0xff]
        %v2000 = vld [vmem:[%s3 + $0x168] sm:$0xff]
        %v2001 = vld [vmem:[%s3 + $0x170] sm:$0xff]
        %v2002 = vld [vmem:[%s3 + $0x178] sm:$0xff]
        %v2003 = vld [vmem:[%s3 + $0x180] sm:$0xff]
        %v2004 = vld [vmem:[%s3 + $0x188] sm:$0xff]
        %v2005 = vld [vmem:[%s3 + $0x190] sm:$0xff]
        %v2006 = vld [vmem:[%s3 + $0x198] sm:$0xff]
        %v2007 = vld [vmem:[%s3 + $0x1a0] sm:$0xff]
        %v2008 = vld [vmem:[%s3 + $0x1a8] sm:$0xff]
        %v2009 = vld [vmem:[%s3 + $0x1b0] sm:$0xff]
        %v2010 = vld [vmem:[%s3 + $0x1b8] sm:$0xff]
        %v2011 = vld [vmem:[%s3 + $0x1c0] sm:$0xff]
        %v2012 = vld [vmem:[%s3 + $0x1c8] sm:$0xff]
        %v2013 = vld [vmem:[%s3 + $0x1d0] sm:$0xff]
        %v2014 = vld [vmem:[%s3 + $0x1d8] sm:$0xff]
        %v2015 = vld [vmem:[%s3 + $0x1e0] sm:$0xff]
        %v2016 = vld [vmem:[%s3 + $0x1e8] sm:$0xff]
        %v2017 = vld [vmem:[%s3 + $0x1f0] sm:$0xff]
        %v2018 = vld [vmem:[%s3 + $0x1f8] sm:$0xff]
        %v2019 = vld [vmem:[%s4] sm:$0x1]
        %v2021 = vlaneseq
        %v2022 = vshrl.u32 %v2021, 7
        %v2023 = vsub.s32 0, %v2022
        %v2024 = vrot.slane %v2019, %v2023
        %2026 = vmatprep.subr.mxu0 0.0
        %2027 = vmatpush1.msra.mxu0 %v1955
        %2028 = vmatprep.subr.mxu0 0.0
        %2029 = vmatpush1.msra.mxu0 %v1956
        %2030 = vmatprep.subr.mxu0 0.0
        %2031 = vmatpush1.msra.mxu0 %v1957
        %2032 = vmatprep.subr.mxu0 0.0
        %2033 = vmatpush1.msra.mxu0 %v1958
        %2034 = vmatprep.subr.mxu0 0.0
        %2035 = vmatpush1.msra.mxu0 %v1959
        %2036 = vmatprep.subr.mxu0 0.0
        %2037 = vmatpush1.msra.mxu0 %v1960
        %2038 = vmatprep.subr.mxu0 0.0
        %2039 = vmatpush1.msra.mxu0 %v1961
        %2040 = vmatprep.subr.mxu0 0.0
        %2041 = vmatpush1.msra.mxu0 %v1962
        %2042 = vmatprep.subr.mxu0 0.0
        %2043 = vmatpush1.msra.mxu0 %v1963
        %2044 = vmatprep.subr.mxu0 0.0
        %2045 = vmatpush1.msra.mxu0 %v1964
        %2046 = vmatprep.subr.mxu0 0.0
        %2047 = vmatpush1.msra.mxu0 %v1965
        %2048 = vmatprep.subr.mxu0 0.0
        %2049 = vmatpush1.msra.mxu0 %v1966
        %2050 = vmatprep.subr.mxu0 0.0
        %2051 = vmatpush1.msra.mxu0 %v1967
        %2052 = vmatprep.subr.mxu0 0.0
        %2053 = vmatpush1.msra.mxu0 %v1968
        %2054 = vmatprep.subr.mxu0 0.0
        %2055 = vmatpush1.msra.mxu0 %v1969
        %2056 = vmatprep.subr.mxu0 0.0
        %2057 = vmatpush1.msra.mxu0 %v1970
        %2058 = vmatprep.subr.mxu0 0.0
        %2059 = vmatpush1.msra.mxu0 %v1971
        %2060 = vmatprep.subr.mxu0 0.0
        %2061 = vmatpush1.msra.mxu0 %v1972
        %2062 = vmatprep.subr.mxu0 0.0
        %2063 = vmatpush1.msra.mxu0 %v1973
        %2064 = vmatprep.subr.mxu0 0.0
        %2065 = vmatpush1.msra.mxu0 %v1974
        %2066 = vmatprep.subr.mxu0 0.0
        %2067 = vmatpush1.msra.mxu0 %v1975
        %2068 = vmatprep.subr.mxu0 0.0
        %2069 = vmatpush1.msra.mxu0 %v1976
        %2070 = vmatprep.subr.mxu0 0.0
        %2071 = vmatpush1.msra.mxu0 %v1977
        %2072 = vmatprep.subr.mxu0 0.0
        %2073 = vmatpush1.msra.mxu0 %v1978
        %2074 = vmatprep.subr.mxu0 0.0
        %2075 = vmatpush1.msra.mxu0 %v1979
        %2076 = vmatprep.subr.mxu0 0.0
        %2077 = vmatpush1.msra.mxu0 %v1980
        %2078 = vmatprep.subr.mxu0 0.0
        %2079 = vmatpush1.msra.mxu0 %v1981
        %2080 = vmatprep.subr.mxu0 0.0
        %2081 = vmatpush1.msra.mxu0 %v1982
        %2082 = vmatprep.subr.mxu0 0.0
        %2083 = vmatpush1.msra.mxu0 %v1983
        %2084 = vmatprep.subr.mxu0 0.0
        %2085 = vmatpush1.msra.mxu0 %v1984
        %2086 = vmatprep.subr.mxu0 0.0
        %2087 = vmatpush1.msra.mxu0 %v1985
        %2088 = vmatprep.subr.mxu0 0.0
        %2089 = vmatpush1.msra.mxu0 %v1986
        %2090 = vmatprep.mubr.f32.mxu0 %v1908
        %2091 = vmatmul.mubr.f32.gmra.mrb[0].mxu0 %v1907
        %v2092 = vpop.f32.mrb[0].mxu0
        %v2093 = vadd.f32 %v2024, %v2092
        %v2094 = vpop.f32.mrb[0].mxu0
        %2095 = vmatprep.mubr.f32.mxu0 %v1912
        %2096 = vmatmul.mubr.f32.gmra.mrb[0].mxu0 %v1911
        %v2097 = vpop.f32.mrb[0].mxu0
        %v2098 = vadd.f32 %v2024, %v2097
        %v2099 = vpop.f32.mrb[0].mxu0
        %2100 = vmatprep.mubr.f32.mxu0 %v1916
        %2101 = vmatmul.mubr.f32.gmra.mrb[0].mxu0 %v1915
        %v2102 = vpop.f32.mrb[0].mxu0
        %v2103 = vadd.f32 %v2024, %v2102
        %v2104 = vpop.f32.mrb[0].mxu0
        %2105 = vmatprep.mubr.f32.mxu0 %v1920
        %2106 = vmatmul.mubr.f32.gmra.mrb[0].mxu0 %v1919
        %v2107 = vpop.f32.mrb[0].mxu0
        %v2108 = vadd.f32 %v2024, %v2107
        %v2109 = vpop.f32.mrb[0].mxu0
        %2110 = vmatprep.mubr.f32.mxu0 %v1924
        %2111 = vmatmul.mubr.f32.gmra.mrb[0].mxu0 %v1923
        %v2112 = vpop.f32.mrb[0].mxu0
        %v2113 = vadd.f32 %v2024, %v2112
        %v2114 = vpop.f32.mrb[0].mxu0
        %2115 = vmatprep.mubr.f32.mxu0 %v1928
        %2116 = vmatmul.mubr.f32.gmra.mrb[0].mxu0 %v1927
        %v2117 = vpop.f32.mrb[0].mxu0
        %v2118 = vadd.f32 %v2024, %v2117
        %v2119 = vpop.f32.mrb[0].mxu0
        %2120 = vmatprep.mubr.f32.mxu0 %v1932
        %2121 = vmatmul.mubr.f32.gmra.mrb[0].mxu0 %v1931
        %v2122 = vpop.f32.mrb[0].mxu0
        %v2123 = vadd.f32 %v2024, %v2122
        %v2124 = vpop.f32.mrb[0].mxu0
        %2125 = vmatprep.mubr.f32.mxu0 %v1936
        %2126 = vmatmul.mubr.f32.gmra.mrb[0].mxu0 %v1935
        %v2127 = vpop.f32.mrb[0].mxu0
        %v2128 = vadd.f32 %v2024, %v2127
        %v2129 = vpop.f32.mrb[0].mxu0
        %2130 = vmatprep.mubr.f32.mxu0 %v1940
        %2131 = vmatmul.mubr.f32.gmra.mrb[0].mxu0 %v1939
        %v2132 = vpop.f32.mrb[0].mxu0
        %v2133 = vadd.f32 %v2024, %v2132
        %v2134 = vpop.f32.mrb[0].mxu0
        %2135 = vmatprep.mubr.f32.mxu0 %v1944
        %2136 = vmatmul.mubr.f32.gmra.mrb[0].mxu0 %v1943
        %v2137 = vpop.f32.mrb[0].mxu0
        %v2138 = vadd.f32 %v2024, %v2137
        %v2139 = vpop.f32.mrb[0].mxu0
        %2140 = vmatprep.mubr.f32.mxu0 %v1948
        %2141 = vmatmul.mubr.f32.gmra.mrb[0].mxu0 %v1947
        %v2142 = vpop.f32.mrb[0].mxu0
        %v2143 = vadd.f32 %v2024, %v2142
        %v2144 = vpop.f32.mrb[0].mxu0
        %2145 = vmatprep.mubr.f32.mxu0 %v1952
        %2146 = vmatmul.mubr.f32.gmra.mrb[0].mxu0 %v1951
        %v2147 = vpop.f32.mrb[0].mxu0
        %v2148 = vadd.f32 %v2024, %v2147
        %v2149 = vpop.f32.mrb[0].mxu0
        %2150 = vdwg.mxu0
        %2151 = vmatprep.subr.mxu0 0.0
        %2152 = vmatpush1.msra.mxu0 %v1987
        %2153 = vmatprep.subr.mxu0 0.0
        %2154 = vmatpush1.msra.mxu0 %v1988
        %2155 = vmatprep.subr.mxu0 0.0
        %2156 = vmatpush1.msra.mxu0 %v1989
        %2157 = vmatprep.subr.mxu0 0.0
        %2158 = vmatpush1.msra.mxu0 %v1990
        %2159 = vmatprep.subr.mxu0 0.0
        %2160 = vmatpush1.msra.mxu0 %v1991
        %2161 = vmatprep.subr.mxu0 0.0
        %2162 = vmatpush1.msra.mxu0 %v1992
        %2163 = vmatprep.subr.mxu0 0.0
        %2164 = vmatpush1.msra.mxu0 %v1993
        %2165 = vmatprep.subr.mxu0 0.0
        %2166 = vmatpush1.msra.mxu0 %v1994
        %2167 = vmatprep.subr.mxu0 0.0
        %2168 = vmatpush1.msra.mxu0 %v1995
        %2169 = vmatprep.subr.mxu0 0.0
        %2170 = vmatpush1.msra.mxu0 %v1996
        %2171 = vmatprep.subr.mxu0 0.0
        %2172 = vmatpush1.msra.mxu0 %v1997
        %2173 = vmatprep.subr.mxu0 0.0
        %2174 = vmatpush1.msra.mxu0 %v1998
        %2175 = vmatprep.subr.mxu0 0.0
        %2176 = vmatpush1.msra.mxu0 %v1999
        %2177 = vmatprep.subr.mxu0 0.0
        %2178 = vmatpush1.msra.mxu0 %v2000
        %2179 = vmatprep.subr.mxu0 0.0
        %2180 = vmatpush1.msra.mxu0 %v2001
        %2181 = vmatprep.subr.mxu0 0.0
        %2182 = vmatpush1.msra.mxu0 %v2002
        %2183 = vmatprep.subr.mxu0 0.0
        %2184 = vmatpush1.msra.mxu0 %v2003
        %2185 = vmatprep.subr.mxu0 0.0
        %2186 = vmatpush1.msra.mxu0 %v2004
        %2187 = vmatprep.subr.mxu0 0.0
        %2188 = vmatpush1.msra.mxu0 %v2005
        %2189 = vmatprep.subr.mxu0 0.0
        %2190 = vmatpush1.msra.mxu0 %v2006
        %2191 = vmatprep.subr.mxu0 0.0
        %2192 = vmatpush1.msra.mxu0 %v2007
        %2193 = vmatprep.subr.mxu0 0.0
        %2194 = vmatpush1.msra.mxu0 %v2008
        %2195 = vmatprep.subr.mxu0 0.0
        %2196 = vmatpush1.msra.mxu0 %v2009
        %2197 = vmatprep.subr.mxu0 0.0
        %2198 = vmatpush1.msra.mxu0 %v2010
        %2199 = vmatprep.subr.mxu0 0.0
        %2200 = vmatpush1.msra.mxu0 %v2011
        %2201 = vmatprep.subr.mxu0 0.0
        %2202 = vmatpush1.msra.mxu0 %v2012
        %2203 = vmatprep.subr.mxu0 0.0
        %2204 = vmatpush1.msra.mxu0 %v2013
        %2205 = vmatprep.subr.mxu0 0.0
        %2206 = vmatpush1.msra.mxu0 %v2014
        %2207 = vmatprep.subr.mxu0 0.0
        %2208 = vmatpush1.msra.mxu0 %v2015
        %2209 = vmatprep.subr.mxu0 0.0
        %2210 = vmatpush1.msra.mxu0 %v2016
        %2211 = vmatprep.subr.mxu0 0.0
        %2212 = vmatpush1.msra.mxu0 %v2017
        %2213 = vmatprep.subr.mxu0 0.0
        %2214 = vmatpush1.msra.mxu0 %v2018
        %2215 = vmatprep.mubr.f32.mxu0 %v1910
        %2216 = vmatmul.mubr.f32.gmra.mrb[0].mxu0 %v1909
        %v2217 = vpop.f32.mrb[0].mxu0
        %v2218 = vadd.f32 %v2093, %v2217
        %v2219 = vpop.f32.mrb[0].mxu0
        %2220 = vmatprep.mubr.f32.mxu0 %v1914
        %2221 = vmatmul.mubr.f32.gmra.mrb[0].mxu0 %v1913
        %v2222 = vpop.f32.mrb[0].mxu0
        %v2223 = vadd.f32 %v2098, %v2222
        %v2224 = vpop.f32.mrb[0].mxu0
        %2225 = vmatprep.mubr.f32.mxu0 %v1918
        %2226 = vmatmul.mubr.f32.gmra.mrb[0].mxu0 %v1917
        %v2227 = vpop.f32.mrb[0].mxu0
        %v2228 = vadd.f32 %v2103, %v2227
        %v2229 = vpop.f32.mrb[0].mxu0
        %2230 = vmatprep.mubr.f32.mxu0 %v1922
        %2231 = vmatmul.mubr.f32.gmra.mrb[0].mxu0 %v1921
        %v2232 = vpop.f32.mrb[0].mxu0
        %v2233 = vadd.f32 %v2108, %v2232
        %v2234 = vpop.f32.mrb[0].mxu0
        %2235 = vmatprep.mubr.f32.mxu0 %v1926
        %2236 = vmatmul.mubr.f32.gmra.mrb[0].mxu0 %v1925
        %v2237 = vpop.f32.mrb[0].mxu0
        %v2238 = vadd.f32 %v2113, %v2237
        %v2239 = vpop.f32.mrb[0].mxu0
        %2240 = vmatprep.mubr.f32.mxu0 %v1930
        %2241 = vmatmul.mubr.f32.gmra.mrb[0].mxu0 %v1929
        %v2242 = vpop.f32.mrb[0].mxu0
        %v2243 = vadd.f32 %v2118, %v2242
        %v2244 = vpop.f32.mrb[0].mxu0
        %2245 = vmatprep.mubr.f32.mxu0 %v1934
        %2246 = vmatmul.mubr.f32.gmra.mrb[0].mxu0 %v1933
        %v2247 = vpop.f32.mrb[0].mxu0
        %v2248 = vadd.f32 %v2123, %v2247
        %v2249 = vpop.f32.mrb[0].mxu0
        %2250 = vmatprep.mubr.f32.mxu0 %v1938
        %2251 = vmatmul.mubr.f32.gmra.mrb[0].mxu0 %v1937
        %v2252 = vpop.f32.mrb[0].mxu0
        %v2253 = vadd.f32 %v2128, %v2252
        %v2254 = vpop.f32.mrb[0].mxu0
        %2255 = vmatprep.mubr.f32.mxu0 %v1942
        %2256 = vmatmul.mubr.f32.gmra.mrb[0].mxu0 %v1941
        %v2257 = vpop.f32.mrb[0].mxu0
        %v2258 = vadd.f32 %v2133, %v2257
        %v2259 = vpop.f32.mrb[0].mxu0
        %2260 = vmatprep.mubr.f32.mxu0 %v1946
        %2261 = vmatmul.mubr.f32.gmra.mrb[0].mxu0 %v1945
        %v2262 = vpop.f32.mrb[0].mxu0
        %v2263 = vadd.f32 %v2138, %v2262
        %v2264 = vpop.f32.mrb[0].mxu0
        %2265 = vmatprep.mubr.f32.mxu0 %v1950
        %2266 = vmatmul.mubr.f32.gmra.mrb[0].mxu0 %v1949
        %v2267 = vpop.f32.mrb[0].mxu0
        %v2268 = vadd.f32 %v2143, %v2267
        %v2269 = vpop.f32.mrb[0].mxu0
        %2270 = vmatprep.mubr.f32.mxu0 %v1954
        %2271 = vmatmul.mubr.f32.gmra.mrb[0].mxu0 %v1953
        %v2272 = vpop.f32.mrb[0].mxu0
        %v2273 = vadd.f32 %v2148, %v2272
        %v2274 = vpop.f32.mrb[0].mxu0
        %2275 = vdwg.mxu0
        %v2276 = vmax.f32 %v2218, 0.0
        %v2277 = vmax.f32 %v2223, 0.0
        %v2278 = vmax.f32 %v2228, 0.0
        %v2279 = vmax.f32 %v2233, 0.0
        %v2280 = vmax.f32 %v2238, 0.0
        %v2281 = vmax.f32 %v2243, 0.0
        %v2282 = vmax.f32 %v2248, 0.0
        %v2283 = vmax.f32 %v2253, 0.0
        %v2284 = vmax.f32 %v2258, 0.0
        %v2285 = vmax.f32 %v2263, 0.0
        %v2286 = vmax.f32 %v2268, 0.0
        %v2287 = vmax.f32 %v2273, 0.0
        %vm2288 = vcmask 523264
        %2289 = vst.msk [vmem:[#allocation4] sm:$0xff] %vm2288, %v2276
        %2290 = vst.msk [vmem:[#allocation4 + $0x8] sm:$0xff] %vm2288, %v2277
        %2291 = vst.msk [vmem:[#allocation4 + $0x10] sm:$0xff] %vm2288, %v2278
        %2292 = vst.msk [vmem:[#allocation4 + $0x18] sm:$0xff] %vm2288, %v2279
        %2293 = vst.msk [vmem:[#allocation4 + $0x20] sm:$0xff] %vm2288, %v2280
        %2294 = vst.msk [vmem:[#allocation4 + $0x28] sm:$0xff] %vm2288, %v2281
        %2295 = vst.msk [vmem:[#allocation4 + $0x30] sm:$0xff] %vm2288, %v2282
        %2296 = vst.msk [vmem:[#allocation4 + $0x38] sm:$0xff] %vm2288, %v2283
        %2297 = vst.msk [vmem:[#allocation4 + $0x40] sm:$0xff] %vm2288, %v2284
        %2298 = vst.msk [vmem:[#allocation4 + $0x48] sm:$0xff] %vm2288, %v2285
        %2299 = vst.msk [vmem:[#allocation4 + $0x50] sm:$0xff] %vm2288, %v2286
        %vm2300 = vcmask 516096
        %2301 = vst.msk [vmem:[#allocation4 + $0x58] sm:$0x1] %vm2300, %v2287
        %v2302 = vld [vmem:[#allocation4] sm:$0xff]
        %v2303 = vld [vmem:[#allocation4 + $0x8] sm:$0xff]
        %v2304 = vld [vmem:[#allocation4 + $0x10] sm:$0xff]
        %v2305 = vld [vmem:[#allocation4 + $0x18] sm:$0xff]
        %v2306 = vld [vmem:[#allocation4 + $0x20] sm:$0xff]
        %v2307 = vld [vmem:[#allocation4 + $0x28] sm:$0xff]
        %v2308 = vld [vmem:[#allocation4 + $0x30] sm:$0xff]
        %v2309 = vld [vmem:[#allocation4 + $0x38] sm:$0xff]
        %v2310 = vld [vmem:[#allocation4 + $0x40] sm:$0x7]
        %2311 = vst.msk [vmem:[#allocation5] sm:$0xff] %vm2288, %v2302
        %2312 = vst.msk [vmem:[#allocation5 + $0x28] sm:$0xff] %vm2288, %v2303
        %2313 = vst.msk [vmem:[#allocation5 + $0x50] sm:$0xff] %vm2288, %v2304
        %2314 = vst.msk [vmem:[#allocation5 + $0x78] sm:$0xff] %vm2288, %v2305
        %2315 = vst.msk [vmem:[#allocation5 + $0xa0] sm:$0xff] %vm2288, %v2306
        %2316 = vst.msk [vmem:[#allocation5 + $0xc8] sm:$0xff] %vm2288, %v2307
        %2317 = vst.msk [vmem:[#allocation5 + $0xf0] sm:$0xff] %vm2288, %v2308
        %2318 = vst.msk [vmem:[#allocation5 + $0x118] sm:$0xff] %vm2288, %v2309
        %vm2319 = vcmask 518144
        %2320 = vst.msk [vmem:[#allocation5 + $0x140] sm:$0x7] %vm2319, %v2310
        %v2321 = vld [vmem:[#allocation4 + $0x1] sm:$0xff]
        %v2322 = vld [vmem:[#allocation4 + $0x9] sm:$0xff]
        %v2323 = vld [vmem:[#allocation4 + $0x11] sm:$0xff]
        %v2324 = vld [vmem:[#allocation4 + $0x19] sm:$0xff]
        %v2325 = vld [vmem:[#allocation4 + $0x21] sm:$0xff]
        %v2326 = vld [vmem:[#allocation4 + $0x29] sm:$0xff]
        %v2327 = vld [vmem:[#allocation4 + $0x31] sm:$0xff]
        %v2328 = vld [vmem:[#allocation4 + $0x39] sm:$0xff]
        %v2329 = vld [vmem:[#allocation4 + $0x41] sm:$0x7]
        %2339 = vrot.lane.b32.xlu0 %v2321, 64
        %v2340 = vpop.permute.xlu0 %2339
        %2341 = vrot.lane.b32.xlu0 %v2322, 64
        %v2342 = vpop.permute.xlu0 %2341
        %2343 = vrot.lane.b32.xlu0 %v2323, 64
        %v2344 = vpop.permute.xlu0 %2343
        %2345 = vrot.lane.b32.xlu0 %v2324, 64
        %v2346 = vpop.permute.xlu0 %2345
        %2347 = vrot.lane.b32.xlu0 %v2325, 64
        %v2348 = vpop.permute.xlu0 %2347
        %2349 = vrot.lane.b32.xlu0 %v2326, 64
        %v2350 = vpop.permute.xlu0 %2349
        %2351 = vrot.lane.b32.xlu0 %v2327, 64
        %v2352 = vpop.permute.xlu0 %2351
        %2353 = vrot.lane.b32.xlu0 %v2328, 64
        %v2354 = vpop.permute.xlu0 %2353
        %2355 = vrot.lane.b32.xlu0 %v2329, 64
        %v2356 = vpop.permute.xlu0 %2355
        %vm2366 = vcmask 1048064
        %2367 = vst.msk [vmem:[#allocation5] sm:$0xff] %vm2366, %v2340
        %2368 = vst.msk [vmem:[#allocation5 + $0x28] sm:$0xff] %vm2366, %v2342
        %2369 = vst.msk [vmem:[#allocation5 + $0x50] sm:$0xff] %vm2366, %v2344
        %2370 = vst.msk [vmem:[#allocation5 + $0x78] sm:$0xff] %vm2366, %v2346
        %2371 = vst.msk [vmem:[#allocation5 + $0xa0] sm:$0xff] %vm2366, %v2348
        %2372 = vst.msk [vmem:[#allocation5 + $0xc8] sm:$0xff] %vm2366, %v2350
        %2373 = vst.msk [vmem:[#allocation5 + $0xf0] sm:$0xff] %vm2366, %v2352
        %2374 = vst.msk [vmem:[#allocation5 + $0x118] sm:$0xff] %vm2366, %v2354
        %vm2375 = vcmask 1042944
        %2376 = vst.msk [vmem:[#allocation5 + $0x140] sm:$0x7] %vm2375, %v2356
        %v2377 = vld [vmem:[#allocation4 + $0x2] sm:$0xff]
        %v2378 = vld [vmem:[#allocation4 + $0xa] sm:$0xff]
        %v2379 = vld [vmem:[#allocation4 + $0x12] sm:$0xff]
        %v2380 = vld [vmem:[#allocation4 + $0x1a] sm:$0xff]
        %v2381 = vld [vmem:[#allocation4 + $0x22] sm:$0xff]
        %v2382 = vld [vmem:[#allocation4 + $0x2a] sm:$0xff]
        %v2383 = vld [vmem:[#allocation4 + $0x32] sm:$0xff]
        %v2384 = vld [vmem:[#allocation4 + $0x3a] sm:$0xff]
        %v2385 = vld [vmem:[#allocation4 + $0x42] sm:$0x7]
        %2386 = vst.msk [vmem:[#allocation5 + $0x8] sm:$0xff] %vm2288, %v2377
        %2387 = vst.msk [vmem:[#allocation5 + $0x30] sm:$0xff] %vm2288, %v2378
        %2388 = vst.msk [vmem:[#allocation5 + $0x58] sm:$0xff] %vm2288, %v2379
        %2389 = vst.msk [vmem:[#allocation5 + $0x80] sm:$0xff] %vm2288, %v2380
        %2390 = vst.msk [vmem:[#allocation5 + $0xa8] sm:$0xff] %vm2288, %v2381
        %2391 = vst.msk [vmem:[#allocation5 + $0xd0] sm:$0xff] %vm2288, %v2382
        %2392 = vst.msk [vmem:[#allocation5 + $0xf8] sm:$0xff] %vm2288, %v2383
        %2393 = vst.msk [vmem:[#allocation5 + $0x120] sm:$0xff] %vm2288, %v2384
        %2394 = vst.msk [vmem:[#allocation5 + $0x148] sm:$0x7] %vm2319, %v2385
        %v2395 = vld [vmem:[#allocation4 + $0xa] sm:$0xff]
        %v2396 = vld [vmem:[#allocation4 + $0x12] sm:$0xff]
        %v2397 = vld [vmem:[#allocation4 + $0x1a] sm:$0xff]
        %v2398 = vld [vmem:[#allocation4 + $0x22] sm:$0xff]
        %v2399 = vld [vmem:[#allocation4 + $0x2a] sm:$0xff]
        %v2400 = vld [vmem:[#allocation4 + $0x32] sm:$0xff]
        %v2401 = vld [vmem:[#allocation4 + $0x3a] sm:$0xff]
        %v2402 = vld [vmem:[#allocation4 + $0x42] sm:$0xff]
        %v2403 = vld [vmem:[#allocation4 + $0x4a] sm:$0x7]
        %2413 = vrot.lane.b32.xlu0 %v2395, 64
        %v2414 = vpop.permute.xlu0 %2413
        %2415 = vrot.lane.b32.xlu0 %v2396, 64
        %v2416 = vpop.permute.xlu0 %2415
        %2417 = vrot.lane.b32.xlu0 %v2397, 64
        %v2418 = vpop.permute.xlu0 %2417
        %2419 = vrot.lane.b32.xlu0 %v2398, 64
        %v2420 = vpop.permute.xlu0 %2419
        %2421 = vrot.lane.b32.xlu0 %v2399, 64
        %v2422 = vpop.permute.xlu0 %2421
        %2423 = vrot.lane.b32.xlu0 %v2400, 64
        %v2424 = vpop.permute.xlu0 %2423
        %2425 = vrot.lane.b32.xlu0 %v2401, 64
        %v2426 = vpop.permute.xlu0 %2425
        %2427 = vrot.lane.b32.xlu0 %v2402, 64
        %v2428 = vpop.permute.xlu0 %2427
        %2429 = vrot.lane.b32.xlu0 %v2403, 64
        %v2430 = vpop.permute.xlu0 %2429
        %2440 = vst.msk [vmem:[#allocation5 + $0x8] sm:$0xff] %vm2366, %v2414
        %2441 = vst.msk [vmem:[#allocation5 + $0x30] sm:$0xff] %vm2366, %v2416
        %2442 = vst.msk [vmem:[#allocation5 + $0x58] sm:$0xff] %vm2366, %v2418
        %2443 = vst.msk [vmem:[#allocation5 + $0x80] sm:$0xff] %vm2366, %v2420
        %2444 = vst.msk [vmem:[#allocation5 + $0xa8] sm:$0xff] %vm2366, %v2422
        %2445 = vst.msk [vmem:[#allocation5 + $0xd0] sm:$0xff] %vm2366, %v2424
        %2446 = vst.msk [vmem:[#allocation5 + $0xf8] sm:$0xff] %vm2366, %v2426
        %2447 = vst.msk [vmem:[#allocation5 + $0x120] sm:$0xff] %vm2366, %v2428
        %2448 = vst.msk [vmem:[#allocation5 + $0x148] sm:$0x7] %vm2375, %v2430
        %v2449 = vld [vmem:[#allocation4 + $0xb] sm:$0xff]
        %v2450 = vld [vmem:[#allocation4 + $0x13] sm:$0xff]
        %v2451 = vld [vmem:[#allocation4 + $0x1b] sm:$0xff]
        %v2452 = vld [vmem:[#allocation4 + $0x23] sm:$0xff]
        %v2453 = vld [vmem:[#allocation4 + $0x2b] sm:$0xff]
        %v2454 = vld [vmem:[#allocation4 + $0x33] sm:$0xff]
        %v2455 = vld [vmem:[#allocation4 + $0x3b] sm:$0xff]
        %v2456 = vld [vmem:[#allocation4 + $0x43] sm:$0xff]
        %v2457 = vld [vmem:[#allocation4 + $0x4b] sm:$0x7]
        %2458 = vst.msk [vmem:[#allocation5 + $0x10] sm:$0xff] %vm2288, %v2449
        %2459 = vst.msk [vmem:[#allocation5 + $0x38] sm:$0xff] %vm2288, %v2450
        %2460 = vst.msk [vmem:[#allocation5 + $0x60] sm:$0xff] %vm2288, %v2451
        %2461 = vst.msk [vmem:[#allocation5 + $0x88] sm:$0xff] %vm2288, %v2452
        %2462 = vst.msk [vmem:[#allocation5 + $0xb0] sm:$0xff] %vm2288, %v2453
        %2463 = vst.msk [vmem:[#allocation5 + $0xd8] sm:$0xff] %vm2288, %v2454
        %2464 = vst.msk [vmem:[#allocation5 + $0x100] sm:$0xff] %vm2288, %v2455
        %2465 = vst.msk [vmem:[#allocation5 + $0x128] sm:$0xff] %vm2288, %v2456
        %2466 = vst.msk [vmem:[#allocation5 + $0x150] sm:$0x7] %vm2319, %v2457
        %v2467 = vld [vmem:[#allocation4 + $0xc] sm:$0xff]
        %v2468 = vld [vmem:[#allocation4 + $0x14] sm:$0xff]
        %v2469 = vld [vmem:[#allocation4 + $0x1c] sm:$0xff]
        %v2470 = vld [vmem:[#allocation4 + $0x24] sm:$0xff]
        %v2471 = vld [vmem:[#allocation4 + $0x2c] sm:$0xff]
        %v2472 = vld [vmem:[#allocation4 + $0x34] sm:$0xff]
        %v2473 = vld [vmem:[#allocation4 + $0x3c] sm:$0xff]
        %v2474 = vld [vmem:[#allocation4 + $0x44] sm:$0xff]
        %v2475 = vld [vmem:[#allocation4 + $0x4c] sm:$0x7]
        %2485 = vrot.lane.b32.xlu0 %v2467, 64
        %v2486 = vpop.permute.xlu0 %2485
        %2487 = vrot.lane.b32.xlu0 %v2468, 64
        %v2488 = vpop.permute.xlu0 %2487
        %2489 = vrot.lane.b32.xlu0 %v2469, 64
        %v2490 = vpop.permute.xlu0 %2489
        %2491 = vrot.lane.b32.xlu0 %v2470, 64
        %v2492 = vpop.permute.xlu0 %2491
        %2493 = vrot.lane.b32.xlu0 %v2471, 64
        %v2494 = vpop.permute.xlu0 %2493
        %2495 = vrot.lane.b32.xlu0 %v2472, 64
        %v2496 = vpop.permute.xlu0 %2495
        %2497 = vrot.lane.b32.xlu0 %v2473, 64
        %v2498 = vpop.permute.xlu0 %2497
        %2499 = vrot.lane.b32.xlu0 %v2474, 64
        %v2500 = vpop.permute.xlu0 %2499
        %2501 = vrot.lane.b32.xlu0 %v2475, 64
        %v2502 = vpop.permute.xlu0 %2501
        %2512 = vst.msk [vmem:[#allocation5 + $0x10] sm:$0xff] %vm2366, %v2486
        %2513 = vst.msk [vmem:[#allocation5 + $0x38] sm:$0xff] %vm2366, %v2488
        %2514 = vst.msk [vmem:[#allocation5 + $0x60] sm:$0xff] %vm2366, %v2490
        %2515 = vst.msk [vmem:[#allocation5 + $0x88] sm:$0xff] %vm2366, %v2492
        %2516 = vst.msk [vmem:[#allocation5 + $0xb0] sm:$0xff] %vm2366, %v2494
        %2517 = vst.msk [vmem:[#allocation5 + $0xd8] sm:$0xff] %vm2366, %v2496
        %2518 = vst.msk [vmem:[#allocation5 + $0x100] sm:$0xff] %vm2366, %v2498
        %2519 = vst.msk [vmem:[#allocation5 + $0x128] sm:$0xff] %vm2366, %v2500
        %2520 = vst.msk [vmem:[#allocation5 + $0x150] sm:$0x7] %vm2375, %v2502
        %v2521 = vld [vmem:[#allocation4 + $0x14] sm:$0xff]
        %v2522 = vld [vmem:[#allocation4 + $0x1c] sm:$0xff]
        %v2523 = vld [vmem:[#allocation4 + $0x24] sm:$0xff]
        %v2524 = vld [vmem:[#allocation4 + $0x2c] sm:$0xff]
        %v2525 = vld [vmem:[#allocation4 + $0x34] sm:$0xff]
        %v2526 = vld [vmem:[#allocation4 + $0x3c] sm:$0xff]
        %v2527 = vld [vmem:[#allocation4 + $0x44] sm:$0xff]
        %v2528 = vld [vmem:[#allocation4 + $0x4c] sm:$0xff]
        %v2529 = vld [vmem:[#allocation4 + $0x54] sm:$0x7]
        %2530 = vst.msk [vmem:[#allocation5 + $0x18] sm:$0xff] %vm2288, %v2521
        %2531 = vst.msk [vmem:[#allocation5 + $0x40] sm:$0xff] %vm2288, %v2522
        %2532 = vst.msk [vmem:[#allocation5 + $0x68] sm:$0xff] %vm2288, %v2523
        %2533 = vst.msk [vmem:[#allocation5 + $0x90] sm:$0xff] %vm2288, %v2524
        %2534 = vst.msk [vmem:[#allocation5 + $0xb8] sm:$0xff] %vm2288, %v2525
        %2535 = vst.msk [vmem:[#allocation5 + $0xe0] sm:$0xff] %vm2288, %v2526
        %2536 = vst.msk [vmem:[#allocation5 + $0x108] sm:$0xff] %vm2288, %v2527
        %2537 = vst.msk [vmem:[#allocation5 + $0x130] sm:$0xff] %vm2288, %v2528
        %2538 = vst.msk [vmem:[#allocation5 + $0x158] sm:$0x7] %vm2319, %v2529
        %v2539 = vld [vmem:[#allocation4 + $0x15] sm:$0xff]
        %v2540 = vld [vmem:[#allocation4 + $0x1d] sm:$0xff]
        %v2541 = vld [vmem:[#allocation4 + $0x25] sm:$0xff]
        %v2542 = vld [vmem:[#allocation4 + $0x2d] sm:$0xff]
        %v2543 = vld [vmem:[#allocation4 + $0x35] sm:$0xff]
        %v2544 = vld [vmem:[#allocation4 + $0x3d] sm:$0xff]
        %v2545 = vld [vmem:[#allocation4 + $0x45] sm:$0xff]
        %v2546 = vld [vmem:[#allocation4 + $0x4d] sm:$0xff]
        %v2547 = vld [vmem:[#allocation4 + $0x55] sm:$0x7]
        %2557 = vrot.lane.b32.xlu0 %v2539, 64
        %v2558 = vpop.permute.xlu0 %2557
        %2559 = vrot.lane.b32.xlu0 %v2540, 64
        %v2560 = vpop.permute.xlu0 %2559
        %2561 = vrot.lane.b32.xlu0 %v2541, 64
        %v2562 = vpop.permute.xlu0 %2561
        %2563 = vrot.lane.b32.xlu0 %v2542, 64
        %v2564 = vpop.permute.xlu0 %2563
        %2565 = vrot.lane.b32.xlu0 %v2543, 64
        %v2566 = vpop.permute.xlu0 %2565
        %2567 = vrot.lane.b32.xlu0 %v2544, 64
        %v2568 = vpop.permute.xlu0 %2567
        %2569 = vrot.lane.b32.xlu0 %v2545, 64
        %v2570 = vpop.permute.xlu0 %2569
        %2571 = vrot.lane.b32.xlu0 %v2546, 64
        %v2572 = vpop.permute.xlu0 %2571
        %2573 = vrot.lane.b32.xlu0 %v2547, 64
        %v2574 = vpop.permute.xlu0 %2573
        %2584 = vst.msk [vmem:[#allocation5 + $0x18] sm:$0xff] %vm2366, %v2558
        %2585 = vst.msk [vmem:[#allocation5 + $0x40] sm:$0xff] %vm2366, %v2560
        %2586 = vst.msk [vmem:[#allocation5 + $0x68] sm:$0xff] %vm2366, %v2562
        %2587 = vst.msk [vmem:[#allocation5 + $0x90] sm:$0xff] %vm2366, %v2564
        %2588 = vst.msk [vmem:[#allocation5 + $0xb8] sm:$0xff] %vm2366, %v2566
        %2589 = vst.msk [vmem:[#allocation5 + $0xe0] sm:$0xff] %vm2366, %v2568
        %2590 = vst.msk [vmem:[#allocation5 + $0x108] sm:$0xff] %vm2366, %v2570
        %2591 = vst.msk [vmem:[#allocation5 + $0x130] sm:$0xff] %vm2366, %v2572
        %2592 = vst.msk [vmem:[#allocation5 + $0x158] sm:$0x7] %vm2375, %v2574
        %v2593 = vld [vmem:[#allocation4 + $0x16] sm:$0xff]
        %v2594 = vld [vmem:[#allocation4 + $0x1e] sm:$0xff]
        %v2595 = vld [vmem:[#allocation4 + $0x26] sm:$0xff]
        %v2596 = vld [vmem:[#allocation4 + $0x2e] sm:$0xff]
        %v2597 = vld [vmem:[#allocation4 + $0x36] sm:$0xff]
        %v2598 = vld [vmem:[#allocation4 + $0x3e] sm:$0xff]
        %v2599 = vld [vmem:[#allocation4 + $0x46] sm:$0xff]
        %v2600 = vld [vmem:[#allocation4 + $0x4e] sm:$0xff]
        %v2601 = vld [vmem:[#allocation4 + $0x56] sm:$0x7]
        %2602 = vst.msk [vmem:[#allocation5 + $0x20] sm:$0xff] %vm2288, %v2593
        %2603 = vst.msk [vmem:[#allocation5 + $0x48] sm:$0xff] %vm2288, %v2594
        %2604 = vst.msk [vmem:[#allocation5 + $0x70] sm:$0xff] %vm2288, %v2595
        %2605 = vst.msk [vmem:[#allocation5 + $0x98] sm:$0xff] %vm2288, %v2596
        %2606 = vst.msk [vmem:[#allocation5 + $0xc0] sm:$0xff] %vm2288, %v2597
        %2607 = vst.msk [vmem:[#allocation5 + $0xe8] sm:$0xff] %vm2288, %v2598
        %2608 = vst.msk [vmem:[#allocation5 + $0x110] sm:$0xff] %vm2288, %v2599
        %2609 = vst.msk [vmem:[#allocation5 + $0x138] sm:$0xff] %vm2288, %v2600
        %2610 = vst.msk [vmem:[#allocation5 + $0x160] sm:$0x7] %vm2319, %v2601
        %v2611 = vld [vmem:[#allocation5] sm:$0xff]
        %v2612 = vld [vmem:[#allocation5 + $0x8] sm:$0xff]
        %v2613 = vld [vmem:[#allocation5 + $0x10] sm:$0xff]
        %v2614 = vld [vmem:[#allocation5 + $0x18] sm:$0xff]
        %v2615 = vld [vmem:[#allocation5 + $0x20] sm:$0xff]
        %v2616 = vld [vmem:[#allocation5 + $0x28] sm:$0xff]
        %v2617 = vld [vmem:[#allocation5 + $0x30] sm:$0xff]
        %v2618 = vld [vmem:[#allocation5 + $0x38] sm:$0xff]
        %v2619 = vld [vmem:[#allocation5 + $0x40] sm:$0xff]
        %v2620 = vld [vmem:[#allocation5 + $0x48] sm:$0xff]
        %v2621 = vld [vmem:[#allocation5 + $0x50] sm:$0xff]
        %v2622 = vld [vmem:[#allocation5 + $0x58] sm:$0xff]
        %v2623 = vld [vmem:[#allocation5 + $0x60] sm:$0xff]
        %v2624 = vld [vmem:[#allocation5 + $0x68] sm:$0xff]
        %v2625 = vld [vmem:[#allocation5 + $0x70] sm:$0xff]
        %v2626 = vld [vmem:[#allocation5 + $0x78] sm:$0xff]
        %v2627 = vld [vmem:[#allocation5 + $0x80] sm:$0xff]
        %v2628 = vld [vmem:[#allocation5 + $0x88] sm:$0xff]
        %v2629 = vld [vmem:[#allocation5 + $0x90] sm:$0xff]
        %v2630 = vld [vmem:[#allocation5 + $0x98] sm:$0xff]
        %v2631 = vld [vmem:[#allocation5 + $0xa0] sm:$0xff]
        %v2632 = vld [vmem:[#allocation5 + $0xa8] sm:$0xff]
        %v2633 = vld [vmem:[#allocation5 + $0xb0] sm:$0xff]
        %v2634 = vld [vmem:[#allocation5 + $0xb8] sm:$0xff]
        %v2635 = vld [vmem:[#allocation5 + $0xc0] sm:$0xff]
        %v2636 = vld [vmem:[#allocation5 + $0xc8] sm:$0xff]
        %v2637 = vld [vmem:[#allocation5 + $0xd0] sm:$0xff]
        %v2638 = vld [vmem:[#allocation5 + $0xd8] sm:$0xff]
        %v2639 = vld [vmem:[#allocation5 + $0xe0] sm:$0xff]
        %v2640 = vld [vmem:[#allocation5 + $0xe8] sm:$0xff]
        %v2641 = vld [vmem:[#allocation5 + $0xf0] sm:$0xff]
        %v2642 = vld [vmem:[#allocation5 + $0xf8] sm:$0xff]
        %v2643 = vld [vmem:[#allocation5 + $0x100] sm:$0xff]
        %v2644 = vld [vmem:[#allocation5 + $0x108] sm:$0xff]
        %v2645 = vld [vmem:[#allocation5 + $0x110] sm:$0xff]
        %v2646 = vld [vmem:[#allocation5 + $0x118] sm:$0xff]
        %v2647 = vld [vmem:[#allocation5 + $0x120] sm:$0xff]
        %v2648 = vld [vmem:[#allocation5 + $0x128] sm:$0xff]
        %v2649 = vld [vmem:[#allocation5 + $0x130] sm:$0xff]
        %v2650 = vld [vmem:[#allocation5 + $0x138] sm:$0xff]
        %v2651 = vld [vmem:[#allocation5 + $0x140] sm:$0x7]
        %v2652 = vld [vmem:[#allocation5 + $0x148] sm:$0x7]
        %v2653 = vld [vmem:[#allocation5 + $0x150] sm:$0x7]
        %v2654 = vld [vmem:[#allocation5 + $0x158] sm:$0x7]
        %v2655 = vld [vmem:[#allocation5 + $0x160] sm:$0x7]
        %v2656 = vld [vmem:[%s5] sm:$0xff]
        %v2657 = vld [vmem:[%s5 + $0x8] sm:$0xff]
        %v2658 = vld [vmem:[%s5 + $0x10] sm:$0xff]
        %v2659 = vld [vmem:[%s5 + $0x18] sm:$0xff]
        %v2660 = vld [vmem:[%s5 + $0x20] sm:$0xff]
        %v2661 = vld [vmem:[%s5 + $0x28] sm:$0xff]
        %v2662 = vld [vmem:[%s5 + $0x30] sm:$0xff]
        %v2663 = vld [vmem:[%s5 + $0x38] sm:$0xff]
        %v2664 = vld [vmem:[%s5 + $0x40] sm:$0xff]
        %v2665 = vld [vmem:[%s5 + $0x48] sm:$0xff]
        %v2666 = vld [vmem:[%s5 + $0x50] sm:$0xff]
        %v2667 = vld [vmem:[%s5 + $0x58] sm:$0xff]
        %v2668 = vld [vmem:[%s5 + $0x60] sm:$0xff]
        %v2669 = vld [vmem:[%s5 + $0x68] sm:$0xff]
        %v2670 = vld [vmem:[%s5 + $0x70] sm:$0xff]
        %v2671 = vld [vmem:[%s5 + $0x78] sm:$0xff]
        %v2672 = vld [vmem:[%s5 + $0x80] sm:$0xff]
        %v2673 = vld [vmem:[%s5 + $0x88] sm:$0xff]
        %v2674 = vld [vmem:[%s5 + $0x90] sm:$0xff]
        %v2675 = vld [vmem:[%s5 + $0x98] sm:$0xff]
        %v2676 = vld [vmem:[%s5 + $0xa0] sm:$0xff]
        %v2677 = vld [vmem:[%s5 + $0xa8] sm:$0xff]
        %v2678 = vld [vmem:[%s5 + $0xb0] sm:$0xff]
        %v2679 = vld [vmem:[%s5 + $0xb8] sm:$0xff]
        %v2680 = vld [vmem:[%s5 + $0xc0] sm:$0xff]
        %v2681 = vld [vmem:[%s5 + $0xc8] sm:$0xff]
        %v2682 = vld [vmem:[%s5 + $0xd0] sm:$0xff]
        %v2683 = vld [vmem:[%s5 + $0xd8] sm:$0xff]
        %v2684 = vld [vmem:[%s5 + $0xe0] sm:$0xff]
        %v2685 = vld [vmem:[%s5 + $0xe8] sm:$0xff]
        %v2686 = vld [vmem:[%s5 + $0xf0] sm:$0xff]
        %v2687 = vld [vmem:[%s5 + $0xf8] sm:$0xff]
        %v2688 = vld [vmem:[%s5 + $0x100] sm:$0xff]
        %v2689 = vld [vmem:[%s5 + $0x108] sm:$0xff]
        %v2690 = vld [vmem:[%s5 + $0x110] sm:$0xff]
        %v2691 = vld [vmem:[%s5 + $0x118] sm:$0xff]
        %v2692 = vld [vmem:[%s5 + $0x120] sm:$0xff]
        %v2693 = vld [vmem:[%s5 + $0x128] sm:$0xff]
        %v2694 = vld [vmem:[%s5 + $0x130] sm:$0xff]
        %v2695 = vld [vmem:[%s5 + $0x138] sm:$0xff]
        %v2696 = vld [vmem:[%s5 + $0x140] sm:$0xff]
        %v2697 = vld [vmem:[%s5 + $0x148] sm:$0xff]
        %v2698 = vld [vmem:[%s5 + $0x150] sm:$0xff]
        %v2699 = vld [vmem:[%s5 + $0x158] sm:$0xff]
        %v2700 = vld [vmem:[%s5 + $0x160] sm:$0xff]
        %v2701 = vld [vmem:[%s5 + $0x168] sm:$0xff]
        %v2702 = vld [vmem:[%s5 + $0x170] sm:$0xff]
        %v2703 = vld [vmem:[%s5 + $0x178] sm:$0xff]
        %v2704 = vld [vmem:[%s5 + $0x180] sm:$0xff]
        %v2705 = vld [vmem:[%s5 + $0x188] sm:$0xff]
        %v2706 = vld [vmem:[%s5 + $0x190] sm:$0xff]
        %v2707 = vld [vmem:[%s5 + $0x198] sm:$0xff]
        %v2708 = vld [vmem:[%s5 + $0x1a0] sm:$0xff]
        %v2709 = vld [vmem:[%s5 + $0x1a8] sm:$0xff]
        %v2710 = vld [vmem:[%s5 + $0x1b0] sm:$0xff]
        %v2711 = vld [vmem:[%s5 + $0x1b8] sm:$0xff]
        %v2712 = vld [vmem:[%s5 + $0x1c0] sm:$0xff]
        %v2713 = vld [vmem:[%s5 + $0x1c8] sm:$0xff]
        %v2714 = vld [vmem:[%s5 + $0x1d0] sm:$0xff]
        %v2715 = vld [vmem:[%s5 + $0x1d8] sm:$0xff]
        %v2716 = vld [vmem:[%s5 + $0x1e0] sm:$0xff]
        %v2717 = vld [vmem:[%s5 + $0x1e8] sm:$0xff]
        %v2718 = vld [vmem:[%s5 + $0x1f0] sm:$0xff]
        %v2719 = vld [vmem:[%s5 + $0x1f8] sm:$0xff]
        %v2720 = vld [vmem:[%s5 + $0x200] sm:$0xff]
        %v2721 = vld [vmem:[%s5 + $0x208] sm:$0xff]
        %v2722 = vld [vmem:[%s5 + $0x210] sm:$0xff]
        %v2723 = vld [vmem:[%s5 + $0x218] sm:$0xff]
        %v2724 = vld [vmem:[%s5 + $0x220] sm:$0xff]
        %v2725 = vld [vmem:[%s5 + $0x228] sm:$0xff]
        %v2726 = vld [vmem:[%s5 + $0x230] sm:$0xff]
        %v2727 = vld [vmem:[%s5 + $0x238] sm:$0xff]
        %v2728 = vld [vmem:[%s6] sm:$0x1]
        %v2730 = vlaneseq
        %v2731 = vshrl.u32 %v2730, 7
        %v2732 = vsub.s32 0, %v2731
        %v2733 = vrot.slane %v2728, %v2732
        %v2736 = vsel %vm2288, %v2615, 0
        %v2739 = vsel %vm2288, %v2620, 0
        %v2742 = vsel %vm2288, %v2625, 0
        %v2745 = vsel %vm2288, %v2630, 0
        %v2748 = vsel %vm2288, %v2635, 0
        %v2751 = vsel %vm2288, %v2640, 0
        %v2754 = vsel %vm2288, %v2645, 0
        %v2757 = vsel %vm2288, %v2650, 0
        %v2760 = vsel %vm2288, %v2655, 0
        %2762 = vmatprep.subr.mxu0 0.0
        %2763 = vmatpush1.msra.mxu0 %v2656
        %2764 = vmatprep.subr.mxu0 0.0
        %2765 = vmatpush1.msra.mxu0 %v2657
        %2766 = vmatprep.subr.mxu0 0.0
        %2767 = vmatpush1.msra.mxu0 %v2658
        %2768 = vmatprep.subr.mxu0 0.0
        %2769 = vmatpush1.msra.mxu0 %v2659
        %2770 = vmatprep.subr.mxu0 0.0
        %2771 = vmatpush1.msra.mxu0 %v2660
        %2772 = vmatprep.subr.mxu0 0.0
        %2773 = vmatpush1.msra.mxu0 %v2661
        %2774 = vmatprep.subr.mxu0 0.0
        %2775 = vmatpush1.msra.mxu0 %v2662
        %2776 = vmatprep.subr.mxu0 0.0
        %2777 = vmatpush1.msra.mxu0 %v2663
        %2778 = vmatprep.subr.mxu0 0.0
        %2779 = vmatpush1.msra.mxu0 %v2664
        %2780 = vmatprep.subr.mxu0 0.0
        %2781 = vmatpush1.msra.mxu0 %v2665
        %2782 = vmatprep.subr.mxu0 0.0
        %2783 = vmatpush1.msra.mxu0 %v2666
        %2784 = vmatprep.subr.mxu0 0.0
        %2785 = vmatpush1.msra.mxu0 %v2667
        %2786 = vmatprep.subr.mxu0 0.0
        %2787 = vmatpush1.msra.mxu0 %v2668
        %2788 = vmatprep.subr.mxu0 0.0
        %2789 = vmatpush1.msra.mxu0 %v2669
        %2790 = vmatprep.subr.mxu0 0.0
        %2791 = vmatpush1.msra.mxu0 %v2670
        %2792 = vmatprep.subr.mxu0 0.0
        %2793 = vmatpush1.msra.mxu0 %v2671
        %2794 = vmatprep.subr.mxu0 0.0
        %2795 = vmatpush1.msra.mxu0 %v2672
        %2796 = vmatprep.subr.mxu0 0.0
        %2797 = vmatpush1.msra.mxu0 %v2673
        %2798 = vmatprep.subr.mxu0 0.0
        %2799 = vmatpush1.msra.mxu0 %v2674
        %2800 = vmatprep.subr.mxu0 0.0
        %2801 = vmatpush1.msra.mxu0 %v2675
        %2802 = vmatprep.subr.mxu0 0.0
        %2803 = vmatpush1.msra.mxu0 %v2676
        %2804 = vmatprep.subr.mxu0 0.0
        %2805 = vmatpush1.msra.mxu0 %v2677
        %2806 = vmatprep.subr.mxu0 0.0
        %2807 = vmatpush1.msra.mxu0 %v2678
        %2808 = vmatprep.subr.mxu0 0.0
        %2809 = vmatpush1.msra.mxu0 %v2679
        %2810 = vmatprep.subr.mxu0 0.0
        %2811 = vmatpush1.msra.mxu0 %v2680
        %2812 = vmatprep.subr.mxu0 0.0
        %2813 = vmatpush1.msra.mxu0 %v2681
        %2814 = vmatprep.subr.mxu0 0.0
        %2815 = vmatpush1.msra.mxu0 %v2682
        %2816 = vmatprep.subr.mxu0 0.0
        %2817 = vmatpush1.msra.mxu0 %v2683
        %2818 = vmatprep.subr.mxu0 0.0
        %2819 = vmatpush1.msra.mxu0 %v2684
        %2820 = vmatprep.subr.mxu0 0.0
        %2821 = vmatpush1.msra.mxu0 %v2685
        %2822 = vmatprep.subr.mxu0 0.0
        %2823 = vmatpush1.msra.mxu0 %v2686
        %2824 = vmatprep.subr.mxu0 0.0
        %2825 = vmatpush1.msra.mxu0 %v2687
        %2826 = vmatprep.mubr.f32.mxu0 %v2612
        %2827 = vmatmul.mubr.f32.gmra.mrb[0].mxu0 %v2611
        %v2828 = vpop.f32.mrb[0].mxu0
        %v2829 = vadd.f32 %v2733, %v2828
        %v2830 = vpop.f32.mrb[0].mxu0
        %2831 = vmatprep.mubr.f32.mxu0 %v2617
        %2832 = vmatmul.mubr.f32.gmra.mrb[0].mxu0 %v2616
        %v2833 = vpop.f32.mrb[0].mxu0
        %v2834 = vadd.f32 %v2733, %v2833
        %v2835 = vpop.f32.mrb[0].mxu0
        %2836 = vmatprep.mubr.f32.mxu0 %v2622
        %2837 = vmatmul.mubr.f32.gmra.mrb[0].mxu0 %v2621
        %v2838 = vpop.f32.mrb[0].mxu0
        %v2839 = vadd.f32 %v2733, %v2838
        %v2840 = vpop.f32.mrb[0].mxu0
        %2841 = vmatprep.mubr.f32.mxu0 %v2627
        %2842 = vmatmul.mubr.f32.gmra.mrb[0].mxu0 %v2626
        %v2843 = vpop.f32.mrb[0].mxu0
        %v2844 = vadd.f32 %v2733, %v2843
        %v2845 = vpop.f32.mrb[0].mxu0
        %2846 = vmatprep.mubr.f32.mxu0 %v2632
        %2847 = vmatmul.mubr.f32.gmra.mrb[0].mxu0 %v2631
        %v2848 = vpop.f32.mrb[0].mxu0
        %v2849 = vadd.f32 %v2733, %v2848
        %v2850 = vpop.f32.mrb[0].mxu0
        %2851 = vmatprep.mubr.f32.mxu0 %v2637
        %2852 = vmatmul.mubr.f32.gmra.mrb[0].mxu0 %v2636
        %v2853 = vpop.f32.mrb[0].mxu0
        %v2854 = vadd.f32 %v2733, %v2853
        %v2855 = vpop.f32.mrb[0].mxu0
        %2856 = vmatprep.mubr.f32.mxu0 %v2642
        %2857 = vmatmul.mubr.f32.gmra.mrb[0].mxu0 %v2641
        %v2858 = vpop.f32.mrb[0].mxu0
        %v2859 = vadd.f32 %v2733, %v2858
        %v2860 = vpop.f32.mrb[0].mxu0
        %2861 = vmatprep.mubr.f32.mxu0 %v2647
        %2862 = vmatmul.mubr.f32.gmra.mrb[0].mxu0 %v2646
        %v2863 = vpop.f32.mrb[0].mxu0
        %v2864 = vadd.f32 %v2733, %v2863
        %v2865 = vpop.f32.mrb[0].mxu0
        %2866 = vmatprep.mubr.f32.mxu0 %v2652
        %2867 = vmatmul.mubr.f32.gmra.mrb[0].mxu0 %v2651
        %v2868 = vpop.f32.mrb[0].mxu0
        %v2869 = vadd.f32 %v2733, %v2868
        %v2870 = vpop.f32.mrb[0].mxu0
        %2871 = vdwg.mxu0
        %2872 = vmatprep.subr.mxu0 0.0
        %2873 = vmatpush1.msra.mxu0 %v2688
        %2874 = vmatprep.subr.mxu0 0.0
        %2875 = vmatpush1.msra.mxu0 %v2689
        %2876 = vmatprep.subr.mxu0 0.0
        %2877 = vmatpush1.msra.mxu0 %v2690
        %2878 = vmatprep.subr.mxu0 0.0
        %2879 = vmatpush1.msra.mxu0 %v2691
        %2880 = vmatprep.subr.mxu0 0.0
        %2881 = vmatpush1.msra.mxu0 %v2692
        %2882 = vmatprep.subr.mxu0 0.0
        %2883 = vmatpush1.msra.mxu0 %v2693
        %2884 = vmatprep.subr.mxu0 0.0
        %2885 = vmatpush1.msra.mxu0 %v2694
        %2886 = vmatprep.subr.mxu0 0.0
        %2887 = vmatpush1.msra.mxu0 %v2695
        %2888 = vmatprep.subr.mxu0 0.0
        %2889 = vmatpush1.msra.mxu0 %v2696
        %2890 = vmatprep.subr.mxu0 0.0
        %2891 = vmatpush1.msra.mxu0 %v2697
        %2892 = vmatprep.subr.mxu0 0.0
        %2893 = vmatpush1.msra.mxu0 %v2698
        %2894 = vmatprep.subr.mxu0 0.0
        %2895 = vmatpush1.msra.mxu0 %v2699
        %2896 = vmatprep.subr.mxu0 0.0
        %2897 = vmatpush1.msra.mxu0 %v2700
        %2898 = vmatprep.subr.mxu0 0.0
        %2899 = vmatpush1.msra.mxu0 %v2701
        %2900 = vmatprep.subr.mxu0 0.0
        %2901 = vmatpush1.msra.mxu0 %v2702
        %2902 = vmatprep.subr.mxu0 0.0
        %2903 = vmatpush1.msra.mxu0 %v2703
        %2904 = vmatprep.subr.mxu0 0.0
        %2905 = vmatpush1.msra.mxu0 %v2704
        %2906 = vmatprep.subr.mxu0 0.0
        %2907 = vmatpush1.msra.mxu0 %v2705
        %2908 = vmatprep.subr.mxu0 0.0
        %2909 = vmatpush1.msra.mxu0 %v2706
        %2910 = vmatprep.subr.mxu0 0.0
        %2911 = vmatpush1.msra.mxu0 %v2707
        %2912 = vmatprep.subr.mxu0 0.0
        %2913 = vmatpush1.msra.mxu0 %v2708
        %2914 = vmatprep.subr.mxu0 0.0
        %2915 = vmatpush1.msra.mxu0 %v2709
        %2916 = vmatprep.subr.mxu0 0.0
        %2917 = vmatpush1.msra.mxu0 %v2710
        %2918 = vmatprep.subr.mxu0 0.0
        %2919 = vmatpush1.msra.mxu0 %v2711
        %2920 = vmatprep.subr.mxu0 0.0
        %2921 = vmatpush1.msra.mxu0 %v2712
        %2922 = vmatprep.subr.mxu0 0.0
        %2923 = vmatpush1.msra.mxu0 %v2713
        %2924 = vmatprep.subr.mxu0 0.0
        %2925 = vmatpush1.msra.mxu0 %v2714
        %2926 = vmatprep.subr.mxu0 0.0
        %2927 = vmatpush1.msra.mxu0 %v2715
        %2928 = vmatprep.subr.mxu0 0.0
        %2929 = vmatpush1.msra.mxu0 %v2716
        %2930 = vmatprep.subr.mxu0 0.0
        %2931 = vmatpush1.msra.mxu0 %v2717
        %2932 = vmatprep.subr.mxu0 0.0
        %2933 = vmatpush1.msra.mxu0 %v2718
        %2934 = vmatprep.subr.mxu0 0.0
        %2935 = vmatpush1.msra.mxu0 %v2719
        %2936 = vmatprep.mubr.f32.mxu0 %v2614
        %2937 = vmatmul.mubr.f32.gmra.mrb[0].mxu0 %v2613
        %v2938 = vpop.f32.mrb[0].mxu0
        %v2939 = vadd.f32 %v2829, %v2938
        %v2940 = vpop.f32.mrb[0].mxu0
        %2941 = vmatprep.mubr.f32.mxu0 %v2619
        %2942 = vmatmul.mubr.f32.gmra.mrb[0].mxu0 %v2618
        %v2943 = vpop.f32.mrb[0].mxu0
        %v2944 = vadd.f32 %v2834, %v2943
        %v2945 = vpop.f32.mrb[0].mxu0
        %2946 = vmatprep.mubr.f32.mxu0 %v2624
        %2947 = vmatmul.mubr.f32.gmra.mrb[0].mxu0 %v2623
        %v2948 = vpop.f32.mrb[0].mxu0
        %v2949 = vadd.f32 %v2839, %v2948
        %v2950 = vpop.f32.mrb[0].mxu0
        %2951 = vmatprep.mubr.f32.mxu0 %v2629
        %2952 = vmatmul.mubr.f32.gmra.mrb[0].mxu0 %v2628
        %v2953 = vpop.f32.mrb[0].mxu0
        %v2954 = vadd.f32 %v2844, %v2953
        %v2955 = vpop.f32.mrb[0].mxu0
        %2956 = vmatprep.mubr.f32.mxu0 %v2634
        %2957 = vmatmul.mubr.f32.gmra.mrb[0].mxu0 %v2633
        %v2958 = vpop.f32.mrb[0].mxu0
        %v2959 = vadd.f32 %v2849, %v2958
        %v2960 = vpop.f32.mrb[0].mxu0
        %2961 = vmatprep.mubr.f32.mxu0 %v2639
        %2962 = vmatmul.mubr.f32.gmra.mrb[0].mxu0 %v2638
        %v2963 = vpop.f32.mrb[0].mxu0
        %v2964 = vadd.f32 %v2854, %v2963
        %v2965 = vpop.f32.mrb[0].mxu0
        %2966 = vmatprep.mubr.f32.mxu0 %v2644
        %2967 = vmatmul.mubr.f32.gmra.mrb[0].mxu0 %v2643
        %v2968 = vpop.f32.mrb[0].mxu0
        %v2969 = vadd.f32 %v2859, %v2968
        %v2970 = vpop.f32.mrb[0].mxu0
        %2971 = vmatprep.mubr.f32.mxu0 %v2649
        %2972 = vmatmul.mubr.f32.gmra.mrb[0].mxu0 %v2648
        %v2973 = vpop.f32.mrb[0].mxu0
        %v2974 = vadd.f32 %v2864, %v2973
        %v2975 = vpop.f32.mrb[0].mxu0
        %2976 = vmatprep.mubr.f32.mxu0 %v2654
        %2977 = vmatmul.mubr.f32.gmra.mrb[0].mxu0 %v2653
        %v2978 = vpop.f32.mrb[0].mxu0
        %v2979 = vadd.f32 %v2869, %v2978
        %v2980 = vpop.f32.mrb[0].mxu0
        %2981 = vdwg.mxu0
        %2982 = vmatprep.subr.mxu0 0.0
        %2983 = vmatpush1.msra.mxu0 %v2720
        %2984 = vmatprep.subr.mxu0 0.0
        %2985 = vmatpush1.msra.mxu0 %v2721
        %2986 = vmatprep.subr.mxu0 0.0
        %2987 = vmatpush1.msra.mxu0 %v2722
        %2988 = vmatprep.subr.mxu0 0.0
        %2989 = vmatpush1.msra.mxu0 %v2723
        %2990 = vmatprep.subr.mxu0 0.0
        %2991 = vmatpush1.msra.mxu0 %v2724
        %2992 = vmatprep.subr.mxu0 0.0
        %2993 = vmatpush1.msra.mxu0 %v2725
        %2994 = vmatprep.subr.mxu0 0.0
        %2995 = vmatpush1.msra.mxu0 %v2726
        %2996 = vmatprep.subr.mxu0 0.0
        %2997 = vmatpush1.msra.mxu0 %v2727
        %2998 = vmatprep.subr.mxu0 0.0
        %2999 = vmatpush1.msra.mxu0 0.0
        %3000 = vmatprep.subr.mxu0 0.0
        %3001 = vmatpush1.msra.mxu0 0.0
        %3002 = vmatprep.subr.mxu0 0.0
        %3003 = vmatpush1.msra.mxu0 0.0
        %3004 = vmatprep.subr.mxu0 0.0
        %3005 = vmatpush1.msra.mxu0 0.0
        %3006 = vmatprep.subr.mxu0 0.0
        %3007 = vmatpush1.msra.mxu0 0.0
        %3008 = vmatprep.subr.mxu0 0.0
        %3009 = vmatpush1.msra.mxu0 0.0
        %3010 = vmatprep.subr.mxu0 0.0
        %3011 = vmatpush1.msra.mxu0 0.0
        %3012 = vmatprep.subr.mxu0 0.0
        %3013 = vmatpush1.msra.mxu0 0.0
        %3014 = vmatprep.subr.mxu0 0.0
        %3015 = vmatpush1.msra.mxu0 0.0
        %3016 = vmatprep.subr.mxu0 0.0
        %3017 = vmatpush1.msra.mxu0 0.0
        %3018 = vmatprep.subr.mxu0 0.0
        %3019 = vmatpush1.msra.mxu0 0.0
        %3020 = vmatprep.subr.mxu0 0.0
        %3021 = vmatpush1.msra.mxu0 0.0
        %3022 = vmatprep.subr.mxu0 0.0
        %3023 = vmatpush1.msra.mxu0 0.0
        %3024 = vmatprep.subr.mxu0 0.0
        %3025 = vmatpush1.msra.mxu0 0.0
        %3026 = vmatprep.subr.mxu0 0.0
        %3027 = vmatpush1.msra.mxu0 0.0
        %3028 = vmatprep.subr.mxu0 0.0
        %3029 = vmatpush1.msra.mxu0 0.0
        %3030 = vmatprep.subr.mxu0 0.0
        %3031 = vmatpush1.msra.mxu0 0.0
        %3032 = vmatprep.subr.mxu0 0.0
        %3033 = vmatpush1.msra.mxu0 0.0
        %3034 = vmatprep.subr.mxu0 0.0
        %3035 = vmatpush1.msra.mxu0 0.0
        %3036 = vmatprep.subr.mxu0 0.0
        %3037 = vmatpush1.msra.mxu0 0.0
        %3038 = vmatprep.subr.mxu0 0.0
        %3039 = vmatpush1.msra.mxu0 0.0
        %3040 = vmatprep.subr.mxu0 0.0
        %3041 = vmatpush1.msra.mxu0 0.0
        %3042 = vmatprep.subr.mxu0 0.0
        %3043 = vmatpush1.msra.mxu0 0.0
        %3044 = vmatprep.subr.mxu0 0.0
        %3045 = vmatpush1.msra.mxu0 0.0
        %3046 = vmatprep.mubr.f32.mxu0 0.0
        %3047 = vmatmul.mubr.f32.gmra.mrb[0].mxu0 %v2736
        %v3048 = vpop.f32.mrb[0].mxu0
        %v3049 = vadd.f32 %v2939, %v3048
        %v3050 = vpop.f32.mrb[0].mxu0
        %3051 = vmatprep.mubr.f32.mxu0 0.0
        %3052 = vmatmul.mubr.f32.gmra.mrb[0].mxu0 %v2739
        %v3053 = vpop.f32.mrb[0].mxu0
        %v3054 = vadd.f32 %v2944, %v3053
        %v3055 = vpop.f32.mrb[0].mxu0
        %3056 = vmatprep.mubr.f32.mxu0 0.0
        %3057 = vmatmul.mubr.f32.gmra.mrb[0].mxu0 %v2742
        %v3058 = vpop.f32.mrb[0].mxu0
        %v3059 = vadd.f32 %v2949, %v3058
        %v3060 = vpop.f32.mrb[0].mxu0
        %3061 = vmatprep.mubr.f32.mxu0 0.0
        %3062 = vmatmul.mubr.f32.gmra.mrb[0].mxu0 %v2745
        %v3063 = vpop.f32.mrb[0].mxu0
        %v3064 = vadd.f32 %v2954, %v3063
        %v3065 = vpop.f32.mrb[0].mxu0
        %3066 = vmatprep.mubr.f32.mxu0 0.0
        %3067 = vmatmul.mubr.f32.gmra.mrb[0].mxu0 %v2748
        %v3068 = vpop.f32.mrb[0].mxu0
        %v3069 = vadd.f32 %v2959, %v3068
        %v3070 = vpop.f32.mrb[0].mxu0
        %3071 = vmatprep.mubr.f32.mxu0 0.0
        %3072 = vmatmul.mubr.f32.gmra.mrb[0].mxu0 %v2751
        %v3073 = vpop.f32.mrb[0].mxu0
        %v3074 = vadd.f32 %v2964, %v3073
        %v3075 = vpop.f32.mrb[0].mxu0
        %3076 = vmatprep.mubr.f32.mxu0 0.0
        %3077 = vmatmul.mubr.f32.gmra.mrb[0].mxu0 %v2754
        %v3078 = vpop.f32.mrb[0].mxu0
        %v3079 = vadd.f32 %v2969, %v3078
        %v3080 = vpop.f32.mrb[0].mxu0
        %3081 = vmatprep.mubr.f32.mxu0 0.0
        %3082 = vmatmul.mubr.f32.gmra.mrb[0].mxu0 %v2757
        %v3083 = vpop.f32.mrb[0].mxu0
        %v3084 = vadd.f32 %v2974, %v3083
        %v3085 = vpop.f32.mrb[0].mxu0
        %3086 = vmatprep.mubr.f32.mxu0 0.0
        %3087 = vmatmul.mubr.f32.gmra.mrb[0].mxu0 %v2760
        %v3088 = vpop.f32.mrb[0].mxu0
        %v3089 = vadd.f32 %v2979, %v3088
        %v3090 = vpop.f32.mrb[0].mxu0
        %3091 = vdwg.mxu0
        %v3092 = vmax.f32 %v3049, 0.0
        %v3093 = vmax.f32 %v3054, 0.0
        %v3094 = vmax.f32 %v3059, 0.0
        %v3095 = vmax.f32 %v3064, 0.0
        %v3096 = vmax.f32 %v3069, 0.0
        %v3097 = vmax.f32 %v3074, 0.0
        %v3098 = vmax.f32 %v3079, 0.0
        %v3099 = vmax.f32 %v3084, 0.0
        %v3100 = vmax.f32 %v3089, 0.0
        %3101 = vst.msk [vmem:[#allocation6] sm:$0xff] %vm2288, %v3092
        %3102 = vst.msk [vmem:[#allocation6 + $0x8] sm:$0xff] %vm2288, %v3093
        %3103 = vst.msk [vmem:[#allocation6 + $0x10] sm:$0xff] %vm2288, %v3094
        %3104 = vst.msk [vmem:[#allocation6 + $0x18] sm:$0xff] %vm2288, %v3095
        %3105 = vst.msk [vmem:[#allocation6 + $0x20] sm:$0xff] %vm2288, %v3096
        %3106 = vst.msk [vmem:[#allocation6 + $0x28] sm:$0xff] %vm2288, %v3097
        %3107 = vst.msk [vmem:[#allocation6 + $0x30] sm:$0xff] %vm2288, %v3098
        %3108 = vst.msk [vmem:[#allocation6 + $0x38] sm:$0xff] %vm2288, %v3099
        %3109 = vst.msk [vmem:[#allocation6 + $0x40] sm:$0x7] %vm2319, %v3100
        %v3110 = vld [vmem:[#allocation6] sm:$0x1]
        %v3111 = vlaneseq
        %vm3112 = vcmp.ge.s32.totalorder %v3111, 0
        %vm3113 = vcmp.lt.s32.totalorder %v3111, 64
        %vm3114 = vmand %vm3112, %vm3113
        %3115 = vst.msk [vmem:[#allocation7] sm:$0x1] %vm3114, %v3110
        %v3116 = vld [vmem:[#allocation6 + $0x1] sm:$0x1]
        %v3119 = vunpack.c.l.s4 1966171168
        %v3120 = vunpack.c.0.s8 %v3119
        %v3121 = vlaneseq
        %v3122 = vshrl.u32 %v3121, 7
        %v3123 = vsub.s32 %v3120, %v3122
        %v3124 = vrot.slane %v3116, %v3123
        %v3126 = vunpack.c.l.s4 1966171168
        %v3127 = vunpack.c.0.s8 %v3126
        %v3128 = vlaneseq
        %v3129 = vshrl.u32 %v3128, 7
        %v3130 = vsub.s32 %v3127, %v3129
        %v3131 = vrot.slane %v3124, %v3130
        %3132 = vrot.lane.b32.xlu0 %v3131, 64
        %v3133 = vpop.permute.xlu0 %3132
        %vm3135 = vcmp.ge.s32.totalorder %v3111, 64
        %vm3136 = vcmp.lt.s32.totalorder %v3111, 128
        %vm3137 = vmand %vm3135, %vm3136
        %3138 = vst.msk [vmem:[#allocation7] sm:$0x1] %vm3137, %v3133
        %v3139 = vld [vmem:[#allocation6 + $0x2] sm:$0x1]
        %3140 = vst.msk [vmem:[#allocation7 + $0x1] sm:$0x1] %vm3114, %v3139
        %v3141 = vld [vmem:[#allocation6 + $0x3] sm:$0x1]
        %v3144 = vunpack.c.l.s4 1966171168
        %v3145 = vunpack.c.0.s8 %v3144
        %v3146 = vlaneseq
        %v3147 = vshrl.u32 %v3146, 7
        %v3148 = vsub.s32 %v3145, %v3147
        %v3149 = vrot.slane %v3141, %v3148
        %v3151 = vunpack.c.l.s4 1966171168
        %v3152 = vunpack.c.0.s8 %v3151
        %v3153 = vlaneseq
        %v3154 = vshrl.u32 %v3153, 7
        %v3155 = vsub.s32 %v3152, %v3154
        %v3156 = vrot.slane %v3149, %v3155
        %3157 = vrot.lane.b32.xlu0 %v3156, 64
        %v3158 = vpop.permute.xlu0 %3157
        %3160 = vst.msk [vmem:[#allocation7 + $0x1] sm:$0x1] %vm3137, %v3158
        %v3161 = vld [vmem:[#allocation6 + $0x4] sm:$0x1]
        %3162 = vst.msk [vmem:[#allocation7 + $0x2] sm:$0x1] %vm3114, %v3161
        %v3163 = vld [vmem:[#allocation6 + $0x5] sm:$0x1]
        %v3166 = vunpack.c.l.s4 1966171168
        %v3167 = vunpack.c.0.s8 %v3166
        %v3168 = vlaneseq
        %v3169 = vshrl.u32 %v3168, 7
        %v3170 = vsub.s32 %v3167, %v3169
        %v3171 = vrot.slane %v3163, %v3170
        %v3173 = vunpack.c.l.s4 1966171168
        %v3174 = vunpack.c.0.s8 %v3173
        %v3175 = vlaneseq
        %v3176 = vshrl.u32 %v3175, 7
        %v3177 = vsub.s32 %v3174, %v3176
        %v3178 = vrot.slane %v3171, %v3177
        %3179 = vrot.lane.b32.xlu0 %v3178, 64
        %v3180 = vpop.permute.xlu0 %3179
        %3182 = vst.msk [vmem:[#allocation7 + $0x2] sm:$0x1] %vm3137, %v3180
        %v3183 = vld [vmem:[#allocation6 + $0x6] sm:$0x1]
        %3184 = vst.msk [vmem:[#allocation7 + $0x3] sm:$0x1] %vm3114, %v3183
        %v3185 = vld [vmem:[#allocation6 + $0xa] sm:$0x1]
        %v3188 = vunpack.c.l.s4 1966171168
        %v3189 = vunpack.c.0.s8 %v3188
        %v3190 = vlaneseq
        %v3191 = vshrl.u32 %v3190, 7
        %v3192 = vsub.s32 %v3189, %v3191
        %v3193 = vrot.slane %v3185, %v3192
        %v3195 = vunpack.c.l.s4 1966171168
        %v3196 = vunpack.c.0.s8 %v3195
        %v3197 = vlaneseq
        %v3198 = vshrl.u32 %v3197, 7
        %v3199 = vsub.s32 %v3196, %v3198
        %v3200 = vrot.slane %v3193, %v3199
        %3201 = vrot.lane.b32.xlu0 %v3200, 64
        %v3202 = vpop.permute.xlu0 %3201
        %3204 = vst.msk [vmem:[#allocation7 + $0x3] sm:$0x1] %vm3137, %v3202
        %v3205 = vld [vmem:[#allocation6 + $0xb] sm:$0x1]
        %3206 = vst.msk [vmem:[#allocation7 + $0x4] sm:$0x1] %vm3114, %v3205
        %v3207 = vld [vmem:[#allocation6 + $0xc] sm:$0x1]
        %v3210 = vunpack.c.l.s4 1966171168
        %v3211 = vunpack.c.0.s8 %v3210
        %v3212 = vlaneseq
        %v3213 = vshrl.u32 %v3212, 7
        %v3214 = vsub.s32 %v3211, %v3213
        %v3215 = vrot.slane %v3207, %v3214
        %v3217 = vunpack.c.l.s4 1966171168
        %v3218 = vunpack.c.0.s8 %v3217
        %v3219 = vlaneseq
        %v3220 = vshrl.u32 %v3219, 7
        %v3221 = vsub.s32 %v3218, %v3220
        %v3222 = vrot.slane %v3215, %v3221
        %3223 = vrot.lane.b32.xlu0 %v3222, 64
        %v3224 = vpop.permute.xlu0 %3223
        %3226 = vst.msk [vmem:[#allocation7 + $0x4] sm:$0x1] %vm3137, %v3224
        %v3227 = vld [vmem:[#allocation6 + $0xd] sm:$0x1]
        %3228 = vst.msk [vmem:[#allocation7 + $0x5] sm:$0x1] %vm3114, %v3227
        %v3229 = vld [vmem:[#allocation6 + $0xe] sm:$0x1]
        %v3232 = vunpack.c.l.s4 1966171168
        %v3233 = vunpack.c.0.s8 %v3232
        %v3234 = vlaneseq
        %v3235 = vshrl.u32 %v3234, 7
        %v3236 = vsub.s32 %v3233, %v3235
        %v3237 = vrot.slane %v3229, %v3236
        %v3239 = vunpack.c.l.s4 1966171168
        %v3240 = vunpack.c.0.s8 %v3239
        %v3241 = vlaneseq
        %v3242 = vshrl.u32 %v3241, 7
        %v3243 = vsub.s32 %v3240, %v3242
        %v3244 = vrot.slane %v3237, %v3243
        %3245 = vrot.lane.b32.xlu0 %v3244, 64
        %v3246 = vpop.permute.xlu0 %3245
        %3248 = vst.msk [vmem:[#allocation7 + $0x5] sm:$0x1] %vm3137, %v3246
        %v3249 = vld [vmem:[#allocation6 + $0xf] sm:$0x1]
        %3250 = vst.msk [vmem:[#allocation7 + $0x6] sm:$0x1] %vm3114, %v3249
        %v3251 = vld [vmem:[#allocation6 + $0x10] sm:$0x1]
        %v3254 = vunpack.c.l.s4 1966171168
        %v3255 = vunpack.c.0.s8 %v3254
        %v3256 = vlaneseq
        %v3257 = vshrl.u32 %v3256, 7
        %v3258 = vsub.s32 %v3255, %v3257
        %v3259 = vrot.slane %v3251, %v3258
        %v3261 = vunpack.c.l.s4 1966171168
        %v3262 = vunpack.c.0.s8 %v3261
        %v3263 = vlaneseq
        %v3264 = vshrl.u32 %v3263, 7
        %v3265 = vsub.s32 %v3262, %v3264
        %v3266 = vrot.slane %v3259, %v3265
        %3267 = vrot.lane.b32.xlu0 %v3266, 64
        %v3268 = vpop.permute.xlu0 %3267
        %3270 = vst.msk [vmem:[#allocation7 + $0x6] sm:$0x1] %vm3137, %v3268
        %v3271 = vld [vmem:[#allocation6 + $0x14] sm:$0x1]
        %3272 = vst.msk [vmem:[#allocation7 + $0x7] sm:$0x1] %vm3114, %v3271
        %v3273 = vld [vmem:[#allocation6 + $0x15] sm:$0x1]
        %v3276 = vunpack.c.l.s4 1966171168
        %v3277 = vunpack.c.0.s8 %v3276
        %v3278 = vlaneseq
        %v3279 = vshrl.u32 %v3278, 7
        %v3280 = vsub.s32 %v3277, %v3279
        %v3281 = vrot.slane %v3273, %v3280
        %v3283 = vunpack.c.l.s4 1966171168
        %v3284 = vunpack.c.0.s8 %v3283
        %v3285 = vlaneseq
        %v3286 = vshrl.u32 %v3285, 7
        %v3287 = vsub.s32 %v3284, %v3286
        %v3288 = vrot.slane %v3281, %v3287
        %3289 = vrot.lane.b32.xlu0 %v3288, 64
        %v3290 = vpop.permute.xlu0 %3289
        %3292 = vst.msk [vmem:[#allocation7 + $0x7] sm:$0x1] %vm3137, %v3290
        %v3293 = vld [vmem:[#allocation6 + $0x16] sm:$0x1]
        %3294 = vst.msk [vmem:[#allocation7 + $0x8] sm:$0x1] %vm3114, %v3293
        %v3295 = vld [vmem:[#allocation6 + $0x17] sm:$0x1]
        %v3298 = vunpack.c.l.s4 1966171168
        %v3299 = vunpack.c.0.s8 %v3298
        %v3300 = vlaneseq
        %v3301 = vshrl.u32 %v3300, 7
        %v3302 = vsub.s32 %v3299, %v3301
        %v3303 = vrot.slane %v3295, %v3302
        %v3305 = vunpack.c.l.s4 1966171168
        %v3306 = vunpack.c.0.s8 %v3305
        %v3307 = vlaneseq
        %v3308 = vshrl.u32 %v3307, 7
        %v3309 = vsub.s32 %v3306, %v3308
        %v3310 = vrot.slane %v3303, %v3309
        %3311 = vrot.lane.b32.xlu0 %v3310, 64
        %v3312 = vpop.permute.xlu0 %3311
        %3314 = vst.msk [vmem:[#allocation7 + $0x8] sm:$0x1] %vm3137, %v3312
        %v3315 = vld [vmem:[#allocation6 + $0x18] sm:$0x1]
        %3316 = vst.msk [vmem:[#allocation7 + $0x9] sm:$0x1] %vm3114, %v3315
        %v3317 = vld [vmem:[#allocation6 + $0x19] sm:$0x1]
        %v3320 = vunpack.c.l.s4 1966171168
        %v3321 = vunpack.c.0.s8 %v3320
        %v3322 = vlaneseq
        %v3323 = vshrl.u32 %v3322, 7
        %v3324 = vsub.s32 %v3321, %v3323
        %v3325 = vrot.slane %v3317, %v3324
        %v3327 = vunpack.c.l.s4 1966171168
        %v3328 = vunpack.c.0.s8 %v3327
        %v3329 = vlaneseq
        %v3330 = vshrl.u32 %v3329, 7
        %v3331 = vsub.s32 %v3328, %v3330
        %v3332 = vrot.slane %v3325, %v3331
        %3333 = vrot.lane.b32.xlu0 %v3332, 64
        %v3334 = vpop.permute.xlu0 %3333
        %3336 = vst.msk [vmem:[#allocation7 + $0x9] sm:$0x1] %vm3137, %v3334
        %v3337 = vld [vmem:[#allocation6 + $0x1a] sm:$0x1]
        %3338 = vst.msk [vmem:[#allocation7 + $0xa] sm:$0x1] %vm3114, %v3337
        %v3339 = vld [vmem:[#allocation6 + $0x1e] sm:$0x1]
        %v3342 = vunpack.c.l.s4 1966171168
        %v3343 = vunpack.c.0.s8 %v3342
        %v3344 = vlaneseq
        %v3345 = vshrl.u32 %v3344, 7
        %v3346 = vsub.s32 %v3343, %v3345
        %v3347 = vrot.slane %v3339, %v3346
        %v3349 = vunpack.c.l.s4 1966171168
        %v3350 = vunpack.c.0.s8 %v3349
        %v3351 = vlaneseq
        %v3352 = vshrl.u32 %v3351, 7
        %v3353 = vsub.s32 %v3350, %v3352
        %v3354 = vrot.slane %v3347, %v3353
        %3355 = vrot.lane.b32.xlu0 %v3354, 64
        %v3356 = vpop.permute.xlu0 %3355
        %3358 = vst.msk [vmem:[#allocation7 + $0xa] sm:$0x1] %vm3137, %v3356
        %v3359 = vld [vmem:[#allocation6 + $0x1f] sm:$0x1]
        %3360 = vst.msk [vmem:[#allocation7 + $0xb] sm:$0x1] %vm3114, %v3359
        %v3361 = vld [vmem:[#allocation6 + $0x20] sm:$0x1]
        %v3364 = vunpack.c.l.s4 1966171168
        %v3365 = vunpack.c.0.s8 %v3364
        %v3366 = vlaneseq
        %v3367 = vshrl.u32 %v3366, 7
        %v3368 = vsub.s32 %v3365, %v3367
        %v3369 = vrot.slane %v3361, %v3368
        %v3371 = vunpack.c.l.s4 1966171168
        %v3372 = vunpack.c.0.s8 %v3371
        %v3373 = vlaneseq
        %v3374 = vshrl.u32 %v3373, 7
        %v3375 = vsub.s32 %v3372, %v3374
        %v3376 = vrot.slane %v3369, %v3375
        %3377 = vrot.lane.b32.xlu0 %v3376, 64
        %v3378 = vpop.permute.xlu0 %3377
        %3380 = vst.msk [vmem:[#allocation7 + $0xb] sm:$0x1] %vm3137, %v3378
        %v3381 = vld [vmem:[#allocation6 + $0x21] sm:$0x1]
        %3382 = vst.msk [vmem:[#allocation7 + $0xc] sm:$0x1] %vm3114, %v3381
        %v3383 = vld [vmem:[#allocation6 + $0x22] sm:$0x1]
        %v3386 = vunpack.c.l.s4 1966171168
        %v3387 = vunpack.c.0.s8 %v3386
        %v3388 = vlaneseq
        %v3389 = vshrl.u32 %v3388, 7
        %v3390 = vsub.s32 %v3387, %v3389
        %v3391 = vrot.slane %v3383, %v3390
        %v3393 = vunpack.c.l.s4 1966171168
        %v3394 = vunpack.c.0.s8 %v3393
        %v3395 = vlaneseq
        %v3396 = vshrl.u32 %v3395, 7
        %v3397 = vsub.s32 %v3394, %v3396
        %v3398 = vrot.slane %v3391, %v3397
        %3399 = vrot.lane.b32.xlu0 %v3398, 64
        %v3400 = vpop.permute.xlu0 %3399
        %3402 = vst.msk [vmem:[#allocation7 + $0xc] sm:$0x1] %vm3137, %v3400
        %v3403 = vld [vmem:[#allocation6 + $0x23] sm:$0x1]
        %3404 = vst.msk [vmem:[#allocation7 + $0xd] sm:$0x1] %vm3114, %v3403
        %v3405 = vld [vmem:[#allocation6 + $0x24] sm:$0x1]
        %v3408 = vunpack.c.l.s4 1966171168
        %v3409 = vunpack.c.0.s8 %v3408
        %v3410 = vlaneseq
        %v3411 = vshrl.u32 %v3410, 7
        %v3412 = vsub.s32 %v3409, %v3411
        %v3413 = vrot.slane %v3405, %v3412
        %v3415 = vunpack.c.l.s4 1966171168
        %v3416 = vunpack.c.0.s8 %v3415
        %v3417 = vlaneseq
        %v3418 = vshrl.u32 %v3417, 7
        %v3419 = vsub.s32 %v3416, %v3418
        %v3420 = vrot.slane %v3413, %v3419
        %3421 = vrot.lane.b32.xlu0 %v3420, 64
        %v3422 = vpop.permute.xlu0 %3421
        %3424 = vst.msk [vmem:[#allocation7 + $0xd] sm:$0x1] %vm3137, %v3422
        %v3425 = vld [vmem:[#allocation6 + $0x28] sm:$0x1]
        %3426 = vst.msk [vmem:[#allocation7 + $0xe] sm:$0x1] %vm3114, %v3425
        %v3427 = vld [vmem:[#allocation6 + $0x29] sm:$0x1]
        %v3430 = vunpack.c.l.s4 1966171168
        %v3431 = vunpack.c.0.s8 %v3430
        %v3432 = vlaneseq
        %v3433 = vshrl.u32 %v3432, 7
        %v3434 = vsub.s32 %v3431, %v3433
        %v3435 = vrot.slane %v3427, %v3434
        %v3437 = vunpack.c.l.s4 1966171168
        %v3438 = vunpack.c.0.s8 %v3437
        %v3439 = vlaneseq
        %v3440 = vshrl.u32 %v3439, 7
        %v3441 = vsub.s32 %v3438, %v3440
        %v3442 = vrot.slane %v3435, %v3441
        %3443 = vrot.lane.b32.xlu0 %v3442, 64
        %v3444 = vpop.permute.xlu0 %3443
        %3446 = vst.msk [vmem:[#allocation7 + $0xe] sm:$0x1] %vm3137, %v3444
        %v3447 = vld [vmem:[#allocation6 + $0x2a] sm:$0x1]
        %3448 = vst.msk [vmem:[#allocation7 + $0xf] sm:$0x1] %vm3114, %v3447
        %v3449 = vld [vmem:[#allocation6 + $0x2b] sm:$0x1]
        %v3452 = vunpack.c.l.s4 1966171168
        %v3453 = vunpack.c.0.s8 %v3452
        %v3454 = vlaneseq
        %v3455 = vshrl.u32 %v3454, 7
        %v3456 = vsub.s32 %v3453, %v3455
        %v3457 = vrot.slane %v3449, %v3456
        %v3459 = vunpack.c.l.s4 1966171168
        %v3460 = vunpack.c.0.s8 %v3459
        %v3461 = vlaneseq
        %v3462 = vshrl.u32 %v3461, 7
        %v3463 = vsub.s32 %v3460, %v3462
        %v3464 = vrot.slane %v3457, %v3463
        %3465 = vrot.lane.b32.xlu0 %v3464, 64
        %v3466 = vpop.permute.xlu0 %3465
        %3468 = vst.msk [vmem:[#allocation7 + $0xf] sm:$0x1] %vm3137, %v3466
        %v3469 = vld [vmem:[#allocation6 + $0x2c] sm:$0x1]
        %3470 = vst.msk [vmem:[#allocation7 + $0x10] sm:$0x1] %vm3114, %v3469
        %v3471 = vld [vmem:[#allocation6 + $0x2d] sm:$0x1]
        %v3474 = vunpack.c.l.s4 1966171168
        %v3475 = vunpack.c.0.s8 %v3474
        %v3476 = vlaneseq
        %v3477 = vshrl.u32 %v3476, 7
        %v3478 = vsub.s32 %v3475, %v3477
        %v3479 = vrot.slane %v3471, %v3478
        %v3481 = vunpack.c.l.s4 1966171168
        %v3482 = vunpack.c.0.s8 %v3481
        %v3483 = vlaneseq
        %v3484 = vshrl.u32 %v3483, 7
        %v3485 = vsub.s32 %v3482, %v3484
        %v3486 = vrot.slane %v3479, %v3485
        %3487 = vrot.lane.b32.xlu0 %v3486, 64
        %v3488 = vpop.permute.xlu0 %3487
        %3490 = vst.msk [vmem:[#allocation7 + $0x10] sm:$0x1] %vm3137, %v3488
        %v3491 = vld [vmem:[#allocation6 + $0x2e] sm:$0x1]
        %3492 = vst.msk [vmem:[#allocation7 + $0x11] sm:$0x1] %vm3114, %v3491
        %v3493 = vld [vmem:[#allocation6 + $0x32] sm:$0x1]
        %v3496 = vunpack.c.l.s4 1966171168
        %v3497 = vunpack.c.0.s8 %v3496
        %v3498 = vlaneseq
        %v3499 = vshrl.u32 %v3498, 7
        %v3500 = vsub.s32 %v3497, %v3499
        %v3501 = vrot.slane %v3493, %v3500
        %v3503 = vunpack.c.l.s4 1966171168
        %v3504 = vunpack.c.0.s8 %v3503
        %v3505 = vlaneseq
        %v3506 = vshrl.u32 %v3505, 7
        %v3507 = vsub.s32 %v3504, %v3506
        %v3508 = vrot.slane %v3501, %v3507
        %3509 = vrot.lane.b32.xlu0 %v3508, 64
        %v3510 = vpop.permute.xlu0 %3509
        %3512 = vst.msk [vmem:[#allocation7 + $0x11] sm:$0x1] %vm3137, %v3510
        %v3513 = vld [vmem:[#allocation6 + $0x33] sm:$0x1]
        %3514 = vst.msk [vmem:[#allocation7 + $0x12] sm:$0x1] %vm3114, %v3513
        %v3515 = vld [vmem:[#allocation6 + $0x34] sm:$0x1]
        %v3518 = vunpack.c.l.s4 1966171168
        %v3519 = vunpack.c.0.s8 %v3518
        %v3520 = vlaneseq
        %v3521 = vshrl.u32 %v3520, 7
        %v3522 = vsub.s32 %v3519, %v3521
        %v3523 = vrot.slane %v3515, %v3522
        %v3525 = vunpack.c.l.s4 1966171168
        %v3526 = vunpack.c.0.s8 %v3525
        %v3527 = vlaneseq
        %v3528 = vshrl.u32 %v3527, 7
        %v3529 = vsub.s32 %v3526, %v3528
        %v3530 = vrot.slane %v3523, %v3529
        %3531 = vrot.lane.b32.xlu0 %v3530, 64
        %v3532 = vpop.permute.xlu0 %3531
        %3534 = vst.msk [vmem:[#allocation7 + $0x12] sm:$0x1] %vm3137, %v3532
        %v3535 = vld [vmem:[#allocation6 + $0x35] sm:$0x1]
        %3536 = vst.msk [vmem:[#allocation7 + $0x13] sm:$0x1] %vm3114, %v3535
        %v3537 = vld [vmem:[#allocation6 + $0x36] sm:$0x1]
        %v3540 = vunpack.c.l.s4 1966171168
        %v3541 = vunpack.c.0.s8 %v3540
        %v3542 = vlaneseq
        %v3543 = vshrl.u32 %v3542, 7
        %v3544 = vsub.s32 %v3541, %v3543
        %v3545 = vrot.slane %v3537, %v3544
        %v3547 = vunpack.c.l.s4 1966171168
        %v3548 = vunpack.c.0.s8 %v3547
        %v3549 = vlaneseq
        %v3550 = vshrl.u32 %v3549, 7
        %v3551 = vsub.s32 %v3548, %v3550
        %v3552 = vrot.slane %v3545, %v3551
        %3553 = vrot.lane.b32.xlu0 %v3552, 64
        %v3554 = vpop.permute.xlu0 %3553
        %3556 = vst.msk [vmem:[#allocation7 + $0x13] sm:$0x1] %vm3137, %v3554
        %v3557 = vld [vmem:[#allocation6 + $0x37] sm:$0x1]
        %3558 = vst.msk [vmem:[#allocation7 + $0x14] sm:$0x1] %vm3114, %v3557
        %v3559 = vld [vmem:[#allocation6 + $0x38] sm:$0x1]
        %v3562 = vunpack.c.l.s4 1966171168
        %v3563 = vunpack.c.0.s8 %v3562
        %v3564 = vlaneseq
        %v3565 = vshrl.u32 %v3564, 7
        %v3566 = vsub.s32 %v3563, %v3565
        %v3567 = vrot.slane %v3559, %v3566
        %v3569 = vunpack.c.l.s4 1966171168
        %v3570 = vunpack.c.0.s8 %v3569
        %v3571 = vlaneseq
        %v3572 = vshrl.u32 %v3571, 7
        %v3573 = vsub.s32 %v3570, %v3572
        %v3574 = vrot.slane %v3567, %v3573
        %3575 = vrot.lane.b32.xlu0 %v3574, 64
        %v3576 = vpop.permute.xlu0 %3575
        %3578 = vst.msk [vmem:[#allocation7 + $0x14] sm:$0x1] %vm3137, %v3576
        %v3579 = vld [vmem:[#allocation6 + $0x3c] sm:$0x1]
        %3580 = vst.msk [vmem:[#allocation7 + $0x15] sm:$0x1] %vm3114, %v3579
        %v3581 = vld [vmem:[#allocation6 + $0x3d] sm:$0x1]
        %v3584 = vunpack.c.l.s4 1966171168
        %v3585 = vunpack.c.0.s8 %v3584
        %v3586 = vlaneseq
        %v3587 = vshrl.u32 %v3586, 7
        %v3588 = vsub.s32 %v3585, %v3587
        %v3589 = vrot.slane %v3581, %v3588
        %v3591 = vunpack.c.l.s4 1966171168
        %v3592 = vunpack.c.0.s8 %v3591
        %v3593 = vlaneseq
        %v3594 = vshrl.u32 %v3593, 7
        %v3595 = vsub.s32 %v3592, %v3594
        %v3596 = vrot.slane %v3589, %v3595
        %3597 = vrot.lane.b32.xlu0 %v3596, 64
        %v3598 = vpop.permute.xlu0 %3597
        %3600 = vst.msk [vmem:[#allocation7 + $0x15] sm:$0x1] %vm3137, %v3598
        %v3601 = vld [vmem:[#allocation6 + $0x3e] sm:$0x1]
        %3602 = vst.msk [vmem:[#allocation7 + $0x16] sm:$0x1] %vm3114, %v3601
        %v3603 = vld [vmem:[#allocation6 + $0x3f] sm:$0x1]
        %v3606 = vunpack.c.l.s4 1966171168
        %v3607 = vunpack.c.0.s8 %v3606
        %v3608 = vlaneseq
        %v3609 = vshrl.u32 %v3608, 7
        %v3610 = vsub.s32 %v3607, %v3609
        %v3611 = vrot.slane %v3603, %v3610
        %v3613 = vunpack.c.l.s4 1966171168
        %v3614 = vunpack.c.0.s8 %v3613
        %v3615 = vlaneseq
        %v3616 = vshrl.u32 %v3615, 7
        %v3617 = vsub.s32 %v3614, %v3616
        %v3618 = vrot.slane %v3611, %v3617
        %3619 = vrot.lane.b32.xlu0 %v3618, 64
        %v3620 = vpop.permute.xlu0 %3619
        %3622 = vst.msk [vmem:[#allocation7 + $0x16] sm:$0x1] %vm3137, %v3620
        %v3623 = vld [vmem:[#allocation6 + $0x40] sm:$0x1]
        %3624 = vst.msk [vmem:[#allocation7 + $0x17] sm:$0x1] %vm3114, %v3623
        %v3625 = vld [vmem:[#allocation6 + $0x41] sm:$0x1]
        %v3628 = vunpack.c.l.s4 1966171168
        %v3629 = vunpack.c.0.s8 %v3628
        %v3630 = vlaneseq
        %v3631 = vshrl.u32 %v3630, 7
        %v3632 = vsub.s32 %v3629, %v3631
        %v3633 = vrot.slane %v3625, %v3632
        %v3635 = vunpack.c.l.s4 1966171168
        %v3636 = vunpack.c.0.s8 %v3635
        %v3637 = vlaneseq
        %v3638 = vshrl.u32 %v3637, 7
        %v3639 = vsub.s32 %v3636, %v3638
        %v3640 = vrot.slane %v3633, %v3639
        %3641 = vrot.lane.b32.xlu0 %v3640, 64
        %v3642 = vpop.permute.xlu0 %3641
        %3644 = vst.msk [vmem:[#allocation7 + $0x17] sm:$0x1] %vm3137, %v3642
        %v3645 = vld [vmem:[#allocation6 + $0x42] sm:$0x1]
        %3646 = vst.msk [vmem:[#allocation7 + $0x18] sm:$0x1] %vm3114, %v3645
        %v3647 = vld [vmem:[#allocation7] sm:$0xff]
        %v3648 = vld [vmem:[#allocation7 + $0x8] sm:$0xff]
        %v3649 = vld [vmem:[#allocation7 + $0x10] sm:$0xff]
        %v3650 = vld [vmem:[#allocation7 + $0x18] sm:$0x1]
        %v3655 = vlaneseq
        %v3656 = vshrl.u32 %v3655, 7
        %v3657 = vsub.s32 0, %v3656
        %v3658 = vrot.slane %v3647, %v3657
        %v3659 = vlaneseq
        %v3660 = vshrl.u32 %v3659, 7
        %v3661 = vsub.s32 1, %v3660
        %v3662 = vrot.slane %v3647, %v3661
        %v3663 = vlaneseq
        %v3664 = vshrl.u32 %v3663, 7
        %v3665 = vsub.s32 2, %v3664
        %v3666 = vrot.slane %v3647, %v3665
        %v3667 = vlaneseq
        %v3668 = vshrl.u32 %v3667, 7
        %v3669 = vsub.s32 3, %v3668
        %v3670 = vrot.slane %v3647, %v3669
        %v3671 = vlaneseq
        %v3672 = vshrl.u32 %v3671, 7
        %v3673 = vsub.s32 4, %v3672
        %v3674 = vrot.slane %v3647, %v3673
        %v3675 = vlaneseq
        %v3676 = vshrl.u32 %v3675, 7
        %v3677 = vsub.s32 5, %v3676
        %v3678 = vrot.slane %v3647, %v3677
        %v3679 = vlaneseq
        %v3680 = vshrl.u32 %v3679, 7
        %v3681 = vsub.s32 6, %v3680
        %v3682 = vrot.slane %v3647, %v3681
        %v3683 = vlaneseq
        %v3684 = vshrl.u32 %v3683, 7
        %v3685 = vsub.s32 7, %v3684
        %v3686 = vrot.slane %v3647, %v3685
        %v3687 = vlaneseq
        %v3688 = vshrl.u32 %v3687, 7
        %v3689 = vsub.s32 0, %v3688
        %v3690 = vrot.slane %v3648, %v3689
        %v3691 = vlaneseq
        %v3692 = vshrl.u32 %v3691, 7
        %v3693 = vsub.s32 1, %v3692
        %v3694 = vrot.slane %v3648, %v3693
        %v3695 = vlaneseq
        %v3696 = vshrl.u32 %v3695, 7
        %v3697 = vsub.s32 2, %v3696
        %v3698 = vrot.slane %v3648, %v3697
        %v3699 = vlaneseq
        %v3700 = vshrl.u32 %v3699, 7
        %v3701 = vsub.s32 3, %v3700
        %v3702 = vrot.slane %v3648, %v3701
        %v3703 = vlaneseq
        %v3704 = vshrl.u32 %v3703, 7
        %v3705 = vsub.s32 4, %v3704
        %v3706 = vrot.slane %v3648, %v3705
        %v3707 = vlaneseq
        %v3708 = vshrl.u32 %v3707, 7
        %v3709 = vsub.s32 5, %v3708
        %v3710 = vrot.slane %v3648, %v3709
        %v3711 = vlaneseq
        %v3712 = vshrl.u32 %v3711, 7
        %v3713 = vsub.s32 6, %v3712
        %v3714 = vrot.slane %v3648, %v3713
        %v3715 = vlaneseq
        %v3716 = vshrl.u32 %v3715, 7
        %v3717 = vsub.s32 7, %v3716
        %v3718 = vrot.slane %v3648, %v3717
        %v3719 = vlaneseq
        %v3720 = vshrl.u32 %v3719, 7
        %v3721 = vsub.s32 0, %v3720
        %v3722 = vrot.slane %v3649, %v3721
        %v3723 = vlaneseq
        %v3724 = vshrl.u32 %v3723, 7
        %v3725 = vsub.s32 1, %v3724
        %v3726 = vrot.slane %v3649, %v3725
        %v3727 = vlaneseq
        %v3728 = vshrl.u32 %v3727, 7
        %v3729 = vsub.s32 2, %v3728
        %v3730 = vrot.slane %v3649, %v3729
        %v3731 = vlaneseq
        %v3732 = vshrl.u32 %v3731, 7
        %v3733 = vsub.s32 3, %v3732
        %v3734 = vrot.slane %v3649, %v3733
        %v3735 = vlaneseq
        %v3736 = vshrl.u32 %v3735, 7
        %v3737 = vsub.s32 4, %v3736
        %v3738 = vrot.slane %v3649, %v3737
        %v3739 = vlaneseq
        %v3740 = vshrl.u32 %v3739, 7
        %v3741 = vsub.s32 5, %v3740
        %v3742 = vrot.slane %v3649, %v3741
        %v3743 = vlaneseq
        %v3744 = vshrl.u32 %v3743, 7
        %v3745 = vsub.s32 6, %v3744
        %v3746 = vrot.slane %v3649, %v3745
        %v3747 = vlaneseq
        %v3748 = vshrl.u32 %v3747, 7
        %v3749 = vsub.s32 7, %v3748
        %v3750 = vrot.slane %v3649, %v3749
        %v3751 = vlaneseq
        %v3752 = vshrl.u32 %v3751, 7
        %v3753 = vsub.s32 0, %v3752
        %v3754 = vrot.slane %v3650, %v3753
        %v3780 = vpack.c.bf16 %v3658, %v3658
        %v3781 = vpack.c.bf16 %v3662, %v3662
        %v3782 = vpack.c.bf16 %v3666, %v3666
        %v3783 = vpack.c.bf16 %v3670, %v3670
        %v3784 = vpack.c.bf16 %v3674, %v3674
        %v3785 = vpack.c.bf16 %v3678, %v3678
        %v3786 = vpack.c.bf16 %v3682, %v3682
        %v3787 = vpack.c.bf16 %v3686, %v3686
        %v3788 = vpack.c.bf16 %v3690, %v3690
        %v3789 = vpack.c.bf16 %v3694, %v3694
        %v3790 = vpack.c.bf16 %v3698, %v3698
        %v3791 = vpack.c.bf16 %v3702, %v3702
        %v3792 = vpack.c.bf16 %v3706, %v3706
        %v3793 = vpack.c.bf16 %v3710, %v3710
        %v3794 = vpack.c.bf16 %v3714, %v3714
        %v3795 = vpack.c.bf16 %v3718, %v3718
        %v3796 = vpack.c.bf16 %v3722, %v3722
        %v3797 = vpack.c.bf16 %v3726, %v3726
        %v3798 = vpack.c.bf16 %v3730, %v3730
        %v3799 = vpack.c.bf16 %v3734, %v3734
        %v3800 = vpack.c.bf16 %v3738, %v3738
        %v3801 = vpack.c.bf16 %v3742, %v3742
        %v3802 = vpack.c.bf16 %v3746, %v3746
        %v3803 = vpack.c.bf16 %v3750, %v3750
        %v3804 = vpack.c.bf16 %v3754, %v3754
        %v3805 = vld [vmem:[%s7] sm:$0xff]
        %v3806 = vld [vmem:[%s7 + $0x8] sm:$0xff]
        %v3807 = vld [vmem:[%s7 + $0x10] sm:$0xff]
        %v3808 = vld [vmem:[%s7 + $0x18] sm:$0xff]
        %v3809 = vld [vmem:[%s7 + $0x20] sm:$0xff]
        %v3810 = vld [vmem:[%s7 + $0x28] sm:$0xff]
        %v3811 = vld [vmem:[%s7 + $0x30] sm:$0xff]
        %v3812 = vld [vmem:[%s7 + $0x38] sm:$0xff]
        %v3813 = vld [vmem:[%s7 + $0x40] sm:$0xff]
        %v3814 = vld [vmem:[%s7 + $0x48] sm:$0xff]
        %v3815 = vld [vmem:[%s7 + $0x50] sm:$0xff]
        %v3816 = vld [vmem:[%s7 + $0x58] sm:$0xff]
        %v3817 = vld [vmem:[%s7 + $0x60] sm:$0xff]
        %v3818 = vld [vmem:[%s7 + $0x68] sm:$0xff]
        %v3819 = vld [vmem:[%s7 + $0x70] sm:$0xff]
        %v3820 = vld [vmem:[%s7 + $0x78] sm:$0xff]
        %v3821 = vld [vmem:[%s7 + $0x80] sm:$0xff]
        %v3822 = vld [vmem:[%s7 + $0x88] sm:$0xff]
        %v3823 = vld [vmem:[%s7 + $0x90] sm:$0xff]
        %v3824 = vld [vmem:[%s7 + $0x98] sm:$0xff]
        %v3825 = vld [vmem:[%s7 + $0xa0] sm:$0xff]
        %v3826 = vld [vmem:[%s7 + $0xa8] sm:$0xff]
        %v3827 = vld [vmem:[%s7 + $0xb0] sm:$0xff]
        %v3828 = vld [vmem:[%s7 + $0xb8] sm:$0xff]
        %v3829 = vld [vmem:[%s7 + $0xc0] sm:$0xff]
        %v3830 = vld [vmem:[%s7 + $0xc8] sm:$0xff]
        %v3831 = vld [vmem:[%s7 + $0xd0] sm:$0xff]
        %v3832 = vld [vmem:[%s7 + $0xd8] sm:$0xff]
        %v3833 = vld [vmem:[%s7 + $0xe0] sm:$0xff]
        %v3834 = vld [vmem:[%s7 + $0xe8] sm:$0xff]
        %v3835 = vld [vmem:[%s7 + $0xf0] sm:$0xff]
        %v3836 = vld [vmem:[%s7 + $0xf8] sm:$0xff]
        %v3837 = vld [vmem:[%s7 + $0x100] sm:$0xff]
        %v3838 = vld [vmem:[%s7 + $0x108] sm:$0xff]
        %v3839 = vld [vmem:[%s7 + $0x110] sm:$0xff]
        %v3840 = vld [vmem:[%s7 + $0x118] sm:$0xff]
        %v3841 = vld [vmem:[%s7 + $0x120] sm:$0xff]
        %v3842 = vld [vmem:[%s7 + $0x128] sm:$0xff]
        %v3843 = vld [vmem:[%s7 + $0x130] sm:$0xff]
        %v3844 = vld [vmem:[%s7 + $0x138] sm:$0xff]
        %v3845 = vld [vmem:[%s7 + $0x140] sm:$0xff]
        %v3846 = vld [vmem:[%s7 + $0x148] sm:$0xff]
        %v3847 = vld [vmem:[%s7 + $0x150] sm:$0xff]
        %v3848 = vld [vmem:[%s7 + $0x158] sm:$0xff]
        %v3849 = vld [vmem:[%s7 + $0x160] sm:$0xff]
        %v3850 = vld [vmem:[%s7 + $0x168] sm:$0xff]
        %v3851 = vld [vmem:[%s7 + $0x170] sm:$0xff]
        %v3852 = vld [vmem:[%s7 + $0x178] sm:$0xff]
        %v3853 = vld [vmem:[%s7 + $0x180] sm:$0xff]
        %v3854 = vld [vmem:[%s7 + $0x188] sm:$0xff]
        %v3855 = vld [vmem:[%s7 + $0x190] sm:$0xff]
        %v3856 = vld [vmem:[%s7 + $0x198] sm:$0xff]
        %v3857 = vld [vmem:[%s7 + $0x1a0] sm:$0xff]
        %v3858 = vld [vmem:[%s7 + $0x1a8] sm:$0xff]
        %v3859 = vld [vmem:[%s7 + $0x1b0] sm:$0xff]
        %v3860 = vld [vmem:[%s7 + $0x1b8] sm:$0xff]
        %v3861 = vld [vmem:[%s7 + $0x1c0] sm:$0xff]
        %v3862 = vld [vmem:[%s7 + $0x1c8] sm:$0xff]
        %v3863 = vld [vmem:[%s7 + $0x1d0] sm:$0xff]
        %v3864 = vld [vmem:[%s7 + $0x1d8] sm:$0xff]
        %v3865 = vld [vmem:[%s7 + $0x1e0] sm:$0xff]
        %v3866 = vld [vmem:[%s7 + $0x1e8] sm:$0xff]
        %v3867 = vld [vmem:[%s7 + $0x1f0] sm:$0xff]
        %v3868 = vld [vmem:[%s7 + $0x1f8] sm:$0xff]
        %v3869 = vld [vmem:[%s7 + $0x200] sm:$0xff]
        %v3870 = vld [vmem:[%s7 + $0x208] sm:$0xff]
        %v3871 = vld [vmem:[%s7 + $0x210] sm:$0xff]
        %v3872 = vld [vmem:[%s7 + $0x218] sm:$0xff]
        %v3873 = vld [vmem:[%s7 + $0x220] sm:$0xff]
        %v3874 = vld [vmem:[%s7 + $0x228] sm:$0xff]
        %v3875 = vld [vmem:[%s7 + $0x230] sm:$0xff]
        %v3876 = vld [vmem:[%s7 + $0x238] sm:$0xff]
        %v3877 = vld [vmem:[%s7 + $0x240] sm:$0xff]
        %v3878 = vld [vmem:[%s7 + $0x248] sm:$0xff]
        %v3879 = vld [vmem:[%s7 + $0x250] sm:$0xff]
        %v3880 = vld [vmem:[%s7 + $0x258] sm:$0xff]
        %v3881 = vld [vmem:[%s7 + $0x260] sm:$0xff]
        %v3882 = vld [vmem:[%s7 + $0x268] sm:$0xff]
        %v3883 = vld [vmem:[%s7 + $0x270] sm:$0xff]
        %v3884 = vld [vmem:[%s7 + $0x278] sm:$0xff]
        %v3885 = vld [vmem:[%s7 + $0x280] sm:$0xff]
        %v3886 = vld [vmem:[%s7 + $0x288] sm:$0xff]
        %v3887 = vld [vmem:[%s7 + $0x290] sm:$0xff]
        %v3888 = vld [vmem:[%s7 + $0x298] sm:$0xff]
        %v3889 = vld [vmem:[%s7 + $0x2a0] sm:$0xff]
        %v3890 = vld [vmem:[%s7 + $0x2a8] sm:$0xff]
        %v3891 = vld [vmem:[%s7 + $0x2b0] sm:$0xff]
        %v3892 = vld [vmem:[%s7 + $0x2b8] sm:$0xff]
        %v3893 = vld [vmem:[%s7 + $0x2c0] sm:$0xff]
        %v3894 = vld [vmem:[%s7 + $0x2c8] sm:$0xff]
        %v3895 = vld [vmem:[%s7 + $0x2d0] sm:$0xff]
        %v3896 = vld [vmem:[%s7 + $0x2d8] sm:$0xff]
        %v3897 = vld [vmem:[%s7 + $0x2e0] sm:$0xff]
        %v3898 = vld [vmem:[%s7 + $0x2e8] sm:$0xff]
        %v3899 = vld [vmem:[%s7 + $0x2f0] sm:$0xff]
        %v3900 = vld [vmem:[%s7 + $0x2f8] sm:$0xff]
        %v3901 = vld [vmem:[%s7 + $0x300] sm:$0xff]
        %v3902 = vld [vmem:[%s7 + $0x308] sm:$0xff]
        %v3903 = vld [vmem:[%s7 + $0x310] sm:$0xff]
        %v3904 = vld [vmem:[%s7 + $0x318] sm:$0xff]
        %v3905 = vld [vmem:[%s7 + $0x320] sm:$0xff]
        %v3906 = vld [vmem:[%s7 + $0x328] sm:$0xff]
        %v3907 = vld [vmem:[%s7 + $0x330] sm:$0xff]
        %v3908 = vld [vmem:[%s7 + $0x338] sm:$0xff]
        %v3909 = vld [vmem:[%s7 + $0x340] sm:$0xff]
        %v3910 = vld [vmem:[%s7 + $0x348] sm:$0xff]
        %v3911 = vld [vmem:[%s7 + $0x350] sm:$0xff]
        %v3912 = vld [vmem:[%s7 + $0x358] sm:$0xff]
        %v3913 = vld [vmem:[%s7 + $0x360] sm:$0xff]
        %v3914 = vld [vmem:[%s7 + $0x368] sm:$0xff]
        %v3915 = vld [vmem:[%s7 + $0x370] sm:$0xff]
        %v3916 = vld [vmem:[%s7 + $0x378] sm:$0xff]
        %v3917 = vld [vmem:[%s7 + $0x380] sm:$0xff]
        %v3918 = vld [vmem:[%s7 + $0x388] sm:$0xff]
        %v3919 = vld [vmem:[%s7 + $0x390] sm:$0xff]
        %v3920 = vld [vmem:[%s7 + $0x398] sm:$0xff]
        %v3921 = vld [vmem:[%s7 + $0x3a0] sm:$0xff]
        %v3922 = vld [vmem:[%s7 + $0x3a8] sm:$0xff]
        %v3923 = vld [vmem:[%s7 + $0x3b0] sm:$0xff]
        %v3924 = vld [vmem:[%s7 + $0x3b8] sm:$0xff]
        %v3925 = vld [vmem:[%s7 + $0x3c0] sm:$0xff]
        %v3926 = vld [vmem:[%s7 + $0x3c8] sm:$0xff]
        %v3927 = vld [vmem:[%s7 + $0x3d0] sm:$0xff]
        %v3928 = vld [vmem:[%s7 + $0x3d8] sm:$0xff]
        %v3929 = vld [vmem:[%s7 + $0x3e0] sm:$0xff]
        %v3930 = vld [vmem:[%s7 + $0x3e8] sm:$0xff]
        %v3931 = vld [vmem:[%s7 + $0x3f0] sm:$0xff]
        %v3932 = vld [vmem:[%s7 + $0x3f8] sm:$0xff]
        %v3933 = vld [vmem:[%s7 + $0x400] sm:$0xff]
        %v3934 = vld [vmem:[%s7 + $0x408] sm:$0xff]
        %v3935 = vld [vmem:[%s7 + $0x410] sm:$0xff]
        %v3936 = vld [vmem:[%s7 + $0x418] sm:$0xff]
        %v3937 = vld [vmem:[%s7 + $0x420] sm:$0xff]
        %v3938 = vld [vmem:[%s7 + $0x428] sm:$0xff]
        %v3939 = vld [vmem:[%s7 + $0x430] sm:$0xff]
        %v3940 = vld [vmem:[%s7 + $0x438] sm:$0xff]
        %v3941 = vld [vmem:[%s7 + $0x440] sm:$0xff]
        %v3942 = vld [vmem:[%s7 + $0x448] sm:$0xff]
        %v3943 = vld [vmem:[%s7 + $0x450] sm:$0xff]
        %v3944 = vld [vmem:[%s7 + $0x458] sm:$0xff]
        %v3945 = vld [vmem:[%s7 + $0x460] sm:$0xff]
        %v3946 = vld [vmem:[%s7 + $0x468] sm:$0xff]
        %v3947 = vld [vmem:[%s7 + $0x470] sm:$0xff]
        %v3948 = vld [vmem:[%s7 + $0x478] sm:$0xff]
        %v3949 = vld [vmem:[%s7 + $0x480] sm:$0xff]
        %v3950 = vld [vmem:[%s7 + $0x488] sm:$0xff]
        %v3951 = vld [vmem:[%s7 + $0x490] sm:$0xff]
        %v3952 = vld [vmem:[%s7 + $0x498] sm:$0xff]
        %v3953 = vld [vmem:[%s7 + $0x4a0] sm:$0xff]
        %v3954 = vld [vmem:[%s7 + $0x4a8] sm:$0xff]
        %v3955 = vld [vmem:[%s7 + $0x4b0] sm:$0xff]
        %v3956 = vld [vmem:[%s7 + $0x4b8] sm:$0xff]
        %v3957 = vld [vmem:[%s7 + $0x4c0] sm:$0xff]
        %v3958 = vld [vmem:[%s7 + $0x4c8] sm:$0xff]
        %v3959 = vld [vmem:[%s7 + $0x4d0] sm:$0xff]
        %v3960 = vld [vmem:[%s7 + $0x4d8] sm:$0xff]
        %v3961 = vld [vmem:[%s7 + $0x4e0] sm:$0xff]
        %v3962 = vld [vmem:[%s7 + $0x4e8] sm:$0xff]
        %v3963 = vld [vmem:[%s7 + $0x4f0] sm:$0xff]
        %v3964 = vld [vmem:[%s7 + $0x4f8] sm:$0xff]
        %v3965 = vld [vmem:[%s7 + $0x500] sm:$0xff]
        %v3966 = vld [vmem:[%s7 + $0x508] sm:$0xff]
        %v3967 = vld [vmem:[%s7 + $0x510] sm:$0xff]
        %v3968 = vld [vmem:[%s7 + $0x518] sm:$0xff]
        %v3969 = vld [vmem:[%s7 + $0x520] sm:$0xff]
        %v3970 = vld [vmem:[%s7 + $0x528] sm:$0xff]
        %v3971 = vld [vmem:[%s7 + $0x530] sm:$0xff]
        %v3972 = vld [vmem:[%s7 + $0x538] sm:$0xff]
        %v3973 = vld [vmem:[%s7 + $0x540] sm:$0xff]
        %v3974 = vld [vmem:[%s7 + $0x548] sm:$0xff]
        %v3975 = vld [vmem:[%s7 + $0x550] sm:$0xff]
        %v3976 = vld [vmem:[%s7 + $0x558] sm:$0xff]
        %v3977 = vld [vmem:[%s7 + $0x560] sm:$0xff]
        %v3978 = vld [vmem:[%s7 + $0x568] sm:$0xff]
        %v3979 = vld [vmem:[%s7 + $0x570] sm:$0xff]
        %v3980 = vld [vmem:[%s7 + $0x578] sm:$0xff]
        %v3981 = vld [vmem:[%s7 + $0x580] sm:$0xff]
        %v3982 = vld [vmem:[%s7 + $0x588] sm:$0xff]
        %v3983 = vld [vmem:[%s7 + $0x590] sm:$0xff]
        %v3984 = vld [vmem:[%s7 + $0x598] sm:$0xff]
        %v3985 = vld [vmem:[%s7 + $0x5a0] sm:$0xff]
        %v3986 = vld [vmem:[%s7 + $0x5a8] sm:$0xff]
        %v3987 = vld [vmem:[%s7 + $0x5b0] sm:$0xff]
        %v3988 = vld [vmem:[%s7 + $0x5b8] sm:$0xff]
        %v3989 = vld [vmem:[%s7 + $0x5c0] sm:$0xff]
        %v3990 = vld [vmem:[%s7 + $0x5c8] sm:$0xff]
        %v3991 = vld [vmem:[%s7 + $0x5d0] sm:$0xff]
        %v3992 = vld [vmem:[%s7 + $0x5d8] sm:$0xff]
        %v3993 = vld [vmem:[%s7 + $0x5e0] sm:$0xff]
        %v3994 = vld [vmem:[%s7 + $0x5e8] sm:$0xff]
        %v3995 = vld [vmem:[%s7 + $0x5f0] sm:$0xff]
        %v3996 = vld [vmem:[%s7 + $0x5f8] sm:$0xff]
        %v3997 = vld [vmem:[%s7 + $0x600] sm:$0xff]
        %v3998 = vld [vmem:[%s7 + $0x608] sm:$0xff]
        %v3999 = vld [vmem:[%s7 + $0x610] sm:$0xff]
        %v4000 = vld [vmem:[%s7 + $0x618] sm:$0xff]
        %v4001 = vld [vmem:[%s7 + $0x620] sm:$0xff]
        %v4002 = vld [vmem:[%s7 + $0x628] sm:$0xff]
        %v4003 = vld [vmem:[%s7 + $0x630] sm:$0xff]
        %v4004 = vld [vmem:[%s7 + $0x638] sm:$0xff]
        %v4005 = vld [vmem:[%s7 + $0x640] sm:$0xff]
        %v4006 = vld [vmem:[%s7 + $0x648] sm:$0xff]
        %v4007 = vld [vmem:[%s7 + $0x650] sm:$0xff]
        %v4008 = vld [vmem:[%s7 + $0x658] sm:$0xff]
        %v4009 = vld [vmem:[%s7 + $0x660] sm:$0xff]
        %v4010 = vld [vmem:[%s7 + $0x668] sm:$0xff]
        %v4011 = vld [vmem:[%s7 + $0x670] sm:$0xff]
        %v4012 = vld [vmem:[%s7 + $0x678] sm:$0xff]
        %v4013 = vld [vmem:[%s7 + $0x680] sm:$0xff]
        %v4014 = vld [vmem:[%s7 + $0x688] sm:$0xff]
        %v4015 = vld [vmem:[%s7 + $0x690] sm:$0xff]
        %v4016 = vld [vmem:[%s7 + $0x698] sm:$0xff]
        %v4017 = vld [vmem:[%s7 + $0x6a0] sm:$0xff]
        %v4018 = vld [vmem:[%s7 + $0x6a8] sm:$0xff]
        %v4019 = vld [vmem:[%s7 + $0x6b0] sm:$0xff]
        %v4020 = vld [vmem:[%s7 + $0x6b8] sm:$0xff]
        %v4021 = vld [vmem:[%s7 + $0x6c0] sm:$0xff]
        %v4022 = vld [vmem:[%s7 + $0x6c8] sm:$0xff]
        %v4023 = vld [vmem:[%s7 + $0x6d0] sm:$0xff]
        %v4024 = vld [vmem:[%s7 + $0x6d8] sm:$0xff]
        %v4025 = vld [vmem:[%s7 + $0x6e0] sm:$0xff]
        %v4026 = vld [vmem:[%s7 + $0x6e8] sm:$0xff]
        %v4027 = vld [vmem:[%s7 + $0x6f0] sm:$0xff]
        %v4028 = vld [vmem:[%s7 + $0x6f8] sm:$0xff]
        %v4029 = vld [vmem:[%s7 + $0x700] sm:$0xff]
        %v4030 = vld [vmem:[%s7 + $0x708] sm:$0xff]
        %v4031 = vld [vmem:[%s7 + $0x710] sm:$0xff]
        %v4032 = vld [vmem:[%s7 + $0x718] sm:$0xff]
        %v4033 = vld [vmem:[%s7 + $0x720] sm:$0xff]
        %v4034 = vld [vmem:[%s7 + $0x728] sm:$0xff]
        %v4035 = vld [vmem:[%s7 + $0x730] sm:$0xff]
        %v4036 = vld [vmem:[%s7 + $0x738] sm:$0xff]
        %v4037 = vld [vmem:[%s7 + $0x740] sm:$0xff]
        %v4038 = vld [vmem:[%s7 + $0x748] sm:$0xff]
        %v4039 = vld [vmem:[%s7 + $0x750] sm:$0xff]
        %v4040 = vld [vmem:[%s7 + $0x758] sm:$0xff]
        %v4041 = vld [vmem:[%s7 + $0x760] sm:$0xff]
        %v4042 = vld [vmem:[%s7 + $0x768] sm:$0xff]
        %v4043 = vld [vmem:[%s7 + $0x770] sm:$0xff]
        %v4044 = vld [vmem:[%s7 + $0x778] sm:$0xff]
        %v4045 = vld [vmem:[%s7 + $0x780] sm:$0xff]
        %v4046 = vld [vmem:[%s7 + $0x788] sm:$0xff]
        %v4047 = vld [vmem:[%s7 + $0x790] sm:$0xff]
        %v4048 = vld [vmem:[%s7 + $0x798] sm:$0xff]
        %v4049 = vld [vmem:[%s7 + $0x7a0] sm:$0xff]
        %v4050 = vld [vmem:[%s7 + $0x7a8] sm:$0xff]
        %v4051 = vld [vmem:[%s7 + $0x7b0] sm:$0xff]
        %v4052 = vld [vmem:[%s7 + $0x7b8] sm:$0xff]
        %v4053 = vld [vmem:[%s7 + $0x7c0] sm:$0xff]
        %v4054 = vld [vmem:[%s7 + $0x7c8] sm:$0xff]
        %v4055 = vld [vmem:[%s7 + $0x7d0] sm:$0xff]
        %v4056 = vld [vmem:[%s7 + $0x7d8] sm:$0xff]
        %v4057 = vld [vmem:[%s7 + $0x7e0] sm:$0xff]
        %v4058 = vld [vmem:[%s7 + $0x7e8] sm:$0xff]
        %v4059 = vld [vmem:[%s7 + $0x7f0] sm:$0xff]
        %v4060 = vld [vmem:[%s7 + $0x7f8] sm:$0xff]
        %v4061 = vld [vmem:[%s7 + $0x800] sm:$0xff]
        %v4062 = vld [vmem:[%s7 + $0x808] sm:$0xff]
        %v4063 = vld [vmem:[%s7 + $0x810] sm:$0xff]
        %v4064 = vld [vmem:[%s7 + $0x818] sm:$0xff]
        %v4065 = vld [vmem:[%s7 + $0x820] sm:$0xff]
        %v4066 = vld [vmem:[%s7 + $0x828] sm:$0xff]
        %v4067 = vld [vmem:[%s7 + $0x830] sm:$0xff]
        %v4068 = vld [vmem:[%s7 + $0x838] sm:$0xff]
        %v4069 = vld [vmem:[%s7 + $0x840] sm:$0xff]
        %v4070 = vld [vmem:[%s7 + $0x848] sm:$0xff]
        %v4071 = vld [vmem:[%s7 + $0x850] sm:$0xff]
        %v4072 = vld [vmem:[%s7 + $0x858] sm:$0xff]
        %v4073 = vld [vmem:[%s7 + $0x860] sm:$0xff]
        %v4074 = vld [vmem:[%s7 + $0x868] sm:$0xff]
        %v4075 = vld [vmem:[%s7 + $0x870] sm:$0xff]
        %v4076 = vld [vmem:[%s7 + $0x878] sm:$0xff]
        %v4077 = vld [vmem:[%s7 + $0x880] sm:$0xff]
        %v4078 = vld [vmem:[%s7 + $0x888] sm:$0xff]
        %v4079 = vld [vmem:[%s7 + $0x890] sm:$0xff]
        %v4080 = vld [vmem:[%s7 + $0x898] sm:$0xff]
        %v4081 = vld [vmem:[%s7 + $0x8a0] sm:$0xff]
        %v4082 = vld [vmem:[%s7 + $0x8a8] sm:$0xff]
        %v4083 = vld [vmem:[%s7 + $0x8b0] sm:$0xff]
        %v4084 = vld [vmem:[%s7 + $0x8b8] sm:$0xff]
        %v4085 = vld [vmem:[%s7 + $0x8c0] sm:$0xff]
        %v4086 = vld [vmem:[%s7 + $0x8c8] sm:$0xff]
        %v4087 = vld [vmem:[%s7 + $0x8d0] sm:$0xff]
        %v4088 = vld [vmem:[%s7 + $0x8d8] sm:$0xff]
        %v4089 = vld [vmem:[%s7 + $0x8e0] sm:$0xff]
        %v4090 = vld [vmem:[%s7 + $0x8e8] sm:$0xff]
        %v4091 = vld [vmem:[%s7 + $0x8f0] sm:$0xff]
        %v4092 = vld [vmem:[%s7 + $0x8f8] sm:$0xff]
        %v4093 = vld [vmem:[%s7 + $0x900] sm:$0xff]
        %v4094 = vld [vmem:[%s7 + $0x908] sm:$0xff]
        %v4095 = vld [vmem:[%s7 + $0x910] sm:$0xff]
        %v4096 = vld [vmem:[%s7 + $0x918] sm:$0xff]
        %v4097 = vld [vmem:[%s7 + $0x920] sm:$0xff]
        %v4098 = vld [vmem:[%s7 + $0x928] sm:$0xff]
        %v4099 = vld [vmem:[%s7 + $0x930] sm:$0xff]
        %v4100 = vld [vmem:[%s7 + $0x938] sm:$0xff]
        %v4101 = vld [vmem:[%s7 + $0x940] sm:$0xff]
        %v4102 = vld [vmem:[%s7 + $0x948] sm:$0xff]
        %v4103 = vld [vmem:[%s7 + $0x950] sm:$0xff]
        %v4104 = vld [vmem:[%s7 + $0x958] sm:$0xff]
        %v4105 = vld [vmem:[%s7 + $0x960] sm:$0xff]
        %v4106 = vld [vmem:[%s7 + $0x968] sm:$0xff]
        %v4107 = vld [vmem:[%s7 + $0x970] sm:$0xff]
        %v4108 = vld [vmem:[%s7 + $0x978] sm:$0xff]
        %v4109 = vld [vmem:[%s7 + $0x980] sm:$0xff]
        %v4110 = vld [vmem:[%s7 + $0x988] sm:$0xff]
        %v4111 = vld [vmem:[%s7 + $0x990] sm:$0xff]
        %v4112 = vld [vmem:[%s7 + $0x998] sm:$0xff]
        %v4113 = vld [vmem:[%s7 + $0x9a0] sm:$0xff]
        %v4114 = vld [vmem:[%s7 + $0x9a8] sm:$0xff]
        %v4115 = vld [vmem:[%s7 + $0x9b0] sm:$0xff]
        %v4116 = vld [vmem:[%s7 + $0x9b8] sm:$0xff]
        %v4117 = vld [vmem:[%s7 + $0x9c0] sm:$0xff]
        %v4118 = vld [vmem:[%s7 + $0x9c8] sm:$0xff]
        %v4119 = vld [vmem:[%s7 + $0x9d0] sm:$0xff]
        %v4120 = vld [vmem:[%s7 + $0x9d8] sm:$0xff]
        %v4121 = vld [vmem:[%s7 + $0x9e0] sm:$0xff]
        %v4122 = vld [vmem:[%s7 + $0x9e8] sm:$0xff]
        %v4123 = vld [vmem:[%s7 + $0x9f0] sm:$0xff]
        %v4124 = vld [vmem:[%s7 + $0x9f8] sm:$0xff]
        %v4125 = vld [vmem:[%s7 + $0xa00] sm:$0xff]
        %v4126 = vld [vmem:[%s7 + $0xa08] sm:$0xff]
        %v4127 = vld [vmem:[%s7 + $0xa10] sm:$0xff]
        %v4128 = vld [vmem:[%s7 + $0xa18] sm:$0xff]
        %v4129 = vld [vmem:[%s7 + $0xa20] sm:$0xff]
        %v4130 = vld [vmem:[%s7 + $0xa28] sm:$0xff]
        %v4131 = vld [vmem:[%s7 + $0xa30] sm:$0xff]
        %v4132 = vld [vmem:[%s7 + $0xa38] sm:$0xff]
        %v4133 = vld [vmem:[%s7 + $0xa40] sm:$0xff]
        %v4134 = vld [vmem:[%s7 + $0xa48] sm:$0xff]
        %v4135 = vld [vmem:[%s7 + $0xa50] sm:$0xff]
        %v4136 = vld [vmem:[%s7 + $0xa58] sm:$0xff]
        %v4137 = vld [vmem:[%s7 + $0xa60] sm:$0xff]
        %v4138 = vld [vmem:[%s7 + $0xa68] sm:$0xff]
        %v4139 = vld [vmem:[%s7 + $0xa70] sm:$0xff]
        %v4140 = vld [vmem:[%s7 + $0xa78] sm:$0xff]
        %v4141 = vld [vmem:[%s7 + $0xa80] sm:$0xff]
        %v4142 = vld [vmem:[%s7 + $0xa88] sm:$0xff]
        %v4143 = vld [vmem:[%s7 + $0xa90] sm:$0xff]
        %v4144 = vld [vmem:[%s7 + $0xa98] sm:$0xff]
        %v4145 = vld [vmem:[%s7 + $0xaa0] sm:$0xff]
        %v4146 = vld [vmem:[%s7 + $0xaa8] sm:$0xff]
        %v4147 = vld [vmem:[%s7 + $0xab0] sm:$0xff]
        %v4148 = vld [vmem:[%s7 + $0xab8] sm:$0xff]
        %v4149 = vld [vmem:[%s7 + $0xac0] sm:$0xff]
        %v4150 = vld [vmem:[%s7 + $0xac8] sm:$0xff]
        %v4151 = vld [vmem:[%s7 + $0xad0] sm:$0xff]
        %v4152 = vld [vmem:[%s7 + $0xad8] sm:$0xff]
        %v4153 = vld [vmem:[%s7 + $0xae0] sm:$0xff]
        %v4154 = vld [vmem:[%s7 + $0xae8] sm:$0xff]
        %v4155 = vld [vmem:[%s7 + $0xaf0] sm:$0xff]
        %v4156 = vld [vmem:[%s7 + $0xaf8] sm:$0xff]
        %v4157 = vld [vmem:[%s7 + $0xb00] sm:$0xff]
        %v4158 = vld [vmem:[%s7 + $0xb08] sm:$0xff]
        %v4159 = vld [vmem:[%s7 + $0xb10] sm:$0xff]
        %v4160 = vld [vmem:[%s7 + $0xb18] sm:$0xff]
        %v4161 = vld [vmem:[%s7 + $0xb20] sm:$0xff]
        %v4162 = vld [vmem:[%s7 + $0xb28] sm:$0xff]
        %v4163 = vld [vmem:[%s7 + $0xb30] sm:$0xff]
        %v4164 = vld [vmem:[%s7 + $0xb38] sm:$0xff]
        %v4165 = vld [vmem:[%s7 + $0xb40] sm:$0xff]
        %v4166 = vld [vmem:[%s7 + $0xb48] sm:$0xff]
        %v4167 = vld [vmem:[%s7 + $0xb50] sm:$0xff]
        %v4168 = vld [vmem:[%s7 + $0xb58] sm:$0xff]
        %v4169 = vld [vmem:[%s7 + $0xb60] sm:$0xff]
        %v4170 = vld [vmem:[%s7 + $0xb68] sm:$0xff]
        %v4171 = vld [vmem:[%s7 + $0xb70] sm:$0xff]
        %v4172 = vld [vmem:[%s7 + $0xb78] sm:$0xff]
        %v4173 = vld [vmem:[%s7 + $0xb80] sm:$0xff]
        %v4174 = vld [vmem:[%s7 + $0xb88] sm:$0xff]
        %v4175 = vld [vmem:[%s7 + $0xb90] sm:$0xff]
        %v4176 = vld [vmem:[%s7 + $0xb98] sm:$0xff]
        %v4177 = vld [vmem:[%s7 + $0xba0] sm:$0xff]
        %v4178 = vld [vmem:[%s7 + $0xba8] sm:$0xff]
        %v4179 = vld [vmem:[%s7 + $0xbb0] sm:$0xff]
        %v4180 = vld [vmem:[%s7 + $0xbb8] sm:$0xff]
        %v4181 = vld [vmem:[%s7 + $0xbc0] sm:$0xff]
        %v4182 = vld [vmem:[%s7 + $0xbc8] sm:$0xff]
        %v4183 = vld [vmem:[%s7 + $0xbd0] sm:$0xff]
        %v4184 = vld [vmem:[%s7 + $0xbd8] sm:$0xff]
        %v4185 = vld [vmem:[%s7 + $0xbe0] sm:$0xff]
        %v4186 = vld [vmem:[%s7 + $0xbe8] sm:$0xff]
        %v4187 = vld [vmem:[%s7 + $0xbf0] sm:$0xff]
        %v4188 = vld [vmem:[%s7 + $0xbf8] sm:$0xff]
        %v4189 = vld [vmem:[%s7 + $0xc00] sm:$0xff]
        %v4190 = vld [vmem:[%s7 + $0xc08] sm:$0xff]
        %v4191 = vld [vmem:[%s7 + $0xc10] sm:$0xff]
        %v4192 = vld [vmem:[%s7 + $0xc18] sm:$0xff]
        %v4193 = vld [vmem:[%s7 + $0xc20] sm:$0xff]
        %v4194 = vld [vmem:[%s7 + $0xc28] sm:$0xff]
        %v4195 = vld [vmem:[%s7 + $0xc30] sm:$0xff]
        %v4196 = vld [vmem:[%s7 + $0xc38] sm:$0xff]
        %v4197 = vld [vmem:[%s7 + $0xc40] sm:$0xff]
        %v4198 = vld [vmem:[%s7 + $0xc48] sm:$0xff]
        %v4199 = vld [vmem:[%s7 + $0xc50] sm:$0xff]
        %v4200 = vld [vmem:[%s7 + $0xc58] sm:$0xff]
        %v4201 = vld [vmem:[%s7 + $0xc60] sm:$0xff]
        %v4202 = vld [vmem:[%s7 + $0xc68] sm:$0xff]
        %v4203 = vld [vmem:[%s7 + $0xc70] sm:$0xff]
        %v4204 = vld [vmem:[%s7 + $0xc78] sm:$0xff]
        %v4205 = vld [vmem:[%s7 + $0xc80] sm:$0xff]
        %v4206 = vld [vmem:[%s7 + $0xc88] sm:$0xff]
        %v4207 = vld [vmem:[%s7 + $0xc90] sm:$0xff]
        %v4208 = vld [vmem:[%s7 + $0xc98] sm:$0xff]
        %v4209 = vld [vmem:[%s7 + $0xca0] sm:$0xff]
        %v4210 = vld [vmem:[%s7 + $0xca8] sm:$0xff]
        %v4211 = vld [vmem:[%s7 + $0xcb0] sm:$0xff]
        %v4212 = vld [vmem:[%s7 + $0xcb8] sm:$0xff]
        %v4213 = vld [vmem:[%s7 + $0xcc0] sm:$0xff]
        %v4214 = vld [vmem:[%s7 + $0xcc8] sm:$0xff]
        %v4215 = vld [vmem:[%s7 + $0xcd0] sm:$0xff]
        %v4216 = vld [vmem:[%s7 + $0xcd8] sm:$0xff]
        %v4217 = vld [vmem:[%s7 + $0xce0] sm:$0xff]
        %v4218 = vld [vmem:[%s7 + $0xce8] sm:$0xff]
        %v4219 = vld [vmem:[%s7 + $0xcf0] sm:$0xff]
        %v4220 = vld [vmem:[%s7 + $0xcf8] sm:$0xff]
        %v4221 = vld [vmem:[%s7 + $0xd00] sm:$0xff]
        %v4222 = vld [vmem:[%s7 + $0xd08] sm:$0xff]
        %v4223 = vld [vmem:[%s7 + $0xd10] sm:$0xff]
        %v4224 = vld [vmem:[%s7 + $0xd18] sm:$0xff]
        %v4225 = vld [vmem:[%s7 + $0xd20] sm:$0xff]
        %v4226 = vld [vmem:[%s7 + $0xd28] sm:$0xff]
        %v4227 = vld [vmem:[%s7 + $0xd30] sm:$0xff]
        %v4228 = vld [vmem:[%s7 + $0xd38] sm:$0xff]
        %v4229 = vld [vmem:[%s7 + $0xd40] sm:$0xff]
        %v4230 = vld [vmem:[%s7 + $0xd48] sm:$0xff]
        %v4231 = vld [vmem:[%s7 + $0xd50] sm:$0xff]
        %v4232 = vld [vmem:[%s7 + $0xd58] sm:$0xff]
        %v4233 = vld [vmem:[%s7 + $0xd60] sm:$0xff]
        %v4234 = vld [vmem:[%s7 + $0xd68] sm:$0xff]
        %v4235 = vld [vmem:[%s7 + $0xd70] sm:$0xff]
        %v4236 = vld [vmem:[%s7 + $0xd78] sm:$0xff]
        %v4237 = vld [vmem:[%s7 + $0xd80] sm:$0xff]
        %v4238 = vld [vmem:[%s7 + $0xd88] sm:$0xff]
        %v4239 = vld [vmem:[%s7 + $0xd90] sm:$0xff]
        %v4240 = vld [vmem:[%s7 + $0xd98] sm:$0xff]
        %v4241 = vld [vmem:[%s7 + $0xda0] sm:$0xff]
        %v4242 = vld [vmem:[%s7 + $0xda8] sm:$0xff]
        %v4243 = vld [vmem:[%s7 + $0xdb0] sm:$0xff]
        %v4244 = vld [vmem:[%s7 + $0xdb8] sm:$0xff]
        %v4245 = vld [vmem:[%s7 + $0xdc0] sm:$0xff]
        %v4246 = vld [vmem:[%s7 + $0xdc8] sm:$0xff]
        %v4247 = vld [vmem:[%s7 + $0xdd0] sm:$0xff]
        %v4248 = vld [vmem:[%s7 + $0xdd8] sm:$0xff]
        %v4249 = vld [vmem:[%s7 + $0xde0] sm:$0xff]
        %v4250 = vld [vmem:[%s7 + $0xde8] sm:$0xff]
        %v4251 = vld [vmem:[%s7 + $0xdf0] sm:$0xff]
        %v4252 = vld [vmem:[%s7 + $0xdf8] sm:$0xff]
        %v4253 = vld [vmem:[%s7 + $0xe00] sm:$0xff]
        %v4254 = vld [vmem:[%s7 + $0xe08] sm:$0xff]
        %v4255 = vld [vmem:[%s7 + $0xe10] sm:$0xff]
        %v4256 = vld [vmem:[%s7 + $0xe18] sm:$0xff]
        %v4257 = vld [vmem:[%s7 + $0xe20] sm:$0xff]
        %v4258 = vld [vmem:[%s7 + $0xe28] sm:$0xff]
        %v4259 = vld [vmem:[%s7 + $0xe30] sm:$0xff]
        %v4260 = vld [vmem:[%s7 + $0xe38] sm:$0xff]
        %v4261 = vld [vmem:[%s7 + $0xe40] sm:$0xff]
        %v4262 = vld [vmem:[%s7 + $0xe48] sm:$0xff]
        %v4263 = vld [vmem:[%s7 + $0xe50] sm:$0xff]
        %v4264 = vld [vmem:[%s7 + $0xe58] sm:$0xff]
        %v4265 = vld [vmem:[%s7 + $0xe60] sm:$0xff]
        %v4266 = vld [vmem:[%s7 + $0xe68] sm:$0xff]
        %v4267 = vld [vmem:[%s7 + $0xe70] sm:$0xff]
        %v4268 = vld [vmem:[%s7 + $0xe78] sm:$0xff]
        %v4269 = vld [vmem:[%s7 + $0xe80] sm:$0xff]
        %v4270 = vld [vmem:[%s7 + $0xe88] sm:$0xff]
        %v4271 = vld [vmem:[%s7 + $0xe90] sm:$0xff]
        %v4272 = vld [vmem:[%s7 + $0xe98] sm:$0xff]
        %v4273 = vld [vmem:[%s7 + $0xea0] sm:$0xff]
        %v4274 = vld [vmem:[%s7 + $0xea8] sm:$0xff]
        %v4275 = vld [vmem:[%s7 + $0xeb0] sm:$0xff]
        %v4276 = vld [vmem:[%s7 + $0xeb8] sm:$0xff]
        %v4277 = vld [vmem:[%s7 + $0xec0] sm:$0xff]
        %v4278 = vld [vmem:[%s7 + $0xec8] sm:$0xff]
        %v4279 = vld [vmem:[%s7 + $0xed0] sm:$0xff]
        %v4280 = vld [vmem:[%s7 + $0xed8] sm:$0xff]
        %v4281 = vld [vmem:[%s7 + $0xee0] sm:$0xff]
        %v4282 = vld [vmem:[%s7 + $0xee8] sm:$0xff]
        %v4283 = vld [vmem:[%s7 + $0xef0] sm:$0xff]
        %v4284 = vld [vmem:[%s7 + $0xef8] sm:$0xff]
        %v4285 = vld [vmem:[%s7 + $0xf00] sm:$0xff]
        %v4286 = vld [vmem:[%s7 + $0xf08] sm:$0xff]
        %v4287 = vld [vmem:[%s7 + $0xf10] sm:$0xff]
        %v4288 = vld [vmem:[%s7 + $0xf18] sm:$0xff]
        %v4289 = vld [vmem:[%s7 + $0xf20] sm:$0xff]
        %v4290 = vld [vmem:[%s7 + $0xf28] sm:$0xff]
        %v4291 = vld [vmem:[%s7 + $0xf30] sm:$0xff]
        %v4292 = vld [vmem:[%s7 + $0xf38] sm:$0xff]
        %v4293 = vld [vmem:[%s7 + $0xf40] sm:$0xff]
        %v4294 = vld [vmem:[%s7 + $0xf48] sm:$0xff]
        %v4295 = vld [vmem:[%s7 + $0xf50] sm:$0xff]
        %v4296 = vld [vmem:[%s7 + $0xf58] sm:$0xff]
        %v4297 = vld [vmem:[%s7 + $0xf60] sm:$0xff]
        %v4298 = vld [vmem:[%s7 + $0xf68] sm:$0xff]
        %v4299 = vld [vmem:[%s7 + $0xf70] sm:$0xff]
        %v4300 = vld [vmem:[%s7 + $0xf78] sm:$0xff]
        %v4301 = vld [vmem:[%s7 + $0xf80] sm:$0xff]
        %v4302 = vld [vmem:[%s7 + $0xf88] sm:$0xff]
        %v4303 = vld [vmem:[%s7 + $0xf90] sm:$0xff]
        %v4304 = vld [vmem:[%s7 + $0xf98] sm:$0xff]
        %v4305 = vld [vmem:[%s7 + $0xfa0] sm:$0xff]
        %v4306 = vld [vmem:[%s7 + $0xfa8] sm:$0xff]
        %v4307 = vld [vmem:[%s7 + $0xfb0] sm:$0xff]
        %v4308 = vld [vmem:[%s7 + $0xfb8] sm:$0xff]
        %v4309 = vld [vmem:[%s7 + $0xfc0] sm:$0xff]
        %v4310 = vld [vmem:[%s7 + $0xfc8] sm:$0xff]
        %v4311 = vld [vmem:[%s7 + $0xfd0] sm:$0xff]
        %v4312 = vld [vmem:[%s7 + $0xfd8] sm:$0xff]
        %v4313 = vld [vmem:[%s7 + $0xfe0] sm:$0xff]
        %v4314 = vld [vmem:[%s7 + $0xfe8] sm:$0xff]
        %v4315 = vld [vmem:[%s7 + $0xff0] sm:$0xff]
        %v4316 = vld [vmem:[%s7 + $0xff8] sm:$0xff]
        %v4317 = vld [vmem:[%s7 + $0x1000] sm:$0xff]
        %v4318 = vld [vmem:[%s7 + $0x1008] sm:$0xff]
        %v4319 = vld [vmem:[%s7 + $0x1010] sm:$0xff]
        %v4320 = vld [vmem:[%s7 + $0x1018] sm:$0xff]
        %v4321 = vld [vmem:[%s7 + $0x1020] sm:$0xff]
        %v4322 = vld [vmem:[%s7 + $0x1028] sm:$0xff]
        %v4323 = vld [vmem:[%s7 + $0x1030] sm:$0xff]
        %v4324 = vld [vmem:[%s7 + $0x1038] sm:$0xff]
        %v4325 = vld [vmem:[%s7 + $0x1040] sm:$0xff]
        %v4326 = vld [vmem:[%s7 + $0x1048] sm:$0xff]
        %v4327 = vld [vmem:[%s7 + $0x1050] sm:$0xff]
        %v4328 = vld [vmem:[%s7 + $0x1058] sm:$0xff]
        %v4329 = vld [vmem:[%s7 + $0x1060] sm:$0xff]
        %v4330 = vld [vmem:[%s7 + $0x1068] sm:$0xff]
        %v4331 = vld [vmem:[%s7 + $0x1070] sm:$0xff]
        %v4332 = vld [vmem:[%s7 + $0x1078] sm:$0xff]
        %v4333 = vld [vmem:[%s7 + $0x1080] sm:$0xff]
        %v4334 = vld [vmem:[%s7 + $0x1088] sm:$0xff]
        %v4335 = vld [vmem:[%s7 + $0x1090] sm:$0xff]
        %v4336 = vld [vmem:[%s7 + $0x1098] sm:$0xff]
        %v4337 = vld [vmem:[%s7 + $0x10a0] sm:$0xff]
        %v4338 = vld [vmem:[%s7 + $0x10a8] sm:$0xff]
        %v4339 = vld [vmem:[%s7 + $0x10b0] sm:$0xff]
        %v4340 = vld [vmem:[%s7 + $0x10b8] sm:$0xff]
        %v4341 = vld [vmem:[%s7 + $0x10c0] sm:$0xff]
        %v4342 = vld [vmem:[%s7 + $0x10c8] sm:$0xff]
        %v4343 = vld [vmem:[%s7 + $0x10d0] sm:$0xff]
        %v4344 = vld [vmem:[%s7 + $0x10d8] sm:$0xff]
        %v4345 = vld [vmem:[%s7 + $0x10e0] sm:$0xff]
        %v4346 = vld [vmem:[%s7 + $0x10e8] sm:$0xff]
        %v4347 = vld [vmem:[%s7 + $0x10f0] sm:$0xff]
        %v4348 = vld [vmem:[%s7 + $0x10f8] sm:$0xff]
        %v4349 = vld [vmem:[%s7 + $0x1100] sm:$0xff]
        %v4350 = vld [vmem:[%s7 + $0x1108] sm:$0xff]
        %v4351 = vld [vmem:[%s7 + $0x1110] sm:$0xff]
        %v4352 = vld [vmem:[%s7 + $0x1118] sm:$0xff]
        %v4353 = vld [vmem:[%s7 + $0x1120] sm:$0xff]
        %v4354 = vld [vmem:[%s7 + $0x1128] sm:$0xff]
        %v4355 = vld [vmem:[%s7 + $0x1130] sm:$0xff]
        %v4356 = vld [vmem:[%s7 + $0x1138] sm:$0xff]
        %v4357 = vld [vmem:[%s7 + $0x1140] sm:$0xff]
        %v4358 = vld [vmem:[%s7 + $0x1148] sm:$0xff]
        %v4359 = vld [vmem:[%s7 + $0x1150] sm:$0xff]
        %v4360 = vld [vmem:[%s7 + $0x1158] sm:$0xff]
        %v4361 = vld [vmem:[%s7 + $0x1160] sm:$0xff]
        %v4362 = vld [vmem:[%s7 + $0x1168] sm:$0xff]
        %v4363 = vld [vmem:[%s7 + $0x1170] sm:$0xff]
        %v4364 = vld [vmem:[%s7 + $0x1178] sm:$0xff]
        %v4365 = vld [vmem:[%s7 + $0x1180] sm:$0xff]
        %v4366 = vld [vmem:[%s7 + $0x1188] sm:$0xff]
        %v4367 = vld [vmem:[%s7 + $0x1190] sm:$0xff]
        %v4368 = vld [vmem:[%s7 + $0x1198] sm:$0xff]
        %v4369 = vld [vmem:[%s7 + $0x11a0] sm:$0xff]
        %v4370 = vld [vmem:[%s7 + $0x11a8] sm:$0xff]
        %v4371 = vld [vmem:[%s7 + $0x11b0] sm:$0xff]
        %v4372 = vld [vmem:[%s7 + $0x11b8] sm:$0xff]
        %v4373 = vld [vmem:[%s7 + $0x11c0] sm:$0xff]
        %v4374 = vld [vmem:[%s7 + $0x11c8] sm:$0xff]
        %v4375 = vld [vmem:[%s7 + $0x11d0] sm:$0xff]
        %v4376 = vld [vmem:[%s7 + $0x11d8] sm:$0xff]
        %v4377 = vld [vmem:[%s7 + $0x11e0] sm:$0xff]
        %v4378 = vld [vmem:[%s7 + $0x11e8] sm:$0xff]
        %v4379 = vld [vmem:[%s7 + $0x11f0] sm:$0xff]
        %v4380 = vld [vmem:[%s7 + $0x11f8] sm:$0xff]
        %v4381 = vld [vmem:[%s7 + $0x1200] sm:$0xff]
        %v4382 = vld [vmem:[%s7 + $0x1208] sm:$0xff]
        %v4383 = vld [vmem:[%s7 + $0x1210] sm:$0xff]
        %v4384 = vld [vmem:[%s7 + $0x1218] sm:$0xff]
        %v4385 = vld [vmem:[%s7 + $0x1220] sm:$0xff]
        %v4386 = vld [vmem:[%s7 + $0x1228] sm:$0xff]
        %v4387 = vld [vmem:[%s7 + $0x1230] sm:$0xff]
        %v4388 = vld [vmem:[%s7 + $0x1238] sm:$0xff]
        %v4389 = vld [vmem:[%s7 + $0x1240] sm:$0xff]
        %v4390 = vld [vmem:[%s7 + $0x1248] sm:$0xff]
        %v4391 = vld [vmem:[%s7 + $0x1250] sm:$0xff]
        %v4392 = vld [vmem:[%s7 + $0x1258] sm:$0xff]
        %v4393 = vld [vmem:[%s7 + $0x1260] sm:$0xff]
        %v4394 = vld [vmem:[%s7 + $0x1268] sm:$0xff]
        %v4395 = vld [vmem:[%s7 + $0x1270] sm:$0xff]
        %v4396 = vld [vmem:[%s7 + $0x1278] sm:$0xff]
        %v4397 = vld [vmem:[%s7 + $0x1280] sm:$0xff]
        %v4398 = vld [vmem:[%s7 + $0x1288] sm:$0xff]
        %v4399 = vld [vmem:[%s7 + $0x1290] sm:$0xff]
        %v4400 = vld [vmem:[%s7 + $0x1298] sm:$0xff]
        %v4401 = vld [vmem:[%s7 + $0x12a0] sm:$0xff]
        %v4402 = vld [vmem:[%s7 + $0x12a8] sm:$0xff]
        %v4403 = vld [vmem:[%s7 + $0x12b0] sm:$0xff]
        %v4404 = vld [vmem:[%s7 + $0x12b8] sm:$0xff]
        %v4405 = vld [vmem:[%s7 + $0x12c0] sm:$0xff]
        %v4406 = vld [vmem:[%s7 + $0x12c8] sm:$0xff]
        %v4407 = vld [vmem:[%s7 + $0x12d0] sm:$0xff]
        %v4408 = vld [vmem:[%s7 + $0x12d8] sm:$0xff]
        %v4409 = vld [vmem:[%s7 + $0x12e0] sm:$0xff]
        %v4410 = vld [vmem:[%s7 + $0x12e8] sm:$0xff]
        %v4411 = vld [vmem:[%s7 + $0x12f0] sm:$0xff]
        %v4412 = vld [vmem:[%s7 + $0x12f8] sm:$0xff]
        %v4413 = vld [vmem:[%s7 + $0x1300] sm:$0xff]
        %v4414 = vld [vmem:[%s7 + $0x1308] sm:$0xff]
        %v4415 = vld [vmem:[%s7 + $0x1310] sm:$0xff]
        %v4416 = vld [vmem:[%s7 + $0x1318] sm:$0xff]
        %v4417 = vld [vmem:[%s7 + $0x1320] sm:$0xff]
        %v4418 = vld [vmem:[%s7 + $0x1328] sm:$0xff]
        %v4419 = vld [vmem:[%s7 + $0x1330] sm:$0xff]
        %v4420 = vld [vmem:[%s7 + $0x1338] sm:$0xff]
        %v4421 = vld [vmem:[%s7 + $0x1340] sm:$0xff]
        %v4422 = vld [vmem:[%s7 + $0x1348] sm:$0xff]
        %v4423 = vld [vmem:[%s7 + $0x1350] sm:$0xff]
        %v4424 = vld [vmem:[%s7 + $0x1358] sm:$0xff]
        %v4425 = vld [vmem:[%s7 + $0x1360] sm:$0xff]
        %v4426 = vld [vmem:[%s7 + $0x1368] sm:$0xff]
        %v4427 = vld [vmem:[%s7 + $0x1370] sm:$0xff]
        %v4428 = vld [vmem:[%s7 + $0x1378] sm:$0xff]
        %v4429 = vld [vmem:[%s7 + $0x1380] sm:$0xff]
        %v4430 = vld [vmem:[%s7 + $0x1388] sm:$0xff]
        %v4431 = vld [vmem:[%s7 + $0x1390] sm:$0xff]
        %v4432 = vld [vmem:[%s7 + $0x1398] sm:$0xff]
        %v4433 = vld [vmem:[%s7 + $0x13a0] sm:$0xff]
        %v4434 = vld [vmem:[%s7 + $0x13a8] sm:$0xff]
        %v4435 = vld [vmem:[%s7 + $0x13b0] sm:$0xff]
        %v4436 = vld [vmem:[%s7 + $0x13b8] sm:$0xff]
        %v4437 = vld [vmem:[%s7 + $0x13c0] sm:$0xff]
        %v4438 = vld [vmem:[%s7 + $0x13c8] sm:$0xff]
        %v4439 = vld [vmem:[%s7 + $0x13d0] sm:$0xff]
        %v4440 = vld [vmem:[%s7 + $0x13d8] sm:$0xff]
        %v4441 = vld [vmem:[%s7 + $0x13e0] sm:$0xff]
        %v4442 = vld [vmem:[%s7 + $0x13e8] sm:$0xff]
        %v4443 = vld [vmem:[%s7 + $0x13f0] sm:$0xff]
        %v4444 = vld [vmem:[%s7 + $0x13f8] sm:$0xff]
        %v4445 = vld [vmem:[%s7 + $0x1400] sm:$0xff]
        %v4446 = vld [vmem:[%s7 + $0x1408] sm:$0xff]
        %v4447 = vld [vmem:[%s7 + $0x1410] sm:$0xff]
        %v4448 = vld [vmem:[%s7 + $0x1418] sm:$0xff]
        %v4449 = vld [vmem:[%s7 + $0x1420] sm:$0xff]
        %v4450 = vld [vmem:[%s7 + $0x1428] sm:$0xff]
        %v4451 = vld [vmem:[%s7 + $0x1430] sm:$0xff]
        %v4452 = vld [vmem:[%s7 + $0x1438] sm:$0xff]
        %v4453 = vld [vmem:[%s7 + $0x1440] sm:$0xff]
        %v4454 = vld [vmem:[%s7 + $0x1448] sm:$0xff]
        %v4455 = vld [vmem:[%s7 + $0x1450] sm:$0xff]
        %v4456 = vld [vmem:[%s7 + $0x1458] sm:$0xff]
        %v4457 = vld [vmem:[%s7 + $0x1460] sm:$0xff]
        %v4458 = vld [vmem:[%s7 + $0x1468] sm:$0xff]
        %v4459 = vld [vmem:[%s7 + $0x1470] sm:$0xff]
        %v4460 = vld [vmem:[%s7 + $0x1478] sm:$0xff]
        %v4461 = vld [vmem:[%s7 + $0x1480] sm:$0xff]
        %v4462 = vld [vmem:[%s7 + $0x1488] sm:$0xff]
        %v4463 = vld [vmem:[%s7 + $0x1490] sm:$0xff]
        %v4464 = vld [vmem:[%s7 + $0x1498] sm:$0xff]
        %v4465 = vld [vmem:[%s7 + $0x14a0] sm:$0xff]
        %v4466 = vld [vmem:[%s7 + $0x14a8] sm:$0xff]
        %v4467 = vld [vmem:[%s7 + $0x14b0] sm:$0xff]
        %v4468 = vld [vmem:[%s7 + $0x14b8] sm:$0xff]
        %v4469 = vld [vmem:[%s7 + $0x14c0] sm:$0xff]
        %v4470 = vld [vmem:[%s7 + $0x14c8] sm:$0xff]
        %v4471 = vld [vmem:[%s7 + $0x14d0] sm:$0xff]
        %v4472 = vld [vmem:[%s7 + $0x14d8] sm:$0xff]
        %v4473 = vld [vmem:[%s7 + $0x14e0] sm:$0xff]
        %v4474 = vld [vmem:[%s7 + $0x14e8] sm:$0xff]
        %v4475 = vld [vmem:[%s7 + $0x14f0] sm:$0xff]
        %v4476 = vld [vmem:[%s7 + $0x14f8] sm:$0xff]
        %v4477 = vld [vmem:[%s7 + $0x1500] sm:$0xff]
        %v4478 = vld [vmem:[%s7 + $0x1508] sm:$0xff]
        %v4479 = vld [vmem:[%s7 + $0x1510] sm:$0xff]
        %v4480 = vld [vmem:[%s7 + $0x1518] sm:$0xff]
        %v4481 = vld [vmem:[%s7 + $0x1520] sm:$0xff]
        %v4482 = vld [vmem:[%s7 + $0x1528] sm:$0xff]
        %v4483 = vld [vmem:[%s7 + $0x1530] sm:$0xff]
        %v4484 = vld [vmem:[%s7 + $0x1538] sm:$0xff]
        %v4485 = vld [vmem:[%s7 + $0x1540] sm:$0xff]
        %v4486 = vld [vmem:[%s7 + $0x1548] sm:$0xff]
        %v4487 = vld [vmem:[%s7 + $0x1550] sm:$0xff]
        %v4488 = vld [vmem:[%s7 + $0x1558] sm:$0xff]
        %v4489 = vld [vmem:[%s7 + $0x1560] sm:$0xff]
        %v4490 = vld [vmem:[%s7 + $0x1568] sm:$0xff]
        %v4491 = vld [vmem:[%s7 + $0x1570] sm:$0xff]
        %v4492 = vld [vmem:[%s7 + $0x1578] sm:$0xff]
        %v4493 = vld [vmem:[%s7 + $0x1580] sm:$0xff]
        %v4494 = vld [vmem:[%s7 + $0x1588] sm:$0xff]
        %v4495 = vld [vmem:[%s7 + $0x1590] sm:$0xff]
        %v4496 = vld [vmem:[%s7 + $0x1598] sm:$0xff]
        %v4497 = vld [vmem:[%s7 + $0x15a0] sm:$0xff]
        %v4498 = vld [vmem:[%s7 + $0x15a8] sm:$0xff]
        %v4499 = vld [vmem:[%s7 + $0x15b0] sm:$0xff]
        %v4500 = vld [vmem:[%s7 + $0x15b8] sm:$0xff]
        %v4501 = vld [vmem:[%s7 + $0x15c0] sm:$0xff]
        %v4502 = vld [vmem:[%s7 + $0x15c8] sm:$0xff]
        %v4503 = vld [vmem:[%s7 + $0x15d0] sm:$0xff]
        %v4504 = vld [vmem:[%s7 + $0x15d8] sm:$0xff]
        %v4505 = vld [vmem:[%s7 + $0x15e0] sm:$0xff]
        %v4506 = vld [vmem:[%s7 + $0x15e8] sm:$0xff]
        %v4507 = vld [vmem:[%s7 + $0x15f0] sm:$0xff]
        %v4508 = vld [vmem:[%s7 + $0x15f8] sm:$0xff]
        %v4509 = vld [vmem:[%s7 + $0x1600] sm:$0xff]
        %v4510 = vld [vmem:[%s7 + $0x1608] sm:$0xff]
        %v4511 = vld [vmem:[%s7 + $0x1610] sm:$0xff]
        %v4512 = vld [vmem:[%s7 + $0x1618] sm:$0xff]
        %v4513 = vld [vmem:[%s7 + $0x1620] sm:$0xff]
        %v4514 = vld [vmem:[%s7 + $0x1628] sm:$0xff]
        %v4515 = vld [vmem:[%s7 + $0x1630] sm:$0xff]
        %v4516 = vld [vmem:[%s7 + $0x1638] sm:$0xff]
        %v4517 = vld [vmem:[%s7 + $0x1640] sm:$0xff]
        %v4518 = vld [vmem:[%s7 + $0x1648] sm:$0xff]
        %v4519 = vld [vmem:[%s7 + $0x1650] sm:$0xff]
        %v4520 = vld [vmem:[%s7 + $0x1658] sm:$0xff]
        %v4521 = vld [vmem:[%s7 + $0x1660] sm:$0xff]
        %v4522 = vld [vmem:[%s7 + $0x1668] sm:$0xff]
        %v4523 = vld [vmem:[%s7 + $0x1670] sm:$0xff]
        %v4524 = vld [vmem:[%s7 + $0x1678] sm:$0xff]
        %v4525 = vld [vmem:[%s7 + $0x1680] sm:$0xff]
        %v4526 = vld [vmem:[%s7 + $0x1688] sm:$0xff]
        %v4527 = vld [vmem:[%s7 + $0x1690] sm:$0xff]
        %v4528 = vld [vmem:[%s7 + $0x1698] sm:$0xff]
        %v4529 = vld [vmem:[%s7 + $0x16a0] sm:$0xff]
        %v4530 = vld [vmem:[%s7 + $0x16a8] sm:$0xff]
        %v4531 = vld [vmem:[%s7 + $0x16b0] sm:$0xff]
        %v4532 = vld [vmem:[%s7 + $0x16b8] sm:$0xff]
        %v4533 = vld [vmem:[%s7 + $0x16c0] sm:$0xff]
        %v4534 = vld [vmem:[%s7 + $0x16c8] sm:$0xff]
        %v4535 = vld [vmem:[%s7 + $0x16d0] sm:$0xff]
        %v4536 = vld [vmem:[%s7 + $0x16d8] sm:$0xff]
        %v4537 = vld [vmem:[%s7 + $0x16e0] sm:$0xff]
        %v4538 = vld [vmem:[%s7 + $0x16e8] sm:$0xff]
        %v4539 = vld [vmem:[%s7 + $0x16f0] sm:$0xff]
        %v4540 = vld [vmem:[%s7 + $0x16f8] sm:$0xff]
        %v4541 = vld [vmem:[%s7 + $0x1700] sm:$0xff]
        %v4542 = vld [vmem:[%s7 + $0x1708] sm:$0xff]
        %v4543 = vld [vmem:[%s7 + $0x1710] sm:$0xff]
        %v4544 = vld [vmem:[%s7 + $0x1718] sm:$0xff]
        %v4545 = vld [vmem:[%s7 + $0x1720] sm:$0xff]
        %v4546 = vld [vmem:[%s7 + $0x1728] sm:$0xff]
        %v4547 = vld [vmem:[%s7 + $0x1730] sm:$0xff]
        %v4548 = vld [vmem:[%s7 + $0x1738] sm:$0xff]
        %v4549 = vld [vmem:[%s7 + $0x1740] sm:$0xff]
        %v4550 = vld [vmem:[%s7 + $0x1748] sm:$0xff]
        %v4551 = vld [vmem:[%s7 + $0x1750] sm:$0xff]
        %v4552 = vld [vmem:[%s7 + $0x1758] sm:$0xff]
        %v4553 = vld [vmem:[%s7 + $0x1760] sm:$0xff]
        %v4554 = vld [vmem:[%s7 + $0x1768] sm:$0xff]
        %v4555 = vld [vmem:[%s7 + $0x1770] sm:$0xff]
        %v4556 = vld [vmem:[%s7 + $0x1778] sm:$0xff]
        %v4557 = vld [vmem:[%s7 + $0x1780] sm:$0xff]
        %v4558 = vld [vmem:[%s7 + $0x1788] sm:$0xff]
        %v4559 = vld [vmem:[%s7 + $0x1790] sm:$0xff]
        %v4560 = vld [vmem:[%s7 + $0x1798] sm:$0xff]
        %v4561 = vld [vmem:[%s7 + $0x17a0] sm:$0xff]
        %v4562 = vld [vmem:[%s7 + $0x17a8] sm:$0xff]
        %v4563 = vld [vmem:[%s7 + $0x17b0] sm:$0xff]
        %v4564 = vld [vmem:[%s7 + $0x17b8] sm:$0xff]
        %v4565 = vld [vmem:[%s7 + $0x17c0] sm:$0xff]
        %v4566 = vld [vmem:[%s7 + $0x17c8] sm:$0xff]
        %v4567 = vld [vmem:[%s7 + $0x17d0] sm:$0xff]
        %v4568 = vld [vmem:[%s7 + $0x17d8] sm:$0xff]
        %v4569 = vld [vmem:[%s7 + $0x17e0] sm:$0xff]
        %v4570 = vld [vmem:[%s7 + $0x17e8] sm:$0xff]
        %v4571 = vld [vmem:[%s7 + $0x17f0] sm:$0xff]
        %v4572 = vld [vmem:[%s7 + $0x17f8] sm:$0xff]
        %v4573 = vld [vmem:[%s7 + $0x1800] sm:$0xff]
        %v4574 = vld [vmem:[%s7 + $0x1808] sm:$0xff]
        %v4575 = vld [vmem:[%s7 + $0x1810] sm:$0xff]
        %v4576 = vld [vmem:[%s7 + $0x1818] sm:$0xff]
        %v4577 = vld [vmem:[%s7 + $0x1820] sm:$0xff]
        %v4578 = vld [vmem:[%s7 + $0x1828] sm:$0xff]
        %v4579 = vld [vmem:[%s7 + $0x1830] sm:$0xff]
        %v4580 = vld [vmem:[%s7 + $0x1838] sm:$0xff]
        %v4581 = vld [vmem:[%s7 + $0x1840] sm:$0xff]
        %v4582 = vld [vmem:[%s7 + $0x1848] sm:$0xff]
        %v4583 = vld [vmem:[%s7 + $0x1850] sm:$0xff]
        %v4584 = vld [vmem:[%s7 + $0x1858] sm:$0xff]
        %v4585 = vld [vmem:[%s7 + $0x1860] sm:$0xff]
        %v4586 = vld [vmem:[%s7 + $0x1868] sm:$0xff]
        %v4587 = vld [vmem:[%s7 + $0x1870] sm:$0xff]
        %v4588 = vld [vmem:[%s7 + $0x1878] sm:$0xff]
        %v4589 = vld [vmem:[%s8] sm:$0xf]
        %v5374 = vunpack.c.l.b16 %v3805
        %v5375 = vunpack.c.h.b16 %v3805
        %v5376 = vunpack.c.l.b16 %v3806
        %v5377 = vunpack.c.h.b16 %v3806
        %v5378 = vunpack.c.l.b16 %v3807
        %v5379 = vunpack.c.h.b16 %v3807
        %v5380 = vunpack.c.l.b16 %v3808
        %v5381 = vunpack.c.h.b16 %v3808
        %v5382 = vunpack.c.l.b16 %v3809
        %v5383 = vunpack.c.h.b16 %v3809
        %v5384 = vunpack.c.l.b16 %v3810
        %v5385 = vunpack.c.h.b16 %v3810
        %v5386 = vunpack.c.l.b16 %v3811
        %v5387 = vunpack.c.h.b16 %v3811
        %v5388 = vunpack.c.l.b16 %v3812
        %v5389 = vunpack.c.h.b16 %v3812
        %v5390 = vunpack.c.l.b16 %v3813
        %v5391 = vunpack.c.h.b16 %v3813
        %v5392 = vunpack.c.l.b16 %v3814
        %v5393 = vunpack.c.h.b16 %v3814
        %v5394 = vunpack.c.l.b16 %v3815
        %v5395 = vunpack.c.h.b16 %v3815
        %v5396 = vunpack.c.l.b16 %v3816
        %v5397 = vunpack.c.h.b16 %v3816
        %v5398 = vunpack.c.l.b16 %v3817
        %v5399 = vunpack.c.h.b16 %v3817
        %v5400 = vunpack.c.l.b16 %v3818
        %v5401 = vunpack.c.h.b16 %v3818
        %v5402 = vunpack.c.l.b16 %v3819
        %v5403 = vunpack.c.h.b16 %v3819
        %v5404 = vunpack.c.l.b16 %v3820
        %v5405 = vunpack.c.h.b16 %v3820
        %v5406 = vunpack.c.l.b16 %v3821
        %v5407 = vunpack.c.h.b16 %v3821
        %v5408 = vunpack.c.l.b16 %v3822
        %v5409 = vunpack.c.h.b16 %v3822
        %v5410 = vunpack.c.l.b16 %v3823
        %v5411 = vunpack.c.h.b16 %v3823
        %v5412 = vunpack.c.l.b16 %v3824
        %v5413 = vunpack.c.h.b16 %v3824
        %v5414 = vunpack.c.l.b16 %v3825
        %v5415 = vunpack.c.h.b16 %v3825
        %v5416 = vunpack.c.l.b16 %v3826
        %v5417 = vunpack.c.h.b16 %v3826
        %v5418 = vunpack.c.l.b16 %v3827
        %v5419 = vunpack.c.h.b16 %v3827
        %v5420 = vunpack.c.l.b16 %v3828
        %v5421 = vunpack.c.h.b16 %v3828
        %v5422 = vunpack.c.l.b16 %v3829
        %v5423 = vunpack.c.h.b16 %v3829
        %v5424 = vunpack.c.l.b16 %v3830
        %v5425 = vunpack.c.h.b16 %v3830
        %v5426 = vunpack.c.l.b16 %v3831
        %v5427 = vunpack.c.h.b16 %v3831
        %v5428 = vunpack.c.l.b16 %v3832
        %v5429 = vunpack.c.h.b16 %v3832
        %v5430 = vunpack.c.l.b16 %v3833
        %v5431 = vunpack.c.h.b16 %v3833
        %v5432 = vunpack.c.l.b16 %v3834
        %v5433 = vunpack.c.h.b16 %v3834
        %v5434 = vunpack.c.l.b16 %v3835
        %v5435 = vunpack.c.h.b16 %v3835
        %v5436 = vunpack.c.l.b16 %v3836
        %v5437 = vunpack.c.h.b16 %v3836
        %v5438 = vunpack.c.l.b16 %v3837
        %v5439 = vunpack.c.h.b16 %v3837
        %v5440 = vunpack.c.l.b16 %v3838
        %v5441 = vunpack.c.h.b16 %v3838
        %v5442 = vunpack.c.l.b16 %v3839
        %v5443 = vunpack.c.h.b16 %v3839
        %v5444 = vunpack.c.l.b16 %v3840
        %v5445 = vunpack.c.h.b16 %v3840
        %v5446 = vunpack.c.l.b16 %v3841
        %v5447 = vunpack.c.h.b16 %v3841
        %v5448 = vunpack.c.l.b16 %v3842
        %v5449 = vunpack.c.h.b16 %v3842
        %v5450 = vunpack.c.l.b16 %v3843
        %v5451 = vunpack.c.h.b16 %v3843
        %v5452 = vunpack.c.l.b16 %v3844
        %v5453 = vunpack.c.h.b16 %v3844
        %v5454 = vunpack.c.l.b16 %v3845
        %v5455 = vunpack.c.h.b16 %v3845
        %v5456 = vunpack.c.l.b16 %v3846
        %v5457 = vunpack.c.h.b16 %v3846
        %v5458 = vunpack.c.l.b16 %v3847
        %v5459 = vunpack.c.h.b16 %v3847
        %v5460 = vunpack.c.l.b16 %v3848
        %v5461 = vunpack.c.h.b16 %v3848
        %v5462 = vunpack.c.l.b16 %v3849
        %v5463 = vunpack.c.h.b16 %v3849
        %v5464 = vunpack.c.l.b16 %v3850
        %v5465 = vunpack.c.h.b16 %v3850
        %v5466 = vunpack.c.l.b16 %v3851
        %v5467 = vunpack.c.h.b16 %v3851
        %v5468 = vunpack.c.l.b16 %v3852
        %v5469 = vunpack.c.h.b16 %v3852
        %v5470 = vunpack.c.l.b16 %v3853
        %v5471 = vunpack.c.h.b16 %v3853
        %v5472 = vunpack.c.l.b16 %v3854
        %v5473 = vunpack.c.h.b16 %v3854
        %v5474 = vunpack.c.l.b16 %v3855
        %v5475 = vunpack.c.h.b16 %v3855
        %v5476 = vunpack.c.l.b16 %v3856
        %v5477 = vunpack.c.h.b16 %v3856
        %v5478 = vunpack.c.l.b16 %v3857
        %v5479 = vunpack.c.h.b16 %v3857
        %v5480 = vunpack.c.l.b16 %v3858
        %v5481 = vunpack.c.h.b16 %v3858
        %v5482 = vunpack.c.l.b16 %v3859
        %v5483 = vunpack.c.h.b16 %v3859
        %v5484 = vunpack.c.l.b16 %v3860
        %v5485 = vunpack.c.h.b16 %v3860
        %v5486 = vunpack.c.l.b16 %v3861
        %v5487 = vunpack.c.h.b16 %v3861
        %v5488 = vunpack.c.l.b16 %v3862
        %v5489 = vunpack.c.h.b16 %v3862
        %v5490 = vunpack.c.l.b16 %v3863
        %v5491 = vunpack.c.h.b16 %v3863
        %v5492 = vunpack.c.l.b16 %v3864
        %v5493 = vunpack.c.h.b16 %v3864
        %v5494 = vunpack.c.l.b16 %v3865
        %v5495 = vunpack.c.h.b16 %v3865
        %v5496 = vunpack.c.l.b16 %v3866
        %v5497 = vunpack.c.h.b16 %v3866
        %v5498 = vunpack.c.l.b16 %v3867
        %v5499 = vunpack.c.h.b16 %v3867
        %v5500 = vunpack.c.l.b16 %v3868
        %v5501 = vunpack.c.h.b16 %v3868
        %v5502 = vunpack.c.l.b16 %v3869
        %v5503 = vunpack.c.h.b16 %v3869
        %v5504 = vunpack.c.l.b16 %v3870
        %v5505 = vunpack.c.h.b16 %v3870
        %v5506 = vunpack.c.l.b16 %v3871
        %v5507 = vunpack.c.h.b16 %v3871
        %v5508 = vunpack.c.l.b16 %v3872
        %v5509 = vunpack.c.h.b16 %v3872
        %v5510 = vunpack.c.l.b16 %v3873
        %v5511 = vunpack.c.h.b16 %v3873
        %v5512 = vunpack.c.l.b16 %v3874
        %v5513 = vunpack.c.h.b16 %v3874
        %v5514 = vunpack.c.l.b16 %v3875
        %v5515 = vunpack.c.h.b16 %v3875
        %v5516 = vunpack.c.l.b16 %v3876
        %v5517 = vunpack.c.h.b16 %v3876
        %v5518 = vunpack.c.l.b16 %v3877
        %v5519 = vunpack.c.h.b16 %v3877
        %v5520 = vunpack.c.l.b16 %v3878
        %v5521 = vunpack.c.h.b16 %v3878
        %v5522 = vunpack.c.l.b16 %v3879
        %v5523 = vunpack.c.h.b16 %v3879
        %v5524 = vunpack.c.l.b16 %v3880
        %v5525 = vunpack.c.h.b16 %v3880
        %v5526 = vunpack.c.l.b16 %v3881
        %v5527 = vunpack.c.h.b16 %v3881
        %v5528 = vunpack.c.l.b16 %v3882
        %v5529 = vunpack.c.h.b16 %v3882
        %v5530 = vunpack.c.l.b16 %v3883
        %v5531 = vunpack.c.h.b16 %v3883
        %v5532 = vunpack.c.l.b16 %v3884
        %v5533 = vunpack.c.h.b16 %v3884
        %v5534 = vunpack.c.l.b16 %v3885
        %v5535 = vunpack.c.h.b16 %v3885
        %v5536 = vunpack.c.l.b16 %v3886
        %v5537 = vunpack.c.h.b16 %v3886
        %v5538 = vunpack.c.l.b16 %v3887
        %v5539 = vunpack.c.h.b16 %v3887
        %v5540 = vunpack.c.l.b16 %v3888
        %v5541 = vunpack.c.h.b16 %v3888
        %v5542 = vunpack.c.l.b16 %v3889
        %v5543 = vunpack.c.h.b16 %v3889
        %v5544 = vunpack.c.l.b16 %v3890
        %v5545 = vunpack.c.h.b16 %v3890
        %v5546 = vunpack.c.l.b16 %v3891
        %v5547 = vunpack.c.h.b16 %v3891
        %v5548 = vunpack.c.l.b16 %v3892
        %v5549 = vunpack.c.h.b16 %v3892
        %v5550 = vunpack.c.l.b16 %v3893
        %v5551 = vunpack.c.h.b16 %v3893
        %v5552 = vunpack.c.l.b16 %v3894
        %v5553 = vunpack.c.h.b16 %v3894
        %v5554 = vunpack.c.l.b16 %v3895
        %v5555 = vunpack.c.h.b16 %v3895
        %v5556 = vunpack.c.l.b16 %v3896
        %v5557 = vunpack.c.h.b16 %v3896
        %v5558 = vunpack.c.l.b16 %v3897
        %v5559 = vunpack.c.h.b16 %v3897
        %v5560 = vunpack.c.l.b16 %v3898
        %v5561 = vunpack.c.h.b16 %v3898
        %v5562 = vunpack.c.l.b16 %v3899
        %v5563 = vunpack.c.h.b16 %v3899
        %v5564 = vunpack.c.l.b16 %v3900
        %v5565 = vunpack.c.h.b16 %v3900
        %v5566 = vunpack.c.l.b16 %v3901
        %v5567 = vunpack.c.h.b16 %v3901
        %v5568 = vunpack.c.l.b16 %v3902
        %v5569 = vunpack.c.h.b16 %v3902
        %v5570 = vunpack.c.l.b16 %v3903
        %v5571 = vunpack.c.h.b16 %v3903
        %v5572 = vunpack.c.l.b16 %v3904
        %v5573 = vunpack.c.h.b16 %v3904
        %v5574 = vunpack.c.l.b16 %v3905
        %v5575 = vunpack.c.h.b16 %v3905
        %v5576 = vunpack.c.l.b16 %v3906
        %v5577 = vunpack.c.h.b16 %v3906
        %v5578 = vunpack.c.l.b16 %v3907
        %v5579 = vunpack.c.h.b16 %v3907
        %v5580 = vunpack.c.l.b16 %v3908
        %v5581 = vunpack.c.h.b16 %v3908
        %v5582 = vunpack.c.l.b16 %v3909
        %v5583 = vunpack.c.h.b16 %v3909
        %v5584 = vunpack.c.l.b16 %v3910
        %v5585 = vunpack.c.h.b16 %v3910
        %v5586 = vunpack.c.l.b16 %v3911
        %v5587 = vunpack.c.h.b16 %v3911
        %v5588 = vunpack.c.l.b16 %v3912
        %v5589 = vunpack.c.h.b16 %v3912
        %v5590 = vunpack.c.l.b16 %v3913
        %v5591 = vunpack.c.h.b16 %v3913
        %v5592 = vunpack.c.l.b16 %v3914
        %v5593 = vunpack.c.h.b16 %v3914
        %v5594 = vunpack.c.l.b16 %v3915
        %v5595 = vunpack.c.h.b16 %v3915
        %v5596 = vunpack.c.l.b16 %v3916
        %v5597 = vunpack.c.h.b16 %v3916
        %v5598 = vunpack.c.l.b16 %v3917
        %v5599 = vunpack.c.h.b16 %v3917
        %v5600 = vunpack.c.l.b16 %v3918
        %v5601 = vunpack.c.h.b16 %v3918
        %v5602 = vunpack.c.l.b16 %v3919
        %v5603 = vunpack.c.h.b16 %v3919
        %v5604 = vunpack.c.l.b16 %v3920
        %v5605 = vunpack.c.h.b16 %v3920
        %v5606 = vunpack.c.l.b16 %v3921
        %v5607 = vunpack.c.h.b16 %v3921
        %v5608 = vunpack.c.l.b16 %v3922
        %v5609 = vunpack.c.h.b16 %v3922
        %v5610 = vunpack.c.l.b16 %v3923
        %v5611 = vunpack.c.h.b16 %v3923
        %v5612 = vunpack.c.l.b16 %v3924
        %v5613 = vunpack.c.h.b16 %v3924
        %v5614 = vunpack.c.l.b16 %v3925
        %v5615 = vunpack.c.h.b16 %v3925
        %v5616 = vunpack.c.l.b16 %v3926
        %v5617 = vunpack.c.h.b16 %v3926
        %v5618 = vunpack.c.l.b16 %v3927
        %v5619 = vunpack.c.h.b16 %v3927
        %v5620 = vunpack.c.l.b16 %v3928
        %v5621 = vunpack.c.h.b16 %v3928
        %v5622 = vunpack.c.l.b16 %v3929
        %v5623 = vunpack.c.h.b16 %v3929
        %v5624 = vunpack.c.l.b16 %v3930
        %v5625 = vunpack.c.h.b16 %v3930
        %v5626 = vunpack.c.l.b16 %v3931
        %v5627 = vunpack.c.h.b16 %v3931
        %v5628 = vunpack.c.l.b16 %v3932
        %v5629 = vunpack.c.h.b16 %v3932
        %v5630 = vunpack.c.l.b16 %v3933
        %v5631 = vunpack.c.h.b16 %v3933
        %v5632 = vunpack.c.l.b16 %v3934
        %v5633 = vunpack.c.h.b16 %v3934
        %v5634 = vunpack.c.l.b16 %v3935
        %v5635 = vunpack.c.h.b16 %v3935
        %v5636 = vunpack.c.l.b16 %v3936
        %v5637 = vunpack.c.h.b16 %v3936
        %v5638 = vunpack.c.l.b16 %v3937
        %v5639 = vunpack.c.h.b16 %v3937
        %v5640 = vunpack.c.l.b16 %v3938
        %v5641 = vunpack.c.h.b16 %v3938
        %v5642 = vunpack.c.l.b16 %v3939
        %v5643 = vunpack.c.h.b16 %v3939
        %v5644 = vunpack.c.l.b16 %v3940
        %v5645 = vunpack.c.h.b16 %v3940
        %v5646 = vunpack.c.l.b16 %v3941
        %v5647 = vunpack.c.h.b16 %v3941
        %v5648 = vunpack.c.l.b16 %v3942
        %v5649 = vunpack.c.h.b16 %v3942
        %v5650 = vunpack.c.l.b16 %v3943
        %v5651 = vunpack.c.h.b16 %v3943
        %v5652 = vunpack.c.l.b16 %v3944
        %v5653 = vunpack.c.h.b16 %v3944
        %v5654 = vunpack.c.l.b16 %v3945
        %v5655 = vunpack.c.h.b16 %v3945
        %v5656 = vunpack.c.l.b16 %v3946
        %v5657 = vunpack.c.h.b16 %v3946
        %v5658 = vunpack.c.l.b16 %v3947
        %v5659 = vunpack.c.h.b16 %v3947
        %v5660 = vunpack.c.l.b16 %v3948
        %v5661 = vunpack.c.h.b16 %v3948
        %v5662 = vunpack.c.l.b16 %v3949
        %v5663 = vunpack.c.h.b16 %v3949
        %v5664 = vunpack.c.l.b16 %v3950
        %v5665 = vunpack.c.h.b16 %v3950
        %v5666 = vunpack.c.l.b16 %v3951
        %v5667 = vunpack.c.h.b16 %v3951
        %v5668 = vunpack.c.l.b16 %v3952
        %v5669 = vunpack.c.h.b16 %v3952
        %v5670 = vunpack.c.l.b16 %v3953
        %v5671 = vunpack.c.h.b16 %v3953
        %v5672 = vunpack.c.l.b16 %v3954
        %v5673 = vunpack.c.h.b16 %v3954
        %v5674 = vunpack.c.l.b16 %v3955
        %v5675 = vunpack.c.h.b16 %v3955
        %v5676 = vunpack.c.l.b16 %v3956
        %v5677 = vunpack.c.h.b16 %v3956
        %v5678 = vunpack.c.l.b16 %v3957
        %v5679 = vunpack.c.h.b16 %v3957
        %v5680 = vunpack.c.l.b16 %v3958
        %v5681 = vunpack.c.h.b16 %v3958
        %v5682 = vunpack.c.l.b16 %v3959
        %v5683 = vunpack.c.h.b16 %v3959
        %v5684 = vunpack.c.l.b16 %v3960
        %v5685 = vunpack.c.h.b16 %v3960
        %v5686 = vunpack.c.l.b16 %v3961
        %v5687 = vunpack.c.h.b16 %v3961
        %v5688 = vunpack.c.l.b16 %v3962
        %v5689 = vunpack.c.h.b16 %v3962
        %v5690 = vunpack.c.l.b16 %v3963
        %v5691 = vunpack.c.h.b16 %v3963
        %v5692 = vunpack.c.l.b16 %v3964
        %v5693 = vunpack.c.h.b16 %v3964
        %v5694 = vunpack.c.l.b16 %v3965
        %v5695 = vunpack.c.h.b16 %v3965
        %v5696 = vunpack.c.l.b16 %v3966
        %v5697 = vunpack.c.h.b16 %v3966
        %v5698 = vunpack.c.l.b16 %v3967
        %v5699 = vunpack.c.h.b16 %v3967
        %v5700 = vunpack.c.l.b16 %v3968
        %v5701 = vunpack.c.h.b16 %v3968
        %v5702 = vunpack.c.l.b16 %v3969
        %v5703 = vunpack.c.h.b16 %v3969
        %v5704 = vunpack.c.l.b16 %v3970
        %v5705 = vunpack.c.h.b16 %v3970
        %v5706 = vunpack.c.l.b16 %v3971
        %v5707 = vunpack.c.h.b16 %v3971
        %v5708 = vunpack.c.l.b16 %v3972
        %v5709 = vunpack.c.h.b16 %v3972
        %v5710 = vunpack.c.l.b16 %v3973
        %v5711 = vunpack.c.h.b16 %v3973
        %v5712 = vunpack.c.l.b16 %v3974
        %v5713 = vunpack.c.h.b16 %v3974
        %v5714 = vunpack.c.l.b16 %v3975
        %v5715 = vunpack.c.h.b16 %v3975
        %v5716 = vunpack.c.l.b16 %v3976
        %v5717 = vunpack.c.h.b16 %v3976
        %v5718 = vunpack.c.l.b16 %v3977
        %v5719 = vunpack.c.h.b16 %v3977
        %v5720 = vunpack.c.l.b16 %v3978
        %v5721 = vunpack.c.h.b16 %v3978
        %v5722 = vunpack.c.l.b16 %v3979
        %v5723 = vunpack.c.h.b16 %v3979
        %v5724 = vunpack.c.l.b16 %v3980
        %v5725 = vunpack.c.h.b16 %v3980
        %v5726 = vunpack.c.l.b16 %v3981
        %v5727 = vunpack.c.h.b16 %v3981
        %v5728 = vunpack.c.l.b16 %v3982
        %v5729 = vunpack.c.h.b16 %v3982
        %v5730 = vunpack.c.l.b16 %v3983
        %v5731 = vunpack.c.h.b16 %v3983
        %v5732 = vunpack.c.l.b16 %v3984
        %v5733 = vunpack.c.h.b16 %v3984
        %v5734 = vunpack.c.l.b16 %v3985
        %v5735 = vunpack.c.h.b16 %v3985
        %v5736 = vunpack.c.l.b16 %v3986
        %v5737 = vunpack.c.h.b16 %v3986
        %v5738 = vunpack.c.l.b16 %v3987
        %v5739 = vunpack.c.h.b16 %v3987
        %v5740 = vunpack.c.l.b16 %v3988
        %v5741 = vunpack.c.h.b16 %v3988
        %v5742 = vunpack.c.l.b16 %v3989
        %v5743 = vunpack.c.h.b16 %v3989
        %v5744 = vunpack.c.l.b16 %v3990
        %v5745 = vunpack.c.h.b16 %v3990
        %v5746 = vunpack.c.l.b16 %v3991
        %v5747 = vunpack.c.h.b16 %v3991
        %v5748 = vunpack.c.l.b16 %v3992
        %v5749 = vunpack.c.h.b16 %v3992
        %v5750 = vunpack.c.l.b16 %v3993
        %v5751 = vunpack.c.h.b16 %v3993
        %v5752 = vunpack.c.l.b16 %v3994
        %v5753 = vunpack.c.h.b16 %v3994
        %v5754 = vunpack.c.l.b16 %v3995
        %v5755 = vunpack.c.h.b16 %v3995
        %v5756 = vunpack.c.l.b16 %v3996
        %v5757 = vunpack.c.h.b16 %v3996
        %v5758 = vunpack.c.l.b16 %v3997
        %v5759 = vunpack.c.h.b16 %v3997
        %v5760 = vunpack.c.l.b16 %v3998
        %v5761 = vunpack.c.h.b16 %v3998
        %v5762 = vunpack.c.l.b16 %v3999
        %v5763 = vunpack.c.h.b16 %v3999
        %v5764 = vunpack.c.l.b16 %v4000
        %v5765 = vunpack.c.h.b16 %v4000
        %v5766 = vunpack.c.l.b16 %v4001
        %v5767 = vunpack.c.h.b16 %v4001
        %v5768 = vunpack.c.l.b16 %v4002
        %v5769 = vunpack.c.h.b16 %v4002
        %v5770 = vunpack.c.l.b16 %v4003
        %v5771 = vunpack.c.h.b16 %v4003
        %v5772 = vunpack.c.l.b16 %v4004
        %v5773 = vunpack.c.h.b16 %v4004
        %v5774 = vunpack.c.l.b16 %v4005
        %v5775 = vunpack.c.h.b16 %v4005
        %v5776 = vunpack.c.l.b16 %v4006
        %v5777 = vunpack.c.h.b16 %v4006
        %v5778 = vunpack.c.l.b16 %v4007
        %v5779 = vunpack.c.h.b16 %v4007
        %v5780 = vunpack.c.l.b16 %v4008
        %v5781 = vunpack.c.h.b16 %v4008
        %v5782 = vunpack.c.l.b16 %v4009
        %v5783 = vunpack.c.h.b16 %v4009
        %v5784 = vunpack.c.l.b16 %v4010
        %v5785 = vunpack.c.h.b16 %v4010
        %v5786 = vunpack.c.l.b16 %v4011
        %v5787 = vunpack.c.h.b16 %v4011
        %v5788 = vunpack.c.l.b16 %v4012
        %v5789 = vunpack.c.h.b16 %v4012
        %v5790 = vunpack.c.l.b16 %v4013
        %v5791 = vunpack.c.h.b16 %v4013
        %v5792 = vunpack.c.l.b16 %v4014
        %v5793 = vunpack.c.h.b16 %v4014
        %v5794 = vunpack.c.l.b16 %v4015
        %v5795 = vunpack.c.h.b16 %v4015
        %v5796 = vunpack.c.l.b16 %v4016
        %v5797 = vunpack.c.h.b16 %v4016
        %v5798 = vunpack.c.l.b16 %v4017
        %v5799 = vunpack.c.h.b16 %v4017
        %v5800 = vunpack.c.l.b16 %v4018
        %v5801 = vunpack.c.h.b16 %v4018
        %v5802 = vunpack.c.l.b16 %v4019
        %v5803 = vunpack.c.h.b16 %v4019
        %v5804 = vunpack.c.l.b16 %v4020
        %v5805 = vunpack.c.h.b16 %v4020
        %v5806 = vunpack.c.l.b16 %v4021
        %v5807 = vunpack.c.h.b16 %v4021
        %v5808 = vunpack.c.l.b16 %v4022
        %v5809 = vunpack.c.h.b16 %v4022
        %v5810 = vunpack.c.l.b16 %v4023
        %v5811 = vunpack.c.h.b16 %v4023
        %v5812 = vunpack.c.l.b16 %v4024
        %v5813 = vunpack.c.h.b16 %v4024
        %v5814 = vunpack.c.l.b16 %v4025
        %v5815 = vunpack.c.h.b16 %v4025
        %v5816 = vunpack.c.l.b16 %v4026
        %v5817 = vunpack.c.h.b16 %v4026
        %v5818 = vunpack.c.l.b16 %v4027
        %v5819 = vunpack.c.h.b16 %v4027
        %v5820 = vunpack.c.l.b16 %v4028
        %v5821 = vunpack.c.h.b16 %v4028
        %v5822 = vunpack.c.l.b16 %v4029
        %v5823 = vunpack.c.h.b16 %v4029
        %v5824 = vunpack.c.l.b16 %v4030
        %v5825 = vunpack.c.h.b16 %v4030
        %v5826 = vunpack.c.l.b16 %v4031
        %v5827 = vunpack.c.h.b16 %v4031
        %v5828 = vunpack.c.l.b16 %v4032
        %v5829 = vunpack.c.h.b16 %v4032
        %v5830 = vunpack.c.l.b16 %v4033
        %v5831 = vunpack.c.h.b16 %v4033
        %v5832 = vunpack.c.l.b16 %v4034
        %v5833 = vunpack.c.h.b16 %v4034
        %v5834 = vunpack.c.l.b16 %v4035
        %v5835 = vunpack.c.h.b16 %v4035
        %v5836 = vunpack.c.l.b16 %v4036
        %v5837 = vunpack.c.h.b16 %v4036
        %v5838 = vunpack.c.l.b16 %v4037
        %v5839 = vunpack.c.h.b16 %v4037
        %v5840 = vunpack.c.l.b16 %v4038
        %v5841 = vunpack.c.h.b16 %v4038
        %v5842 = vunpack.c.l.b16 %v4039
        %v5843 = vunpack.c.h.b16 %v4039
        %v5844 = vunpack.c.l.b16 %v4040
        %v5845 = vunpack.c.h.b16 %v4040
        %v5846 = vunpack.c.l.b16 %v4041
        %v5847 = vunpack.c.h.b16 %v4041
        %v5848 = vunpack.c.l.b16 %v4042
        %v5849 = vunpack.c.h.b16 %v4042
        %v5850 = vunpack.c.l.b16 %v4043
        %v5851 = vunpack.c.h.b16 %v4043
        %v5852 = vunpack.c.l.b16 %v4044
        %v5853 = vunpack.c.h.b16 %v4044
        %v5854 = vunpack.c.l.b16 %v4045
        %v5855 = vunpack.c.h.b16 %v4045
        %v5856 = vunpack.c.l.b16 %v4046
        %v5857 = vunpack.c.h.b16 %v4046
        %v5858 = vunpack.c.l.b16 %v4047
        %v5859 = vunpack.c.h.b16 %v4047
        %v5860 = vunpack.c.l.b16 %v4048
        %v5861 = vunpack.c.h.b16 %v4048
        %v5862 = vunpack.c.l.b16 %v4049
        %v5863 = vunpack.c.h.b16 %v4049
        %v5864 = vunpack.c.l.b16 %v4050
        %v5865 = vunpack.c.h.b16 %v4050
        %v5866 = vunpack.c.l.b16 %v4051
        %v5867 = vunpack.c.h.b16 %v4051
        %v5868 = vunpack.c.l.b16 %v4052
        %v5869 = vunpack.c.h.b16 %v4052
        %v5870 = vunpack.c.l.b16 %v4053
        %v5871 = vunpack.c.h.b16 %v4053
        %v5872 = vunpack.c.l.b16 %v4054
        %v5873 = vunpack.c.h.b16 %v4054
        %v5874 = vunpack.c.l.b16 %v4055
        %v5875 = vunpack.c.h.b16 %v4055
        %v5876 = vunpack.c.l.b16 %v4056
        %v5877 = vunpack.c.h.b16 %v4056
        %v5878 = vunpack.c.l.b16 %v4057
        %v5879 = vunpack.c.h.b16 %v4057
        %v5880 = vunpack.c.l.b16 %v4058
        %v5881 = vunpack.c.h.b16 %v4058
        %v5882 = vunpack.c.l.b16 %v4059
        %v5883 = vunpack.c.h.b16 %v4059
        %v5884 = vunpack.c.l.b16 %v4060
        %v5885 = vunpack.c.h.b16 %v4060
        %v5886 = vunpack.c.l.b16 %v4061
        %v5887 = vunpack.c.h.b16 %v4061
        %v5888 = vunpack.c.l.b16 %v4062
        %v5889 = vunpack.c.h.b16 %v4062
        %v5890 = vunpack.c.l.b16 %v4063
        %v5891 = vunpack.c.h.b16 %v4063
        %v5892 = vunpack.c.l.b16 %v4064
        %v5893 = vunpack.c.h.b16 %v4064
        %v5894 = vunpack.c.l.b16 %v4065
        %v5895 = vunpack.c.h.b16 %v4065
        %v5896 = vunpack.c.l.b16 %v4066
        %v5897 = vunpack.c.h.b16 %v4066
        %v5898 = vunpack.c.l.b16 %v4067
        %v5899 = vunpack.c.h.b16 %v4067
        %v5900 = vunpack.c.l.b16 %v4068
        %v5901 = vunpack.c.h.b16 %v4068
        %v5902 = vunpack.c.l.b16 %v4069
        %v5903 = vunpack.c.h.b16 %v4069
        %v5904 = vunpack.c.l.b16 %v4070
        %v5905 = vunpack.c.h.b16 %v4070
        %v5906 = vunpack.c.l.b16 %v4071
        %v5907 = vunpack.c.h.b16 %v4071
        %v5908 = vunpack.c.l.b16 %v4072
        %v5909 = vunpack.c.h.b16 %v4072
        %v5910 = vunpack.c.l.b16 %v4073
        %v5911 = vunpack.c.h.b16 %v4073
        %v5912 = vunpack.c.l.b16 %v4074
        %v5913 = vunpack.c.h.b16 %v4074
        %v5914 = vunpack.c.l.b16 %v4075
        %v5915 = vunpack.c.h.b16 %v4075
        %v5916 = vunpack.c.l.b16 %v4076
        %v5917 = vunpack.c.h.b16 %v4076
        %v5918 = vunpack.c.l.b16 %v4077
        %v5919 = vunpack.c.h.b16 %v4077
        %v5920 = vunpack.c.l.b16 %v4078
        %v5921 = vunpack.c.h.b16 %v4078
        %v5922 = vunpack.c.l.b16 %v4079
        %v5923 = vunpack.c.h.b16 %v4079
        %v5924 = vunpack.c.l.b16 %v4080
        %v5925 = vunpack.c.h.b16 %v4080
        %v5926 = vunpack.c.l.b16 %v4081
        %v5927 = vunpack.c.h.b16 %v4081
        %v5928 = vunpack.c.l.b16 %v4082
        %v5929 = vunpack.c.h.b16 %v4082
        %v5930 = vunpack.c.l.b16 %v4083
        %v5931 = vunpack.c.h.b16 %v4083
        %v5932 = vunpack.c.l.b16 %v4084
        %v5933 = vunpack.c.h.b16 %v4084
        %v5934 = vunpack.c.l.b16 %v4085
        %v5935 = vunpack.c.h.b16 %v4085
        %v5936 = vunpack.c.l.b16 %v4086
        %v5937 = vunpack.c.h.b16 %v4086
        %v5938 = vunpack.c.l.b16 %v4087
        %v5939 = vunpack.c.h.b16 %v4087
        %v5940 = vunpack.c.l.b16 %v4088
        %v5941 = vunpack.c.h.b16 %v4088
        %v5942 = vunpack.c.l.b16 %v4089
        %v5943 = vunpack.c.h.b16 %v4089
        %v5944 = vunpack.c.l.b16 %v4090
        %v5945 = vunpack.c.h.b16 %v4090
        %v5946 = vunpack.c.l.b16 %v4091
        %v5947 = vunpack.c.h.b16 %v4091
        %v5948 = vunpack.c.l.b16 %v4092
        %v5949 = vunpack.c.h.b16 %v4092
        %v5950 = vunpack.c.l.b16 %v4093
        %v5951 = vunpack.c.h.b16 %v4093
        %v5952 = vunpack.c.l.b16 %v4094
        %v5953 = vunpack.c.h.b16 %v4094
        %v5954 = vunpack.c.l.b16 %v4095
        %v5955 = vunpack.c.h.b16 %v4095
        %v5956 = vunpack.c.l.b16 %v4096
        %v5957 = vunpack.c.h.b16 %v4096
        %v5958 = vunpack.c.l.b16 %v4097
        %v5959 = vunpack.c.h.b16 %v4097
        %v5960 = vunpack.c.l.b16 %v4098
        %v5961 = vunpack.c.h.b16 %v4098
        %v5962 = vunpack.c.l.b16 %v4099
        %v5963 = vunpack.c.h.b16 %v4099
        %v5964 = vunpack.c.l.b16 %v4100
        %v5965 = vunpack.c.h.b16 %v4100
        %v5966 = vunpack.c.l.b16 %v4101
        %v5967 = vunpack.c.h.b16 %v4101
        %v5968 = vunpack.c.l.b16 %v4102
        %v5969 = vunpack.c.h.b16 %v4102
        %v5970 = vunpack.c.l.b16 %v4103
        %v5971 = vunpack.c.h.b16 %v4103
        %v5972 = vunpack.c.l.b16 %v4104
        %v5973 = vunpack.c.h.b16 %v4104
        %v5974 = vunpack.c.l.b16 %v4105
        %v5975 = vunpack.c.h.b16 %v4105
        %v5976 = vunpack.c.l.b16 %v4106
        %v5977 = vunpack.c.h.b16 %v4106
        %v5978 = vunpack.c.l.b16 %v4107
        %v5979 = vunpack.c.h.b16 %v4107
        %v5980 = vunpack.c.l.b16 %v4108
        %v5981 = vunpack.c.h.b16 %v4108
        %v5982 = vunpack.c.l.b16 %v4109
        %v5983 = vunpack.c.h.b16 %v4109
        %v5984 = vunpack.c.l.b16 %v4110
        %v5985 = vunpack.c.h.b16 %v4110
        %v5986 = vunpack.c.l.b16 %v4111
        %v5987 = vunpack.c.h.b16 %v4111
        %v5988 = vunpack.c.l.b16 %v4112
        %v5989 = vunpack.c.h.b16 %v4112
        %v5990 = vunpack.c.l.b16 %v4113
        %v5991 = vunpack.c.h.b16 %v4113
        %v5992 = vunpack.c.l.b16 %v4114
        %v5993 = vunpack.c.h.b16 %v4114
        %v5994 = vunpack.c.l.b16 %v4115
        %v5995 = vunpack.c.h.b16 %v4115
        %v5996 = vunpack.c.l.b16 %v4116
        %v5997 = vunpack.c.h.b16 %v4116
        %v5998 = vunpack.c.l.b16 %v4117
        %v5999 = vunpack.c.h.b16 %v4117
        %v6000 = vunpack.c.l.b16 %v4118
        %v6001 = vunpack.c.h.b16 %v4118
        %v6002 = vunpack.c.l.b16 %v4119
        %v6003 = vunpack.c.h.b16 %v4119
        %v6004 = vunpack.c.l.b16 %v4120
        %v6005 = vunpack.c.h.b16 %v4120
        %v6006 = vunpack.c.l.b16 %v4121
        %v6007 = vunpack.c.h.b16 %v4121
        %v6008 = vunpack.c.l.b16 %v4122
        %v6009 = vunpack.c.h.b16 %v4122
        %v6010 = vunpack.c.l.b16 %v4123
        %v6011 = vunpack.c.h.b16 %v4123
        %v6012 = vunpack.c.l.b16 %v4124
        %v6013 = vunpack.c.h.b16 %v4124
        %v6014 = vunpack.c.l.b16 %v4125
        %v6015 = vunpack.c.h.b16 %v4125
        %v6016 = vunpack.c.l.b16 %v4126
        %v6017 = vunpack.c.h.b16 %v4126
        %v6018 = vunpack.c.l.b16 %v4127
        %v6019 = vunpack.c.h.b16 %v4127
        %v6020 = vunpack.c.l.b16 %v4128
        %v6021 = vunpack.c.h.b16 %v4128
        %v6022 = vunpack.c.l.b16 %v4129
        %v6023 = vunpack.c.h.b16 %v4129
        %v6024 = vunpack.c.l.b16 %v4130
        %v6025 = vunpack.c.h.b16 %v4130
        %v6026 = vunpack.c.l.b16 %v4131
        %v6027 = vunpack.c.h.b16 %v4131
        %v6028 = vunpack.c.l.b16 %v4132
        %v6029 = vunpack.c.h.b16 %v4132
        %v6030 = vunpack.c.l.b16 %v4133
        %v6031 = vunpack.c.h.b16 %v4133
        %v6032 = vunpack.c.l.b16 %v4134
        %v6033 = vunpack.c.h.b16 %v4134
        %v6034 = vunpack.c.l.b16 %v4135
        %v6035 = vunpack.c.h.b16 %v4135
        %v6036 = vunpack.c.l.b16 %v4136
        %v6037 = vunpack.c.h.b16 %v4136
        %v6038 = vunpack.c.l.b16 %v4137
        %v6039 = vunpack.c.h.b16 %v4137
        %v6040 = vunpack.c.l.b16 %v4138
        %v6041 = vunpack.c.h.b16 %v4138
        %v6042 = vunpack.c.l.b16 %v4139
        %v6043 = vunpack.c.h.b16 %v4139
        %v6044 = vunpack.c.l.b16 %v4140
        %v6045 = vunpack.c.h.b16 %v4140
        %v6046 = vunpack.c.l.b16 %v4141
        %v6047 = vunpack.c.h.b16 %v4141
        %v6048 = vunpack.c.l.b16 %v4142
        %v6049 = vunpack.c.h.b16 %v4142
        %v6050 = vunpack.c.l.b16 %v4143
        %v6051 = vunpack.c.h.b16 %v4143
        %v6052 = vunpack.c.l.b16 %v4144
        %v6053 = vunpack.c.h.b16 %v4144
        %v6054 = vunpack.c.l.b16 %v4145
        %v6055 = vunpack.c.h.b16 %v4145
        %v6056 = vunpack.c.l.b16 %v4146
        %v6057 = vunpack.c.h.b16 %v4146
        %v6058 = vunpack.c.l.b16 %v4147
        %v6059 = vunpack.c.h.b16 %v4147
        %v6060 = vunpack.c.l.b16 %v4148
        %v6061 = vunpack.c.h.b16 %v4148
        %v6062 = vunpack.c.l.b16 %v4149
        %v6063 = vunpack.c.h.b16 %v4149
        %v6064 = vunpack.c.l.b16 %v4150
        %v6065 = vunpack.c.h.b16 %v4150
        %v6066 = vunpack.c.l.b16 %v4151
        %v6067 = vunpack.c.h.b16 %v4151
        %v6068 = vunpack.c.l.b16 %v4152
        %v6069 = vunpack.c.h.b16 %v4152
        %v6070 = vunpack.c.l.b16 %v4153
        %v6071 = vunpack.c.h.b16 %v4153
        %v6072 = vunpack.c.l.b16 %v4154
        %v6073 = vunpack.c.h.b16 %v4154
        %v6074 = vunpack.c.l.b16 %v4155
        %v6075 = vunpack.c.h.b16 %v4155
        %v6076 = vunpack.c.l.b16 %v4156
        %v6077 = vunpack.c.h.b16 %v4156
        %v6078 = vunpack.c.l.b16 %v4157
        %v6079 = vunpack.c.h.b16 %v4157
        %v6080 = vunpack.c.l.b16 %v4158
        %v6081 = vunpack.c.h.b16 %v4158
        %v6082 = vunpack.c.l.b16 %v4159
        %v6083 = vunpack.c.h.b16 %v4159
        %v6084 = vunpack.c.l.b16 %v4160
        %v6085 = vunpack.c.h.b16 %v4160
        %v6086 = vunpack.c.l.b16 %v4161
        %v6087 = vunpack.c.h.b16 %v4161
        %v6088 = vunpack.c.l.b16 %v4162
        %v6089 = vunpack.c.h.b16 %v4162
        %v6090 = vunpack.c.l.b16 %v4163
        %v6091 = vunpack.c.h.b16 %v4163
        %v6092 = vunpack.c.l.b16 %v4164
        %v6093 = vunpack.c.h.b16 %v4164
        %v6094 = vunpack.c.l.b16 %v4165
        %v6095 = vunpack.c.h.b16 %v4165
        %v6096 = vunpack.c.l.b16 %v4166
        %v6097 = vunpack.c.h.b16 %v4166
        %v6098 = vunpack.c.l.b16 %v4167
        %v6099 = vunpack.c.h.b16 %v4167
        %v6100 = vunpack.c.l.b16 %v4168
        %v6101 = vunpack.c.h.b16 %v4168
        %v6102 = vunpack.c.l.b16 %v4169
        %v6103 = vunpack.c.h.b16 %v4169
        %v6104 = vunpack.c.l.b16 %v4170
        %v6105 = vunpack.c.h.b16 %v4170
        %v6106 = vunpack.c.l.b16 %v4171
        %v6107 = vunpack.c.h.b16 %v4171
        %v6108 = vunpack.c.l.b16 %v4172
        %v6109 = vunpack.c.h.b16 %v4172
        %v6110 = vunpack.c.l.b16 %v4173
        %v6111 = vunpack.c.h.b16 %v4173
        %v6112 = vunpack.c.l.b16 %v4174
        %v6113 = vunpack.c.h.b16 %v4174
        %v6114 = vunpack.c.l.b16 %v4175
        %v6115 = vunpack.c.h.b16 %v4175
        %v6116 = vunpack.c.l.b16 %v4176
        %v6117 = vunpack.c.h.b16 %v4176
        %v6118 = vunpack.c.l.b16 %v4177
        %v6119 = vunpack.c.h.b16 %v4177
        %v6120 = vunpack.c.l.b16 %v4178
        %v6121 = vunpack.c.h.b16 %v4178
        %v6122 = vunpack.c.l.b16 %v4179
        %v6123 = vunpack.c.h.b16 %v4179
        %v6124 = vunpack.c.l.b16 %v4180
        %v6125 = vunpack.c.h.b16 %v4180
        %v6126 = vunpack.c.l.b16 %v4181
        %v6127 = vunpack.c.h.b16 %v4181
        %v6128 = vunpack.c.l.b16 %v4182
        %v6129 = vunpack.c.h.b16 %v4182
        %v6130 = vunpack.c.l.b16 %v4183
        %v6131 = vunpack.c.h.b16 %v4183
        %v6132 = vunpack.c.l.b16 %v4184
        %v6133 = vunpack.c.h.b16 %v4184
        %v6134 = vunpack.c.l.b16 %v4185
        %v6135 = vunpack.c.h.b16 %v4185
        %v6136 = vunpack.c.l.b16 %v4186
        %v6137 = vunpack.c.h.b16 %v4186
        %v6138 = vunpack.c.l.b16 %v4187
        %v6139 = vunpack.c.h.b16 %v4187
        %v6140 = vunpack.c.l.b16 %v4188
        %v6141 = vunpack.c.h.b16 %v4188
        %v6142 = vunpack.c.l.b16 %v4189
        %v6143 = vunpack.c.h.b16 %v4189
        %v6144 = vunpack.c.l.b16 %v4190
        %v6145 = vunpack.c.h.b16 %v4190
        %v6146 = vunpack.c.l.b16 %v4191
        %v6147 = vunpack.c.h.b16 %v4191
        %v6148 = vunpack.c.l.b16 %v4192
        %v6149 = vunpack.c.h.b16 %v4192
        %v6150 = vunpack.c.l.b16 %v4193
        %v6151 = vunpack.c.h.b16 %v4193
        %v6152 = vunpack.c.l.b16 %v4194
        %v6153 = vunpack.c.h.b16 %v4194
        %v6154 = vunpack.c.l.b16 %v4195
        %v6155 = vunpack.c.h.b16 %v4195
        %v6156 = vunpack.c.l.b16 %v4196
        %v6157 = vunpack.c.h.b16 %v4196
        %v6158 = vunpack.c.l.b16 %v4197
        %v6159 = vunpack.c.h.b16 %v4197
        %v6160 = vunpack.c.l.b16 %v4198
        %v6161 = vunpack.c.h.b16 %v4198
        %v6162 = vunpack.c.l.b16 %v4199
        %v6163 = vunpack.c.h.b16 %v4199
        %v6164 = vunpack.c.l.b16 %v4200
        %v6165 = vunpack.c.h.b16 %v4200
        %v6166 = vunpack.c.l.b16 %v4201
        %v6167 = vunpack.c.h.b16 %v4201
        %v6168 = vunpack.c.l.b16 %v4202
        %v6169 = vunpack.c.h.b16 %v4202
        %v6170 = vunpack.c.l.b16 %v4203
        %v6171 = vunpack.c.h.b16 %v4203
        %v6172 = vunpack.c.l.b16 %v4204
        %v6173 = vunpack.c.h.b16 %v4204
        %v6174 = vunpack.c.l.b16 %v4205
        %v6175 = vunpack.c.h.b16 %v4205
        %v6176 = vunpack.c.l.b16 %v4206
        %v6177 = vunpack.c.h.b16 %v4206
        %v6178 = vunpack.c.l.b16 %v4207
        %v6179 = vunpack.c.h.b16 %v4207
        %v6180 = vunpack.c.l.b16 %v4208
        %v6181 = vunpack.c.h.b16 %v4208
        %v6182 = vunpack.c.l.b16 %v4209
        %v6183 = vunpack.c.h.b16 %v4209
        %v6184 = vunpack.c.l.b16 %v4210
        %v6185 = vunpack.c.h.b16 %v4210
        %v6186 = vunpack.c.l.b16 %v4211
        %v6187 = vunpack.c.h.b16 %v4211
        %v6188 = vunpack.c.l.b16 %v4212
        %v6189 = vunpack.c.h.b16 %v4212
        %v6190 = vunpack.c.l.b16 %v4213
        %v6191 = vunpack.c.h.b16 %v4213
        %v6192 = vunpack.c.l.b16 %v4214
        %v6193 = vunpack.c.h.b16 %v4214
        %v6194 = vunpack.c.l.b16 %v4215
        %v6195 = vunpack.c.h.b16 %v4215
        %v6196 = vunpack.c.l.b16 %v4216
        %v6197 = vunpack.c.h.b16 %v4216
        %v6198 = vunpack.c.l.b16 %v4217
        %v6199 = vunpack.c.h.b16 %v4217
        %v6200 = vunpack.c.l.b16 %v4218
        %v6201 = vunpack.c.h.b16 %v4218
        %v6202 = vunpack.c.l.b16 %v4219
        %v6203 = vunpack.c.h.b16 %v4219
        %v6204 = vunpack.c.l.b16 %v4220
        %v6205 = vunpack.c.h.b16 %v4220
        %v6206 = vunpack.c.l.b16 %v4221
        %v6207 = vunpack.c.h.b16 %v4221
        %v6208 = vunpack.c.l.b16 %v4222
        %v6209 = vunpack.c.h.b16 %v4222
        %v6210 = vunpack.c.l.b16 %v4223
        %v6211 = vunpack.c.h.b16 %v4223
        %v6212 = vunpack.c.l.b16 %v4224
        %v6213 = vunpack.c.h.b16 %v4224
        %v6214 = vunpack.c.l.b16 %v4225
        %v6215 = vunpack.c.h.b16 %v4225
        %v6216 = vunpack.c.l.b16 %v4226
        %v6217 = vunpack.c.h.b16 %v4226
        %v6218 = vunpack.c.l.b16 %v4227
        %v6219 = vunpack.c.h.b16 %v4227
        %v6220 = vunpack.c.l.b16 %v4228
        %v6221 = vunpack.c.h.b16 %v4228
        %v6222 = vunpack.c.l.b16 %v4229
        %v6223 = vunpack.c.h.b16 %v4229
        %v6224 = vunpack.c.l.b16 %v4230
        %v6225 = vunpack.c.h.b16 %v4230
        %v6226 = vunpack.c.l.b16 %v4231
        %v6227 = vunpack.c.h.b16 %v4231
        %v6228 = vunpack.c.l.b16 %v4232
        %v6229 = vunpack.c.h.b16 %v4232
        %v6230 = vunpack.c.l.b16 %v4233
        %v6231 = vunpack.c.h.b16 %v4233
        %v6232 = vunpack.c.l.b16 %v4234
        %v6233 = vunpack.c.h.b16 %v4234
        %v6234 = vunpack.c.l.b16 %v4235
        %v6235 = vunpack.c.h.b16 %v4235
        %v6236 = vunpack.c.l.b16 %v4236
        %v6237 = vunpack.c.h.b16 %v4236
        %v6238 = vunpack.c.l.b16 %v4237
        %v6239 = vunpack.c.h.b16 %v4237
        %v6240 = vunpack.c.l.b16 %v4238
        %v6241 = vunpack.c.h.b16 %v4238
        %v6242 = vunpack.c.l.b16 %v4239
        %v6243 = vunpack.c.h.b16 %v4239
        %v6244 = vunpack.c.l.b16 %v4240
        %v6245 = vunpack.c.h.b16 %v4240
        %v6246 = vunpack.c.l.b16 %v4241
        %v6247 = vunpack.c.h.b16 %v4241
        %v6248 = vunpack.c.l.b16 %v4242
        %v6249 = vunpack.c.h.b16 %v4242
        %v6250 = vunpack.c.l.b16 %v4243
        %v6251 = vunpack.c.h.b16 %v4243
        %v6252 = vunpack.c.l.b16 %v4244
        %v6253 = vunpack.c.h.b16 %v4244
        %v6254 = vunpack.c.l.b16 %v4245
        %v6255 = vunpack.c.h.b16 %v4245
        %v6256 = vunpack.c.l.b16 %v4246
        %v6257 = vunpack.c.h.b16 %v4246
        %v6258 = vunpack.c.l.b16 %v4247
        %v6259 = vunpack.c.h.b16 %v4247
        %v6260 = vunpack.c.l.b16 %v4248
        %v6261 = vunpack.c.h.b16 %v4248
        %v6262 = vunpack.c.l.b16 %v4249
        %v6263 = vunpack.c.h.b16 %v4249
        %v6264 = vunpack.c.l.b16 %v4250
        %v6265 = vunpack.c.h.b16 %v4250
        %v6266 = vunpack.c.l.b16 %v4251
        %v6267 = vunpack.c.h.b16 %v4251
        %v6268 = vunpack.c.l.b16 %v4252
        %v6269 = vunpack.c.h.b16 %v4252
        %v6270 = vunpack.c.l.b16 %v4253
        %v6271 = vunpack.c.h.b16 %v4253
        %v6272 = vunpack.c.l.b16 %v4254
        %v6273 = vunpack.c.h.b16 %v4254
        %v6274 = vunpack.c.l.b16 %v4255
        %v6275 = vunpack.c.h.b16 %v4255
        %v6276 = vunpack.c.l.b16 %v4256
        %v6277 = vunpack.c.h.b16 %v4256
        %v6278 = vunpack.c.l.b16 %v4257
        %v6279 = vunpack.c.h.b16 %v4257
        %v6280 = vunpack.c.l.b16 %v4258
        %v6281 = vunpack.c.h.b16 %v4258
        %v6282 = vunpack.c.l.b16 %v4259
        %v6283 = vunpack.c.h.b16 %v4259
        %v6284 = vunpack.c.l.b16 %v4260
        %v6285 = vunpack.c.h.b16 %v4260
        %v6286 = vunpack.c.l.b16 %v4261
        %v6287 = vunpack.c.h.b16 %v4261
        %v6288 = vunpack.c.l.b16 %v4262
        %v6289 = vunpack.c.h.b16 %v4262
        %v6290 = vunpack.c.l.b16 %v4263
        %v6291 = vunpack.c.h.b16 %v4263
        %v6292 = vunpack.c.l.b16 %v4264
        %v6293 = vunpack.c.h.b16 %v4264
        %v6294 = vunpack.c.l.b16 %v4265
        %v6295 = vunpack.c.h.b16 %v4265
        %v6296 = vunpack.c.l.b16 %v4266
        %v6297 = vunpack.c.h.b16 %v4266
        %v6298 = vunpack.c.l.b16 %v4267
        %v6299 = vunpack.c.h.b16 %v4267
        %v6300 = vunpack.c.l.b16 %v4268
        %v6301 = vunpack.c.h.b16 %v4268
        %v6302 = vunpack.c.l.b16 %v4269
        %v6303 = vunpack.c.h.b16 %v4269
        %v6304 = vunpack.c.l.b16 %v4270
        %v6305 = vunpack.c.h.b16 %v4270
        %v6306 = vunpack.c.l.b16 %v4271
        %v6307 = vunpack.c.h.b16 %v4271
        %v6308 = vunpack.c.l.b16 %v4272
        %v6309 = vunpack.c.h.b16 %v4272
        %v6310 = vunpack.c.l.b16 %v4273
        %v6311 = vunpack.c.h.b16 %v4273
        %v6312 = vunpack.c.l.b16 %v4274
        %v6313 = vunpack.c.h.b16 %v4274
        %v6314 = vunpack.c.l.b16 %v4275
        %v6315 = vunpack.c.h.b16 %v4275
        %v6316 = vunpack.c.l.b16 %v4276
        %v6317 = vunpack.c.h.b16 %v4276
        %v6318 = vunpack.c.l.b16 %v4277
        %v6319 = vunpack.c.h.b16 %v4277
        %v6320 = vunpack.c.l.b16 %v4278
        %v6321 = vunpack.c.h.b16 %v4278
        %v6322 = vunpack.c.l.b16 %v4279
        %v6323 = vunpack.c.h.b16 %v4279
        %v6324 = vunpack.c.l.b16 %v4280
        %v6325 = vunpack.c.h.b16 %v4280
        %v6326 = vunpack.c.l.b16 %v4281
        %v6327 = vunpack.c.h.b16 %v4281
        %v6328 = vunpack.c.l.b16 %v4282
        %v6329 = vunpack.c.h.b16 %v4282
        %v6330 = vunpack.c.l.b16 %v4283
        %v6331 = vunpack.c.h.b16 %v4283
        %v6332 = vunpack.c.l.b16 %v4284
        %v6333 = vunpack.c.h.b16 %v4284
        %v6334 = vunpack.c.l.b16 %v4285
        %v6335 = vunpack.c.h.b16 %v4285
        %v6336 = vunpack.c.l.b16 %v4286
        %v6337 = vunpack.c.h.b16 %v4286
        %v6338 = vunpack.c.l.b16 %v4287
        %v6339 = vunpack.c.h.b16 %v4287
        %v6340 = vunpack.c.l.b16 %v4288
        %v6341 = vunpack.c.h.b16 %v4288
        %v6342 = vunpack.c.l.b16 %v4289
        %v6343 = vunpack.c.h.b16 %v4289
        %v6344 = vunpack.c.l.b16 %v4290
        %v6345 = vunpack.c.h.b16 %v4290
        %v6346 = vunpack.c.l.b16 %v4291
        %v6347 = vunpack.c.h.b16 %v4291
        %v6348 = vunpack.c.l.b16 %v4292
        %v6349 = vunpack.c.h.b16 %v4292
        %v6350 = vunpack.c.l.b16 %v4293
        %v6351 = vunpack.c.h.b16 %v4293
        %v6352 = vunpack.c.l.b16 %v4294
        %v6353 = vunpack.c.h.b16 %v4294
        %v6354 = vunpack.c.l.b16 %v4295
        %v6355 = vunpack.c.h.b16 %v4295
        %v6356 = vunpack.c.l.b16 %v4296
        %v6357 = vunpack.c.h.b16 %v4296
        %v6358 = vunpack.c.l.b16 %v4297
        %v6359 = vunpack.c.h.b16 %v4297
        %v6360 = vunpack.c.l.b16 %v4298
        %v6361 = vunpack.c.h.b16 %v4298
        %v6362 = vunpack.c.l.b16 %v4299
        %v6363 = vunpack.c.h.b16 %v4299
        %v6364 = vunpack.c.l.b16 %v4300
        %v6365 = vunpack.c.h.b16 %v4300
        %v6366 = vunpack.c.l.b16 %v4301
        %v6367 = vunpack.c.h.b16 %v4301
        %v6368 = vunpack.c.l.b16 %v4302
        %v6369 = vunpack.c.h.b16 %v4302
        %v6370 = vunpack.c.l.b16 %v4303
        %v6371 = vunpack.c.h.b16 %v4303
        %v6372 = vunpack.c.l.b16 %v4304
        %v6373 = vunpack.c.h.b16 %v4304
        %v6374 = vunpack.c.l.b16 %v4305
        %v6375 = vunpack.c.h.b16 %v4305
        %v6376 = vunpack.c.l.b16 %v4306
        %v6377 = vunpack.c.h.b16 %v4306
        %v6378 = vunpack.c.l.b16 %v4307
        %v6379 = vunpack.c.h.b16 %v4307
        %v6380 = vunpack.c.l.b16 %v4308
        %v6381 = vunpack.c.h.b16 %v4308
        %v6382 = vunpack.c.l.b16 %v4309
        %v6383 = vunpack.c.h.b16 %v4309
        %v6384 = vunpack.c.l.b16 %v4310
        %v6385 = vunpack.c.h.b16 %v4310
        %v6386 = vunpack.c.l.b16 %v4311
        %v6387 = vunpack.c.h.b16 %v4311
        %v6388 = vunpack.c.l.b16 %v4312
        %v6389 = vunpack.c.h.b16 %v4312
        %v6390 = vunpack.c.l.b16 %v4313
        %v6391 = vunpack.c.h.b16 %v4313
        %v6392 = vunpack.c.l.b16 %v4314
        %v6393 = vunpack.c.h.b16 %v4314
        %v6394 = vunpack.c.l.b16 %v4315
        %v6395 = vunpack.c.h.b16 %v4315
        %v6396 = vunpack.c.l.b16 %v4316
        %v6397 = vunpack.c.h.b16 %v4316
        %v6398 = vunpack.c.l.b16 %v4317
        %v6399 = vunpack.c.h.b16 %v4317
        %v6400 = vunpack.c.l.b16 %v4318
        %v6401 = vunpack.c.h.b16 %v4318
        %v6402 = vunpack.c.l.b16 %v4319
        %v6403 = vunpack.c.h.b16 %v4319
        %v6404 = vunpack.c.l.b16 %v4320
        %v6405 = vunpack.c.h.b16 %v4320
        %v6406 = vunpack.c.l.b16 %v4321
        %v6407 = vunpack.c.h.b16 %v4321
        %v6408 = vunpack.c.l.b16 %v4322
        %v6409 = vunpack.c.h.b16 %v4322
        %v6410 = vunpack.c.l.b16 %v4323
        %v6411 = vunpack.c.h.b16 %v4323
        %v6412 = vunpack.c.l.b16 %v4324
        %v6413 = vunpack.c.h.b16 %v4324
        %v6414 = vunpack.c.l.b16 %v4325
        %v6415 = vunpack.c.h.b16 %v4325
        %v6416 = vunpack.c.l.b16 %v4326
        %v6417 = vunpack.c.h.b16 %v4326
        %v6418 = vunpack.c.l.b16 %v4327
        %v6419 = vunpack.c.h.b16 %v4327
        %v6420 = vunpack.c.l.b16 %v4328
        %v6421 = vunpack.c.h.b16 %v4328
        %v6422 = vunpack.c.l.b16 %v4329
        %v6423 = vunpack.c.h.b16 %v4329
        %v6424 = vunpack.c.l.b16 %v4330
        %v6425 = vunpack.c.h.b16 %v4330
        %v6426 = vunpack.c.l.b16 %v4331
        %v6427 = vunpack.c.h.b16 %v4331
        %v6428 = vunpack.c.l.b16 %v4332
        %v6429 = vunpack.c.h.b16 %v4332
        %v6430 = vunpack.c.l.b16 %v4333
        %v6431 = vunpack.c.h.b16 %v4333
        %v6432 = vunpack.c.l.b16 %v4334
        %v6433 = vunpack.c.h.b16 %v4334
        %v6434 = vunpack.c.l.b16 %v4335
        %v6435 = vunpack.c.h.b16 %v4335
        %v6436 = vunpack.c.l.b16 %v4336
        %v6437 = vunpack.c.h.b16 %v4336
        %v6438 = vunpack.c.l.b16 %v4337
        %v6439 = vunpack.c.h.b16 %v4337
        %v6440 = vunpack.c.l.b16 %v4338
        %v6441 = vunpack.c.h.b16 %v4338
        %v6442 = vunpack.c.l.b16 %v4339
        %v6443 = vunpack.c.h.b16 %v4339
        %v6444 = vunpack.c.l.b16 %v4340
        %v6445 = vunpack.c.h.b16 %v4340
        %v6446 = vunpack.c.l.b16 %v4341
        %v6447 = vunpack.c.h.b16 %v4341
        %v6448 = vunpack.c.l.b16 %v4342
        %v6449 = vunpack.c.h.b16 %v4342
        %v6450 = vunpack.c.l.b16 %v4343
        %v6451 = vunpack.c.h.b16 %v4343
        %v6452 = vunpack.c.l.b16 %v4344
        %v6453 = vunpack.c.h.b16 %v4344
        %v6454 = vunpack.c.l.b16 %v4345
        %v6455 = vunpack.c.h.b16 %v4345
        %v6456 = vunpack.c.l.b16 %v4346
        %v6457 = vunpack.c.h.b16 %v4346
        %v6458 = vunpack.c.l.b16 %v4347
        %v6459 = vunpack.c.h.b16 %v4347
        %v6460 = vunpack.c.l.b16 %v4348
        %v6461 = vunpack.c.h.b16 %v4348
        %v6462 = vunpack.c.l.b16 %v4349
        %v6463 = vunpack.c.h.b16 %v4349
        %v6464 = vunpack.c.l.b16 %v4350
        %v6465 = vunpack.c.h.b16 %v4350
        %v6466 = vunpack.c.l.b16 %v4351
        %v6467 = vunpack.c.h.b16 %v4351
        %v6468 = vunpack.c.l.b16 %v4352
        %v6469 = vunpack.c.h.b16 %v4352
        %v6470 = vunpack.c.l.b16 %v4353
        %v6471 = vunpack.c.h.b16 %v4353
        %v6472 = vunpack.c.l.b16 %v4354
        %v6473 = vunpack.c.h.b16 %v4354
        %v6474 = vunpack.c.l.b16 %v4355
        %v6475 = vunpack.c.h.b16 %v4355
        %v6476 = vunpack.c.l.b16 %v4356
        %v6477 = vunpack.c.h.b16 %v4356
        %v6478 = vunpack.c.l.b16 %v4357
        %v6479 = vunpack.c.h.b16 %v4357
        %v6480 = vunpack.c.l.b16 %v4358
        %v6481 = vunpack.c.h.b16 %v4358
        %v6482 = vunpack.c.l.b16 %v4359
        %v6483 = vunpack.c.h.b16 %v4359
        %v6484 = vunpack.c.l.b16 %v4360
        %v6485 = vunpack.c.h.b16 %v4360
        %v6486 = vunpack.c.l.b16 %v4361
        %v6487 = vunpack.c.h.b16 %v4361
        %v6488 = vunpack.c.l.b16 %v4362
        %v6489 = vunpack.c.h.b16 %v4362
        %v6490 = vunpack.c.l.b16 %v4363
        %v6491 = vunpack.c.h.b16 %v4363
        %v6492 = vunpack.c.l.b16 %v4364
        %v6493 = vunpack.c.h.b16 %v4364
        %v6494 = vunpack.c.l.b16 %v4365
        %v6495 = vunpack.c.h.b16 %v4365
        %v6496 = vunpack.c.l.b16 %v4366
        %v6497 = vunpack.c.h.b16 %v4366
        %v6498 = vunpack.c.l.b16 %v4367
        %v6499 = vunpack.c.h.b16 %v4367
        %v6500 = vunpack.c.l.b16 %v4368
        %v6501 = vunpack.c.h.b16 %v4368
        %v6502 = vunpack.c.l.b16 %v4369
        %v6503 = vunpack.c.h.b16 %v4369
        %v6504 = vunpack.c.l.b16 %v4370
        %v6505 = vunpack.c.h.b16 %v4370
        %v6506 = vunpack.c.l.b16 %v4371
        %v6507 = vunpack.c.h.b16 %v4371
        %v6508 = vunpack.c.l.b16 %v4372
        %v6509 = vunpack.c.h.b16 %v4372
        %v6510 = vunpack.c.l.b16 %v4373
        %v6511 = vunpack.c.h.b16 %v4373
        %v6512 = vunpack.c.l.b16 %v4374
        %v6513 = vunpack.c.h.b16 %v4374
        %v6514 = vunpack.c.l.b16 %v4375
        %v6515 = vunpack.c.h.b16 %v4375
        %v6516 = vunpack.c.l.b16 %v4376
        %v6517 = vunpack.c.h.b16 %v4376
        %v6518 = vunpack.c.l.b16 %v4377
        %v6519 = vunpack.c.h.b16 %v4377
        %v6520 = vunpack.c.l.b16 %v4378
        %v6521 = vunpack.c.h.b16 %v4378
        %v6522 = vunpack.c.l.b16 %v4379
        %v6523 = vunpack.c.h.b16 %v4379
        %v6524 = vunpack.c.l.b16 %v4380
        %v6525 = vunpack.c.h.b16 %v4380
        %v6526 = vunpack.c.l.b16 %v4381
        %v6527 = vunpack.c.h.b16 %v4381
        %v6528 = vunpack.c.l.b16 %v4382
        %v6529 = vunpack.c.h.b16 %v4382
        %v6530 = vunpack.c.l.b16 %v4383
        %v6531 = vunpack.c.h.b16 %v4383
        %v6532 = vunpack.c.l.b16 %v4384
        %v6533 = vunpack.c.h.b16 %v4384
        %v6534 = vunpack.c.l.b16 %v4385
        %v6535 = vunpack.c.h.b16 %v4385
        %v6536 = vunpack.c.l.b16 %v4386
        %v6537 = vunpack.c.h.b16 %v4386
        %v6538 = vunpack.c.l.b16 %v4387
        %v6539 = vunpack.c.h.b16 %v4387
        %v6540 = vunpack.c.l.b16 %v4388
        %v6541 = vunpack.c.h.b16 %v4388
        %v6542 = vunpack.c.l.b16 %v4389
        %v6543 = vunpack.c.h.b16 %v4389
        %v6544 = vunpack.c.l.b16 %v4390
        %v6545 = vunpack.c.h.b16 %v4390
        %v6546 = vunpack.c.l.b16 %v4391
        %v6547 = vunpack.c.h.b16 %v4391
        %v6548 = vunpack.c.l.b16 %v4392
        %v6549 = vunpack.c.h.b16 %v4392
        %v6550 = vunpack.c.l.b16 %v4393
        %v6551 = vunpack.c.h.b16 %v4393
        %v6552 = vunpack.c.l.b16 %v4394
        %v6553 = vunpack.c.h.b16 %v4394
        %v6554 = vunpack.c.l.b16 %v4395
        %v6555 = vunpack.c.h.b16 %v4395
        %v6556 = vunpack.c.l.b16 %v4396
        %v6557 = vunpack.c.h.b16 %v4396
        %v6558 = vunpack.c.l.b16 %v4397
        %v6559 = vunpack.c.h.b16 %v4397
        %v6560 = vunpack.c.l.b16 %v4398
        %v6561 = vunpack.c.h.b16 %v4398
        %v6562 = vunpack.c.l.b16 %v4399
        %v6563 = vunpack.c.h.b16 %v4399
        %v6564 = vunpack.c.l.b16 %v4400
        %v6565 = vunpack.c.h.b16 %v4400
        %v6566 = vunpack.c.l.b16 %v4401
        %v6567 = vunpack.c.h.b16 %v4401
        %v6568 = vunpack.c.l.b16 %v4402
        %v6569 = vunpack.c.h.b16 %v4402
        %v6570 = vunpack.c.l.b16 %v4403
        %v6571 = vunpack.c.h.b16 %v4403
        %v6572 = vunpack.c.l.b16 %v4404
        %v6573 = vunpack.c.h.b16 %v4404
        %v6574 = vunpack.c.l.b16 %v4405
        %v6575 = vunpack.c.h.b16 %v4405
        %v6576 = vunpack.c.l.b16 %v4406
        %v6577 = vunpack.c.h.b16 %v4406
        %v6578 = vunpack.c.l.b16 %v4407
        %v6579 = vunpack.c.h.b16 %v4407
        %v6580 = vunpack.c.l.b16 %v4408
        %v6581 = vunpack.c.h.b16 %v4408
        %v6582 = vunpack.c.l.b16 %v4409
        %v6583 = vunpack.c.h.b16 %v4409
        %v6584 = vunpack.c.l.b16 %v4410
        %v6585 = vunpack.c.h.b16 %v4410
        %v6586 = vunpack.c.l.b16 %v4411
        %v6587 = vunpack.c.h.b16 %v4411
        %v6588 = vunpack.c.l.b16 %v4412
        %v6589 = vunpack.c.h.b16 %v4412
        %v6590 = vunpack.c.l.b16 %v4413
        %v6591 = vunpack.c.h.b16 %v4413
        %v6592 = vunpack.c.l.b16 %v4414
        %v6593 = vunpack.c.h.b16 %v4414
        %v6594 = vunpack.c.l.b16 %v4415
        %v6595 = vunpack.c.h.b16 %v4415
        %v6596 = vunpack.c.l.b16 %v4416
        %v6597 = vunpack.c.h.b16 %v4416
        %v6598 = vunpack.c.l.b16 %v4417
        %v6599 = vunpack.c.h.b16 %v4417
        %v6600 = vunpack.c.l.b16 %v4418
        %v6601 = vunpack.c.h.b16 %v4418
        %v6602 = vunpack.c.l.b16 %v4419
        %v6603 = vunpack.c.h.b16 %v4419
        %v6604 = vunpack.c.l.b16 %v4420
        %v6605 = vunpack.c.h.b16 %v4420
        %v6606 = vunpack.c.l.b16 %v4421
        %v6607 = vunpack.c.h.b16 %v4421
        %v6608 = vunpack.c.l.b16 %v4422
        %v6609 = vunpack.c.h.b16 %v4422
        %v6610 = vunpack.c.l.b16 %v4423
        %v6611 = vunpack.c.h.b16 %v4423
        %v6612 = vunpack.c.l.b16 %v4424
        %v6613 = vunpack.c.h.b16 %v4424
        %v6614 = vunpack.c.l.b16 %v4425
        %v6615 = vunpack.c.h.b16 %v4425
        %v6616 = vunpack.c.l.b16 %v4426
        %v6617 = vunpack.c.h.b16 %v4426
        %v6618 = vunpack.c.l.b16 %v4427
        %v6619 = vunpack.c.h.b16 %v4427
        %v6620 = vunpack.c.l.b16 %v4428
        %v6621 = vunpack.c.h.b16 %v4428
        %v6622 = vunpack.c.l.b16 %v4429
        %v6623 = vunpack.c.h.b16 %v4429
        %v6624 = vunpack.c.l.b16 %v4430
        %v6625 = vunpack.c.h.b16 %v4430
        %v6626 = vunpack.c.l.b16 %v4431
        %v6627 = vunpack.c.h.b16 %v4431
        %v6628 = vunpack.c.l.b16 %v4432
        %v6629 = vunpack.c.h.b16 %v4432
        %v6630 = vunpack.c.l.b16 %v4433
        %v6631 = vunpack.c.h.b16 %v4433
        %v6632 = vunpack.c.l.b16 %v4434
        %v6633 = vunpack.c.h.b16 %v4434
        %v6634 = vunpack.c.l.b16 %v4435
        %v6635 = vunpack.c.h.b16 %v4435
        %v6636 = vunpack.c.l.b16 %v4436
        %v6637 = vunpack.c.h.b16 %v4436
        %v6638 = vunpack.c.l.b16 %v4437
        %v6639 = vunpack.c.h.b16 %v4437
        %v6640 = vunpack.c.l.b16 %v4438
        %v6641 = vunpack.c.h.b16 %v4438
        %v6642 = vunpack.c.l.b16 %v4439
        %v6643 = vunpack.c.h.b16 %v4439
        %v6644 = vunpack.c.l.b16 %v4440
        %v6645 = vunpack.c.h.b16 %v4440
        %v6646 = vunpack.c.l.b16 %v4441
        %v6647 = vunpack.c.h.b16 %v4441
        %v6648 = vunpack.c.l.b16 %v4442
        %v6649 = vunpack.c.h.b16 %v4442
        %v6650 = vunpack.c.l.b16 %v4443
        %v6651 = vunpack.c.h.b16 %v4443
        %v6652 = vunpack.c.l.b16 %v4444
        %v6653 = vunpack.c.h.b16 %v4444
        %v6654 = vunpack.c.l.b16 %v4445
        %v6655 = vunpack.c.h.b16 %v4445
        %v6656 = vunpack.c.l.b16 %v4446
        %v6657 = vunpack.c.h.b16 %v4446
        %v6658 = vunpack.c.l.b16 %v4447
        %v6659 = vunpack.c.h.b16 %v4447
        %v6660 = vunpack.c.l.b16 %v4448
        %v6661 = vunpack.c.h.b16 %v4448
        %v6662 = vunpack.c.l.b16 %v4449
        %v6663 = vunpack.c.h.b16 %v4449
        %v6664 = vunpack.c.l.b16 %v4450
        %v6665 = vunpack.c.h.b16 %v4450
        %v6666 = vunpack.c.l.b16 %v4451
        %v6667 = vunpack.c.h.b16 %v4451
        %v6668 = vunpack.c.l.b16 %v4452
        %v6669 = vunpack.c.h.b16 %v4452
        %v6670 = vunpack.c.l.b16 %v4453
        %v6671 = vunpack.c.h.b16 %v4453
        %v6672 = vunpack.c.l.b16 %v4454
        %v6673 = vunpack.c.h.b16 %v4454
        %v6674 = vunpack.c.l.b16 %v4455
        %v6675 = vunpack.c.h.b16 %v4455
        %v6676 = vunpack.c.l.b16 %v4456
        %v6677 = vunpack.c.h.b16 %v4456
        %v6678 = vunpack.c.l.b16 %v4457
        %v6679 = vunpack.c.h.b16 %v4457
        %v6680 = vunpack.c.l.b16 %v4458
        %v6681 = vunpack.c.h.b16 %v4458
        %v6682 = vunpack.c.l.b16 %v4459
        %v6683 = vunpack.c.h.b16 %v4459
        %v6684 = vunpack.c.l.b16 %v4460
        %v6685 = vunpack.c.h.b16 %v4460
        %v6686 = vunpack.c.l.b16 %v4461
        %v6687 = vunpack.c.h.b16 %v4461
        %v6688 = vunpack.c.l.b16 %v4462
        %v6689 = vunpack.c.h.b16 %v4462
        %v6690 = vunpack.c.l.b16 %v4463
        %v6691 = vunpack.c.h.b16 %v4463
        %v6692 = vunpack.c.l.b16 %v4464
        %v6693 = vunpack.c.h.b16 %v4464
        %v6694 = vunpack.c.l.b16 %v4465
        %v6695 = vunpack.c.h.b16 %v4465
        %v6696 = vunpack.c.l.b16 %v4466
        %v6697 = vunpack.c.h.b16 %v4466
        %v6698 = vunpack.c.l.b16 %v4467
        %v6699 = vunpack.c.h.b16 %v4467
        %v6700 = vunpack.c.l.b16 %v4468
        %v6701 = vunpack.c.h.b16 %v4468
        %v6702 = vunpack.c.l.b16 %v4469
        %v6703 = vunpack.c.h.b16 %v4469
        %v6704 = vunpack.c.l.b16 %v4470
        %v6705 = vunpack.c.h.b16 %v4470
        %v6706 = vunpack.c.l.b16 %v4471
        %v6707 = vunpack.c.h.b16 %v4471
        %v6708 = vunpack.c.l.b16 %v4472
        %v6709 = vunpack.c.h.b16 %v4472
        %v6710 = vunpack.c.l.b16 %v4473
        %v6711 = vunpack.c.h.b16 %v4473
        %v6712 = vunpack.c.l.b16 %v4474
        %v6713 = vunpack.c.h.b16 %v4474
        %v6714 = vunpack.c.l.b16 %v4475
        %v6715 = vunpack.c.h.b16 %v4475
        %v6716 = vunpack.c.l.b16 %v4476
        %v6717 = vunpack.c.h.b16 %v4476
        %v6718 = vunpack.c.l.b16 %v4477
        %v6719 = vunpack.c.h.b16 %v4477
        %v6720 = vunpack.c.l.b16 %v4478
        %v6721 = vunpack.c.h.b16 %v4478
        %v6722 = vunpack.c.l.b16 %v4479
        %v6723 = vunpack.c.h.b16 %v4479
        %v6724 = vunpack.c.l.b16 %v4480
        %v6725 = vunpack.c.h.b16 %v4480
        %v6726 = vunpack.c.l.b16 %v4481
        %v6727 = vunpack.c.h.b16 %v4481
        %v6728 = vunpack.c.l.b16 %v4482
        %v6729 = vunpack.c.h.b16 %v4482
        %v6730 = vunpack.c.l.b16 %v4483
        %v6731 = vunpack.c.h.b16 %v4483
        %v6732 = vunpack.c.l.b16 %v4484
        %v6733 = vunpack.c.h.b16 %v4484
        %v6734 = vunpack.c.l.b16 %v4485
        %v6735 = vunpack.c.h.b16 %v4485
        %v6736 = vunpack.c.l.b16 %v4486
        %v6737 = vunpack.c.h.b16 %v4486
        %v6738 = vunpack.c.l.b16 %v4487
        %v6739 = vunpack.c.h.b16 %v4487
        %v6740 = vunpack.c.l.b16 %v4488
        %v6741 = vunpack.c.h.b16 %v4488
        %v6742 = vunpack.c.l.b16 %v4489
        %v6743 = vunpack.c.h.b16 %v4489
        %v6744 = vunpack.c.l.b16 %v4490
        %v6745 = vunpack.c.h.b16 %v4490
        %v6746 = vunpack.c.l.b16 %v4491
        %v6747 = vunpack.c.h.b16 %v4491
        %v6748 = vunpack.c.l.b16 %v4492
        %v6749 = vunpack.c.h.b16 %v4492
        %v6750 = vunpack.c.l.b16 %v4493
        %v6751 = vunpack.c.h.b16 %v4493
        %v6752 = vunpack.c.l.b16 %v4494
        %v6753 = vunpack.c.h.b16 %v4494
        %v6754 = vunpack.c.l.b16 %v4495
        %v6755 = vunpack.c.h.b16 %v4495
        %v6756 = vunpack.c.l.b16 %v4496
        %v6757 = vunpack.c.h.b16 %v4496
        %v6758 = vunpack.c.l.b16 %v4497
        %v6759 = vunpack.c.h.b16 %v4497
        %v6760 = vunpack.c.l.b16 %v4498
        %v6761 = vunpack.c.h.b16 %v4498
        %v6762 = vunpack.c.l.b16 %v4499
        %v6763 = vunpack.c.h.b16 %v4499
        %v6764 = vunpack.c.l.b16 %v4500
        %v6765 = vunpack.c.h.b16 %v4500
        %v6766 = vunpack.c.l.b16 %v4501
        %v6767 = vunpack.c.h.b16 %v4501
        %v6768 = vunpack.c.l.b16 %v4502
        %v6769 = vunpack.c.h.b16 %v4502
        %v6770 = vunpack.c.l.b16 %v4503
        %v6771 = vunpack.c.h.b16 %v4503
        %v6772 = vunpack.c.l.b16 %v4504
        %v6773 = vunpack.c.h.b16 %v4504
        %v6774 = vunpack.c.l.b16 %v4505
        %v6775 = vunpack.c.h.b16 %v4505
        %v6776 = vunpack.c.l.b16 %v4506
        %v6777 = vunpack.c.h.b16 %v4506
        %v6778 = vunpack.c.l.b16 %v4507
        %v6779 = vunpack.c.h.b16 %v4507
        %v6780 = vunpack.c.l.b16 %v4508
        %v6781 = vunpack.c.h.b16 %v4508
        %v6782 = vunpack.c.l.b16 %v4509
        %v6783 = vunpack.c.h.b16 %v4509
        %v6784 = vunpack.c.l.b16 %v4510
        %v6785 = vunpack.c.h.b16 %v4510
        %v6786 = vunpack.c.l.b16 %v4511
        %v6787 = vunpack.c.h.b16 %v4511
        %v6788 = vunpack.c.l.b16 %v4512
        %v6789 = vunpack.c.h.b16 %v4512
        %v6790 = vunpack.c.l.b16 %v4513
        %v6791 = vunpack.c.h.b16 %v4513
        %v6792 = vunpack.c.l.b16 %v4514
        %v6793 = vunpack.c.h.b16 %v4514
        %v6794 = vunpack.c.l.b16 %v4515
        %v6795 = vunpack.c.h.b16 %v4515
        %v6796 = vunpack.c.l.b16 %v4516
        %v6797 = vunpack.c.h.b16 %v4516
        %v6798 = vunpack.c.l.b16 %v4517
        %v6799 = vunpack.c.h.b16 %v4517
        %v6800 = vunpack.c.l.b16 %v4518
        %v6801 = vunpack.c.h.b16 %v4518
        %v6802 = vunpack.c.l.b16 %v4519
        %v6803 = vunpack.c.h.b16 %v4519
        %v6804 = vunpack.c.l.b16 %v4520
        %v6805 = vunpack.c.h.b16 %v4520
        %v6806 = vunpack.c.l.b16 %v4521
        %v6807 = vunpack.c.h.b16 %v4521
        %v6808 = vunpack.c.l.b16 %v4522
        %v6809 = vunpack.c.h.b16 %v4522
        %v6810 = vunpack.c.l.b16 %v4523
        %v6811 = vunpack.c.h.b16 %v4523
        %v6812 = vunpack.c.l.b16 %v4524
        %v6813 = vunpack.c.h.b16 %v4524
        %v6814 = vunpack.c.l.b16 %v4525
        %v6815 = vunpack.c.h.b16 %v4525
        %v6816 = vunpack.c.l.b16 %v4526
        %v6817 = vunpack.c.h.b16 %v4526
        %v6818 = vunpack.c.l.b16 %v4527
        %v6819 = vunpack.c.h.b16 %v4527
        %v6820 = vunpack.c.l.b16 %v4528
        %v6821 = vunpack.c.h.b16 %v4528
        %v6822 = vunpack.c.l.b16 %v4529
        %v6823 = vunpack.c.h.b16 %v4529
        %v6824 = vunpack.c.l.b16 %v4530
        %v6825 = vunpack.c.h.b16 %v4530
        %v6826 = vunpack.c.l.b16 %v4531
        %v6827 = vunpack.c.h.b16 %v4531
        %v6828 = vunpack.c.l.b16 %v4532
        %v6829 = vunpack.c.h.b16 %v4532
        %v6830 = vunpack.c.l.b16 %v4533
        %v6831 = vunpack.c.h.b16 %v4533
        %v6832 = vunpack.c.l.b16 %v4534
        %v6833 = vunpack.c.h.b16 %v4534
        %v6834 = vunpack.c.l.b16 %v4535
        %v6835 = vunpack.c.h.b16 %v4535
        %v6836 = vunpack.c.l.b16 %v4536
        %v6837 = vunpack.c.h.b16 %v4536
        %v6838 = vunpack.c.l.b16 %v4537
        %v6839 = vunpack.c.h.b16 %v4537
        %v6840 = vunpack.c.l.b16 %v4538
        %v6841 = vunpack.c.h.b16 %v4538
        %v6842 = vunpack.c.l.b16 %v4539
        %v6843 = vunpack.c.h.b16 %v4539
        %v6844 = vunpack.c.l.b16 %v4540
        %v6845 = vunpack.c.h.b16 %v4540
        %v6846 = vunpack.c.l.b16 %v4541
        %v6847 = vunpack.c.h.b16 %v4541
        %v6848 = vunpack.c.l.b16 %v4542
        %v6849 = vunpack.c.h.b16 %v4542
        %v6850 = vunpack.c.l.b16 %v4543
        %v6851 = vunpack.c.h.b16 %v4543
        %v6852 = vunpack.c.l.b16 %v4544
        %v6853 = vunpack.c.h.b16 %v4544
        %v6854 = vunpack.c.l.b16 %v4545
        %v6855 = vunpack.c.h.b16 %v4545
        %v6856 = vunpack.c.l.b16 %v4546
        %v6857 = vunpack.c.h.b16 %v4546
        %v6858 = vunpack.c.l.b16 %v4547
        %v6859 = vunpack.c.h.b16 %v4547
        %v6860 = vunpack.c.l.b16 %v4548
        %v6861 = vunpack.c.h.b16 %v4548
        %v6862 = vunpack.c.l.b16 %v4549
        %v6863 = vunpack.c.h.b16 %v4549
        %v6864 = vunpack.c.l.b16 %v4550
        %v6865 = vunpack.c.h.b16 %v4550
        %v6866 = vunpack.c.l.b16 %v4551
        %v6867 = vunpack.c.h.b16 %v4551
        %v6868 = vunpack.c.l.b16 %v4552
        %v6869 = vunpack.c.h.b16 %v4552
        %v6870 = vunpack.c.l.b16 %v4553
        %v6871 = vunpack.c.h.b16 %v4553
        %v6872 = vunpack.c.l.b16 %v4554
        %v6873 = vunpack.c.h.b16 %v4554
        %v6874 = vunpack.c.l.b16 %v4555
        %v6875 = vunpack.c.h.b16 %v4555
        %v6876 = vunpack.c.l.b16 %v4556
        %v6877 = vunpack.c.h.b16 %v4556
        %v6878 = vunpack.c.l.b16 %v4557
        %v6879 = vunpack.c.h.b16 %v4557
        %v6880 = vunpack.c.l.b16 %v4558
        %v6881 = vunpack.c.h.b16 %v4558
        %v6882 = vunpack.c.l.b16 %v4559
        %v6883 = vunpack.c.h.b16 %v4559
        %v6884 = vunpack.c.l.b16 %v4560
        %v6885 = vunpack.c.h.b16 %v4560
        %v6886 = vunpack.c.l.b16 %v4561
        %v6887 = vunpack.c.h.b16 %v4561
        %v6888 = vunpack.c.l.b16 %v4562
        %v6889 = vunpack.c.h.b16 %v4562
        %v6890 = vunpack.c.l.b16 %v4563
        %v6891 = vunpack.c.h.b16 %v4563
        %v6892 = vunpack.c.l.b16 %v4564
        %v6893 = vunpack.c.h.b16 %v4564
        %v6894 = vunpack.c.l.b16 %v4565
        %v6895 = vunpack.c.h.b16 %v4565
        %v6896 = vunpack.c.l.b16 %v4566
        %v6897 = vunpack.c.h.b16 %v4566
        %v6898 = vunpack.c.l.b16 %v4567
        %v6899 = vunpack.c.h.b16 %v4567
        %v6900 = vunpack.c.l.b16 %v4568
        %v6901 = vunpack.c.h.b16 %v4568
        %v6902 = vunpack.c.l.b16 %v4569
        %v6903 = vunpack.c.h.b16 %v4569
        %v6904 = vunpack.c.l.b16 %v4570
        %v6905 = vunpack.c.h.b16 %v4570
        %v6906 = vunpack.c.l.b16 %v4571
        %v6907 = vunpack.c.h.b16 %v4571
        %v6908 = vunpack.c.l.b16 %v4572
        %v6909 = vunpack.c.h.b16 %v4572
        %v6910 = vunpack.c.l.b16 %v4573
        %v6911 = vunpack.c.h.b16 %v4573
        %v6912 = vunpack.c.l.b16 %v4574
        %v6913 = vunpack.c.h.b16 %v4574
        %v6914 = vunpack.c.l.b16 %v4575
        %v6915 = vunpack.c.h.b16 %v4575
        %v6916 = vunpack.c.l.b16 %v4576
        %v6917 = vunpack.c.h.b16 %v4576
        %v6918 = vunpack.c.l.b16 %v4577
        %v6919 = vunpack.c.h.b16 %v4577
        %v6920 = vunpack.c.l.b16 %v4578
        %v6921 = vunpack.c.h.b16 %v4578
        %v6922 = vunpack.c.l.b16 %v4579
        %v6923 = vunpack.c.h.b16 %v4579
        %v6924 = vunpack.c.l.b16 %v4580
        %v6925 = vunpack.c.h.b16 %v4580
        %v6926 = vunpack.c.l.b16 %v4581
        %v6927 = vunpack.c.h.b16 %v4581
        %v6928 = vunpack.c.l.b16 %v4582
        %v6929 = vunpack.c.h.b16 %v4582
        %v6930 = vunpack.c.l.b16 %v4583
        %v6931 = vunpack.c.h.b16 %v4583
        %v6932 = vunpack.c.l.b16 %v4584
        %v6933 = vunpack.c.h.b16 %v4584
        %v6934 = vunpack.c.l.b16 %v4585
        %v6935 = vunpack.c.h.b16 %v4585
        %v6936 = vunpack.c.l.b16 %v4586
        %v6937 = vunpack.c.h.b16 %v4586
        %v6938 = vunpack.c.l.b16 %v4587
        %v6939 = vunpack.c.h.b16 %v4587
        %v6940 = vunpack.c.l.b16 %v4588
        %v6941 = vunpack.c.h.b16 %v4588
        %v6942 = vpack.c.b16 %v5378, %v5374
        %v6943 = vpack.c.b16 %v5379, %v5375
        %v6944 = vpack.c.b16 %v5380, %v5376
        %v6945 = vpack.c.b16 %v5381, %v5377
        %v6946 = vpack.c.b16 %v5386, %v5382
        %v6947 = vpack.c.b16 %v5387, %v5383
        %v6948 = vpack.c.b16 %v5388, %v5384
        %v6949 = vpack.c.b16 %v5389, %v5385
        %v6950 = vpack.c.b16 %v5394, %v5390
        %v6951 = vpack.c.b16 %v5395, %v5391
        %v6952 = vpack.c.b16 %v5396, %v5392
        %v6953 = vpack.c.b16 %v5397, %v5393
        %v6954 = vpack.c.b16 %v5402, %v5398
        %v6955 = vpack.c.b16 %v5403, %v5399
        %v6956 = vpack.c.b16 %v5404, %v5400
        %v6957 = vpack.c.b16 %v5405, %v5401
        %v6958 = vpack.c.b16 %v5410, %v5406
        %v6959 = vpack.c.b16 %v5411, %v5407
        %v6960 = vpack.c.b16 %v5412, %v5408
        %v6961 = vpack.c.b16 %v5413, %v5409
        %v6962 = vpack.c.b16 %v5418, %v5414
        %v6963 = vpack.c.b16 %v5419, %v5415
        %v6964 = vpack.c.b16 %v5420, %v5416
        %v6965 = vpack.c.b16 %v5421, %v5417
        %v6966 = vpack.c.b16 %v5426, %v5422
        %v6967 = vpack.c.b16 %v5427, %v5423
        %v6968 = vpack.c.b16 %v5428, %v5424
        %v6969 = vpack.c.b16 %v5429, %v5425
        %v6970 = vpack.c.b16 %v5434, %v5430
        %v6971 = vpack.c.b16 %v5435, %v5431
        %v6972 = vpack.c.b16 %v5436, %v5432
        %v6973 = vpack.c.b16 %v5437, %v5433
        %v6974 = vpack.c.b16 %v5442, %v5438
        %v6975 = vpack.c.b16 %v5443, %v5439
        %v6976 = vpack.c.b16 %v5444, %v5440
        %v6977 = vpack.c.b16 %v5445, %v5441
        %v6978 = vpack.c.b16 %v5450, %v5446
        %v6979 = vpack.c.b16 %v5451, %v5447
        %v6980 = vpack.c.b16 %v5452, %v5448
        %v6981 = vpack.c.b16 %v5453, %v5449
        %v6982 = vpack.c.b16 %v5458, %v5454
        %v6983 = vpack.c.b16 %v5459, %v5455
        %v6984 = vpack.c.b16 %v5460, %v5456
        %v6985 = vpack.c.b16 %v5461, %v5457
        %v6986 = vpack.c.b16 %v5466, %v5462
        %v6987 = vpack.c.b16 %v5467, %v5463
        %v6988 = vpack.c.b16 %v5468, %v5464
        %v6989 = vpack.c.b16 %v5469, %v5465
        %v6990 = vpack.c.b16 %v5474, %v5470
        %v6991 = vpack.c.b16 %v5475, %v5471
        %v6992 = vpack.c.b16 %v5476, %v5472
        %v6993 = vpack.c.b16 %v5477, %v5473
        %v6994 = vpack.c.b16 %v5482, %v5478
        %v6995 = vpack.c.b16 %v5483, %v5479
        %v6996 = vpack.c.b16 %v5484, %v5480
        %v6997 = vpack.c.b16 %v5485, %v5481
        %v6998 = vpack.c.b16 %v5490, %v5486
        %v6999 = vpack.c.b16 %v5491, %v5487
        %v7000 = vpack.c.b16 %v5492, %v5488
        %v7001 = vpack.c.b16 %v5493, %v5489
        %v7002 = vpack.c.b16 %v5498, %v5494
        %v7003 = vpack.c.b16 %v5499, %v5495
        %v7004 = vpack.c.b16 %v5500, %v5496
        %v7005 = vpack.c.b16 %v5501, %v5497
        %v7006 = vpack.c.b16 %v5506, %v5502
        %v7007 = vpack.c.b16 %v5507, %v5503
        %v7008 = vpack.c.b16 %v5508, %v5504
        %v7009 = vpack.c.b16 %v5509, %v5505
        %v7010 = vpack.c.b16 %v5514, %v5510
        %v7011 = vpack.c.b16 %v5515, %v5511
        %v7012 = vpack.c.b16 %v5516, %v5512
        %v7013 = vpack.c.b16 %v5517, %v5513
        %v7014 = vpack.c.b16 %v5522, %v5518
        %v7015 = vpack.c.b16 %v5523, %v5519
        %v7016 = vpack.c.b16 %v5524, %v5520
        %v7017 = vpack.c.b16 %v5525, %v5521
        %v7018 = vpack.c.b16 %v5530, %v5526
        %v7019 = vpack.c.b16 %v5531, %v5527
        %v7020 = vpack.c.b16 %v5532, %v5528
        %v7021 = vpack.c.b16 %v5533, %v5529
        %v7022 = vpack.c.b16 %v5538, %v5534
        %v7023 = vpack.c.b16 %v5539, %v5535
        %v7024 = vpack.c.b16 %v5540, %v5536
        %v7025 = vpack.c.b16 %v5541, %v5537
        %v7026 = vpack.c.b16 %v5546, %v5542
        %v7027 = vpack.c.b16 %v5547, %v5543
        %v7028 = vpack.c.b16 %v5548, %v5544
        %v7029 = vpack.c.b16 %v5549, %v5545
        %v7030 = vpack.c.b16 %v5554, %v5550
        %v7031 = vpack.c.b16 %v5555, %v5551
        %v7032 = vpack.c.b16 %v5556, %v5552
        %v7033 = vpack.c.b16 %v5557, %v5553
        %v7034 = vpack.c.b16 %v5562, %v5558
        %v7035 = vpack.c.b16 %v5563, %v5559
        %v7036 = vpack.c.b16 %v5564, %v5560
        %v7037 = vpack.c.b16 %v5565, %v5561
        %v7038 = vpack.c.b16 %v5570, %v5566
        %v7039 = vpack.c.b16 %v5571, %v5567
        %v7040 = vpack.c.b16 %v5572, %v5568
        %v7041 = vpack.c.b16 %v5573, %v5569
        %v7042 = vpack.c.b16 %v5578, %v5574
        %v7043 = vpack.c.b16 %v5579, %v5575
        %v7044 = vpack.c.b16 %v5580, %v5576
        %v7045 = vpack.c.b16 %v5581, %v5577
        %v7046 = vpack.c.b16 %v5586, %v5582
        %v7047 = vpack.c.b16 %v5587, %v5583
        %v7048 = vpack.c.b16 %v5588, %v5584
        %v7049 = vpack.c.b16 %v5589, %v5585
        %v7050 = vpack.c.b16 %v5594, %v5590
        %v7051 = vpack.c.b16 %v5595, %v5591
        %v7052 = vpack.c.b16 %v5596, %v5592
        %v7053 = vpack.c.b16 %v5597, %v5593
        %v7054 = vpack.c.b16 %v5602, %v5598
        %v7055 = vpack.c.b16 %v5603, %v5599
        %v7056 = vpack.c.b16 %v5604, %v5600
        %v7057 = vpack.c.b16 %v5605, %v5601
        %v7058 = vpack.c.b16 %v5610, %v5606
        %v7059 = vpack.c.b16 %v5611, %v5607
        %v7060 = vpack.c.b16 %v5612, %v5608
        %v7061 = vpack.c.b16 %v5613, %v5609
        %v7062 = vpack.c.b16 %v5618, %v5614
        %v7063 = vpack.c.b16 %v5619, %v5615
        %v7064 = vpack.c.b16 %v5620, %v5616
        %v7065 = vpack.c.b16 %v5621, %v5617
        %v7066 = vpack.c.b16 %v5626, %v5622
        %v7067 = vpack.c.b16 %v5627, %v5623
        %v7068 = vpack.c.b16 %v5628, %v5624
        %v7069 = vpack.c.b16 %v5629, %v5625
        %v7070 = vpack.c.b16 %v5634, %v5630
        %v7071 = vpack.c.b16 %v5635, %v5631
        %v7072 = vpack.c.b16 %v5636, %v5632
        %v7073 = vpack.c.b16 %v5637, %v5633
        %v7074 = vpack.c.b16 %v5642, %v5638
        %v7075 = vpack.c.b16 %v5643, %v5639
        %v7076 = vpack.c.b16 %v5644, %v5640
        %v7077 = vpack.c.b16 %v5645, %v5641
        %v7078 = vpack.c.b16 %v5650, %v5646
        %v7079 = vpack.c.b16 %v5651, %v5647
        %v7080 = vpack.c.b16 %v5652, %v5648
        %v7081 = vpack.c.b16 %v5653, %v5649
        %v7082 = vpack.c.b16 %v5658, %v5654
        %v7083 = vpack.c.b16 %v5659, %v5655
        %v7084 = vpack.c.b16 %v5660, %v5656
        %v7085 = vpack.c.b16 %v5661, %v5657
        %v7086 = vpack.c.b16 %v5666, %v5662
        %v7087 = vpack.c.b16 %v5667, %v5663
        %v7088 = vpack.c.b16 %v5668, %v5664
        %v7089 = vpack.c.b16 %v5669, %v5665
        %v7090 = vpack.c.b16 %v5674, %v5670
        %v7091 = vpack.c.b16 %v5675, %v5671
        %v7092 = vpack.c.b16 %v5676, %v5672
        %v7093 = vpack.c.b16 %v5677, %v5673
        %v7094 = vpack.c.b16 %v5682, %v5678
        %v7095 = vpack.c.b16 %v5683, %v5679
        %v7096 = vpack.c.b16 %v5684, %v5680
        %v7097 = vpack.c.b16 %v5685, %v5681
        %v7098 = vpack.c.b16 %v5690, %v5686
        %v7099 = vpack.c.b16 %v5691, %v5687
        %v7100 = vpack.c.b16 %v5692, %v5688
        %v7101 = vpack.c.b16 %v5693, %v5689
        %v7102 = vpack.c.b16 %v5698, %v5694
        %v7103 = vpack.c.b16 %v5699, %v5695
        %v7104 = vpack.c.b16 %v5700, %v5696
        %v7105 = vpack.c.b16 %v5701, %v5697
        %v7106 = vpack.c.b16 %v5706, %v5702
        %v7107 = vpack.c.b16 %v5707, %v5703
        %v7108 = vpack.c.b16 %v5708, %v5704
        %v7109 = vpack.c.b16 %v5709, %v5705
        %v7110 = vpack.c.b16 %v5714, %v5710
        %v7111 = vpack.c.b16 %v5715, %v5711
        %v7112 = vpack.c.b16 %v5716, %v5712
        %v7113 = vpack.c.b16 %v5717, %v5713
        %v7114 = vpack.c.b16 %v5722, %v5718
        %v7115 = vpack.c.b16 %v5723, %v5719
        %v7116 = vpack.c.b16 %v5724, %v5720
        %v7117 = vpack.c.b16 %v5725, %v5721
        %v7118 = vpack.c.b16 %v5730, %v5726
        %v7119 = vpack.c.b16 %v5731, %v5727
        %v7120 = vpack.c.b16 %v5732, %v5728
        %v7121 = vpack.c.b16 %v5733, %v5729
        %v7122 = vpack.c.b16 %v5738, %v5734
        %v7123 = vpack.c.b16 %v5739, %v5735
        %v7124 = vpack.c.b16 %v5740, %v5736
        %v7125 = vpack.c.b16 %v5741, %v5737
        %v7126 = vpack.c.b16 %v5746, %v5742
        %v7127 = vpack.c.b16 %v5747, %v5743
        %v7128 = vpack.c.b16 %v5748, %v5744
        %v7129 = vpack.c.b16 %v5749, %v5745
        %v7130 = vpack.c.b16 %v5754, %v5750
        %v7131 = vpack.c.b16 %v5755, %v5751
        %v7132 = vpack.c.b16 %v5756, %v5752
        %v7133 = vpack.c.b16 %v5757, %v5753
        %v7134 = vpack.c.b16 %v5762, %v5758
        %v7135 = vpack.c.b16 %v5763, %v5759
        %v7136 = vpack.c.b16 %v5764, %v5760
        %v7137 = vpack.c.b16 %v5765, %v5761
        %v7138 = vpack.c.b16 %v5770, %v5766
        %v7139 = vpack.c.b16 %v5771, %v5767
        %v7140 = vpack.c.b16 %v5772, %v5768
        %v7141 = vpack.c.b16 %v5773, %v5769
        %v7142 = vpack.c.b16 %v5778, %v5774
        %v7143 = vpack.c.b16 %v5779, %v5775
        %v7144 = vpack.c.b16 %v5780, %v5776
        %v7145 = vpack.c.b16 %v5781, %v5777
        %v7146 = vpack.c.b16 %v5786, %v5782
        %v7147 = vpack.c.b16 %v5787, %v5783
        %v7148 = vpack.c.b16 %v5788, %v5784
        %v7149 = vpack.c.b16 %v5789, %v5785
        %v7150 = vpack.c.b16 %v5794, %v5790
        %v7151 = vpack.c.b16 %v5795, %v5791
        %v7152 = vpack.c.b16 %v5796, %v5792
        %v7153 = vpack.c.b16 %v5797, %v5793
        %v7154 = vpack.c.b16 %v5802, %v5798
        %v7155 = vpack.c.b16 %v5803, %v5799
        %v7156 = vpack.c.b16 %v5804, %v5800
        %v7157 = vpack.c.b16 %v5805, %v5801
        %v7158 = vpack.c.b16 %v5810, %v5806
        %v7159 = vpack.c.b16 %v5811, %v5807
        %v7160 = vpack.c.b16 %v5812, %v5808
        %v7161 = vpack.c.b16 %v5813, %v5809
        %v7162 = vpack.c.b16 %v5818, %v5814
        %v7163 = vpack.c.b16 %v5819, %v5815
        %v7164 = vpack.c.b16 %v5820, %v5816
        %v7165 = vpack.c.b16 %v5821, %v5817
        %v7166 = vpack.c.b16 %v5826, %v5822
        %v7167 = vpack.c.b16 %v5827, %v5823
        %v7168 = vpack.c.b16 %v5828, %v5824
        %v7169 = vpack.c.b16 %v5829, %v5825
        %v7170 = vpack.c.b16 %v5834, %v5830
        %v7171 = vpack.c.b16 %v5835, %v5831
        %v7172 = vpack.c.b16 %v5836, %v5832
        %v7173 = vpack.c.b16 %v5837, %v5833
        %v7174 = vpack.c.b16 %v5842, %v5838
        %v7175 = vpack.c.b16 %v5843, %v5839
        %v7176 = vpack.c.b16 %v5844, %v5840
        %v7177 = vpack.c.b16 %v5845, %v5841
        %v7178 = vpack.c.b16 %v5850, %v5846
        %v7179 = vpack.c.b16 %v5851, %v5847
        %v7180 = vpack.c.b16 %v5852, %v5848
        %v7181 = vpack.c.b16 %v5853, %v5849
        %v7182 = vpack.c.b16 %v5858, %v5854
        %v7183 = vpack.c.b16 %v5859, %v5855
        %v7184 = vpack.c.b16 %v5860, %v5856
        %v7185 = vpack.c.b16 %v5861, %v5857
        %v7186 = vpack.c.b16 %v5866, %v5862
        %v7187 = vpack.c.b16 %v5867, %v5863
        %v7188 = vpack.c.b16 %v5868, %v5864
        %v7189 = vpack.c.b16 %v5869, %v5865
        %v7190 = vpack.c.b16 %v5874, %v5870
        %v7191 = vpack.c.b16 %v5875, %v5871
        %v7192 = vpack.c.b16 %v5876, %v5872
        %v7193 = vpack.c.b16 %v5877, %v5873
        %v7194 = vpack.c.b16 %v5882, %v5878
        %v7195 = vpack.c.b16 %v5883, %v5879
        %v7196 = vpack.c.b16 %v5884, %v5880
        %v7197 = vpack.c.b16 %v5885, %v5881
        %v7198 = vpack.c.b16 %v5890, %v5886
        %v7199 = vpack.c.b16 %v5891, %v5887
        %v7200 = vpack.c.b16 %v5892, %v5888
        %v7201 = vpack.c.b16 %v5893, %v5889
        %v7202 = vpack.c.b16 %v5898, %v5894
        %v7203 = vpack.c.b16 %v5899, %v5895
        %v7204 = vpack.c.b16 %v5900, %v5896
        %v7205 = vpack.c.b16 %v5901, %v5897
        %v7206 = vpack.c.b16 %v5906, %v5902
        %v7207 = vpack.c.b16 %v5907, %v5903
        %v7208 = vpack.c.b16 %v5908, %v5904
        %v7209 = vpack.c.b16 %v5909, %v5905
        %v7210 = vpack.c.b16 %v5914, %v5910
        %v7211 = vpack.c.b16 %v5915, %v5911
        %v7212 = vpack.c.b16 %v5916, %v5912
        %v7213 = vpack.c.b16 %v5917, %v5913
        %v7214 = vpack.c.b16 %v5922, %v5918
        %v7215 = vpack.c.b16 %v5923, %v5919
        %v7216 = vpack.c.b16 %v5924, %v5920
        %v7217 = vpack.c.b16 %v5925, %v5921
        %v7218 = vpack.c.b16 %v5930, %v5926
        %v7219 = vpack.c.b16 %v5931, %v5927
        %v7220 = vpack.c.b16 %v5932, %v5928
        %v7221 = vpack.c.b16 %v5933, %v5929
        %v7222 = vpack.c.b16 %v5938, %v5934
        %v7223 = vpack.c.b16 %v5939, %v5935
        %v7224 = vpack.c.b16 %v5940, %v5936
        %v7225 = vpack.c.b16 %v5941, %v5937
        %v7226 = vpack.c.b16 %v5946, %v5942
        %v7227 = vpack.c.b16 %v5947, %v5943
        %v7228 = vpack.c.b16 %v5948, %v5944
        %v7229 = vpack.c.b16 %v5949, %v5945
        %v7230 = vpack.c.b16 %v5954, %v5950
        %v7231 = vpack.c.b16 %v5955, %v5951
        %v7232 = vpack.c.b16 %v5956, %v5952
        %v7233 = vpack.c.b16 %v5957, %v5953
        %v7234 = vpack.c.b16 %v5962, %v5958
        %v7235 = vpack.c.b16 %v5963, %v5959
        %v7236 = vpack.c.b16 %v5964, %v5960
        %v7237 = vpack.c.b16 %v5965, %v5961
        %v7238 = vpack.c.b16 %v5970, %v5966
        %v7239 = vpack.c.b16 %v5971, %v5967
        %v7240 = vpack.c.b16 %v5972, %v5968
        %v7241 = vpack.c.b16 %v5973, %v5969
        %v7242 = vpack.c.b16 %v5978, %v5974
        %v7243 = vpack.c.b16 %v5979, %v5975
        %v7244 = vpack.c.b16 %v5980, %v5976
        %v7245 = vpack.c.b16 %v5981, %v5977
        %v7246 = vpack.c.b16 %v5986, %v5982
        %v7247 = vpack.c.b16 %v5987, %v5983
        %v7248 = vpack.c.b16 %v5988, %v5984
        %v7249 = vpack.c.b16 %v5989, %v5985
        %v7250 = vpack.c.b16 %v5994, %v5990
        %v7251 = vpack.c.b16 %v5995, %v5991
        %v7252 = vpack.c.b16 %v5996, %v5992
        %v7253 = vpack.c.b16 %v5997, %v5993
        %v7254 = vpack.c.b16 %v6002, %v5998
        %v7255 = vpack.c.b16 %v6003, %v5999
        %v7256 = vpack.c.b16 %v6004, %v6000
        %v7257 = vpack.c.b16 %v6005, %v6001
        %v7258 = vpack.c.b16 %v6010, %v6006
        %v7259 = vpack.c.b16 %v6011, %v6007
        %v7260 = vpack.c.b16 %v6012, %v6008
        %v7261 = vpack.c.b16 %v6013, %v6009
        %v7262 = vpack.c.b16 %v6018, %v6014
        %v7263 = vpack.c.b16 %v6019, %v6015
        %v7264 = vpack.c.b16 %v6020, %v6016
        %v7265 = vpack.c.b16 %v6021, %v6017
        %v7266 = vpack.c.b16 %v6026, %v6022
        %v7267 = vpack.c.b16 %v6027, %v6023
        %v7268 = vpack.c.b16 %v6028, %v6024
        %v7269 = vpack.c.b16 %v6029, %v6025
        %v7270 = vpack.c.b16 %v6034, %v6030
        %v7271 = vpack.c.b16 %v6035, %v6031
        %v7272 = vpack.c.b16 %v6036, %v6032
        %v7273 = vpack.c.b16 %v6037, %v6033
        %v7274 = vpack.c.b16 %v6042, %v6038
        %v7275 = vpack.c.b16 %v6043, %v6039
        %v7276 = vpack.c.b16 %v6044, %v6040
        %v7277 = vpack.c.b16 %v6045, %v6041
        %v7278 = vpack.c.b16 %v6050, %v6046
        %v7279 = vpack.c.b16 %v6051, %v6047
        %v7280 = vpack.c.b16 %v6052, %v6048
        %v7281 = vpack.c.b16 %v6053, %v6049
        %v7282 = vpack.c.b16 %v6058, %v6054
        %v7283 = vpack.c.b16 %v6059, %v6055
        %v7284 = vpack.c.b16 %v6060, %v6056
        %v7285 = vpack.c.b16 %v6061, %v6057
        %v7286 = vpack.c.b16 %v6066, %v6062
        %v7287 = vpack.c.b16 %v6067, %v6063
        %v7288 = vpack.c.b16 %v6068, %v6064
        %v7289 = vpack.c.b16 %v6069, %v6065
        %v7290 = vpack.c.b16 %v6074, %v6070
        %v7291 = vpack.c.b16 %v6075, %v6071
        %v7292 = vpack.c.b16 %v6076, %v6072
        %v7293 = vpack.c.b16 %v6077, %v6073
        %v7294 = vpack.c.b16 %v6082, %v6078
        %v7295 = vpack.c.b16 %v6083, %v6079
        %v7296 = vpack.c.b16 %v6084, %v6080
        %v7297 = vpack.c.b16 %v6085, %v6081
        %v7298 = vpack.c.b16 %v6090, %v6086
        %v7299 = vpack.c.b16 %v6091, %v6087
        %v7300 = vpack.c.b16 %v6092, %v6088
        %v7301 = vpack.c.b16 %v6093, %v6089
        %v7302 = vpack.c.b16 %v6098, %v6094
        %v7303 = vpack.c.b16 %v6099, %v6095
        %v7304 = vpack.c.b16 %v6100, %v6096
        %v7305 = vpack.c.b16 %v6101, %v6097
        %v7306 = vpack.c.b16 %v6106, %v6102
        %v7307 = vpack.c.b16 %v6107, %v6103
        %v7308 = vpack.c.b16 %v6108, %v6104
        %v7309 = vpack.c.b16 %v6109, %v6105
        %v7310 = vpack.c.b16 %v6114, %v6110
        %v7311 = vpack.c.b16 %v6115, %v6111
        %v7312 = vpack.c.b16 %v6116, %v6112
        %v7313 = vpack.c.b16 %v6117, %v6113
        %v7314 = vpack.c.b16 %v6122, %v6118
        %v7315 = vpack.c.b16 %v6123, %v6119
        %v7316 = vpack.c.b16 %v6124, %v6120
        %v7317 = vpack.c.b16 %v6125, %v6121
        %v7318 = vpack.c.b16 %v6130, %v6126
        %v7319 = vpack.c.b16 %v6131, %v6127
        %v7320 = vpack.c.b16 %v6132, %v6128
        %v7321 = vpack.c.b16 %v6133, %v6129
        %v7322 = vpack.c.b16 %v6138, %v6134
        %v7323 = vpack.c.b16 %v6139, %v6135
        %v7324 = vpack.c.b16 %v6140, %v6136
        %v7325 = vpack.c.b16 %v6141, %v6137
        %v7326 = vpack.c.b16 %v6146, %v6142
        %v7327 = vpack.c.b16 %v6147, %v6143
        %v7328 = vpack.c.b16 %v6148, %v6144
        %v7329 = vpack.c.b16 %v6149, %v6145
        %v7330 = vpack.c.b16 %v6154, %v6150
        %v7331 = vpack.c.b16 %v6155, %v6151
        %v7332 = vpack.c.b16 %v6156, %v6152
        %v7333 = vpack.c.b16 %v6157, %v6153
        %v7334 = vpack.c.b16 %v6162, %v6158
        %v7335 = vpack.c.b16 %v6163, %v6159
        %v7336 = vpack.c.b16 %v6164, %v6160
        %v7337 = vpack.c.b16 %v6165, %v6161
        %v7338 = vpack.c.b16 %v6170, %v6166
        %v7339 = vpack.c.b16 %v6171, %v6167
        %v7340 = vpack.c.b16 %v6172, %v6168
        %v7341 = vpack.c.b16 %v6173, %v6169
        %v7342 = vpack.c.b16 %v6178, %v6174
        %v7343 = vpack.c.b16 %v6179, %v6175
        %v7344 = vpack.c.b16 %v6180, %v6176
        %v7345 = vpack.c.b16 %v6181, %v6177
        %v7346 = vpack.c.b16 %v6186, %v6182
        %v7347 = vpack.c.b16 %v6187, %v6183
        %v7348 = vpack.c.b16 %v6188, %v6184
        %v7349 = vpack.c.b16 %v6189, %v6185
        %v7350 = vpack.c.b16 %v6194, %v6190
        %v7351 = vpack.c.b16 %v6195, %v6191
        %v7352 = vpack.c.b16 %v6196, %v6192
        %v7353 = vpack.c.b16 %v6197, %v6193
        %v7354 = vpack.c.b16 %v6202, %v6198
        %v7355 = vpack.c.b16 %v6203, %v6199
        %v7356 = vpack.c.b16 %v6204, %v6200
        %v7357 = vpack.c.b16 %v6205, %v6201
        %v7358 = vpack.c.b16 %v6210, %v6206
        %v7359 = vpack.c.b16 %v6211, %v6207
        %v7360 = vpack.c.b16 %v6212, %v6208
        %v7361 = vpack.c.b16 %v6213, %v6209
        %v7362 = vpack.c.b16 %v6218, %v6214
        %v7363 = vpack.c.b16 %v6219, %v6215
        %v7364 = vpack.c.b16 %v6220, %v6216
        %v7365 = vpack.c.b16 %v6221, %v6217
        %v7366 = vpack.c.b16 %v6226, %v6222
        %v7367 = vpack.c.b16 %v6227, %v6223
        %v7368 = vpack.c.b16 %v6228, %v6224
        %v7369 = vpack.c.b16 %v6229, %v6225
        %v7370 = vpack.c.b16 %v6234, %v6230
        %v7371 = vpack.c.b16 %v6235, %v6231
        %v7372 = vpack.c.b16 %v6236, %v6232
        %v7373 = vpack.c.b16 %v6237, %v6233
        %v7374 = vpack.c.b16 %v6242, %v6238
        %v7375 = vpack.c.b16 %v6243, %v6239
        %v7376 = vpack.c.b16 %v6244, %v6240
        %v7377 = vpack.c.b16 %v6245, %v6241
        %v7378 = vpack.c.b16 %v6250, %v6246
        %v7379 = vpack.c.b16 %v6251, %v6247
        %v7380 = vpack.c.b16 %v6252, %v6248
        %v7381 = vpack.c.b16 %v6253, %v6249
        %v7382 = vpack.c.b16 %v6258, %v6254
        %v7383 = vpack.c.b16 %v6259, %v6255
        %v7384 = vpack.c.b16 %v6260, %v6256
        %v7385 = vpack.c.b16 %v6261, %v6257
        %v7386 = vpack.c.b16 %v6266, %v6262
        %v7387 = vpack.c.b16 %v6267, %v6263
        %v7388 = vpack.c.b16 %v6268, %v6264
        %v7389 = vpack.c.b16 %v6269, %v6265
        %v7390 = vpack.c.b16 %v6274, %v6270
        %v7391 = vpack.c.b16 %v6275, %v6271
        %v7392 = vpack.c.b16 %v6276, %v6272
        %v7393 = vpack.c.b16 %v6277, %v6273
        %v7394 = vpack.c.b16 %v6282, %v6278
        %v7395 = vpack.c.b16 %v6283, %v6279
        %v7396 = vpack.c.b16 %v6284, %v6280
        %v7397 = vpack.c.b16 %v6285, %v6281
        %v7398 = vpack.c.b16 %v6290, %v6286
        %v7399 = vpack.c.b16 %v6291, %v6287
        %v7400 = vpack.c.b16 %v6292, %v6288
        %v7401 = vpack.c.b16 %v6293, %v6289
        %v7402 = vpack.c.b16 %v6298, %v6294
        %v7403 = vpack.c.b16 %v6299, %v6295
        %v7404 = vpack.c.b16 %v6300, %v6296
        %v7405 = vpack.c.b16 %v6301, %v6297
        %v7406 = vpack.c.b16 %v6306, %v6302
        %v7407 = vpack.c.b16 %v6307, %v6303
        %v7408 = vpack.c.b16 %v6308, %v6304
        %v7409 = vpack.c.b16 %v6309, %v6305
        %v7410 = vpack.c.b16 %v6314, %v6310
        %v7411 = vpack.c.b16 %v6315, %v6311
        %v7412 = vpack.c.b16 %v6316, %v6312
        %v7413 = vpack.c.b16 %v6317, %v6313
        %v7414 = vpack.c.b16 %v6322, %v6318
        %v7415 = vpack.c.b16 %v6323, %v6319
        %v7416 = vpack.c.b16 %v6324, %v6320
        %v7417 = vpack.c.b16 %v6325, %v6321
        %v7418 = vpack.c.b16 %v6330, %v6326
        %v7419 = vpack.c.b16 %v6331, %v6327
        %v7420 = vpack.c.b16 %v6332, %v6328
        %v7421 = vpack.c.b16 %v6333, %v6329
        %v7422 = vpack.c.b16 %v6338, %v6334
        %v7423 = vpack.c.b16 %v6339, %v6335
        %v7424 = vpack.c.b16 %v6340, %v6336
        %v7425 = vpack.c.b16 %v6341, %v6337
        %v7426 = vpack.c.b16 %v6346, %v6342
        %v7427 = vpack.c.b16 %v6347, %v6343
        %v7428 = vpack.c.b16 %v6348, %v6344
        %v7429 = vpack.c.b16 %v6349, %v6345
        %v7430 = vpack.c.b16 %v6354, %v6350
        %v7431 = vpack.c.b16 %v6355, %v6351
        %v7432 = vpack.c.b16 %v6356, %v6352
        %v7433 = vpack.c.b16 %v6357, %v6353
        %v7434 = vpack.c.b16 %v6362, %v6358
        %v7435 = vpack.c.b16 %v6363, %v6359
        %v7436 = vpack.c.b16 %v6364, %v6360
        %v7437 = vpack.c.b16 %v6365, %v6361
        %v7438 = vpack.c.b16 %v6370, %v6366
        %v7439 = vpack.c.b16 %v6371, %v6367
        %v7440 = vpack.c.b16 %v6372, %v6368
        %v7441 = vpack.c.b16 %v6373, %v6369
        %v7442 = vpack.c.b16 %v6378, %v6374
        %v7443 = vpack.c.b16 %v6379, %v6375
        %v7444 = vpack.c.b16 %v6380, %v6376
        %v7445 = vpack.c.b16 %v6381, %v6377
        %v7446 = vpack.c.b16 %v6386, %v6382
        %v7447 = vpack.c.b16 %v6387, %v6383
        %v7448 = vpack.c.b16 %v6388, %v6384
        %v7449 = vpack.c.b16 %v6389, %v6385
        %v7450 = vpack.c.b16 %v6394, %v6390
        %v7451 = vpack.c.b16 %v6395, %v6391
        %v7452 = vpack.c.b16 %v6396, %v6392
        %v7453 = vpack.c.b16 %v6397, %v6393
        %v7454 = vpack.c.b16 %v6402, %v6398
        %v7455 = vpack.c.b16 %v6403, %v6399
        %v7456 = vpack.c.b16 %v6404, %v6400
        %v7457 = vpack.c.b16 %v6405, %v6401
        %v7458 = vpack.c.b16 %v6410, %v6406
        %v7459 = vpack.c.b16 %v6411, %v6407
        %v7460 = vpack.c.b16 %v6412, %v6408
        %v7461 = vpack.c.b16 %v6413, %v6409
        %v7462 = vpack.c.b16 %v6418, %v6414
        %v7463 = vpack.c.b16 %v6419, %v6415
        %v7464 = vpack.c.b16 %v6420, %v6416
        %v7465 = vpack.c.b16 %v6421, %v6417
        %v7466 = vpack.c.b16 %v6426, %v6422
        %v7467 = vpack.c.b16 %v6427, %v6423
        %v7468 = vpack.c.b16 %v6428, %v6424
        %v7469 = vpack.c.b16 %v6429, %v6425
        %v7470 = vpack.c.b16 %v6434, %v6430
        %v7471 = vpack.c.b16 %v6435, %v6431
        %v7472 = vpack.c.b16 %v6436, %v6432
        %v7473 = vpack.c.b16 %v6437, %v6433
        %v7474 = vpack.c.b16 %v6442, %v6438
        %v7475 = vpack.c.b16 %v6443, %v6439
        %v7476 = vpack.c.b16 %v6444, %v6440
        %v7477 = vpack.c.b16 %v6445, %v6441
        %v7478 = vpack.c.b16 %v6450, %v6446
        %v7479 = vpack.c.b16 %v6451, %v6447
        %v7480 = vpack.c.b16 %v6452, %v6448
        %v7481 = vpack.c.b16 %v6453, %v6449
        %v7482 = vpack.c.b16 %v6458, %v6454
        %v7483 = vpack.c.b16 %v6459, %v6455
        %v7484 = vpack.c.b16 %v6460, %v6456
        %v7485 = vpack.c.b16 %v6461, %v6457
        %v7486 = vpack.c.b16 %v6466, %v6462
        %v7487 = vpack.c.b16 %v6467, %v6463
        %v7488 = vpack.c.b16 %v6468, %v6464
        %v7489 = vpack.c.b16 %v6469, %v6465
        %v7490 = vpack.c.b16 %v6474, %v6470
        %v7491 = vpack.c.b16 %v6475, %v6471
        %v7492 = vpack.c.b16 %v6476, %v6472
        %v7493 = vpack.c.b16 %v6477, %v6473
        %v7494 = vpack.c.b16 %v6482, %v6478
        %v7495 = vpack.c.b16 %v6483, %v6479
        %v7496 = vpack.c.b16 %v6484, %v6480
        %v7497 = vpack.c.b16 %v6485, %v6481
        %v7498 = vpack.c.b16 %v6490, %v6486
        %v7499 = vpack.c.b16 %v6491, %v6487
        %v7500 = vpack.c.b16 %v6492, %v6488
        %v7501 = vpack.c.b16 %v6493, %v6489
        %v7502 = vpack.c.b16 %v6498, %v6494
        %v7503 = vpack.c.b16 %v6499, %v6495
        %v7504 = vpack.c.b16 %v6500, %v6496
        %v7505 = vpack.c.b16 %v6501, %v6497
        %v7506 = vpack.c.b16 %v6506, %v6502
        %v7507 = vpack.c.b16 %v6507, %v6503
        %v7508 = vpack.c.b16 %v6508, %v6504
        %v7509 = vpack.c.b16 %v6509, %v6505
        %v7510 = vpack.c.b16 %v6514, %v6510
        %v7511 = vpack.c.b16 %v6515, %v6511
        %v7512 = vpack.c.b16 %v6516, %v6512
        %v7513 = vpack.c.b16 %v6517, %v6513
        %v7514 = vpack.c.b16 %v6522, %v6518
        %v7515 = vpack.c.b16 %v6523, %v6519
        %v7516 = vpack.c.b16 %v6524, %v6520
        %v7517 = vpack.c.b16 %v6525, %v6521
        %v7518 = vpack.c.b16 %v6530, %v6526
        %v7519 = vpack.c.b16 %v6531, %v6527
        %v7520 = vpack.c.b16 %v6532, %v6528
        %v7521 = vpack.c.b16 %v6533, %v6529
        %v7522 = vpack.c.b16 %v6538, %v6534
        %v7523 = vpack.c.b16 %v6539, %v6535
        %v7524 = vpack.c.b16 %v6540, %v6536
        %v7525 = vpack.c.b16 %v6541, %v6537
        %v7526 = vpack.c.b16 %v6546, %v6542
        %v7527 = vpack.c.b16 %v6547, %v6543
        %v7528 = vpack.c.b16 %v6548, %v6544
        %v7529 = vpack.c.b16 %v6549, %v6545
        %v7530 = vpack.c.b16 %v6554, %v6550
        %v7531 = vpack.c.b16 %v6555, %v6551
        %v7532 = vpack.c.b16 %v6556, %v6552
        %v7533 = vpack.c.b16 %v6557, %v6553
        %v7534 = vpack.c.b16 %v6562, %v6558
        %v7535 = vpack.c.b16 %v6563, %v6559
        %v7536 = vpack.c.b16 %v6564, %v6560
        %v7537 = vpack.c.b16 %v6565, %v6561
        %v7538 = vpack.c.b16 %v6570, %v6566
        %v7539 = vpack.c.b16 %v6571, %v6567
        %v7540 = vpack.c.b16 %v6572, %v6568
        %v7541 = vpack.c.b16 %v6573, %v6569
        %v7542 = vpack.c.b16 %v6578, %v6574
        %v7543 = vpack.c.b16 %v6579, %v6575
        %v7544 = vpack.c.b16 %v6580, %v6576
        %v7545 = vpack.c.b16 %v6581, %v6577
        %v7546 = vpack.c.b16 %v6586, %v6582
        %v7547 = vpack.c.b16 %v6587, %v6583
        %v7548 = vpack.c.b16 %v6588, %v6584
        %v7549 = vpack.c.b16 %v6589, %v6585
        %v7550 = vpack.c.b16 %v6594, %v6590
        %v7551 = vpack.c.b16 %v6595, %v6591
        %v7552 = vpack.c.b16 %v6596, %v6592
        %v7553 = vpack.c.b16 %v6597, %v6593
        %v7554 = vpack.c.b16 %v6602, %v6598
        %v7555 = vpack.c.b16 %v6603, %v6599
        %v7556 = vpack.c.b16 %v6604, %v6600
        %v7557 = vpack.c.b16 %v6605, %v6601
        %v7558 = vpack.c.b16 %v6610, %v6606
        %v7559 = vpack.c.b16 %v6611, %v6607
        %v7560 = vpack.c.b16 %v6612, %v6608
        %v7561 = vpack.c.b16 %v6613, %v6609
        %v7562 = vpack.c.b16 %v6618, %v6614
        %v7563 = vpack.c.b16 %v6619, %v6615
        %v7564 = vpack.c.b16 %v6620, %v6616
        %v7565 = vpack.c.b16 %v6621, %v6617
        %v7566 = vpack.c.b16 %v6626, %v6622
        %v7567 = vpack.c.b16 %v6627, %v6623
        %v7568 = vpack.c.b16 %v6628, %v6624
        %v7569 = vpack.c.b16 %v6629, %v6625
        %v7570 = vpack.c.b16 %v6634, %v6630
        %v7571 = vpack.c.b16 %v6635, %v6631
        %v7572 = vpack.c.b16 %v6636, %v6632
        %v7573 = vpack.c.b16 %v6637, %v6633
        %v7574 = vpack.c.b16 %v6642, %v6638
        %v7575 = vpack.c.b16 %v6643, %v6639
        %v7576 = vpack.c.b16 %v6644, %v6640
        %v7577 = vpack.c.b16 %v6645, %v6641
        %v7578 = vpack.c.b16 %v6650, %v6646
        %v7579 = vpack.c.b16 %v6651, %v6647
        %v7580 = vpack.c.b16 %v6652, %v6648
        %v7581 = vpack.c.b16 %v6653, %v6649
        %v7582 = vpack.c.b16 %v6658, %v6654
        %v7583 = vpack.c.b16 %v6659, %v6655
        %v7584 = vpack.c.b16 %v6660, %v6656
        %v7585 = vpack.c.b16 %v6661, %v6657
        %v7586 = vpack.c.b16 %v6666, %v6662
        %v7587 = vpack.c.b16 %v6667, %v6663
        %v7588 = vpack.c.b16 %v6668, %v6664
        %v7589 = vpack.c.b16 %v6669, %v6665
        %v7590 = vpack.c.b16 %v6674, %v6670
        %v7591 = vpack.c.b16 %v6675, %v6671
        %v7592 = vpack.c.b16 %v6676, %v6672
        %v7593 = vpack.c.b16 %v6677, %v6673
        %v7594 = vpack.c.b16 %v6682, %v6678
        %v7595 = vpack.c.b16 %v6683, %v6679
        %v7596 = vpack.c.b16 %v6684, %v6680
        %v7597 = vpack.c.b16 %v6685, %v6681
        %v7598 = vpack.c.b16 %v6690, %v6686
        %v7599 = vpack.c.b16 %v6691, %v6687
        %v7600 = vpack.c.b16 %v6692, %v6688
        %v7601 = vpack.c.b16 %v6693, %v6689
        %v7602 = vpack.c.b16 %v6698, %v6694
        %v7603 = vpack.c.b16 %v6699, %v6695
        %v7604 = vpack.c.b16 %v6700, %v6696
        %v7605 = vpack.c.b16 %v6701, %v6697
        %v7606 = vpack.c.b16 %v6706, %v6702
        %v7607 = vpack.c.b16 %v6707, %v6703
        %v7608 = vpack.c.b16 %v6708, %v6704
        %v7609 = vpack.c.b16 %v6709, %v6705
        %v7610 = vpack.c.b16 %v6714, %v6710
        %v7611 = vpack.c.b16 %v6715, %v6711
        %v7612 = vpack.c.b16 %v6716, %v6712
        %v7613 = vpack.c.b16 %v6717, %v6713
        %v7614 = vpack.c.b16 %v6722, %v6718
        %v7615 = vpack.c.b16 %v6723, %v6719
        %v7616 = vpack.c.b16 %v6724, %v6720
        %v7617 = vpack.c.b16 %v6725, %v6721
        %v7618 = vpack.c.b16 %v6730, %v6726
        %v7619 = vpack.c.b16 %v6731, %v6727
        %v7620 = vpack.c.b16 %v6732, %v6728
        %v7621 = vpack.c.b16 %v6733, %v6729
        %v7622 = vpack.c.b16 %v6738, %v6734
        %v7623 = vpack.c.b16 %v6739, %v6735
        %v7624 = vpack.c.b16 %v6740, %v6736
        %v7625 = vpack.c.b16 %v6741, %v6737
        %v7626 = vpack.c.b16 %v6746, %v6742
        %v7627 = vpack.c.b16 %v6747, %v6743
        %v7628 = vpack.c.b16 %v6748, %v6744
        %v7629 = vpack.c.b16 %v6749, %v6745
        %v7630 = vpack.c.b16 %v6754, %v6750
        %v7631 = vpack.c.b16 %v6755, %v6751
        %v7632 = vpack.c.b16 %v6756, %v6752
        %v7633 = vpack.c.b16 %v6757, %v6753
        %v7634 = vpack.c.b16 %v6762, %v6758
        %v7635 = vpack.c.b16 %v6763, %v6759
        %v7636 = vpack.c.b16 %v6764, %v6760
        %v7637 = vpack.c.b16 %v6765, %v6761
        %v7638 = vpack.c.b16 %v6770, %v6766
        %v7639 = vpack.c.b16 %v6771, %v6767
        %v7640 = vpack.c.b16 %v6772, %v6768
        %v7641 = vpack.c.b16 %v6773, %v6769
        %v7642 = vpack.c.b16 %v6778, %v6774
        %v7643 = vpack.c.b16 %v6779, %v6775
        %v7644 = vpack.c.b16 %v6780, %v6776
        %v7645 = vpack.c.b16 %v6781, %v6777
        %v7646 = vpack.c.b16 %v6786, %v6782
        %v7647 = vpack.c.b16 %v6787, %v6783
        %v7648 = vpack.c.b16 %v6788, %v6784
        %v7649 = vpack.c.b16 %v6789, %v6785
        %v7650 = vpack.c.b16 %v6794, %v6790
        %v7651 = vpack.c.b16 %v6795, %v6791
        %v7652 = vpack.c.b16 %v6796, %v6792
        %v7653 = vpack.c.b16 %v6797, %v6793
        %v7654 = vpack.c.b16 %v6802, %v6798
        %v7655 = vpack.c.b16 %v6803, %v6799
        %v7656 = vpack.c.b16 %v6804, %v6800
        %v7657 = vpack.c.b16 %v6805, %v6801
        %v7658 = vpack.c.b16 %v6810, %v6806
        %v7659 = vpack.c.b16 %v6811, %v6807
        %v7660 = vpack.c.b16 %v6812, %v6808
        %v7661 = vpack.c.b16 %v6813, %v6809
        %v7662 = vpack.c.b16 %v6818, %v6814
        %v7663 = vpack.c.b16 %v6819, %v6815
        %v7664 = vpack.c.b16 %v6820, %v6816
        %v7665 = vpack.c.b16 %v6821, %v6817
        %v7666 = vpack.c.b16 %v6826, %v6822
        %v7667 = vpack.c.b16 %v6827, %v6823
        %v7668 = vpack.c.b16 %v6828, %v6824
        %v7669 = vpack.c.b16 %v6829, %v6825
        %v7670 = vpack.c.b16 %v6834, %v6830
        %v7671 = vpack.c.b16 %v6835, %v6831
        %v7672 = vpack.c.b16 %v6836, %v6832
        %v7673 = vpack.c.b16 %v6837, %v6833
        %v7674 = vpack.c.b16 %v6842, %v6838
        %v7675 = vpack.c.b16 %v6843, %v6839
        %v7676 = vpack.c.b16 %v6844, %v6840
        %v7677 = vpack.c.b16 %v6845, %v6841
        %v7678 = vpack.c.b16 %v6850, %v6846
        %v7679 = vpack.c.b16 %v6851, %v6847
        %v7680 = vpack.c.b16 %v6852, %v6848
        %v7681 = vpack.c.b16 %v6853, %v6849
        %v7682 = vpack.c.b16 %v6858, %v6854
        %v7683 = vpack.c.b16 %v6859, %v6855
        %v7684 = vpack.c.b16 %v6860, %v6856
        %v7685 = vpack.c.b16 %v6861, %v6857
        %v7686 = vpack.c.b16 %v6866, %v6862
        %v7687 = vpack.c.b16 %v6867, %v6863
        %v7688 = vpack.c.b16 %v6868, %v6864
        %v7689 = vpack.c.b16 %v6869, %v6865
        %v7690 = vpack.c.b16 %v6874, %v6870
        %v7691 = vpack.c.b16 %v6875, %v6871
        %v7692 = vpack.c.b16 %v6876, %v6872
        %v7693 = vpack.c.b16 %v6877, %v6873
        %v7694 = vpack.c.b16 %v6882, %v6878
        %v7695 = vpack.c.b16 %v6883, %v6879
        %v7696 = vpack.c.b16 %v6884, %v6880
        %v7697 = vpack.c.b16 %v6885, %v6881
        %v7698 = vpack.c.b16 %v6890, %v6886
        %v7699 = vpack.c.b16 %v6891, %v6887
        %v7700 = vpack.c.b16 %v6892, %v6888
        %v7701 = vpack.c.b16 %v6893, %v6889
        %v7702 = vpack.c.b16 %v6898, %v6894
        %v7703 = vpack.c.b16 %v6899, %v6895
        %v7704 = vpack.c.b16 %v6900, %v6896
        %v7705 = vpack.c.b16 %v6901, %v6897
        %v7706 = vpack.c.b16 %v6906, %v6902
        %v7707 = vpack.c.b16 %v6907, %v6903
        %v7708 = vpack.c.b16 %v6908, %v6904
        %v7709 = vpack.c.b16 %v6909, %v6905
        %v7710 = vpack.c.b16 %v6914, %v6910
        %v7711 = vpack.c.b16 %v6915, %v6911
        %v7712 = vpack.c.b16 %v6916, %v6912
        %v7713 = vpack.c.b16 %v6917, %v6913
        %v7714 = vpack.c.b16 %v6922, %v6918
        %v7715 = vpack.c.b16 %v6923, %v6919
        %v7716 = vpack.c.b16 %v6924, %v6920
        %v7717 = vpack.c.b16 %v6925, %v6921
        %v7718 = vpack.c.b16 %v6930, %v6926
        %v7719 = vpack.c.b16 %v6931, %v6927
        %v7720 = vpack.c.b16 %v6932, %v6928
        %v7721 = vpack.c.b16 %v6933, %v6929
        %v7722 = vpack.c.b16 %v6938, %v6934
        %v7723 = vpack.c.b16 %v6939, %v6935
        %v7724 = vpack.c.b16 %v6940, %v6936
        %v7725 = vpack.c.b16 %v6941, %v6937
        %v8511 = vlaneseq
        %v8512 = vshrl.u32 %v8511, 7
        %v8513 = vsub.s32 0, %v8512
        %v8514 = vrot.slane %v4589, %v8513
        %v8515 = vlaneseq
        %v8516 = vshrl.u32 %v8515, 7
        %v8517 = vsub.s32 1, %v8516
        %v8518 = vrot.slane %v4589, %v8517
        %v8519 = vlaneseq
        %v8520 = vshrl.u32 %v8519, 7
        %v8521 = vsub.s32 2, %v8520
        %v8522 = vrot.slane %v4589, %v8521
        %v8523 = vlaneseq
        %v8524 = vshrl.u32 %v8523, 7
        %v8525 = vsub.s32 3, %v8524
        %v8526 = vrot.slane %v4589, %v8525
        %v8532 = vsel %vm2288, %v3804, 0
        %8534 = vmatprep.subr.bf16.mxu0 %v6943
        %8535 = vmatpush1.bf16.msra.mxu0 %v6942
        %8536 = vmatprep.subr.bf16.mxu0 %v6947
        %8537 = vmatpush1.bf16.msra.mxu0 %v6946
        %8538 = vmatprep.subr.bf16.mxu0 %v6951
        %8539 = vmatpush1.bf16.msra.mxu0 %v6950
        %8540 = vmatprep.subr.bf16.mxu0 %v6955
        %8541 = vmatpush1.bf16.msra.mxu0 %v6954
        %8542 = vmatprep.subr.bf16.mxu0 %v6959
        %8543 = vmatpush1.bf16.msra.mxu0 %v6958
        %8544 = vmatprep.subr.bf16.mxu0 %v6963
        %8545 = vmatpush1.bf16.msra.mxu0 %v6962
        %8546 = vmatprep.subr.bf16.mxu0 %v6967
        %8547 = vmatpush1.bf16.msra.mxu0 %v6966
        %8548 = vmatprep.subr.bf16.mxu0 %v6971
        %8549 = vmatpush1.bf16.msra.mxu0 %v6970
        %8550 = vmatprep.subr.bf16.mxu0 %v6975
        %8551 = vmatpush1.bf16.msra.mxu0 %v6974
        %8552 = vmatprep.subr.bf16.mxu0 %v6979
        %8553 = vmatpush1.bf16.msra.mxu0 %v6978
        %8554 = vmatprep.subr.bf16.mxu0 %v6983
        %8555 = vmatpush1.bf16.msra.mxu0 %v6982
        %8556 = vmatprep.subr.bf16.mxu0 %v6987
        %8557 = vmatpush1.bf16.msra.mxu0 %v6986
        %8558 = vmatprep.subr.bf16.mxu0 %v6991
        %8559 = vmatpush1.bf16.msra.mxu0 %v6990
        %8560 = vmatprep.subr.bf16.mxu0 %v6995
        %8561 = vmatpush1.bf16.msra.mxu0 %v6994
        %8562 = vmatprep.subr.bf16.mxu0 %v6999
        %8563 = vmatpush1.bf16.msra.mxu0 %v6998
        %8564 = vmatprep.subr.bf16.mxu0 %v7003
        %8565 = vmatpush1.bf16.msra.mxu0 %v7002
        %8566 = vmatprep.mubr.bf16.mxu0 %v3781
        %8567 = vmatmul.mubr.bf16.gmra.mrb[0].mxu0 %v3780
        %v8568 = vpop.f32.mrb[0].mxu0
        %v8569 = vadd.f32 %v8514, %v8568
        %v8570 = vpop.f32.mrb[0].mxu0
        %v8571 = vadd.f32 %v8518, %v8570
        %v8572 = vpop.f32.mrb[0].mxu0
        %v8573 = vpop.f32.mrb[0].mxu0
        %8574 = vdwg.mxu0
        %8575 = vmatprep.subr.bf16.mxu0 %v7007
        %8576 = vmatpush1.bf16.msra.mxu0 %v7006
        %8577 = vmatprep.subr.bf16.mxu0 %v7011
        %8578 = vmatpush1.bf16.msra.mxu0 %v7010
        %8579 = vmatprep.subr.bf16.mxu0 %v7015
        %8580 = vmatpush1.bf16.msra.mxu0 %v7014
        %8581 = vmatprep.subr.bf16.mxu0 %v7019
        %8582 = vmatpush1.bf16.msra.mxu0 %v7018
        %8583 = vmatprep.subr.bf16.mxu0 %v7023
        %8584 = vmatpush1.bf16.msra.mxu0 %v7022
        %8585 = vmatprep.subr.bf16.mxu0 %v7027
        %8586 = vmatpush1.bf16.msra.mxu0 %v7026
        %8587 = vmatprep.subr.bf16.mxu0 %v7031
        %8588 = vmatpush1.bf16.msra.mxu0 %v7030
        %8589 = vmatprep.subr.bf16.mxu0 %v7035
        %8590 = vmatpush1.bf16.msra.mxu0 %v7034
        %8591 = vmatprep.subr.bf16.mxu0 %v7039
        %8592 = vmatpush1.bf16.msra.mxu0 %v7038
        %8593 = vmatprep.subr.bf16.mxu0 %v7043
        %8594 = vmatpush1.bf16.msra.mxu0 %v7042
        %8595 = vmatprep.subr.bf16.mxu0 %v7047
        %8596 = vmatpush1.bf16.msra.mxu0 %v7046
        %8597 = vmatprep.subr.bf16.mxu0 %v7051
        %8598 = vmatpush1.bf16.msra.mxu0 %v7050
        %8599 = vmatprep.subr.bf16.mxu0 %v7055
        %8600 = vmatpush1.bf16.msra.mxu0 %v7054
        %8601 = vmatprep.subr.bf16.mxu0 %v7059
        %8602 = vmatpush1.bf16.msra.mxu0 %v7058
        %8603 = vmatprep.subr.bf16.mxu0 %v7063
        %8604 = vmatpush1.bf16.msra.mxu0 %v7062
        %8605 = vmatprep.subr.bf16.mxu0 %v7067
        %8606 = vmatpush1.bf16.msra.mxu0 %v7066
        %8607 = vmatprep.mubr.bf16.mxu0 %v3783
        %8608 = vmatmul.mubr.bf16.gmra.mrb[0].mxu0 %v3782
        %v8609 = vpop.f32.mrb[0].mxu0
        %v8610 = vadd.f32 %v8569, %v8609
        %v8611 = vpop.f32.mrb[0].mxu0
        %v8612 = vadd.f32 %v8571, %v8611
        %v8613 = vpop.f32.mrb[0].mxu0
        %v8614 = vpop.f32.mrb[0].mxu0
        %8615 = vdwg.mxu0
        %8616 = vmatprep.subr.bf16.mxu0 %v7071
        %8617 = vmatpush1.bf16.msra.mxu0 %v7070
        %8618 = vmatprep.subr.bf16.mxu0 %v7075
        %8619 = vmatpush1.bf16.msra.mxu0 %v7074
        %8620 = vmatprep.subr.bf16.mxu0 %v7079
        %8621 = vmatpush1.bf16.msra.mxu0 %v7078
        %8622 = vmatprep.subr.bf16.mxu0 %v7083
        %8623 = vmatpush1.bf16.msra.mxu0 %v7082
        %8624 = vmatprep.subr.bf16.mxu0 %v7087
        %8625 = vmatpush1.bf16.msra.mxu0 %v7086
        %8626 = vmatprep.subr.bf16.mxu0 %v7091
        %8627 = vmatpush1.bf16.msra.mxu0 %v7090
        %8628 = vmatprep.subr.bf16.mxu0 %v7095
        %8629 = vmatpush1.bf16.msra.mxu0 %v7094
        %8630 = vmatprep.subr.bf16.mxu0 %v7099
        %8631 = vmatpush1.bf16.msra.mxu0 %v7098
        %8632 = vmatprep.subr.bf16.mxu0 %v7103
        %8633 = vmatpush1.bf16.msra.mxu0 %v7102
        %8634 = vmatprep.subr.bf16.mxu0 %v7107
        %8635 = vmatpush1.bf16.msra.mxu0 %v7106
        %8636 = vmatprep.subr.bf16.mxu0 %v7111
        %8637 = vmatpush1.bf16.msra.mxu0 %v7110
        %8638 = vmatprep.subr.bf16.mxu0 %v7115
        %8639 = vmatpush1.bf16.msra.mxu0 %v7114
        %8640 = vmatprep.subr.bf16.mxu0 %v7119
        %8641 = vmatpush1.bf16.msra.mxu0 %v7118
        %8642 = vmatprep.subr.bf16.mxu0 %v7123
        %8643 = vmatpush1.bf16.msra.mxu0 %v7122
        %8644 = vmatprep.subr.bf16.mxu0 %v7127
        %8645 = vmatpush1.bf16.msra.mxu0 %v7126
        %8646 = vmatprep.subr.bf16.mxu0 %v7131
        %8647 = vmatpush1.bf16.msra.mxu0 %v7130
        %8648 = vmatprep.mubr.bf16.mxu0 %v3785
        %8649 = vmatmul.mubr.bf16.gmra.mrb[0].mxu0 %v3784
        %v8650 = vpop.f32.mrb[0].mxu0
        %v8651 = vadd.f32 %v8610, %v8650
        %v8652 = vpop.f32.mrb[0].mxu0
        %v8653 = vadd.f32 %v8612, %v8652
        %v8654 = vpop.f32.mrb[0].mxu0
        %v8655 = vpop.f32.mrb[0].mxu0
        %8656 = vdwg.mxu0
        %8657 = vmatprep.subr.bf16.mxu0 %v7135
        %8658 = vmatpush1.bf16.msra.mxu0 %v7134
        %8659 = vmatprep.subr.bf16.mxu0 %v7139
        %8660 = vmatpush1.bf16.msra.mxu0 %v7138
        %8661 = vmatprep.subr.bf16.mxu0 %v7143
        %8662 = vmatpush1.bf16.msra.mxu0 %v7142
        %8663 = vmatprep.subr.bf16.mxu0 %v7147
        %8664 = vmatpush1.bf16.msra.mxu0 %v7146
        %8665 = vmatprep.subr.bf16.mxu0 %v7151
        %8666 = vmatpush1.bf16.msra.mxu0 %v7150
        %8667 = vmatprep.subr.bf16.mxu0 %v7155
        %8668 = vmatpush1.bf16.msra.mxu0 %v7154
        %8669 = vmatprep.subr.bf16.mxu0 %v7159
        %8670 = vmatpush1.bf16.msra.mxu0 %v7158
        %8671 = vmatprep.subr.bf16.mxu0 %v7163
        %8672 = vmatpush1.bf16.msra.mxu0 %v7162
        %8673 = vmatprep.subr.bf16.mxu0 %v7167
        %8674 = vmatpush1.bf16.msra.mxu0 %v7166
        %8675 = vmatprep.subr.bf16.mxu0 %v7171
        %8676 = vmatpush1.bf16.msra.mxu0 %v7170
        %8677 = vmatprep.subr.bf16.mxu0 %v7175
        %8678 = vmatpush1.bf16.msra.mxu0 %v7174
        %8679 = vmatprep.subr.bf16.mxu0 %v7179
        %8680 = vmatpush1.bf16.msra.mxu0 %v7178
        %8681 = vmatprep.subr.bf16.mxu0 %v7183
        %8682 = vmatpush1.bf16.msra.mxu0 %v7182
        %8683 = vmatprep.subr.bf16.mxu0 %v7187
        %8684 = vmatpush1.bf16.msra.mxu0 %v7186
        %8685 = vmatprep.subr.bf16.mxu0 %v7191
        %8686 = vmatpush1.bf16.msra.mxu0 %v7190
        %8687 = vmatprep.subr.bf16.mxu0 %v7195
        %8688 = vmatpush1.bf16.msra.mxu0 %v7194
        %8689 = vmatprep.mubr.bf16.mxu0 %v3787
        %8690 = vmatmul.mubr.bf16.gmra.mrb[0].mxu0 %v3786
        %v8691 = vpop.f32.mrb[0].mxu0
        %v8692 = vadd.f32 %v8651, %v8691
        %v8693 = vpop.f32.mrb[0].mxu0
        %v8694 = vadd.f32 %v8653, %v8693
        %v8695 = vpop.f32.mrb[0].mxu0
        %v8696 = vpop.f32.mrb[0].mxu0
        %8697 = vdwg.mxu0
        %8698 = vmatprep.subr.bf16.mxu0 %v7199
        %8699 = vmatpush1.bf16.msra.mxu0 %v7198
        %8700 = vmatprep.subr.bf16.mxu0 %v7203
        %8701 = vmatpush1.bf16.msra.mxu0 %v7202
        %8702 = vmatprep.subr.bf16.mxu0 %v7207
        %8703 = vmatpush1.bf16.msra.mxu0 %v7206
        %8704 = vmatprep.subr.bf16.mxu0 %v7211
        %8705 = vmatpush1.bf16.msra.mxu0 %v7210
        %8706 = vmatprep.subr.bf16.mxu0 %v7215
        %8707 = vmatpush1.bf16.msra.mxu0 %v7214
        %8708 = vmatprep.subr.bf16.mxu0 %v7219
        %8709 = vmatpush1.bf16.msra.mxu0 %v7218
        %8710 = vmatprep.subr.bf16.mxu0 %v7223
        %8711 = vmatpush1.bf16.msra.mxu0 %v7222
        %8712 = vmatprep.subr.bf16.mxu0 %v7227
        %8713 = vmatpush1.bf16.msra.mxu0 %v7226
        %8714 = vmatprep.subr.bf16.mxu0 %v7231
        %8715 = vmatpush1.bf16.msra.mxu0 %v7230
        %8716 = vmatprep.subr.bf16.mxu0 %v7235
        %8717 = vmatpush1.bf16.msra.mxu0 %v7234
        %8718 = vmatprep.subr.bf16.mxu0 %v7239
        %8719 = vmatpush1.bf16.msra.mxu0 %v7238
        %8720 = vmatprep.subr.bf16.mxu0 %v7243
        %8721 = vmatpush1.bf16.msra.mxu0 %v7242
        %8722 = vmatprep.subr.bf16.mxu0 %v7247
        %8723 = vmatpush1.bf16.msra.mxu0 %v7246
        %8724 = vmatprep.subr.bf16.mxu0 %v7251
        %8725 = vmatpush1.bf16.msra.mxu0 %v7250
        %8726 = vmatprep.subr.bf16.mxu0 %v7255
        %8727 = vmatpush1.bf16.msra.mxu0 %v7254
        %8728 = vmatprep.subr.bf16.mxu0 %v7259
        %8729 = vmatpush1.bf16.msra.mxu0 %v7258
        %8730 = vmatprep.mubr.bf16.mxu0 %v3789
        %8731 = vmatmul.mubr.bf16.gmra.mrb[0].mxu0 %v3788
        %v8732 = vpop.f32.mrb[0].mxu0
        %v8733 = vadd.f32 %v8692, %v8732
        %v8734 = vpop.f32.mrb[0].mxu0
        %v8735 = vadd.f32 %v8694, %v8734
        %v8736 = vpop.f32.mrb[0].mxu0
        %v8737 = vpop.f32.mrb[0].mxu0
        %8738 = vdwg.mxu0
        %8739 = vmatprep.subr.bf16.mxu0 %v7263
        %8740 = vmatpush1.bf16.msra.mxu0 %v7262
        %8741 = vmatprep.subr.bf16.mxu0 %v7267
        %8742 = vmatpush1.bf16.msra.mxu0 %v7266
        %8743 = vmatprep.subr.bf16.mxu0 %v7271
        %8744 = vmatpush1.bf16.msra.mxu0 %v7270
        %8745 = vmatprep.subr.bf16.mxu0 %v7275
        %8746 = vmatpush1.bf16.msra.mxu0 %v7274
        %8747 = vmatprep.subr.bf16.mxu0 %v7279
        %8748 = vmatpush1.bf16.msra.mxu0 %v7278
        %8749 = vmatprep.subr.bf16.mxu0 %v7283
        %8750 = vmatpush1.bf16.msra.mxu0 %v7282
        %8751 = vmatprep.subr.bf16.mxu0 %v7287
        %8752 = vmatpush1.bf16.msra.mxu0 %v7286
        %8753 = vmatprep.subr.bf16.mxu0 %v7291
        %8754 = vmatpush1.bf16.msra.mxu0 %v7290
        %8755 = vmatprep.subr.bf16.mxu0 %v7295
        %8756 = vmatpush1.bf16.msra.mxu0 %v7294
        %8757 = vmatprep.subr.bf16.mxu0 %v7299
        %8758 = vmatpush1.bf16.msra.mxu0 %v7298
        %8759 = vmatprep.subr.bf16.mxu0 %v7303
        %8760 = vmatpush1.bf16.msra.mxu0 %v7302
        %8761 = vmatprep.subr.bf16.mxu0 %v7307
        %8762 = vmatpush1.bf16.msra.mxu0 %v7306
        %8763 = vmatprep.subr.bf16.mxu0 %v7311
        %8764 = vmatpush1.bf16.msra.mxu0 %v7310
        %8765 = vmatprep.subr.bf16.mxu0 %v7315
        %8766 = vmatpush1.bf16.msra.mxu0 %v7314
        %8767 = vmatprep.subr.bf16.mxu0 %v7319
        %8768 = vmatpush1.bf16.msra.mxu0 %v7318
        %8769 = vmatprep.subr.bf16.mxu0 %v7323
        %8770 = vmatpush1.bf16.msra.mxu0 %v7322
        %8771 = vmatprep.mubr.bf16.mxu0 %v3791
        %8772 = vmatmul.mubr.bf16.gmra.mrb[0].mxu0 %v3790
        %v8773 = vpop.f32.mrb[0].mxu0
        %v8774 = vadd.f32 %v8733, %v8773
        %v8775 = vpop.f32.mrb[0].mxu0
        %v8776 = vadd.f32 %v8735, %v8775
        %v8777 = vpop.f32.mrb[0].mxu0
        %v8778 = vpop.f32.mrb[0].mxu0
        %8779 = vdwg.mxu0
        %8780 = vmatprep.subr.bf16.mxu0 %v7327
        %8781 = vmatpush1.bf16.msra.mxu0 %v7326
        %8782 = vmatprep.subr.bf16.mxu0 %v7331
        %8783 = vmatpush1.bf16.msra.mxu0 %v7330
        %8784 = vmatprep.subr.bf16.mxu0 %v7335
        %8785 = vmatpush1.bf16.msra.mxu0 %v7334
        %8786 = vmatprep.subr.bf16.mxu0 %v7339
        %8787 = vmatpush1.bf16.msra.mxu0 %v7338
        %8788 = vmatprep.subr.bf16.mxu0 %v7343
        %8789 = vmatpush1.bf16.msra.mxu0 %v7342
        %8790 = vmatprep.subr.bf16.mxu0 %v7347
        %8791 = vmatpush1.bf16.msra.mxu0 %v7346
        %8792 = vmatprep.subr.bf16.mxu0 %v7351
        %8793 = vmatpush1.bf16.msra.mxu0 %v7350
        %8794 = vmatprep.subr.bf16.mxu0 %v7355
        %8795 = vmatpush1.bf16.msra.mxu0 %v7354
        %8796 = vmatprep.subr.bf16.mxu0 %v7359
        %8797 = vmatpush1.bf16.msra.mxu0 %v7358
        %8798 = vmatprep.subr.bf16.mxu0 %v7363
        %8799 = vmatpush1.bf16.msra.mxu0 %v7362
        %8800 = vmatprep.subr.bf16.mxu0 %v7367
        %8801 = vmatpush1.bf16.msra.mxu0 %v7366
        %8802 = vmatprep.subr.bf16.mxu0 %v7371
        %8803 = vmatpush1.bf16.msra.mxu0 %v7370
        %8804 = vmatprep.subr.bf16.mxu0 %v7375
        %8805 = vmatpush1.bf16.msra.mxu0 %v7374
        %8806 = vmatprep.subr.bf16.mxu0 %v7379
        %8807 = vmatpush1.bf16.msra.mxu0 %v7378
        %8808 = vmatprep.subr.bf16.mxu0 %v7383
        %8809 = vmatpush1.bf16.msra.mxu0 %v7382
        %8810 = vmatprep.subr.bf16.mxu0 %v7387
        %8811 = vmatpush1.bf16.msra.mxu0 %v7386
        %8812 = vmatprep.mubr.bf16.mxu0 %v3793
        %8813 = vmatmul.mubr.bf16.gmra.mrb[0].mxu0 %v3792
        %v8814 = vpop.f32.mrb[0].mxu0
        %v8815 = vadd.f32 %v8774, %v8814
        %v8816 = vpop.f32.mrb[0].mxu0
        %v8817 = vadd.f32 %v8776, %v8816
        %v8818 = vpop.f32.mrb[0].mxu0
        %v8819 = vpop.f32.mrb[0].mxu0
        %8820 = vdwg.mxu0
        %8821 = vmatprep.subr.bf16.mxu0 %v7391
        %8822 = vmatpush1.bf16.msra.mxu0 %v7390
        %8823 = vmatprep.subr.bf16.mxu0 %v7395
        %8824 = vmatpush1.bf16.msra.mxu0 %v7394
        %8825 = vmatprep.subr.bf16.mxu0 %v7399
        %8826 = vmatpush1.bf16.msra.mxu0 %v7398
        %8827 = vmatprep.subr.bf16.mxu0 %v7403
        %8828 = vmatpush1.bf16.msra.mxu0 %v7402
        %8829 = vmatprep.subr.bf16.mxu0 %v7407
        %8830 = vmatpush1.bf16.msra.mxu0 %v7406
        %8831 = vmatprep.subr.bf16.mxu0 %v7411
        %8832 = vmatpush1.bf16.msra.mxu0 %v7410
        %8833 = vmatprep.subr.bf16.mxu0 %v7415
        %8834 = vmatpush1.bf16.msra.mxu0 %v7414
        %8835 = vmatprep.subr.bf16.mxu0 %v7419
        %8836 = vmatpush1.bf16.msra.mxu0 %v7418
        %8837 = vmatprep.subr.bf16.mxu0 %v7423
        %8838 = vmatpush1.bf16.msra.mxu0 %v7422
        %8839 = vmatprep.subr.bf16.mxu0 %v7427
        %8840 = vmatpush1.bf16.msra.mxu0 %v7426
        %8841 = vmatprep.subr.bf16.mxu0 %v7431
        %8842 = vmatpush1.bf16.msra.mxu0 %v7430
        %8843 = vmatprep.subr.bf16.mxu0 %v7435
        %8844 = vmatpush1.bf16.msra.mxu0 %v7434
        %8845 = vmatprep.subr.bf16.mxu0 %v7439
        %8846 = vmatpush1.bf16.msra.mxu0 %v7438
        %8847 = vmatprep.subr.bf16.mxu0 %v7443
        %8848 = vmatpush1.bf16.msra.mxu0 %v7442
        %8849 = vmatprep.subr.bf16.mxu0 %v7447
        %8850 = vmatpush1.bf16.msra.mxu0 %v7446
        %8851 = vmatprep.subr.bf16.mxu0 %v7451
        %8852 = vmatpush1.bf16.msra.mxu0 %v7450
        %8853 = vmatprep.mubr.bf16.mxu0 %v3795
        %8854 = vmatmul.mubr.bf16.gmra.mrb[0].mxu0 %v3794
        %v8855 = vpop.f32.mrb[0].mxu0
        %v8856 = vadd.f32 %v8815, %v8855
        %v8857 = vpop.f32.mrb[0].mxu0
        %v8858 = vadd.f32 %v8817, %v8857
        %v8859 = vpop.f32.mrb[0].mxu0
        %v8860 = vpop.f32.mrb[0].mxu0
        %8861 = vdwg.mxu0
        %8862 = vmatprep.subr.bf16.mxu0 %v7455
        %8863 = vmatpush1.bf16.msra.mxu0 %v7454
        %8864 = vmatprep.subr.bf16.mxu0 %v7459
        %8865 = vmatpush1.bf16.msra.mxu0 %v7458
        %8866 = vmatprep.subr.bf16.mxu0 %v7463
        %8867 = vmatpush1.bf16.msra.mxu0 %v7462
        %8868 = vmatprep.subr.bf16.mxu0 %v7467
        %8869 = vmatpush1.bf16.msra.mxu0 %v7466
        %8870 = vmatprep.subr.bf16.mxu0 %v7471
        %8871 = vmatpush1.bf16.msra.mxu0 %v7470
        %8872 = vmatprep.subr.bf16.mxu0 %v7475
        %8873 = vmatpush1.bf16.msra.mxu0 %v7474
        %8874 = vmatprep.subr.bf16.mxu0 %v7479
        %8875 = vmatpush1.bf16.msra.mxu0 %v7478
        %8876 = vmatprep.subr.bf16.mxu0 %v7483
        %8877 = vmatpush1.bf16.msra.mxu0 %v7482
        %8878 = vmatprep.subr.bf16.mxu0 %v7487
        %8879 = vmatpush1.bf16.msra.mxu0 %v7486
        %8880 = vmatprep.subr.bf16.mxu0 %v7491
        %8881 = vmatpush1.bf16.msra.mxu0 %v7490
        %8882 = vmatprep.subr.bf16.mxu0 %v7495
        %8883 = vmatpush1.bf16.msra.mxu0 %v7494
        %8884 = vmatprep.subr.bf16.mxu0 %v7499
        %8885 = vmatpush1.bf16.msra.mxu0 %v7498
        %8886 = vmatprep.subr.bf16.mxu0 %v7503
        %8887 = vmatpush1.bf16.msra.mxu0 %v7502
        %8888 = vmatprep.subr.bf16.mxu0 %v7507
        %8889 = vmatpush1.bf16.msra.mxu0 %v7506
        %8890 = vmatprep.subr.bf16.mxu0 %v7511
        %8891 = vmatpush1.bf16.msra.mxu0 %v7510
        %8892 = vmatprep.subr.bf16.mxu0 %v7515
        %8893 = vmatpush1.bf16.msra.mxu0 %v7514
        %8894 = vmatprep.mubr.bf16.mxu0 %v3797
        %8895 = vmatmul.mubr.bf16.gmra.mrb[0].mxu0 %v3796
        %v8896 = vpop.f32.mrb[0].mxu0
        %v8897 = vadd.f32 %v8856, %v8896
        %v8898 = vpop.f32.mrb[0].mxu0
        %v8899 = vadd.f32 %v8858, %v8898
        %v8900 = vpop.f32.mrb[0].mxu0
        %v8901 = vpop.f32.mrb[0].mxu0
        %8902 = vdwg.mxu0
        %8903 = vmatprep.subr.bf16.mxu0 %v7519
        %8904 = vmatpush1.bf16.msra.mxu0 %v7518
        %8905 = vmatprep.subr.bf16.mxu0 %v7523
        %8906 = vmatpush1.bf16.msra.mxu0 %v7522
        %8907 = vmatprep.subr.bf16.mxu0 %v7527
        %8908 = vmatpush1.bf16.msra.mxu0 %v7526
        %8909 = vmatprep.subr.bf16.mxu0 %v7531
        %8910 = vmatpush1.bf16.msra.mxu0 %v7530
        %8911 = vmatprep.subr.bf16.mxu0 %v7535
        %8912 = vmatpush1.bf16.msra.mxu0 %v7534
        %8913 = vmatprep.subr.bf16.mxu0 %v7539
        %8914 = vmatpush1.bf16.msra.mxu0 %v7538
        %8915 = vmatprep.subr.bf16.mxu0 %v7543
        %8916 = vmatpush1.bf16.msra.mxu0 %v7542
        %8917 = vmatprep.subr.bf16.mxu0 %v7547
        %8918 = vmatpush1.bf16.msra.mxu0 %v7546
        %8919 = vmatprep.subr.bf16.mxu0 %v7551
        %8920 = vmatpush1.bf16.msra.mxu0 %v7550
        %8921 = vmatprep.subr.bf16.mxu0 %v7555
        %8922 = vmatpush1.bf16.msra.mxu0 %v7554
        %8923 = vmatprep.subr.bf16.mxu0 %v7559
        %8924 = vmatpush1.bf16.msra.mxu0 %v7558
        %8925 = vmatprep.subr.bf16.mxu0 %v7563
        %8926 = vmatpush1.bf16.msra.mxu0 %v7562
        %8927 = vmatprep.subr.bf16.mxu0 %v7567
        %8928 = vmatpush1.bf16.msra.mxu0 %v7566
        %8929 = vmatprep.subr.bf16.mxu0 %v7571
        %8930 = vmatpush1.bf16.msra.mxu0 %v7570
        %8931 = vmatprep.subr.bf16.mxu0 %v7575
        %8932 = vmatpush1.bf16.msra.mxu0 %v7574
        %8933 = vmatprep.subr.bf16.mxu0 %v7579
        %8934 = vmatpush1.bf16.msra.mxu0 %v7578
        %8935 = vmatprep.mubr.bf16.mxu0 %v3799
        %8936 = vmatmul.mubr.bf16.gmra.mrb[0].mxu0 %v3798
        %v8937 = vpop.f32.mrb[0].mxu0
        %v8938 = vadd.f32 %v8897, %v8937
        %v8939 = vpop.f32.mrb[0].mxu0
        %v8940 = vadd.f32 %v8899, %v8939
        %v8941 = vpop.f32.mrb[0].mxu0
        %v8942 = vpop.f32.mrb[0].mxu0
        %8943 = vdwg.mxu0
        %8944 = vmatprep.subr.bf16.mxu0 %v7583
        %8945 = vmatpush1.bf16.msra.mxu0 %v7582
        %8946 = vmatprep.subr.bf16.mxu0 %v7587
        %8947 = vmatpush1.bf16.msra.mxu0 %v7586
        %8948 = vmatprep.subr.bf16.mxu0 %v7591
        %8949 = vmatpush1.bf16.msra.mxu0 %v7590
        %8950 = vmatprep.subr.bf16.mxu0 %v7595
        %8951 = vmatpush1.bf16.msra.mxu0 %v7594
        %8952 = vmatprep.subr.bf16.mxu0 %v7599
        %8953 = vmatpush1.bf16.msra.mxu0 %v7598
        %8954 = vmatprep.subr.bf16.mxu0 %v7603
        %8955 = vmatpush1.bf16.msra.mxu0 %v7602
        %8956 = vmatprep.subr.bf16.mxu0 %v7607
        %8957 = vmatpush1.bf16.msra.mxu0 %v7606
        %8958 = vmatprep.subr.bf16.mxu0 %v7611
        %8959 = vmatpush1.bf16.msra.mxu0 %v7610
        %8960 = vmatprep.subr.bf16.mxu0 %v7615
        %8961 = vmatpush1.bf16.msra.mxu0 %v7614
        %8962 = vmatprep.subr.bf16.mxu0 %v7619
        %8963 = vmatpush1.bf16.msra.mxu0 %v7618
        %8964 = vmatprep.subr.bf16.mxu0 %v7623
        %8965 = vmatpush1.bf16.msra.mxu0 %v7622
        %8966 = vmatprep.subr.bf16.mxu0 %v7627
        %8967 = vmatpush1.bf16.msra.mxu0 %v7626
        %8968 = vmatprep.subr.bf16.mxu0 %v7631
        %8969 = vmatpush1.bf16.msra.mxu0 %v7630
        %8970 = vmatprep.subr.bf16.mxu0 %v7635
        %8971 = vmatpush1.bf16.msra.mxu0 %v7634
        %8972 = vmatprep.subr.bf16.mxu0 %v7639
        %8973 = vmatpush1.bf16.msra.mxu0 %v7638
        %8974 = vmatprep.subr.bf16.mxu0 %v7643
        %8975 = vmatpush1.bf16.msra.mxu0 %v7642
        %8976 = vmatprep.mubr.bf16.mxu0 %v3801
        %8977 = vmatmul.mubr.bf16.gmra.mrb[0].mxu0 %v3800
        %v8978 = vpop.f32.mrb[0].mxu0
        %v8979 = vadd.f32 %v8938, %v8978
        %v8980 = vpop.f32.mrb[0].mxu0
        %v8981 = vadd.f32 %v8940, %v8980
        %v8982 = vpop.f32.mrb[0].mxu0
        %v8983 = vpop.f32.mrb[0].mxu0
        %8984 = vdwg.mxu0
        %8985 = vmatprep.subr.bf16.mxu0 %v7647
        %8986 = vmatpush1.bf16.msra.mxu0 %v7646
        %8987 = vmatprep.subr.bf16.mxu0 %v7651
        %8988 = vmatpush1.bf16.msra.mxu0 %v7650
        %8989 = vmatprep.subr.bf16.mxu0 %v7655
        %8990 = vmatpush1.bf16.msra.mxu0 %v7654
        %8991 = vmatprep.subr.bf16.mxu0 %v7659
        %8992 = vmatpush1.bf16.msra.mxu0 %v7658
        %8993 = vmatprep.subr.bf16.mxu0 %v7663
        %8994 = vmatpush1.bf16.msra.mxu0 %v7662
        %8995 = vmatprep.subr.bf16.mxu0 %v7667
        %8996 = vmatpush1.bf16.msra.mxu0 %v7666
        %8997 = vmatprep.subr.bf16.mxu0 %v7671
        %8998 = vmatpush1.bf16.msra.mxu0 %v7670
        %8999 = vmatprep.subr.bf16.mxu0 %v7675
        %9000 = vmatpush1.bf16.msra.mxu0 %v7674
        %9001 = vmatprep.subr.bf16.mxu0 %v7679
        %9002 = vmatpush1.bf16.msra.mxu0 %v7678
        %9003 = vmatprep.subr.bf16.mxu0 %v7683
        %9004 = vmatpush1.bf16.msra.mxu0 %v7682
        %9005 = vmatprep.subr.bf16.mxu0 %v7687
        %9006 = vmatpush1.bf16.msra.mxu0 %v7686
        %9007 = vmatprep.subr.bf16.mxu0 %v7691
        %9008 = vmatpush1.bf16.msra.mxu0 %v7690
        %9009 = vmatprep.subr.bf16.mxu0 %v7695
        %9010 = vmatpush1.bf16.msra.mxu0 %v7694
        %9011 = vmatprep.subr.bf16.mxu0 %v7699
        %9012 = vmatpush1.bf16.msra.mxu0 %v7698
        %9013 = vmatprep.subr.bf16.mxu0 %v7703
        %9014 = vmatpush1.bf16.msra.mxu0 %v7702
        %9015 = vmatprep.subr.bf16.mxu0 %v7707
        %9016 = vmatpush1.bf16.msra.mxu0 %v7706
        %9017 = vmatprep.mubr.bf16.mxu0 %v3803
        %9018 = vmatmul.mubr.bf16.gmra.mrb[0].mxu0 %v3802
        %v9019 = vpop.f32.mrb[0].mxu0
        %v9020 = vadd.f32 %v8979, %v9019
        %v9021 = vpop.f32.mrb[0].mxu0
        %v9022 = vadd.f32 %v8981, %v9021
        %v9023 = vpop.f32.mrb[0].mxu0
        %v9024 = vpop.f32.mrb[0].mxu0
        %9025 = vdwg.mxu0
        %9026 = vmatprep.subr.bf16.mxu0 %v7711
        %9027 = vmatpush1.bf16.msra.mxu0 %v7710
        %9028 = vmatprep.subr.bf16.mxu0 %v7715
        %9029 = vmatpush1.bf16.msra.mxu0 %v7714
        %9030 = vmatprep.subr.bf16.mxu0 %v7719
        %9031 = vmatpush1.bf16.msra.mxu0 %v7718
        %9032 = vmatprep.subr.bf16.mxu0 %v7723
        %9033 = vmatpush1.bf16.msra.mxu0 %v7722
        %9034 = vmatprep.subr.bf16.mxu0 0
        %9035 = vmatpush1.bf16.msra.mxu0 0
        %9036 = vmatprep.subr.bf16.mxu0 0
        %9037 = vmatpush1.bf16.msra.mxu0 0
        %9038 = vmatprep.subr.bf16.mxu0 0
        %9039 = vmatpush1.bf16.msra.mxu0 0
        %9040 = vmatprep.subr.bf16.mxu0 0
        %9041 = vmatpush1.bf16.msra.mxu0 0
        %9042 = vmatprep.subr.bf16.mxu0 0
        %9043 = vmatpush1.bf16.msra.mxu0 0
        %9044 = vmatprep.subr.bf16.mxu0 0
        %9045 = vmatpush1.bf16.msra.mxu0 0
        %9046 = vmatprep.subr.bf16.mxu0 0
        %9047 = vmatpush1.bf16.msra.mxu0 0
        %9048 = vmatprep.subr.bf16.mxu0 0
        %9049 = vmatpush1.bf16.msra.mxu0 0
        %9050 = vmatprep.subr.bf16.mxu0 0
        %9051 = vmatpush1.bf16.msra.mxu0 0
        %9052 = vmatprep.subr.bf16.mxu0 0
        %9053 = vmatpush1.bf16.msra.mxu0 0
        %9054 = vmatprep.subr.bf16.mxu0 0
        %9055 = vmatpush1.bf16.msra.mxu0 0
        %9056 = vmatprep.subr.bf16.mxu0 0
        %9057 = vmatpush1.bf16.msra.mxu0 0
        %9058 = vmatprep.mubr.bf16.mxu0 0
        %9059 = vmatmul.mubr.bf16.gmra.mrb[0].mxu0 %v8532
        %v9060 = vpop.f32.mrb[0].mxu0
        %v9061 = vadd.f32 %v9020, %v9060
        %v9062 = vpop.f32.mrb[0].mxu0
        %v9063 = vadd.f32 %v9022, %v9062
        %v9064 = vpop.f32.mrb[0].mxu0
        %v9065 = vpop.f32.mrb[0].mxu0
        %9066 = vdwg.mxu0
        %9067 = vmatprep.subr.bf16.mxu0 %v6945
        %9068 = vmatpush1.bf16.msra.mxu0 %v6944
        %9069 = vmatprep.subr.bf16.mxu0 %v6949
        %9070 = vmatpush1.bf16.msra.mxu0 %v6948
        %9071 = vmatprep.subr.bf16.mxu0 %v6953
        %9072 = vmatpush1.bf16.msra.mxu0 %v6952
        %9073 = vmatprep.subr.bf16.mxu0 %v6957
        %9074 = vmatpush1.bf16.msra.mxu0 %v6956
        %9075 = vmatprep.subr.bf16.mxu0 %v6961
        %9076 = vmatpush1.bf16.msra.mxu0 %v6960
        %9077 = vmatprep.subr.bf16.mxu0 %v6965
        %9078 = vmatpush1.bf16.msra.mxu0 %v6964
        %9079 = vmatprep.subr.bf16.mxu0 %v6969
        %9080 = vmatpush1.bf16.msra.mxu0 %v6968
        %9081 = vmatprep.subr.bf16.mxu0 %v6973
        %9082 = vmatpush1.bf16.msra.mxu0 %v6972
        %9083 = vmatprep.subr.bf16.mxu0 %v6977
        %9084 = vmatpush1.bf16.msra.mxu0 %v6976
        %9085 = vmatprep.subr.bf16.mxu0 %v6981
        %9086 = vmatpush1.bf16.msra.mxu0 %v6980
        %9087 = vmatprep.subr.bf16.mxu0 %v6985
        %9088 = vmatpush1.bf16.msra.mxu0 %v6984
        %9089 = vmatprep.subr.bf16.mxu0 %v6989
        %9090 = vmatpush1.bf16.msra.mxu0 %v6988
        %9091 = vmatprep.subr.bf16.mxu0 %v6993
        %9092 = vmatpush1.bf16.msra.mxu0 %v6992
        %9093 = vmatprep.subr.bf16.mxu0 %v6997
        %9094 = vmatpush1.bf16.msra.mxu0 %v6996
        %9095 = vmatprep.subr.bf16.mxu0 %v7001
        %9096 = vmatpush1.bf16.msra.mxu0 %v7000
        %9097 = vmatprep.subr.bf16.mxu0 %v7005
        %9098 = vmatpush1.bf16.msra.mxu0 %v7004
        %9099 = vmatprep.mubr.bf16.mxu0 %v3781
        %9100 = vmatmul.mubr.bf16.gmra.mrb[0].mxu0 %v3780
        %v9101 = vpop.f32.mrb[0].mxu0
        %v9102 = vadd.f32 %v8522, %v9101
        %v9103 = vpop.f32.mrb[0].mxu0
        %v9104 = vadd.f32 %v8526, %v9103
        %v9105 = vpop.f32.mrb[0].mxu0
        %v9106 = vpop.f32.mrb[0].mxu0
        %9107 = vdwg.mxu0
        %9108 = vmatprep.subr.bf16.mxu0 %v7009
        %9109 = vmatpush1.bf16.msra.mxu0 %v7008
        %9110 = vmatprep.subr.bf16.mxu0 %v7013
        %9111 = vmatpush1.bf16.msra.mxu0 %v7012
        %9112 = vmatprep.subr.bf16.mxu0 %v7017
        %9113 = vmatpush1.bf16.msra.mxu0 %v7016
        %9114 = vmatprep.subr.bf16.mxu0 %v7021
        %9115 = vmatpush1.bf16.msra.mxu0 %v7020
        %9116 = vmatprep.subr.bf16.mxu0 %v7025
        %9117 = vmatpush1.bf16.msra.mxu0 %v7024
        %9118 = vmatprep.subr.bf16.mxu0 %v7029
        %9119 = vmatpush1.bf16.msra.mxu0 %v7028
        %9120 = vmatprep.subr.bf16.mxu0 %v7033
        %9121 = vmatpush1.bf16.msra.mxu0 %v7032
        %9122 = vmatprep.subr.bf16.mxu0 %v7037
        %9123 = vmatpush1.bf16.msra.mxu0 %v7036
        %9124 = vmatprep.subr.bf16.mxu0 %v7041
        %9125 = vmatpush1.bf16.msra.mxu0 %v7040
        %9126 = vmatprep.subr.bf16.mxu0 %v7045
        %9127 = vmatpush1.bf16.msra.mxu0 %v7044
        %9128 = vmatprep.subr.bf16.mxu0 %v7049
        %9129 = vmatpush1.bf16.msra.mxu0 %v7048
        %9130 = vmatprep.subr.bf16.mxu0 %v7053
        %9131 = vmatpush1.bf16.msra.mxu0 %v7052
        %9132 = vmatprep.subr.bf16.mxu0 %v7057
        %9133 = vmatpush1.bf16.msra.mxu0 %v7056
        %9134 = vmatprep.subr.bf16.mxu0 %v7061
        %9135 = vmatpush1.bf16.msra.mxu0 %v7060
        %9136 = vmatprep.subr.bf16.mxu0 %v7065
        %9137 = vmatpush1.bf16.msra.mxu0 %v7064
        %9138 = vmatprep.subr.bf16.mxu0 %v7069
        %9139 = vmatpush1.bf16.msra.mxu0 %v7068
        %9140 = vmatprep.mubr.bf16.mxu0 %v3783
        %9141 = vmatmul.mubr.bf16.gmra.mrb[0].mxu0 %v3782
        %v9142 = vpop.f32.mrb[0].mxu0
        %v9143 = vadd.f32 %v9102, %v9142
        %v9144 = vpop.f32.mrb[0].mxu0
        %v9145 = vadd.f32 %v9104, %v9144
        %v9146 = vpop.f32.mrb[0].mxu0
        %v9147 = vpop.f32.mrb[0].mxu0
        %9148 = vdwg.mxu0
        %9149 = vmatprep.subr.bf16.mxu0 %v7073
        %9150 = vmatpush1.bf16.msra.mxu0 %v7072
        %9151 = vmatprep.subr.bf16.mxu0 %v7077
        %9152 = vmatpush1.bf16.msra.mxu0 %v7076
        %9153 = vmatprep.subr.bf16.mxu0 %v7081
        %9154 = vmatpush1.bf16.msra.mxu0 %v7080
        %9155 = vmatprep.subr.bf16.mxu0 %v7085
        %9156 = vmatpush1.bf16.msra.mxu0 %v7084
        %9157 = vmatprep.subr.bf16.mxu0 %v7089
        %9158 = vmatpush1.bf16.msra.mxu0 %v7088
        %9159 = vmatprep.subr.bf16.mxu0 %v7093
        %9160 = vmatpush1.bf16.msra.mxu0 %v7092
        %9161 = vmatprep.subr.bf16.mxu0 %v7097
        %9162 = vmatpush1.bf16.msra.mxu0 %v7096
        %9163 = vmatprep.subr.bf16.mxu0 %v7101
        %9164 = vmatpush1.bf16.msra.mxu0 %v7100
        %9165 = vmatprep.subr.bf16.mxu0 %v7105
        %9166 = vmatpush1.bf16.msra.mxu0 %v7104
        %9167 = vmatprep.subr.bf16.mxu0 %v7109
        %9168 = vmatpush1.bf16.msra.mxu0 %v7108
        %9169 = vmatprep.subr.bf16.mxu0 %v7113
        %9170 = vmatpush1.bf16.msra.mxu0 %v7112
        %9171 = vmatprep.subr.bf16.mxu0 %v7117
        %9172 = vmatpush1.bf16.msra.mxu0 %v7116
        %9173 = vmatprep.subr.bf16.mxu0 %v7121
        %9174 = vmatpush1.bf16.msra.mxu0 %v7120
        %9175 = vmatprep.subr.bf16.mxu0 %v7125
        %9176 = vmatpush1.bf16.msra.mxu0 %v7124
        %9177 = vmatprep.subr.bf16.mxu0 %v7129
        %9178 = vmatpush1.bf16.msra.mxu0 %v7128
        %9179 = vmatprep.subr.bf16.mxu0 %v7133
        %9180 = vmatpush1.bf16.msra.mxu0 %v7132
        %9181 = vmatprep.mubr.bf16.mxu0 %v3785
        %9182 = vmatmul.mubr.bf16.gmra.mrb[0].mxu0 %v3784
        %v9183 = vpop.f32.mrb[0].mxu0
        %v9184 = vadd.f32 %v9143, %v9183
        %v9185 = vpop.f32.mrb[0].mxu0
        %v9186 = vadd.f32 %v9145, %v9185
        %v9187 = vpop.f32.mrb[0].mxu0
        %v9188 = vpop.f32.mrb[0].mxu0
        %9189 = vdwg.mxu0
        %9190 = vmatprep.subr.bf16.mxu0 %v7137
        %9191 = vmatpush1.bf16.msra.mxu0 %v7136
        %9192 = vmatprep.subr.bf16.mxu0 %v7141
        %9193 = vmatpush1.bf16.msra.mxu0 %v7140
        %9194 = vmatprep.subr.bf16.mxu0 %v7145
        %9195 = vmatpush1.bf16.msra.mxu0 %v7144
        %9196 = vmatprep.subr.bf16.mxu0 %v7149
        %9197 = vmatpush1.bf16.msra.mxu0 %v7148
        %9198 = vmatprep.subr.bf16.mxu0 %v7153
        %9199 = vmatpush1.bf16.msra.mxu0 %v7152
        %9200 = vmatprep.subr.bf16.mxu0 %v7157
        %9201 = vmatpush1.bf16.msra.mxu0 %v7156
        %9202 = vmatprep.subr.bf16.mxu0 %v7161
        %9203 = vmatpush1.bf16.msra.mxu0 %v7160
        %9204 = vmatprep.subr.bf16.mxu0 %v7165
        %9205 = vmatpush1.bf16.msra.mxu0 %v7164
        %9206 = vmatprep.subr.bf16.mxu0 %v7169
        %9207 = vmatpush1.bf16.msra.mxu0 %v7168
        %9208 = vmatprep.subr.bf16.mxu0 %v7173
        %9209 = vmatpush1.bf16.msra.mxu0 %v7172
        %9210 = vmatprep.subr.bf16.mxu0 %v7177
        %9211 = vmatpush1.bf16.msra.mxu0 %v7176
        %9212 = vmatprep.subr.bf16.mxu0 %v7181
        %9213 = vmatpush1.bf16.msra.mxu0 %v7180
        %9214 = vmatprep.subr.bf16.mxu0 %v7185
        %9215 = vmatpush1.bf16.msra.mxu0 %v7184
        %9216 = vmatprep.subr.bf16.mxu0 %v7189
        %9217 = vmatpush1.bf16.msra.mxu0 %v7188
        %9218 = vmatprep.subr.bf16.mxu0 %v7193
        %9219 = vmatpush1.bf16.msra.mxu0 %v7192
        %9220 = vmatprep.subr.bf16.mxu0 %v7197
        %9221 = vmatpush1.bf16.msra.mxu0 %v7196
        %9222 = vmatprep.mubr.bf16.mxu0 %v3787
        %9223 = vmatmul.mubr.bf16.gmra.mrb[0].mxu0 %v3786
        %v9224 = vpop.f32.mrb[0].mxu0
        %v9225 = vadd.f32 %v9184, %v9224
        %v9226 = vpop.f32.mrb[0].mxu0
        %v9227 = vadd.f32 %v9186, %v9226
        %v9228 = vpop.f32.mrb[0].mxu0
        %v9229 = vpop.f32.mrb[0].mxu0
        %9230 = vdwg.mxu0
        %9231 = vmatprep.subr.bf16.mxu0 %v7201
        %9232 = vmatpush1.bf16.msra.mxu0 %v7200
        %9233 = vmatprep.subr.bf16.mxu0 %v7205
        %9234 = vmatpush1.bf16.msra.mxu0 %v7204
        %9235 = vmatprep.subr.bf16.mxu0 %v7209
        %9236 = vmatpush1.bf16.msra.mxu0 %v7208
        %9237 = vmatprep.subr.bf16.mxu0 %v7213
        %9238 = vmatpush1.bf16.msra.mxu0 %v7212
        %9239 = vmatprep.subr.bf16.mxu0 %v7217
        %9240 = vmatpush1.bf16.msra.mxu0 %v7216
        %9241 = vmatprep.subr.bf16.mxu0 %v7221
        %9242 = vmatpush1.bf16.msra.mxu0 %v7220
        %9243 = vmatprep.subr.bf16.mxu0 %v7225
        %9244 = vmatpush1.bf16.msra.mxu0 %v7224
        %9245 = vmatprep.subr.bf16.mxu0 %v7229
        %9246 = vmatpush1.bf16.msra.mxu0 %v7228
        %9247 = vmatprep.subr.bf16.mxu0 %v7233
        %9248 = vmatpush1.bf16.msra.mxu0 %v7232
        %9249 = vmatprep.subr.bf16.mxu0 %v7237
        %9250 = vmatpush1.bf16.msra.mxu0 %v7236
        %9251 = vmatprep.subr.bf16.mxu0 %v7241
        %9252 = vmatpush1.bf16.msra.mxu0 %v7240
        %9253 = vmatprep.subr.bf16.mxu0 %v7245
        %9254 = vmatpush1.bf16.msra.mxu0 %v7244
        %9255 = vmatprep.subr.bf16.mxu0 %v7249
        %9256 = vmatpush1.bf16.msra.mxu0 %v7248
        %9257 = vmatprep.subr.bf16.mxu0 %v7253
        %9258 = vmatpush1.bf16.msra.mxu0 %v7252
        %9259 = vmatprep.subr.bf16.mxu0 %v7257
        %9260 = vmatpush1.bf16.msra.mxu0 %v7256
        %9261 = vmatprep.subr.bf16.mxu0 %v7261
        %9262 = vmatpush1.bf16.msra.mxu0 %v7260
        %9263 = vmatprep.mubr.bf16.mxu0 %v3789
        %9264 = vmatmul.mubr.bf16.gmra.mrb[0].mxu0 %v3788
        %v9265 = vpop.f32.mrb[0].mxu0
        %v9266 = vadd.f32 %v9225, %v9265
        %v9267 = vpop.f32.mrb[0].mxu0
        %v9268 = vadd.f32 %v9227, %v9267
        %v9269 = vpop.f32.mrb[0].mxu0
        %v9270 = vpop.f32.mrb[0].mxu0
        %9271 = vdwg.mxu0
        %9272 = vmatprep.subr.bf16.mxu0 %v7265
        %9273 = vmatpush1.bf16.msra.mxu0 %v7264
        %9274 = vmatprep.subr.bf16.mxu0 %v7269
        %9275 = vmatpush1.bf16.msra.mxu0 %v7268
        %9276 = vmatprep.subr.bf16.mxu0 %v7273
        %9277 = vmatpush1.bf16.msra.mxu0 %v7272
        %9278 = vmatprep.subr.bf16.mxu0 %v7277
        %9279 = vmatpush1.bf16.msra.mxu0 %v7276
        %9280 = vmatprep.subr.bf16.mxu0 %v7281
        %9281 = vmatpush1.bf16.msra.mxu0 %v7280
        %9282 = vmatprep.subr.bf16.mxu0 %v7285
        %9283 = vmatpush1.bf16.msra.mxu0 %v7284
        %9284 = vmatprep.subr.bf16.mxu0 %v7289
        %9285 = vmatpush1.bf16.msra.mxu0 %v7288
        %9286 = vmatprep.subr.bf16.mxu0 %v7293
        %9287 = vmatpush1.bf16.msra.mxu0 %v7292
        %9288 = vmatprep.subr.bf16.mxu0 %v7297
        %9289 = vmatpush1.bf16.msra.mxu0 %v7296
        %9290 = vmatprep.subr.bf16.mxu0 %v7301
        %9291 = vmatpush1.bf16.msra.mxu0 %v7300
        %9292 = vmatprep.subr.bf16.mxu0 %v7305
        %9293 = vmatpush1.bf16.msra.mxu0 %v7304
        %9294 = vmatprep.subr.bf16.mxu0 %v7309
        %9295 = vmatpush1.bf16.msra.mxu0 %v7308
        %9296 = vmatprep.subr.bf16.mxu0 %v7313
        %9297 = vmatpush1.bf16.msra.mxu0 %v7312
        %9298 = vmatprep.subr.bf16.mxu0 %v7317
        %9299 = vmatpush1.bf16.msra.mxu0 %v7316
        %9300 = vmatprep.subr.bf16.mxu0 %v7321
        %9301 = vmatpush1.bf16.msra.mxu0 %v7320
        %9302 = vmatprep.subr.bf16.mxu0 %v7325
        %9303 = vmatpush1.bf16.msra.mxu0 %v7324
        %9304 = vmatprep.mubr.bf16.mxu0 %v3791
        %9305 = vmatmul.mubr.bf16.gmra.mrb[0].mxu0 %v3790
        %v9306 = vpop.f32.mrb[0].mxu0
        %v9307 = vadd.f32 %v9266, %v9306
        %v9308 = vpop.f32.mrb[0].mxu0
        %v9309 = vadd.f32 %v9268, %v9308
        %v9310 = vpop.f32.mrb[0].mxu0
        %v9311 = vpop.f32.mrb[0].mxu0
        %9312 = vdwg.mxu0
        %9313 = vmatprep.subr.bf16.mxu0 %v7329
        %9314 = vmatpush1.bf16.msra.mxu0 %v7328
        %9315 = vmatprep.subr.bf16.mxu0 %v7333
        %9316 = vmatpush1.bf16.msra.mxu0 %v7332
        %9317 = vmatprep.subr.bf16.mxu0 %v7337
        %9318 = vmatpush1.bf16.msra.mxu0 %v7336
        %9319 = vmatprep.subr.bf16.mxu0 %v7341
        %9320 = vmatpush1.bf16.msra.mxu0 %v7340
        %9321 = vmatprep.subr.bf16.mxu0 %v7345
        %9322 = vmatpush1.bf16.msra.mxu0 %v7344
        %9323 = vmatprep.subr.bf16.mxu0 %v7349
        %9324 = vmatpush1.bf16.msra.mxu0 %v7348
        %9325 = vmatprep.subr.bf16.mxu0 %v7353
        %9326 = vmatpush1.bf16.msra.mxu0 %v7352
        %9327 = vmatprep.subr.bf16.mxu0 %v7357
        %9328 = vmatpush1.bf16.msra.mxu0 %v7356
        %9329 = vmatprep.subr.bf16.mxu0 %v7361
        %9330 = vmatpush1.bf16.msra.mxu0 %v7360
        %9331 = vmatprep.subr.bf16.mxu0 %v7365
        %9332 = vmatpush1.bf16.msra.mxu0 %v7364
        %9333 = vmatprep.subr.bf16.mxu0 %v7369
        %9334 = vmatpush1.bf16.msra.mxu0 %v7368
        %9335 = vmatprep.subr.bf16.mxu0 %v7373
        %9336 = vmatpush1.bf16.msra.mxu0 %v7372
        %9337 = vmatprep.subr.bf16.mxu0 %v7377
        %9338 = vmatpush1.bf16.msra.mxu0 %v7376
        %9339 = vmatprep.subr.bf16.mxu0 %v7381
        %9340 = vmatpush1.bf16.msra.mxu0 %v7380
        %9341 = vmatprep.subr.bf16.mxu0 %v7385
        %9342 = vmatpush1.bf16.msra.mxu0 %v7384
        %9343 = vmatprep.subr.bf16.mxu0 %v7389
        %9344 = vmatpush1.bf16.msra.mxu0 %v7388
        %9345 = vmatprep.mubr.bf16.mxu0 %v3793
        %9346 = vmatmul.mubr.bf16.gmra.mrb[0].mxu0 %v3792
        %v9347 = vpop.f32.mrb[0].mxu0
        %v9348 = vadd.f32 %v9307, %v9347
        %v9349 = vpop.f32.mrb[0].mxu0
        %v9350 = vadd.f32 %v9309, %v9349
        %v9351 = vpop.f32.mrb[0].mxu0
        %v9352 = vpop.f32.mrb[0].mxu0
        %9353 = vdwg.mxu0
        %9354 = vmatprep.subr.bf16.mxu0 %v7393
        %9355 = vmatpush1.bf16.msra.mxu0 %v7392
        %9356 = vmatprep.subr.bf16.mxu0 %v7397
        %9357 = vmatpush1.bf16.msra.mxu0 %v7396
        %9358 = vmatprep.subr.bf16.mxu0 %v7401
        %9359 = vmatpush1.bf16.msra.mxu0 %v7400
        %9360 = vmatprep.subr.bf16.mxu0 %v7405
        %9361 = vmatpush1.bf16.msra.mxu0 %v7404
        %9362 = vmatprep.subr.bf16.mxu0 %v7409
        %9363 = vmatpush1.bf16.msra.mxu0 %v7408
        %9364 = vmatprep.subr.bf16.mxu0 %v7413
        %9365 = vmatpush1.bf16.msra.mxu0 %v7412
        %9366 = vmatprep.subr.bf16.mxu0 %v7417
        %9367 = vmatpush1.bf16.msra.mxu0 %v7416
        %9368 = vmatprep.subr.bf16.mxu0 %v7421
        %9369 = vmatpush1.bf16.msra.mxu0 %v7420
        %9370 = vmatprep.subr.bf16.mxu0 %v7425
        %9371 = vmatpush1.bf16.msra.mxu0 %v7424
        %9372 = vmatprep.subr.bf16.mxu0 %v7429
        %9373 = vmatpush1.bf16.msra.mxu0 %v7428
        %9374 = vmatprep.subr.bf16.mxu0 %v7433
        %9375 = vmatpush1.bf16.msra.mxu0 %v7432
        %9376 = vmatprep.subr.bf16.mxu0 %v7437
        %9377 = vmatpush1.bf16.msra.mxu0 %v7436
        %9378 = vmatprep.subr.bf16.mxu0 %v7441
        %9379 = vmatpush1.bf16.msra.mxu0 %v7440
        %9380 = vmatprep.subr.bf16.mxu0 %v7445
        %9381 = vmatpush1.bf16.msra.mxu0 %v7444
        %9382 = vmatprep.subr.bf16.mxu0 %v7449
        %9383 = vmatpush1.bf16.msra.mxu0 %v7448
        %9384 = vmatprep.subr.bf16.mxu0 %v7453
        %9385 = vmatpush1.bf16.msra.mxu0 %v7452
        %9386 = vmatprep.mubr.bf16.mxu0 %v3795
        %9387 = vmatmul.mubr.bf16.gmra.mrb[0].mxu0 %v3794
        %v9388 = vpop.f32.mrb[0].mxu0
        %v9389 = vadd.f32 %v9348, %v9388
        %v9390 = vpop.f32.mrb[0].mxu0
        %v9391 = vadd.f32 %v9350, %v9390
        %v9392 = vpop.f32.mrb[0].mxu0
        %v9393 = vpop.f32.mrb[0].mxu0
        %9394 = vdwg.mxu0
        %9395 = vmatprep.subr.bf16.mxu0 %v7457
        %9396 = vmatpush1.bf16.msra.mxu0 %v7456
        %9397 = vmatprep.subr.bf16.mxu0 %v7461
        %9398 = vmatpush1.bf16.msra.mxu0 %v7460
        %9399 = vmatprep.subr.bf16.mxu0 %v7465
        %9400 = vmatpush1.bf16.msra.mxu0 %v7464
        %9401 = vmatprep.subr.bf16.mxu0 %v7469
        %9402 = vmatpush1.bf16.msra.mxu0 %v7468
        %9403 = vmatprep.subr.bf16.mxu0 %v7473
        %9404 = vmatpush1.bf16.msra.mxu0 %v7472
        %9405 = vmatprep.subr.bf16.mxu0 %v7477
        %9406 = vmatpush1.bf16.msra.mxu0 %v7476
        %9407 = vmatprep.subr.bf16.mxu0 %v7481
        %9408 = vmatpush1.bf16.msra.mxu0 %v7480
        %9409 = vmatprep.subr.bf16.mxu0 %v7485
        %9410 = vmatpush1.bf16.msra.mxu0 %v7484
        %9411 = vmatprep.subr.bf16.mxu0 %v7489
        %9412 = vmatpush1.bf16.msra.mxu0 %v7488
        %9413 = vmatprep.subr.bf16.mxu0 %v7493
        %9414 = vmatpush1.bf16.msra.mxu0 %v7492
        %9415 = vmatprep.subr.bf16.mxu0 %v7497
        %9416 = vmatpush1.bf16.msra.mxu0 %v7496
        %9417 = vmatprep.subr.bf16.mxu0 %v7501
        %9418 = vmatpush1.bf16.msra.mxu0 %v7500
        %9419 = vmatprep.subr.bf16.mxu0 %v7505
        %9420 = vmatpush1.bf16.msra.mxu0 %v7504
        %9421 = vmatprep.subr.bf16.mxu0 %v7509
        %9422 = vmatpush1.bf16.msra.mxu0 %v7508
        %9423 = vmatprep.subr.bf16.mxu0 %v7513
        %9424 = vmatpush1.bf16.msra.mxu0 %v7512
        %9425 = vmatprep.subr.bf16.mxu0 %v7517
        %9426 = vmatpush1.bf16.msra.mxu0 %v7516
        %9427 = vmatprep.mubr.bf16.mxu0 %v3797
        %9428 = vmatmul.mubr.bf16.gmra.mrb[0].mxu0 %v3796
        %v9429 = vpop.f32.mrb[0].mxu0
        %v9430 = vadd.f32 %v9389, %v9429
        %v9431 = vpop.f32.mrb[0].mxu0
        %v9432 = vadd.f32 %v9391, %v9431
        %v9433 = vpop.f32.mrb[0].mxu0
        %v9434 = vpop.f32.mrb[0].mxu0
        %9435 = vdwg.mxu0
        %9436 = vmatprep.subr.bf16.mxu0 %v7521
        %9437 = vmatpush1.bf16.msra.mxu0 %v7520
        %9438 = vmatprep.subr.bf16.mxu0 %v7525
        %9439 = vmatpush1.bf16.msra.mxu0 %v7524
        %9440 = vmatprep.subr.bf16.mxu0 %v7529
        %9441 = vmatpush1.bf16.msra.mxu0 %v7528
        %9442 = vmatprep.subr.bf16.mxu0 %v7533
        %9443 = vmatpush1.bf16.msra.mxu0 %v7532
        %9444 = vmatprep.subr.bf16.mxu0 %v7537
        %9445 = vmatpush1.bf16.msra.mxu0 %v7536
        %9446 = vmatprep.subr.bf16.mxu0 %v7541
        %9447 = vmatpush1.bf16.msra.mxu0 %v7540
        %9448 = vmatprep.subr.bf16.mxu0 %v7545
        %9449 = vmatpush1.bf16.msra.mxu0 %v7544
        %9450 = vmatprep.subr.bf16.mxu0 %v7549
        %9451 = vmatpush1.bf16.msra.mxu0 %v7548
        %9452 = vmatprep.subr.bf16.mxu0 %v7553
        %9453 = vmatpush1.bf16.msra.mxu0 %v7552
        %9454 = vmatprep.subr.bf16.mxu0 %v7557
        %9455 = vmatpush1.bf16.msra.mxu0 %v7556
        %9456 = vmatprep.subr.bf16.mxu0 %v7561
        %9457 = vmatpush1.bf16.msra.mxu0 %v7560
        %9458 = vmatprep.subr.bf16.mxu0 %v7565
        %9459 = vmatpush1.bf16.msra.mxu0 %v7564
        %9460 = vmatprep.subr.bf16.mxu0 %v7569
        %9461 = vmatpush1.bf16.msra.mxu0 %v7568
        %9462 = vmatprep.subr.bf16.mxu0 %v7573
        %9463 = vmatpush1.bf16.msra.mxu0 %v7572
        %9464 = vmatprep.subr.bf16.mxu0 %v7577
        %9465 = vmatpush1.bf16.msra.mxu0 %v7576
        %9466 = vmatprep.subr.bf16.mxu0 %v7581
        %9467 = vmatpush1.bf16.msra.mxu0 %v7580
        %9468 = vmatprep.mubr.bf16.mxu0 %v3799
        %9469 = vmatmul.mubr.bf16.gmra.mrb[0].mxu0 %v3798
        %v9470 = vpop.f32.mrb[0].mxu0
        %v9471 = vadd.f32 %v9430, %v9470
        %v9472 = vpop.f32.mrb[0].mxu0
        %v9473 = vadd.f32 %v9432, %v9472
        %v9474 = vpop.f32.mrb[0].mxu0
        %v9475 = vpop.f32.mrb[0].mxu0
        %9476 = vdwg.mxu0
        %9477 = vmatprep.subr.bf16.mxu0 %v7585
        %9478 = vmatpush1.bf16.msra.mxu0 %v7584
        %9479 = vmatprep.subr.bf16.mxu0 %v7589
        %9480 = vmatpush1.bf16.msra.mxu0 %v7588
        %9481 = vmatprep.subr.bf16.mxu0 %v7593
        %9482 = vmatpush1.bf16.msra.mxu0 %v7592
        %9483 = vmatprep.subr.bf16.mxu0 %v7597
        %9484 = vmatpush1.bf16.msra.mxu0 %v7596
        %9485 = vmatprep.subr.bf16.mxu0 %v7601
        %9486 = vmatpush1.bf16.msra.mxu0 %v7600
        %9487 = vmatprep.subr.bf16.mxu0 %v7605
        %9488 = vmatpush1.bf16.msra.mxu0 %v7604
        %9489 = vmatprep.subr.bf16.mxu0 %v7609
        %9490 = vmatpush1.bf16.msra.mxu0 %v7608
        %9491 = vmatprep.subr.bf16.mxu0 %v7613
        %9492 = vmatpush1.bf16.msra.mxu0 %v7612
        %9493 = vmatprep.subr.bf16.mxu0 %v7617
        %9494 = vmatpush1.bf16.msra.mxu0 %v7616
        %9495 = vmatprep.subr.bf16.mxu0 %v7621
        %9496 = vmatpush1.bf16.msra.mxu0 %v7620
        %9497 = vmatprep.subr.bf16.mxu0 %v7625
        %9498 = vmatpush1.bf16.msra.mxu0 %v7624
        %9499 = vmatprep.subr.bf16.mxu0 %v7629
        %9500 = vmatpush1.bf16.msra.mxu0 %v7628
        %9501 = vmatprep.subr.bf16.mxu0 %v7633
        %9502 = vmatpush1.bf16.msra.mxu0 %v7632
        %9503 = vmatprep.subr.bf16.mxu0 %v7637
        %9504 = vmatpush1.bf16.msra.mxu0 %v7636
        %9505 = vmatprep.subr.bf16.mxu0 %v7641
        %9506 = vmatpush1.bf16.msra.mxu0 %v7640
        %9507 = vmatprep.subr.bf16.mxu0 %v7645
        %9508 = vmatpush1.bf16.msra.mxu0 %v7644
        %9509 = vmatprep.mubr.bf16.mxu0 %v3801
        %9510 = vmatmul.mubr.bf16.gmra.mrb[0].mxu0 %v3800
        %v9511 = vpop.f32.mrb[0].mxu0
        %v9512 = vadd.f32 %v9471, %v9511
        %v9513 = vpop.f32.mrb[0].mxu0
        %v9514 = vadd.f32 %v9473, %v9513
        %v9515 = vpop.f32.mrb[0].mxu0
        %v9516 = vpop.f32.mrb[0].mxu0
        %9517 = vdwg.mxu0
        %9518 = vmatprep.subr.bf16.mxu0 %v7649
        %9519 = vmatpush1.bf16.msra.mxu0 %v7648
        %9520 = vmatprep.subr.bf16.mxu0 %v7653
        %9521 = vmatpush1.bf16.msra.mxu0 %v7652
        %9522 = vmatprep.subr.bf16.mxu0 %v7657
        %9523 = vmatpush1.bf16.msra.mxu0 %v7656
        %9524 = vmatprep.subr.bf16.mxu0 %v7661
        %9525 = vmatpush1.bf16.msra.mxu0 %v7660
        %9526 = vmatprep.subr.bf16.mxu0 %v7665
        %9527 = vmatpush1.bf16.msra.mxu0 %v7664
        %9528 = vmatprep.subr.bf16.mxu0 %v7669
        %9529 = vmatpush1.bf16.msra.mxu0 %v7668
        %9530 = vmatprep.subr.bf16.mxu0 %v7673
        %9531 = vmatpush1.bf16.msra.mxu0 %v7672
        %9532 = vmatprep.subr.bf16.mxu0 %v7677
        %9533 = vmatpush1.bf16.msra.mxu0 %v7676
        %9534 = vmatprep.subr.bf16.mxu0 %v7681
        %9535 = vmatpush1.bf16.msra.mxu0 %v7680
        %9536 = vmatprep.subr.bf16.mxu0 %v7685
        %9537 = vmatpush1.bf16.msra.mxu0 %v7684
        %9538 = vmatprep.subr.bf16.mxu0 %v7689
        %9539 = vmatpush1.bf16.msra.mxu0 %v7688
        %9540 = vmatprep.subr.bf16.mxu0 %v7693
        %9541 = vmatpush1.bf16.msra.mxu0 %v7692
        %9542 = vmatprep.subr.bf16.mxu0 %v7697
        %9543 = vmatpush1.bf16.msra.mxu0 %v7696
        %9544 = vmatprep.subr.bf16.mxu0 %v7701
        %9545 = vmatpush1.bf16.msra.mxu0 %v7700
        %9546 = vmatprep.subr.bf16.mxu0 %v7705
        %9547 = vmatpush1.bf16.msra.mxu0 %v7704
        %9548 = vmatprep.subr.bf16.mxu0 %v7709
        %9549 = vmatpush1.bf16.msra.mxu0 %v7708
        %9550 = vmatprep.mubr.bf16.mxu0 %v3803
        %9551 = vmatmul.mubr.bf16.gmra.mrb[0].mxu0 %v3802
        %v9552 = vpop.f32.mrb[0].mxu0
        %v9553 = vadd.f32 %v9512, %v9552
        %v9554 = vpop.f32.mrb[0].mxu0
        %v9555 = vadd.f32 %v9514, %v9554
        %v9556 = vpop.f32.mrb[0].mxu0
        %v9557 = vpop.f32.mrb[0].mxu0
        %9558 = vdwg.mxu0
        %9559 = vmatprep.subr.bf16.mxu0 %v7713
        %9560 = vmatpush1.bf16.msra.mxu0 %v7712
        %9561 = vmatprep.subr.bf16.mxu0 %v7717
        %9562 = vmatpush1.bf16.msra.mxu0 %v7716
        %9563 = vmatprep.subr.bf16.mxu0 %v7721
        %9564 = vmatpush1.bf16.msra.mxu0 %v7720
        %9565 = vmatprep.subr.bf16.mxu0 %v7725
        %9566 = vmatpush1.bf16.msra.mxu0 %v7724
        %9567 = vmatprep.subr.bf16.mxu0 0
        %9568 = vmatpush1.bf16.msra.mxu0 0
        %9569 = vmatprep.subr.bf16.mxu0 0
        %9570 = vmatpush1.bf16.msra.mxu0 0
        %9571 = vmatprep.subr.bf16.mxu0 0
        %9572 = vmatpush1.bf16.msra.mxu0 0
        %9573 = vmatprep.subr.bf16.mxu0 0
        %9574 = vmatpush1.bf16.msra.mxu0 0
        %9575 = vmatprep.subr.bf16.mxu0 0
        %9576 = vmatpush1.bf16.msra.mxu0 0
        %9577 = vmatprep.subr.bf16.mxu0 0
        %9578 = vmatpush1.bf16.msra.mxu0 0
        %9579 = vmatprep.subr.bf16.mxu0 0
        %9580 = vmatpush1.bf16.msra.mxu0 0
        %9581 = vmatprep.subr.bf16.mxu0 0
        %9582 = vmatpush1.bf16.msra.mxu0 0
        %9583 = vmatprep.subr.bf16.mxu0 0
        %9584 = vmatpush1.bf16.msra.mxu0 0
        %9585 = vmatprep.subr.bf16.mxu0 0
        %9586 = vmatpush1.bf16.msra.mxu0 0
        %9587 = vmatprep.subr.bf16.mxu0 0
        %9588 = vmatpush1.bf16.msra.mxu0 0
        %9589 = vmatprep.subr.bf16.mxu0 0
        %9590 = vmatpush1.bf16.msra.mxu0 0
        %9591 = vmatprep.mubr.bf16.mxu0 0
        %9592 = vmatmul.mubr.bf16.gmra.mrb[0].mxu0 %v8532
        %v9593 = vpop.f32.mrb[0].mxu0
        %v9594 = vadd.f32 %v9553, %v9593
        %v9595 = vpop.f32.mrb[0].mxu0
        %v9596 = vadd.f32 %v9555, %v9595
        %v9597 = vpop.f32.mrb[0].mxu0
        %v9598 = vpop.f32.mrb[0].mxu0
        %9599 = vdwg.mxu0
        %v9600 = vmax.f32 %v9061, 0.0
        %v9601 = vmax.f32 %v9063, 0.0
        %v9602 = vmax.f32 %v9594, 0.0
        %v9603 = vmax.f32 %v9596, 0.0
        %v9604 = vld [vmem:[%s9] sm:$0xff]
        %v9605 = vld [vmem:[%s9 + $0x8] sm:$0xff]
        %v9606 = vld [vmem:[%s9 + $0x10] sm:$0xff]
        %v9607 = vld [vmem:[%s9 + $0x18] sm:$0xff]
        %v9608 = vld [vmem:[%s9 + $0x20] sm:$0xff]
        %v9609 = vld [vmem:[%s9 + $0x28] sm:$0xff]
        %v9610 = vld [vmem:[%s9 + $0x30] sm:$0xff]
        %v9611 = vld [vmem:[%s9 + $0x38] sm:$0xff]
        %v9612 = vld [vmem:[%s9 + $0x40] sm:$0xff]
        %v9613 = vld [vmem:[%s9 + $0x48] sm:$0xff]
        %v9614 = vld [vmem:[%s9 + $0x50] sm:$0xff]
        %v9615 = vld [vmem:[%s9 + $0x58] sm:$0xff]
        %v9616 = vld [vmem:[%s9 + $0x60] sm:$0xff]
        %v9617 = vld [vmem:[%s9 + $0x68] sm:$0xff]
        %v9618 = vld [vmem:[%s9 + $0x70] sm:$0xff]
        %v9619 = vld [vmem:[%s9 + $0x78] sm:$0xff]
        %v9620 = vld [vmem:[%s9 + $0x80] sm:$0xff]
        %v9621 = vld [vmem:[%s9 + $0x88] sm:$0xff]
        %v9622 = vld [vmem:[%s9 + $0x90] sm:$0xff]
        %v9623 = vld [vmem:[%s9 + $0x98] sm:$0xff]
        %v9624 = vld [vmem:[%s9 + $0xa0] sm:$0xff]
        %v9625 = vld [vmem:[%s9 + $0xa8] sm:$0xff]
        %v9626 = vld [vmem:[%s9 + $0xb0] sm:$0xff]
        %v9627 = vld [vmem:[%s9 + $0xb8] sm:$0xff]
        %v9628 = vld [vmem:[%s9 + $0xc0] sm:$0xff]
        %v9629 = vld [vmem:[%s9 + $0xc8] sm:$0xff]
        %v9630 = vld [vmem:[%s9 + $0xd0] sm:$0xff]
        %v9631 = vld [vmem:[%s9 + $0xd8] sm:$0xff]
        %v9632 = vld [vmem:[%s9 + $0xe0] sm:$0xff]
        %v9633 = vld [vmem:[%s9 + $0xe8] sm:$0xff]
        %v9634 = vld [vmem:[%s9 + $0xf0] sm:$0xff]
        %v9635 = vld [vmem:[%s9 + $0xf8] sm:$0xff]
        %v9636 = vld [vmem:[%s9 + $0x100] sm:$0xff]
        %v9637 = vld [vmem:[%s9 + $0x108] sm:$0xff]
        %v9638 = vld [vmem:[%s9 + $0x110] sm:$0xff]
        %v9639 = vld [vmem:[%s9 + $0x118] sm:$0xff]
        %v9640 = vld [vmem:[%s9 + $0x120] sm:$0xff]
        %v9641 = vld [vmem:[%s9 + $0x128] sm:$0xff]
        %v9642 = vld [vmem:[%s9 + $0x130] sm:$0xff]
        %v9643 = vld [vmem:[%s9 + $0x138] sm:$0xff]
        %v9644 = vld [vmem:[%s9 + $0x140] sm:$0xff]
        %v9645 = vld [vmem:[%s9 + $0x148] sm:$0xff]
        %v9646 = vld [vmem:[%s9 + $0x150] sm:$0xff]
        %v9647 = vld [vmem:[%s9 + $0x158] sm:$0xff]
        %v9648 = vld [vmem:[%s9 + $0x160] sm:$0xff]
        %v9649 = vld [vmem:[%s9 + $0x168] sm:$0xff]
        %v9650 = vld [vmem:[%s9 + $0x170] sm:$0xff]
        %v9651 = vld [vmem:[%s9 + $0x178] sm:$0xff]
        %v9652 = vld [vmem:[%s9 + $0x180] sm:$0xff]
        %v9653 = vld [vmem:[%s9 + $0x188] sm:$0xff]
        %v9654 = vld [vmem:[%s9 + $0x190] sm:$0xff]
        %v9655 = vld [vmem:[%s9 + $0x198] sm:$0xff]
        %v9656 = vld [vmem:[%s9 + $0x1a0] sm:$0xff]
        %v9657 = vld [vmem:[%s9 + $0x1a8] sm:$0xff]
        %v9658 = vld [vmem:[%s9 + $0x1b0] sm:$0xff]
        %v9659 = vld [vmem:[%s9 + $0x1b8] sm:$0xff]
        %v9660 = vld [vmem:[%s9 + $0x1c0] sm:$0xff]
        %v9661 = vld [vmem:[%s9 + $0x1c8] sm:$0xff]
        %v9662 = vld [vmem:[%s9 + $0x1d0] sm:$0xff]
        %v9663 = vld [vmem:[%s9 + $0x1d8] sm:$0xff]
        %v9664 = vld [vmem:[%s9 + $0x1e0] sm:$0xff]
        %v9665 = vld [vmem:[%s9 + $0x1e8] sm:$0xff]
        %v9666 = vld [vmem:[%s9 + $0x1f0] sm:$0xff]
        %v9667 = vld [vmem:[%s9 + $0x1f8] sm:$0xff]
        %v9668 = vld [vmem:[%s10] sm:$0x1]
        %9669 = vmatprep.subr.mxu0 0.0
        %9670 = vmatpush1.msra.mxu0 %v9604
        %9671 = vmatprep.subr.mxu0 0.0
        %9672 = vmatpush1.msra.mxu0 %v9605
        %9673 = vmatprep.subr.mxu0 0.0
        %9674 = vmatpush1.msra.mxu0 %v9606
        %9675 = vmatprep.subr.mxu0 0.0
        %9676 = vmatpush1.msra.mxu0 %v9607
        %9677 = vmatprep.subr.mxu0 0.0
        %9678 = vmatpush1.msra.mxu0 %v9608
        %9679 = vmatprep.subr.mxu0 0.0
        %9680 = vmatpush1.msra.mxu0 %v9609
        %9681 = vmatprep.subr.mxu0 0.0
        %9682 = vmatpush1.msra.mxu0 %v9610
        %9683 = vmatprep.subr.mxu0 0.0
        %9684 = vmatpush1.msra.mxu0 %v9611
        %9685 = vmatprep.subr.mxu0 0.0
        %9686 = vmatpush1.msra.mxu0 %v9612
        %9687 = vmatprep.subr.mxu0 0.0
        %9688 = vmatpush1.msra.mxu0 %v9613
        %9689 = vmatprep.subr.mxu0 0.0
        %9690 = vmatpush1.msra.mxu0 %v9614
        %9691 = vmatprep.subr.mxu0 0.0
        %9692 = vmatpush1.msra.mxu0 %v9615
        %9693 = vmatprep.subr.mxu0 0.0
        %9694 = vmatpush1.msra.mxu0 %v9616
        %9695 = vmatprep.subr.mxu0 0.0
        %9696 = vmatpush1.msra.mxu0 %v9617
        %9697 = vmatprep.subr.mxu0 0.0
        %9698 = vmatpush1.msra.mxu0 %v9618
        %9699 = vmatprep.subr.mxu0 0.0
        %9700 = vmatpush1.msra.mxu0 %v9619
        %9701 = vmatprep.subr.mxu0 0.0
        %9702 = vmatpush1.msra.mxu0 %v9620
        %9703 = vmatprep.subr.mxu0 0.0
        %9704 = vmatpush1.msra.mxu0 %v9621
        %9705 = vmatprep.subr.mxu0 0.0
        %9706 = vmatpush1.msra.mxu0 %v9622
        %9707 = vmatprep.subr.mxu0 0.0
        %9708 = vmatpush1.msra.mxu0 %v9623
        %9709 = vmatprep.subr.mxu0 0.0
        %9710 = vmatpush1.msra.mxu0 %v9624
        %9711 = vmatprep.subr.mxu0 0.0
        %9712 = vmatpush1.msra.mxu0 %v9625
        %9713 = vmatprep.subr.mxu0 0.0
        %9714 = vmatpush1.msra.mxu0 %v9626
        %9715 = vmatprep.subr.mxu0 0.0
        %9716 = vmatpush1.msra.mxu0 %v9627
        %9717 = vmatprep.subr.mxu0 0.0
        %9718 = vmatpush1.msra.mxu0 %v9628
        %9719 = vmatprep.subr.mxu0 0.0
        %9720 = vmatpush1.msra.mxu0 %v9629
        %9721 = vmatprep.subr.mxu0 0.0
        %9722 = vmatpush1.msra.mxu0 %v9630
        %9723 = vmatprep.subr.mxu0 0.0
        %9724 = vmatpush1.msra.mxu0 %v9631
        %9725 = vmatprep.subr.mxu0 0.0
        %9726 = vmatpush1.msra.mxu0 %v9632
        %9727 = vmatprep.subr.mxu0 0.0
        %9728 = vmatpush1.msra.mxu0 %v9633
        %9729 = vmatprep.subr.mxu0 0.0
        %9730 = vmatpush1.msra.mxu0 %v9634
        %9731 = vmatprep.subr.mxu0 0.0
        %9732 = vmatpush1.msra.mxu0 %v9635
        %9733 = vmatprep.mubr.f32.mxu0 %v9601
        %9734 = vmatmul.mubr.f32.gmra.mrb[0].mxu0 %v9600
        %v9735 = vpop.f32.mrb[0].mxu0
        %v9736 = vadd.f32 %v9668, %v9735
        %v9737 = vpop.f32.mrb[0].mxu0
        %9738 = vdwg.mxu0
        %9739 = vmatprep.subr.mxu0 0.0
        %9740 = vmatpush1.msra.mxu0 %v9636
        %9741 = vmatprep.subr.mxu0 0.0
        %9742 = vmatpush1.msra.mxu0 %v9637
        %9743 = vmatprep.subr.mxu0 0.0
        %9744 = vmatpush1.msra.mxu0 %v9638
        %9745 = vmatprep.subr.mxu0 0.0
        %9746 = vmatpush1.msra.mxu0 %v9639
        %9747 = vmatprep.subr.mxu0 0.0
        %9748 = vmatpush1.msra.mxu0 %v9640
        %9749 = vmatprep.subr.mxu0 0.0
        %9750 = vmatpush1.msra.mxu0 %v9641
        %9751 = vmatprep.subr.mxu0 0.0
        %9752 = vmatpush1.msra.mxu0 %v9642
        %9753 = vmatprep.subr.mxu0 0.0
        %9754 = vmatpush1.msra.mxu0 %v9643
        %9755 = vmatprep.subr.mxu0 0.0
        %9756 = vmatpush1.msra.mxu0 %v9644
        %9757 = vmatprep.subr.mxu0 0.0
        %9758 = vmatpush1.msra.mxu0 %v9645
        %9759 = vmatprep.subr.mxu0 0.0
        %9760 = vmatpush1.msra.mxu0 %v9646
        %9761 = vmatprep.subr.mxu0 0.0
        %9762 = vmatpush1.msra.mxu0 %v9647
        %9763 = vmatprep.subr.mxu0 0.0
        %9764 = vmatpush1.msra.mxu0 %v9648
        %9765 = vmatprep.subr.mxu0 0.0
        %9766 = vmatpush1.msra.mxu0 %v9649
        %9767 = vmatprep.subr.mxu0 0.0
        %9768 = vmatpush1.msra.mxu0 %v9650
        %9769 = vmatprep.subr.mxu0 0.0
        %9770 = vmatpush1.msra.mxu0 %v9651
        %9771 = vmatprep.subr.mxu0 0.0
        %9772 = vmatpush1.msra.mxu0 %v9652
        %9773 = vmatprep.subr.mxu0 0.0
        %9774 = vmatpush1.msra.mxu0 %v9653
        %9775 = vmatprep.subr.mxu0 0.0
        %9776 = vmatpush1.msra.mxu0 %v9654
        %9777 = vmatprep.subr.mxu0 0.0
        %9778 = vmatpush1.msra.mxu0 %v9655
        %9779 = vmatprep.subr.mxu0 0.0
        %9780 = vmatpush1.msra.mxu0 %v9656
        %9781 = vmatprep.subr.mxu0 0.0
        %9782 = vmatpush1.msra.mxu0 %v9657
        %9783 = vmatprep.subr.mxu0 0.0
        %9784 = vmatpush1.msra.mxu0 %v9658
        %9785 = vmatprep.subr.mxu0 0.0
        %9786 = vmatpush1.msra.mxu0 %v9659
        %9787 = vmatprep.subr.mxu0 0.0
        %9788 = vmatpush1.msra.mxu0 %v9660
        %9789 = vmatprep.subr.mxu0 0.0
        %9790 = vmatpush1.msra.mxu0 %v9661
        %9791 = vmatprep.subr.mxu0 0.0
        %9792 = vmatpush1.msra.mxu0 %v9662
        %9793 = vmatprep.subr.mxu0 0.0
        %9794 = vmatpush1.msra.mxu0 %v9663
        %9795 = vmatprep.subr.mxu0 0.0
        %9796 = vmatpush1.msra.mxu0 %v9664
        %9797 = vmatprep.subr.mxu0 0.0
        %9798 = vmatpush1.msra.mxu0 %v9665
        %9799 = vmatprep.subr.mxu0 0.0
        %9800 = vmatpush1.msra.mxu0 %v9666
        %9801 = vmatprep.subr.mxu0 0.0
        %9802 = vmatpush1.msra.mxu0 %v9667
        %9803 = vmatprep.mubr.f32.mxu0 %v9603
        %9804 = vmatmul.mubr.f32.gmra.mrb[0].mxu0 %v9602
        %v9805 = vpop.f32.mrb[0].mxu0
        %v9806 = vadd.f32 %v9736, %v9805
        %v9807 = vpop.f32.mrb[0].mxu0
        %9808 = vdwg.mxu0
        %9809 = vst [vmem:[%s378] sm:$0x1] %v9806
        %s9810 = sand.u32 %s269, 1
        %s9811 = scalar_lea.sflag [#allocation9], %s9810
        %s9812 = sand.u32 %s269, 1
        %s9813 = scalar_lea.vmem [#allocation8], %s9812
        // Predicated region
        $region65: #{qnetwork_forward.1} parent=63 // pred_check
          %p9814 = pneg %p279
        $region66: #{qnetwork_forward.1} parent=63 // pred_check_branch
          %9816 = sbr.rel (%p9814) target = $region68
        $region67: #{qnetwork_forward.1} parent=63 // pred_region
          %s9818 = ssub.s32 16, 16
          %9819 = vsyncadd %s9811, %s9818
          %s9820 = smul.addr %s25, 16
          %s9821 = scalar_lea.hbm %s11, %s9820
          %s9823 = sshll.u32 %s9813, 4
          %s9824 = int_to_ptr.vmem [resolvable:$true] %s9823
          %9826 = dma.vmem_to_hbm [thread:$0]  %s9824, 16, %s9821, %s9811
        $region68: #{qnetwork_forward.1} parent=63 // pred_fallthru
          _
      $region64: #{qnetwork_forward.1} parent=5 // pred_fallthru
        _
      %p9827 = scmp.le.s32.totalorder 2, %s20
      // Predicated region
      $region69: #{qnetwork_forward.1} parent=5 // pred_check
        %p9828 = pneg %p9827
      $region70: #{qnetwork_forward.1} parent=5 // pred_check_branch
        %9830 = sbr.rel (%p9828) target = $region72
      $region71: #{qnetwork_forward.1} parent=5 // pred_region
        %s9831 = ssub.s32 %s20, 2
        // Predicated region
        $region73: #{qnetwork_forward.1} parent=71 // pred_check
          %p9832 = pneg %p285
        $region74: #{qnetwork_forward.1} parent=71 // pred_check_branch
          %9834 = sbr.rel (%p9832) target = $region76
        $region75: #{qnetwork_forward.1} parent=71 // pred_region
          %s9835 = sand.u32 %s270, 1
          %s9836 = scalar_lea.sflag [#allocation9], %s9835
          %s9837 = sand.u32 %s270, 1
          %s9838 = scalar_lea.vmem [#allocation8], %s9837
          %9839 = dma.done %s9836, 16
        $region76: #{qnetwork_forward.1} parent=71 // pred_fallthru
          _
      $region72: #{qnetwork_forward.1} parent=5 // pred_fallthru
        _
    $region6: #{qnetwork_forward.1} parent=1 // loop_footer
      %s24 = sadd.s32 1, %s20
    $region7: #{qnetwork_forward.1} parent=1 // loop_footer_branch
      %19 = sbr.rel target = $region3
    $region8: #{qnetwork_forward.1} parent=1 // loop_exit
      _
    %9840 = vsyncpa [#allocation9], 1
    %s9841 = scalar_lea.sflag [#allocation9], 1
    %9842 = vsyncpa %s9841, 1

</llo_original>
